<compile_context>
chip_gen: v6e
topology: v6e:2x2x1
jax: 0.10.0
libtpu: 0.0.40
codegen_flags: <defaults>
</compile_context>

<pallas_src>
import numpy as np
import jax
import jax.numpy as jnp
from jax.experimental import pallas as pl
from jax.experimental.pallas import tpu as pltpu


LEAKY_SLOPE = 0.2

# Row/tap offsets for the flattened (pixels, channels) layouts (32x32 input).
_CONV2_OFFS = tuple(di * 16 + dj for di in range(3) for dj in range(3))  # W=16
_CONV3_OFFS = tuple(di * 9 + dj for di in range(3) for dj in range(3))   # W=9
_CONV4_OFFS = tuple(di * 5 + dj for di in range(3) for dj in range(3))   # W=5

_PARAM_ORDER = ("w1", "b1", "w2", "b2", "s2", "w3", "b3", "s3",
                "w4", "b4", "wl", "bl", "ws", "bs")


def _leaky(z):
    return jnp.where(z >= 0, z, z * LEAKY_SLOPE)


def _tap_stack(a, offs, length):
    """Stack the 9 row-shifted tap windows of a (pixels, Cin) activation along
    the contraction dim -> (length, 9*Cin) bf16 operand for one MXU matmul.
    Only used when Cin is a multiple of 128 (lane-tile aligned concat)."""
    return jnp.concatenate(
        [a[o:o + length, :].astype(jnp.bfloat16) for o in offs], axis=1)


def _convnet_kernel(x1_ref, w1_ref, b1_ref, w2_ref, b2_ref, s2_ref,
                    w3_ref, b3_ref, s3_ref, w4_ref, b4_ref,
                    wl_ref, bl_ref, ws_ref, bs_ref,
                    out_last_ref, out_second_ref):
    f32 = jnp.float32
    bf16 = jnp.bfloat16

    # ---- conv1 block: one (1024,32)@(32,128) matmul over pool-ordered
    # patches.  Row n = q*256 + (hq*16+wq) is the conv output at pixel
    # (2hq+dr, 2wq+dc) with q=2*dr+dc, so MaxPool2d(2) is a max over four
    # aligned 256-row slices and every surviving row is a valid pixel.
    y1 = jnp.dot(x1_ref[0], w1_ref[...], preferred_element_type=f32)
    p1 = jnp.maximum(jnp.maximum(y1[0:256], y1[256:512]),
                     jnp.maximum(y1[512:768], y1[768:1024]))      # (256, 128)
    a1 = _leaky(p1 + b1_ref[...])            # 16x16 raster (W=16), f32

    # ---- conv2 block (no padding): 14x14 conv -> 7x7 pool.  K = 9*128.
    x2 = _tap_stack(a1, _CONV2_OFFS, 222)                          # (222, 1152)
    y2 = jnp.dot(x2, w2_ref[...], preferred_element_type=f32)      # (222, 192)
    m2 = jnp.maximum(jnp.maximum(y2[0:205], y2[1:206]),
                     jnp.maximum(y2[16:221], y2[17:222]))          # (205, 192)
    a2 = _leaky(m2 + b2_ref[...])
    # Scatter the 49 valid pooled pixels into conv3's zero-padded 9x9 layout
    # (0/1 matrix: exact gather, exact zero padding, drops garbage rows).
    a2p = jnp.dot(s2_ref[...], a2.astype(bf16),
                  preferred_element_type=f32)                      # (88, 192)

    # ---- conv3 block (padding=1 baked into layout): 7x7 conv -> 3x3 pool.
    # Cin=192 is not a lane-tile multiple, so accumulate the 9 taps as
    # value-level matmuls (chained through the MXU result path, no scratch).
    cin3 = w3_ref.shape[0] // 9
    y3 = None
    for t, o in enumerate(_CONV3_OFFS):
        piece = a2p[o:o + 61, :].astype(bf16)
        part = jnp.dot(piece, w3_ref[t * cin3:(t + 1) * cin3, :],
                       preferred_element_type=f32)                 # (61, 256)
        y3 = part if y3 is None else y3 + part
    m3 = jnp.maximum(jnp.maximum(y3[0:41], y3[1:42]),
                     jnp.maximum(y3[9:50], y3[10:51]))             # (41, 256)
    a3 = _leaky(m3 + b3_ref[...])
    # TODO(synk): Dropout2d(0.4) is an inference-mode identity (not modeled).

    # output_data0 = MaxPool2d(2)(out_3): max of pooled pixels (0,0),(0,1),
    # (1,0),(1,1), which live at rows {0, 2, 18, 20} of the 41-row layout.
    f_second = jnp.maximum(jnp.maximum(a3[0:1], a3[2:3]),
                           jnp.maximum(a3[18:19], a3[20:21]))      # (1, 256)

    a3p = jnp.dot(s3_ref[...], a3.astype(bf16),
                  preferred_element_type=f32)                      # (32, 256)

    # ---- conv4 block (padding=1 baked into layout): 3x3 conv -> 1x1 pool.
    x4 = _tap_stack(a3p, _CONV4_OFFS, 13)                          # (13, 2304)
    y4 = jnp.dot(x4, w4_ref[...], preferred_element_type=f32)      # (13, 512)
    m4 = jnp.maximum(jnp.maximum(y4[0:1], y4[1:2]),
                     jnp.maximum(y4[5:6], y4[6:7]))                # (1, 512)
    f_last = _leaky(m4 + b4_ref[...])
    # TODO(synk): Dropout2d(0.5) is an inference-mode identity (not modeled).

    # ---- heads: Linear + BatchNorm1d (running stats folded into w/b).
    out_last_ref[0] = (jnp.dot(f_last.astype(bf16), wl_ref[...],
                               preferred_element_type=f32) + bl_ref[...])
    out_second_ref[0] = (jnp.dot(f_second.astype(bf16), ws_ref[...],
                                 preferred_element_type=f32) + bs_ref[...])


# ----------------------------------------------------------------------------
# Parameter / constant construction (BN folded, weights in kernel layout).
# ----------------------------------------------------------------------------
def conv_bn_params(key, cin, cout, eps=1e-5):
    """Conv3x3 (no bias) + BatchNorm2d folded for inference.  Returns the
    tap-stacked weight (9*cin, cout), row = (3*di+dj)*cin + ci, and the
    per-channel bias (1, cout)."""
    kw, kg, kb, km, kv = jax.random.split(key, 5)
    w = 0.05 * jax.random.normal(kw, (cout, cin, 3, 3), jnp.float32)
    gamma = 1.0 + 0.1 * jax.random.normal(kg, (cout,), jnp.float32)
    beta = 0.1 * jax.random.normal(kb, (cout,), jnp.float32)
    mean = 0.1 * jax.random.normal(km, (cout,), jnp.float32)
    var = 0.5 + jax.random.uniform(kv, (cout,), jnp.float32)
    scale = gamma / jnp.sqrt(var + eps)                 # inference-mode BN
    bias = beta - mean * scale
    w = w * scale[:, None, None, None]                  # fold BN scale into conv
    ws = jnp.transpose(w, (2, 3, 1, 0)).reshape(9 * cin, cout)
    return ws.astype(jnp.bfloat16), bias[None, :].astype(jnp.float32)


def linear_bn_params(key, fin, fout, eps=1e-5):
    """Linear + BatchNorm1d folded for inference -> (fin, fout) weight and
    (1, fout) bias."""
    kw, kb, kg, kbb, km, kv = jax.random.split(key, 6)
    w = 0.05 * jax.random.normal(kw, (fout, fin), jnp.float32)
    b = 0.05 * jax.random.normal(kb, (fout,), jnp.float32)
    gamma = 1.0 + 0.1 * jax.random.normal(kg, (fout,), jnp.float32)
    beta = 0.1 * jax.random.normal(kbb, (fout,), jnp.float32)
    mean = 0.1 * jax.random.normal(km, (fout,), jnp.float32)
    var = 0.5 + jax.random.uniform(kv, (fout,), jnp.float32)
    s = gamma / jnp.sqrt(var + eps)
    w_eff = w.T * s[None, :]
    bias_eff = (b - mean) * s + beta
    return w_eff.astype(jnp.bfloat16), bias_eff[None, :].astype(jnp.float32)


def make_scatter(n, in_stride, out_w, out_rows, in_cols):
    """0/1 matrix scattering the n*n valid pooled pixels (pooled-layout row
    2*h*in_stride + 2*w) into the next conv's zero-padded out_w x out_w plane
    (row (h+1)*out_w + (w+1)); all other rows/columns stay exactly zero."""
    sel = np.zeros((out_rows, in_cols), np.float32)
    for h in range(n):
        for w in range(n):
            sel[(h + 1) * out_w + (w + 1), 2 * h * in_stride + 2 * w] = 1.0
    return jnp.asarray(sel, jnp.bfloat16)


def build_params(key, hidden=128, emb_size=128, cifar_flag=True):
    assert cifar_flag, "only the cifar_flag=True (32x32) geometry is supported"
    last_hidden = hidden
    c1, c2, c3, c4 = hidden, int(hidden * 1.5), hidden * 2, hidden * 4
    k1, k2, k3, k4, k5, k6 = jax.random.split(key, 6)
    w1, b1 = conv_bn_params(k1, 3, c1)                    # (27, 128)
    w1 = jnp.pad(w1, ((0, 5), (0, 0)))                    # patch dim 27 -> 32
    w2, b2 = conv_bn_params(k2, c1, c2)                   # (1152, 192)
    w3, b3 = conv_bn_params(k3, c2, c3)                   # (1728, 256)
    w4, b4 = conv_bn_params(k4, c3, c4)                   # (2304, 512)
    s2 = make_scatter(7, 16, 9, 88, 205)                  # conv2 pool -> conv3 in
    s3 = make_scatter(3, 9, 5, 32, 41)                    # conv3 pool -> conv4 in
    wl, bl = linear_bn_params(k5, last_hidden * 4, emb_size)   # layer_last
    ws, bs = linear_bn_params(k6, last_hidden * 2, emb_size)   # layer_second
    return dict(w1=w1, b1=b1, w2=w2, b2=b2, s2=s2, w3=w3, b3=b3, s3=s3,
                w4=w4, b4=b4, wl=wl, bl=bl, ws=ws, bs=bs)


# ----------------------------------------------------------------------------
# Forward pass (matches ConvNet.forward semantics, inference mode).
# ----------------------------------------------------------------------------
def conv1_patches(x_nchw):
    """Pool-window-ordered im2col for conv1 (padding=1) on 32x32 input.
    Column k = (3*di+dj)*3 + c; row n = (2*dr+dc)*256 + hq*16 + wq addresses
    conv output pixel (2*hq+dr, 2*wq+dc).  Pure layout plumbing."""
    B = x_nchw.shape[0]
    xp = jnp.pad(x_nchw, ((0, 0), (0, 0), (1, 1), (1, 1)))          # (B,3,34,34)
    taps = [xp[:, :, di:di + 32, dj:dj + 32]
            for di in range(3) for dj in range(3)]
    pt = jnp.stack(taps, axis=1).reshape(B, 27, 16, 2, 16, 2)       # b,k,hq,dr,wq,dc
    pt = pt.transpose(0, 3, 5, 2, 4, 1).reshape(B, 1024, 27)
    return jnp.pad(pt, ((0, 0), (0, 0), (0, 5))).astype(jnp.bfloat16)


def convnet_forward(x_nchw, params):
    assert x_nchw.shape[1:] == (3, 32, 32), x_nchw.shape
    B = x_nchw.shape[0]
    emb = params["bl"].shape[1]
    x1 = conv1_patches(x_nchw)                                      # (B,1024,32)

    in_specs = [pl.BlockSpec((1, 1024, 32), lambda b: (b, 0, 0))]
    in_specs += [pl.BlockSpec(params[n].shape, lambda b: (0, 0))
                 for n in _PARAM_ORDER]

    out_last, out_second = pl.pallas_call(
        _convnet_kernel,
        out_shape=(jax.ShapeDtypeStruct((B, 1, emb), jnp.float32),
                   jax.ShapeDtypeStruct((B, 1, emb), jnp.float32)),
        grid=(B,),
        in_specs=in_specs,
        out_specs=(pl.BlockSpec((1, 1, emb), lambda b: (b, 0, 0)),
                   pl.BlockSpec((1, 1, emb), lambda b: (b, 0, 0))),
        compiler_params=pltpu.CompilerParams(
            dimension_semantics=("parallel",),
            vmem_limit_bytes=32 * 1024 * 1024),
    )(x1, *(params[n] for n in _PARAM_ORDER))
    return [out_last[:, 0, :], out_second[:, 0, :]]


if __name__ == "__main__":
    hidden = 128            # fixed by the PyTorch module
    emb_size = 128
    cifar_flag = True       # last_hidden = hidden = 128, 32x32 inputs

    key = jax.random.PRNGKey(0)
    k_in, k_params = jax.random.split(key)
    params = build_params(k_params, hidden=hidden, emb_size=emb_size,
                          cifar_flag=cifar_flag)

    # PyTorch-convention NCHW input (B=2, C=3, 32x32).
    x = jax.random.normal(k_in, (2, 3, 32, 32), jnp.float32)

    fwd = jax.jit(lambda inp: convnet_forward(inp, params))
    outs = fwd(x)
    jax.block_until_ready(outs)
    assert outs[0].shape == (2, emb_size), outs[0].shape
    assert outs[1].shape == (2, emb_size), outs[1].shape
    assert all(bool(jnp.all(jnp.isfinite(o))) for o in outs)
    print("KERNEL_OK")
</pallas_src>

<mosaic_0001>
module attributes {stable_mosaic.version = 11 : i64} {
  func.func @_convnet_kernel(%arg0: i32, %arg1: memref<1x1024x32xbf16, #tpu.memory_space<vmem>>, %arg2: memref<32x128xbf16, #tpu.memory_space<vmem>>, %arg3: memref<1x128xf32, #tpu.memory_space<vmem>>, %arg4: memref<1152x192xbf16, #tpu.memory_space<vmem>>, %arg5: memref<1x192xf32, #tpu.memory_space<vmem>>, %arg6: memref<88x205xbf16, #tpu.memory_space<vmem>>, %arg7: memref<1728x256xbf16, #tpu.memory_space<vmem>>, %arg8: memref<1x256xf32, #tpu.memory_space<vmem>>, %arg9: memref<32x41xbf16, #tpu.memory_space<vmem>>, %arg10: memref<2304x512xbf16, #tpu.memory_space<vmem>>, %arg11: memref<1x512xf32, #tpu.memory_space<vmem>>, %arg12: memref<512x128xbf16, #tpu.memory_space<vmem>>, %arg13: memref<1x128xf32, #tpu.memory_space<vmem>>, %arg14: memref<256x128xbf16, #tpu.memory_space<vmem>>, %arg15: memref<1x128xf32, #tpu.memory_space<vmem>>, %arg16: memref<1x1x128xf32, #tpu.memory_space<vmem>>, %arg17: memref<1x1x128xf32, #tpu.memory_space<vmem>>) attributes {dimension_semantics = [#tpu.dimension_semantics<parallel>], iteration_bounds = array<i64: 2>, scalar_prefetch = 0 : i64, scratch_operands = 0 : i64, tpu.core_type = #tpu.core_type<tc>, window_params = [{transform_indices = @transform_0, window_bounds = array<i64: 1, 1024, 32>}, {pipeline_mode = #tpu.pipeline_mode<synchronous>, transform_indices = @transform_1, window_bounds = array<i64: 32, 128>}, {pipeline_mode = #tpu.pipeline_mode<synchronous>, transform_indices = @transform_2, window_bounds = array<i64: 1, 128>}, {pipeline_mode = #tpu.pipeline_mode<synchronous>, transform_indices = @transform_3, window_bounds = array<i64: 1152, 192>}, {pipeline_mode = #tpu.pipeline_mode<synchronous>, transform_indices = @transform_4, window_bounds = array<i64: 1, 192>}, {pipeline_mode = #tpu.pipeline_mode<synchronous>, transform_indices = @transform_5, window_bounds = array<i64: 88, 205>}, {pipeline_mode = #tpu.pipeline_mode<synchronous>, transform_indices = @transform_6, window_bounds = array<i64: 1728, 256>}, {pipeline_mode = #tpu.pipeline_mode<synchronous>, transform_indices = @transform_7, window_bounds = array<i64: 1, 256>}, {pipeline_mode = #tpu.pipeline_mode<synchronous>, transform_indices = @transform_8, window_bounds = array<i64: 32, 41>}, {pipeline_mode = #tpu.pipeline_mode<synchronous>, transform_indices = @transform_9, window_bounds = array<i64: 2304, 512>}, {pipeline_mode = #tpu.pipeline_mode<synchronous>, transform_indices = @transform_10, window_bounds = array<i64: 1, 512>}, {pipeline_mode = #tpu.pipeline_mode<synchronous>, transform_indices = @transform_11, window_bounds = array<i64: 512, 128>}, {pipeline_mode = #tpu.pipeline_mode<synchronous>, transform_indices = @transform_12, window_bounds = array<i64: 1, 128>}, {pipeline_mode = #tpu.pipeline_mode<synchronous>, transform_indices = @transform_13, window_bounds = array<i64: 256, 128>}, {pipeline_mode = #tpu.pipeline_mode<synchronous>, transform_indices = @transform_14, window_bounds = array<i64: 1, 128>}, {transform_indices = @transform_15, window_bounds = array<i64: 1, 1, 128>}, {transform_indices = @transform_16, window_bounds = array<i64: 1, 1, 128>}]} {
    %c0 = arith.constant 0 : index
    %c0_0 = arith.constant 0 : index
    %c0_1 = arith.constant 0 : index
    %0 = vector.load %arg1[%c0, %c0_0, %c0_1] : memref<1x1024x32xbf16, #tpu.memory_space<vmem>>, vector<1x1024x32xbf16>
    %1 = vector.shape_cast %0 : vector<1x1024x32xbf16> to vector<1024x32xbf16>
    %c0_2 = arith.constant 0 : index
    %c0_3 = arith.constant 0 : index
    %2 = vector.load %arg2[%c0_2, %c0_3] : memref<32x128xbf16, #tpu.memory_space<vmem>>, vector<32x128xbf16>
    %cst = arith.constant dense<0.000000e+00> : vector<1024x128xf32>
    %3 = tpu.matmul %1, %2, %cst {dimension_numbers = #tpu.dot_dimension_numbers<[1], [0], [0], [1], [0, 0, 1, 1], [], []>} : vector<1024x32xbf16>, vector<32x128xbf16>, vector<1024x128xf32> -> vector<1024x128xf32>
    %4 = vector.extract_strided_slice %3 {offsets = [0, 0], sizes = [256, 128], strides = [1, 1]} : vector<1024x128xf32> to vector<256x128xf32>
    %5 = vector.extract_strided_slice %3 {offsets = [256, 0], sizes = [256, 128], strides = [1, 1]} : vector<1024x128xf32> to vector<256x128xf32>
    %6 = arith.maximumf %4, %5 : vector<256x128xf32>
    %7 = vector.extract_strided_slice %3 {offsets = [512, 0], sizes = [256, 128], strides = [1, 1]} : vector<1024x128xf32> to vector<256x128xf32>
    %8 = vector.extract_strided_slice %3 {offsets = [768, 0], sizes = [256, 128], strides = [1, 1]} : vector<1024x128xf32> to vector<256x128xf32>
    %9 = arith.maximumf %7, %8 : vector<256x128xf32>
    %10 = arith.maximumf %6, %9 : vector<256x128xf32>
    %c0_4 = arith.constant 0 : index
    %c0_5 = arith.constant 0 : index
    %11 = vector.load %arg3[%c0_4, %c0_5] : memref<1x128xf32, #tpu.memory_space<vmem>>, vector<1x128xf32>
    %12 = vector.broadcast %11 : vector<1x128xf32> to vector<256x128xf32>
    %13 = arith.addf %10, %12 : vector<256x128xf32>
    %cst_6 = arith.constant 0.000000e+00 : f32
    %14 = vector.broadcast %cst_6 : f32 to vector<256x128xf32>
    %15 = arith.cmpf oge, %13, %14 : vector<256x128xf32>
    %cst_7 = arith.constant 2.000000e-01 : f32
    %16 = vector.broadcast %cst_7 : f32 to vector<256x128xf32>
    %17 = arith.mulf %13, %16 : vector<256x128xf32>
    %18 = arith.select %15, %13, %17 : vector<256x128xi1>, vector<256x128xf32>
    %19 = vector.extract_strided_slice %18 {offsets = [0, 0], sizes = [222, 128], strides = [1, 1]} : vector<256x128xf32> to vector<222x128xf32>
    %20 = arith.truncf %19 : vector<222x128xf32> to vector<222x128xbf16>
    %21 = vector.extract_strided_slice %18 {offsets = [1, 0], sizes = [222, 128], strides = [1, 1]} : vector<256x128xf32> to vector<222x128xf32>
    %22 = arith.truncf %21 : vector<222x128xf32> to vector<222x128xbf16>
    %23 = vector.extract_strided_slice %18 {offsets = [2, 0], sizes = [222, 128], strides = [1, 1]} : vector<256x128xf32> to vector<222x128xf32>
    %24 = arith.truncf %23 : vector<222x128xf32> to vector<222x128xbf16>
    %25 = vector.extract_strided_slice %18 {offsets = [16, 0], sizes = [222, 128], strides = [1, 1]} : vector<256x128xf32> to vector<222x128xf32>
    %26 = arith.truncf %25 : vector<222x128xf32> to vector<222x128xbf16>
    %27 = vector.extract_strided_slice %18 {offsets = [17, 0], sizes = [222, 128], strides = [1, 1]} : vector<256x128xf32> to vector<222x128xf32>
    %28 = arith.truncf %27 : vector<222x128xf32> to vector<222x128xbf16>
    %29 = vector.extract_strided_slice %18 {offsets = [18, 0], sizes = [222, 128], strides = [1, 1]} : vector<256x128xf32> to vector<222x128xf32>
    %30 = arith.truncf %29 : vector<222x128xf32> to vector<222x128xbf16>
    %31 = vector.extract_strided_slice %18 {offsets = [32, 0], sizes = [222, 128], strides = [1, 1]} : vector<256x128xf32> to vector<222x128xf32>
    %32 = arith.truncf %31 : vector<222x128xf32> to vector<222x128xbf16>
    %33 = vector.extract_strided_slice %18 {offsets = [33, 0], sizes = [222, 128], strides = [1, 1]} : vector<256x128xf32> to vector<222x128xf32>
    %34 = arith.truncf %33 : vector<222x128xf32> to vector<222x128xbf16>
    %35 = vector.extract_strided_slice %18 {offsets = [34, 0], sizes = [222, 128], strides = [1, 1]} : vector<256x128xf32> to vector<222x128xf32>
    %36 = arith.truncf %35 : vector<222x128xf32> to vector<222x128xbf16>
    %37 = tpu.concatenate %20, %22, %24, %26, %28, %30, %32, %34, %36 in 1 : vector<222x128xbf16>, vector<222x128xbf16>, vector<222x128xbf16>, vector<222x128xbf16>, vector<222x128xbf16>, vector<222x128xbf16>, vector<222x128xbf16>, vector<222x128xbf16>, vector<222x128xbf16> -> vector<222x1152xbf16>
    %c0_8 = arith.constant 0 : index
    %c0_9 = arith.constant 0 : index
    %38 = vector.load %arg4[%c0_8, %c0_9] : memref<1152x192xbf16, #tpu.memory_space<vmem>>, vector<1152x192xbf16>
    %cst_10 = arith.constant dense<0.000000e+00> : vector<222x192xf32>
    %39 = tpu.matmul %37, %38, %cst_10 {dimension_numbers = #tpu.dot_dimension_numbers<[1], [0], [0], [1], [0, 0, 1, 1], [], []>} : vector<222x1152xbf16>, vector<1152x192xbf16>, vector<222x192xf32> -> vector<222x192xf32>
    %40 = vector.extract_strided_slice %39 {offsets = [0, 0], sizes = [205, 192], strides = [1, 1]} : vector<222x192xf32> to vector<205x192xf32>
    %41 = vector.extract_strided_slice %39 {offsets = [1, 0], sizes = [205, 192], strides = [1, 1]} : vector<222x192xf32> to vector<205x192xf32>
    %42 = arith.maximumf %40, %41 : vector<205x192xf32>
    %43 = vector.extract_strided_slice %39 {offsets = [16, 0], sizes = [205, 192], strides = [1, 1]} : vector<222x192xf32> to vector<205x192xf32>
    %44 = vector.extract_strided_slice %39 {offsets = [17, 0], sizes = [205, 192], strides = [1, 1]} : vector<222x192xf32> to vector<205x192xf32>
    %45 = arith.maximumf %43, %44 : vector<205x192xf32>
    %46 = arith.maximumf %42, %45 : vector<205x192xf32>
    %c0_11 = arith.constant 0 : index
    %c0_12 = arith.constant 0 : index
    %47 = vector.load %arg5[%c0_11, %c0_12] : memref<1x192xf32, #tpu.memory_space<vmem>>, vector<1x192xf32>
    %48 = vector.broadcast %47 : vector<1x192xf32> to vector<205x192xf32>
    %49 = arith.addf %46, %48 : vector<205x192xf32>
    %cst_13 = arith.constant 0.000000e+00 : f32
    %50 = vector.broadcast %cst_13 : f32 to vector<205x192xf32>
    %51 = arith.cmpf oge, %49, %50 : vector<205x192xf32>
    %cst_14 = arith.constant 2.000000e-01 : f32
    %52 = vector.broadcast %cst_14 : f32 to vector<205x192xf32>
    %53 = arith.mulf %49, %52 : vector<205x192xf32>
    %54 = arith.select %51, %49, %53 : vector<205x192xi1>, vector<205x192xf32>
    %c0_15 = arith.constant 0 : index
    %c0_16 = arith.constant 0 : index
    %55 = vector.load %arg6[%c0_15, %c0_16] : memref<88x205xbf16, #tpu.memory_space<vmem>>, vector<88x205xbf16>
    %56 = arith.truncf %54 : vector<205x192xf32> to vector<205x192xbf16>
    %cst_17 = arith.constant dense<0.000000e+00> : vector<88x192xf32>
    %57 = tpu.matmul %55, %56, %cst_17 {dimension_numbers = #tpu.dot_dimension_numbers<[1], [0], [0], [1], [0, 0, 1, 1], [], []>} : vector<88x205xbf16>, vector<205x192xbf16>, vector<88x192xf32> -> vector<88x192xf32>
    %58 = vector.extract_strided_slice %57 {offsets = [0, 0], sizes = [61, 192], strides = [1, 1]} : vector<88x192xf32> to vector<61x192xf32>
    %59 = arith.truncf %58 : vector<61x192xf32> to vector<61x192xbf16>
    %c0_18 = arith.constant 0 : index
    %c0_19 = arith.constant 0 : index
    %60 = vector.load %arg7[%c0_18, %c0_19] : memref<1728x256xbf16, #tpu.memory_space<vmem>>, vector<192x256xbf16>
    %cst_20 = arith.constant dense<0.000000e+00> : vector<61x256xf32>
    %61 = tpu.matmul %59, %60, %cst_20 {dimension_numbers = #tpu.dot_dimension_numbers<[1], [0], [0], [1], [0, 0, 1, 1], [], []>} : vector<61x192xbf16>, vector<192x256xbf16>, vector<61x256xf32> -> vector<61x256xf32>
    %62 = vector.extract_strided_slice %57 {offsets = [1, 0], sizes = [61, 192], strides = [1, 1]} : vector<88x192xf32> to vector<61x192xf32>
    %63 = arith.truncf %62 : vector<61x192xf32> to vector<61x192xbf16>
    %c192 = arith.constant 192 : index
    %c0_21 = arith.constant 0 : index
    %64 = vector.load %arg7[%c192, %c0_21] : memref<1728x256xbf16, #tpu.memory_space<vmem>>, vector<192x256xbf16>
    %cst_22 = arith.constant dense<0.000000e+00> : vector<61x256xf32>
    %65 = tpu.matmul %63, %64, %cst_22 {dimension_numbers = #tpu.dot_dimension_numbers<[1], [0], [0], [1], [0, 0, 1, 1], [], []>} : vector<61x192xbf16>, vector<192x256xbf16>, vector<61x256xf32> -> vector<61x256xf32>
    %66 = arith.addf %61, %65 : vector<61x256xf32>
    %67 = vector.extract_strided_slice %57 {offsets = [2, 0], sizes = [61, 192], strides = [1, 1]} : vector<88x192xf32> to vector<61x192xf32>
    %68 = arith.truncf %67 : vector<61x192xf32> to vector<61x192xbf16>
    %c384 = arith.constant 384 : index
    %c0_23 = arith.constant 0 : index
    %69 = vector.load %arg7[%c384, %c0_23] : memref<1728x256xbf16, #tpu.memory_space<vmem>>, vector<192x256xbf16>
    %cst_24 = arith.constant dense<0.000000e+00> : vector<61x256xf32>
    %70 = tpu.matmul %68, %69, %cst_24 {dimension_numbers = #tpu.dot_dimension_numbers<[1], [0], [0], [1], [0, 0, 1, 1], [], []>} : vector<61x192xbf16>, vector<192x256xbf16>, vector<61x256xf32> -> vector<61x256xf32>
    %71 = arith.addf %66, %70 : vector<61x256xf32>
    %72 = vector.extract_strided_slice %57 {offsets = [9, 0], sizes = [61, 192], strides = [1, 1]} : vector<88x192xf32> to vector<61x192xf32>
    %73 = arith.truncf %72 : vector<61x192xf32> to vector<61x192xbf16>
    %c576 = arith.constant 576 : index
    %c0_25 = arith.constant 0 : index
    %74 = vector.load %arg7[%c576, %c0_25] : memref<1728x256xbf16, #tpu.memory_space<vmem>>, vector<192x256xbf16>
    %cst_26 = arith.constant dense<0.000000e+00> : vector<61x256xf32>
    %75 = tpu.matmul %73, %74, %cst_26 {dimension_numbers = #tpu.dot_dimension_numbers<[1], [0], [0], [1], [0, 0, 1, 1], [], []>} : vector<61x192xbf16>, vector<192x256xbf16>, vector<61x256xf32> -> vector<61x256xf32>
    %76 = arith.addf %71, %75 : vector<61x256xf32>
    %77 = vector.extract_strided_slice %57 {offsets = [10, 0], sizes = [61, 192], strides = [1, 1]} : vector<88x192xf32> to vector<61x192xf32>
    %78 = arith.truncf %77 : vector<61x192xf32> to vector<61x192xbf16>
    %c768 = arith.constant 768 : index
    %c0_27 = arith.constant 0 : index
    %79 = vector.load %arg7[%c768, %c0_27] : memref<1728x256xbf16, #tpu.memory_space<vmem>>, vector<192x256xbf16>
    %cst_28 = arith.constant dense<0.000000e+00> : vector<61x256xf32>
    %80 = tpu.matmul %78, %79, %cst_28 {dimension_numbers = #tpu.dot_dimension_numbers<[1], [0], [0], [1], [0, 0, 1, 1], [], []>} : vector<61x192xbf16>, vector<192x256xbf16>, vector<61x256xf32> -> vector<61x256xf32>
    %81 = arith.addf %76, %80 : vector<61x256xf32>
    %82 = vector.extract_strided_slice %57 {offsets = [11, 0], sizes = [61, 192], strides = [1, 1]} : vector<88x192xf32> to vector<61x192xf32>
    %83 = arith.truncf %82 : vector<61x192xf32> to vector<61x192xbf16>
    %c960 = arith.constant 960 : index
    %c0_29 = arith.constant 0 : index
    %84 = vector.load %arg7[%c960, %c0_29] : memref<1728x256xbf16, #tpu.memory_space<vmem>>, vector<192x256xbf16>
    %cst_30 = arith.constant dense<0.000000e+00> : vector<61x256xf32>
    %85 = tpu.matmul %83, %84, %cst_30 {dimension_numbers = #tpu.dot_dimension_numbers<[1], [0], [0], [1], [0, 0, 1, 1], [], []>} : vector<61x192xbf16>, vector<192x256xbf16>, vector<61x256xf32> -> vector<61x256xf32>
    %86 = arith.addf %81, %85 : vector<61x256xf32>
    %87 = vector.extract_strided_slice %57 {offsets = [18, 0], sizes = [61, 192], strides = [1, 1]} : vector<88x192xf32> to vector<61x192xf32>
    %88 = arith.truncf %87 : vector<61x192xf32> to vector<61x192xbf16>
    %c1152 = arith.constant 1152 : index
    %c0_31 = arith.constant 0 : index
    %89 = vector.load %arg7[%c1152, %c0_31] : memref<1728x256xbf16, #tpu.memory_space<vmem>>, vector<192x256xbf16>
    %cst_32 = arith.constant dense<0.000000e+00> : vector<61x256xf32>
    %90 = tpu.matmul %88, %89, %cst_32 {dimension_numbers = #tpu.dot_dimension_numbers<[1], [0], [0], [1], [0, 0, 1, 1], [], []>} : vector<61x192xbf16>, vector<192x256xbf16>, vector<61x256xf32> -> vector<61x256xf32>
    %91 = arith.addf %86, %90 : vector<61x256xf32>
    %92 = vector.extract_strided_slice %57 {offsets = [19, 0], sizes = [61, 192], strides = [1, 1]} : vector<88x192xf32> to vector<61x192xf32>
    %93 = arith.truncf %92 : vector<61x192xf32> to vector<61x192xbf16>
    %c1344 = arith.constant 1344 : index
    %c0_33 = arith.constant 0 : index
    %94 = vector.load %arg7[%c1344, %c0_33] : memref<1728x256xbf16, #tpu.memory_space<vmem>>, vector<192x256xbf16>
    %cst_34 = arith.constant dense<0.000000e+00> : vector<61x256xf32>
    %95 = tpu.matmul %93, %94, %cst_34 {dimension_numbers = #tpu.dot_dimension_numbers<[1], [0], [0], [1], [0, 0, 1, 1], [], []>} : vector<61x192xbf16>, vector<192x256xbf16>, vector<61x256xf32> -> vector<61x256xf32>
    %96 = arith.addf %91, %95 : vector<61x256xf32>
    %97 = vector.extract_strided_slice %57 {offsets = [20, 0], sizes = [61, 192], strides = [1, 1]} : vector<88x192xf32> to vector<61x192xf32>
    %98 = arith.truncf %97 : vector<61x192xf32> to vector<61x192xbf16>
    %c1536 = arith.constant 1536 : index
    %c0_35 = arith.constant 0 : index
    %99 = vector.load %arg7[%c1536, %c0_35] : memref<1728x256xbf16, #tpu.memory_space<vmem>>, vector<192x256xbf16>
    %cst_36 = arith.constant dense<0.000000e+00> : vector<61x256xf32>
    %100 = tpu.matmul %98, %99, %cst_36 {dimension_numbers = #tpu.dot_dimension_numbers<[1], [0], [0], [1], [0, 0, 1, 1], [], []>} : vector<61x192xbf16>, vector<192x256xbf16>, vector<61x256xf32> -> vector<61x256xf32>
    %101 = arith.addf %96, %100 : vector<61x256xf32>
    %102 = vector.extract_strided_slice %101 {offsets = [0, 0], sizes = [41, 256], strides = [1, 1]} : vector<61x256xf32> to vector<41x256xf32>
    %103 = vector.extract_strided_slice %101 {offsets = [1, 0], sizes = [41, 256], strides = [1, 1]} : vector<61x256xf32> to vector<41x256xf32>
    %104 = arith.maximumf %102, %103 : vector<41x256xf32>
    %105 = vector.extract_strided_slice %101 {offsets = [9, 0], sizes = [41, 256], strides = [1, 1]} : vector<61x256xf32> to vector<41x256xf32>
    %106 = vector.extract_strided_slice %101 {offsets = [10, 0], sizes = [41, 256], strides = [1, 1]} : vector<61x256xf32> to vector<41x256xf32>
    %107 = arith.maximumf %105, %106 : vector<41x256xf32>
    %108 = arith.maximumf %104, %107 : vector<41x256xf32>
    %c0_37 = arith.constant 0 : index
    %c0_38 = arith.constant 0 : index
    %109 = vector.load %arg8[%c0_37, %c0_38] : memref<1x256xf32, #tpu.memory_space<vmem>>, vector<1x256xf32>
    %110 = vector.broadcast %109 : vector<1x256xf32> to vector<41x256xf32>
    %111 = arith.addf %108, %110 : vector<41x256xf32>
    %cst_39 = arith.constant 0.000000e+00 : f32
    %112 = vector.broadcast %cst_39 : f32 to vector<41x256xf32>
    %113 = arith.cmpf oge, %111, %112 : vector<41x256xf32>
    %cst_40 = arith.constant 2.000000e-01 : f32
    %114 = vector.broadcast %cst_40 : f32 to vector<41x256xf32>
    %115 = arith.mulf %111, %114 : vector<41x256xf32>
    %116 = arith.select %113, %111, %115 : vector<41x256xi1>, vector<41x256xf32>
    %117 = vector.extract_strided_slice %116 {offsets = [0, 0], sizes = [1, 256], strides = [1, 1]} : vector<41x256xf32> to vector<1x256xf32>
    %118 = vector.extract_strided_slice %116 {offsets = [2, 0], sizes = [1, 256], strides = [1, 1]} : vector<41x256xf32> to vector<1x256xf32>
    %119 = arith.maximumf %117, %118 : vector<1x256xf32>
    %120 = vector.extract_strided_slice %116 {offsets = [18, 0], sizes = [1, 256], strides = [1, 1]} : vector<41x256xf32> to vector<1x256xf32>
    %121 = vector.extract_strided_slice %116 {offsets = [20, 0], sizes = [1, 256], strides = [1, 1]} : vector<41x256xf32> to vector<1x256xf32>
    %122 = arith.maximumf %120, %121 : vector<1x256xf32>
    %123 = arith.maximumf %119, %122 : vector<1x256xf32>
    %c0_41 = arith.constant 0 : index
    %c0_42 = arith.constant 0 : index
    %124 = vector.load %arg9[%c0_41, %c0_42] : memref<32x41xbf16, #tpu.memory_space<vmem>>, vector<32x41xbf16>
    %125 = arith.truncf %116 : vector<41x256xf32> to vector<41x256xbf16>
    %cst_43 = arith.constant dense<0.000000e+00> : vector<32x256xf32>
    %126 = tpu.matmul %124, %125, %cst_43 {dimension_numbers = #tpu.dot_dimension_numbers<[1], [0], [0], [1], [0, 0, 1, 1], [], []>} : vector<32x41xbf16>, vector<41x256xbf16>, vector<32x256xf32> -> vector<32x256xf32>
    %127 = vector.extract_strided_slice %126 {offsets = [0, 0], sizes = [13, 256], strides = [1, 1]} : vector<32x256xf32> to vector<13x256xf32>
    %128 = arith.truncf %127 : vector<13x256xf32> to vector<13x256xbf16>
    %129 = vector.extract_strided_slice %126 {offsets = [1, 0], sizes = [13, 256], strides = [1, 1]} : vector<32x256xf32> to vector<13x256xf32>
    %130 = arith.truncf %129 : vector<13x256xf32> to vector<13x256xbf16>
    %131 = vector.extract_strided_slice %126 {offsets = [2, 0], sizes = [13, 256], strides = [1, 1]} : vector<32x256xf32> to vector<13x256xf32>
    %132 = arith.truncf %131 : vector<13x256xf32> to vector<13x256xbf16>
    %133 = vector.extract_strided_slice %126 {offsets = [5, 0], sizes = [13, 256], strides = [1, 1]} : vector<32x256xf32> to vector<13x256xf32>
    %134 = arith.truncf %133 : vector<13x256xf32> to vector<13x256xbf16>
    %135 = vector.extract_strided_slice %126 {offsets = [6, 0], sizes = [13, 256], strides = [1, 1]} : vector<32x256xf32> to vector<13x256xf32>
    %136 = arith.truncf %135 : vector<13x256xf32> to vector<13x256xbf16>
    %137 = vector.extract_strided_slice %126 {offsets = [7, 0], sizes = [13, 256], strides = [1, 1]} : vector<32x256xf32> to vector<13x256xf32>
    %138 = arith.truncf %137 : vector<13x256xf32> to vector<13x256xbf16>
    %139 = vector.extract_strided_slice %126 {offsets = [10, 0], sizes = [13, 256], strides = [1, 1]} : vector<32x256xf32> to vector<13x256xf32>
    %140 = arith.truncf %139 : vector<13x256xf32> to vector<13x256xbf16>
    %141 = vector.extract_strided_slice %126 {offsets = [11, 0], sizes = [13, 256], strides = [1, 1]} : vector<32x256xf32> to vector<13x256xf32>
    %142 = arith.truncf %141 : vector<13x256xf32> to vector<13x256xbf16>
    %143 = vector.extract_strided_slice %126 {offsets = [12, 0], sizes = [13, 256], strides = [1, 1]} : vector<32x256xf32> to vector<13x256xf32>
    %144 = arith.truncf %143 : vector<13x256xf32> to vector<13x256xbf16>
    %145 = tpu.concatenate %128, %130, %132, %134, %136, %138, %140, %142, %144 in 1 : vector<13x256xbf16>, vector<13x256xbf16>, vector<13x256xbf16>, vector<13x256xbf16>, vector<13x256xbf16>, vector<13x256xbf16>, vector<13x256xbf16>, vector<13x256xbf16>, vector<13x256xbf16> -> vector<13x2304xbf16>
    %c0_44 = arith.constant 0 : index
    %c0_45 = arith.constant 0 : index
    %146 = vector.load %arg10[%c0_44, %c0_45] : memref<2304x512xbf16, #tpu.memory_space<vmem>>, vector<2304x512xbf16>
    %cst_46 = arith.constant dense<0.000000e+00> : vector<13x512xf32>
    %147 = tpu.matmul %145, %146, %cst_46 {dimension_numbers = #tpu.dot_dimension_numbers<[1], [0], [0], [1], [0, 0, 1, 1], [], []>} : vector<13x2304xbf16>, vector<2304x512xbf16>, vector<13x512xf32> -> vector<13x512xf32>
    %148 = vector.extract_strided_slice %147 {offsets = [0, 0], sizes = [1, 512], strides = [1, 1]} : vector<13x512xf32> to vector<1x512xf32>
    %149 = vector.extract_strided_slice %147 {offsets = [1, 0], sizes = [1, 512], strides = [1, 1]} : vector<13x512xf32> to vector<1x512xf32>
    %150 = arith.maximumf %148, %149 : vector<1x512xf32>
    %151 = vector.extract_strided_slice %147 {offsets = [5, 0], sizes = [1, 512], strides = [1, 1]} : vector<13x512xf32> to vector<1x512xf32>
    %152 = vector.extract_strided_slice %147 {offsets = [6, 0], sizes = [1, 512], strides = [1, 1]} : vector<13x512xf32> to vector<1x512xf32>
    %153 = arith.maximumf %151, %152 : vector<1x512xf32>
    %154 = arith.maximumf %150, %153 : vector<1x512xf32>
    %c0_47 = arith.constant 0 : index
    %c0_48 = arith.constant 0 : index
    %155 = vector.load %arg11[%c0_47, %c0_48] : memref<1x512xf32, #tpu.memory_space<vmem>>, vector<1x512xf32>
    %156 = arith.addf %154, %155 : vector<1x512xf32>
    %cst_49 = arith.constant 0.000000e+00 : f32
    %157 = vector.broadcast %cst_49 : f32 to vector<1x512xf32>
    %158 = arith.cmpf oge, %156, %157 : vector<1x512xf32>
    %cst_50 = arith.constant 2.000000e-01 : f32
    %159 = vector.broadcast %cst_50 : f32 to vector<1x512xf32>
    %160 = arith.mulf %156, %159 : vector<1x512xf32>
    %161 = arith.select %158, %156, %160 : vector<1x512xi1>, vector<1x512xf32>
    %162 = arith.truncf %161 : vector<1x512xf32> to vector<1x512xbf16>
    %c0_51 = arith.constant 0 : index
    %c0_52 = arith.constant 0 : index
    %163 = vector.load %arg12[%c0_51, %c0_52] : memref<512x128xbf16, #tpu.memory_space<vmem>>, vector<512x128xbf16>
    %cst_53 = arith.constant dense<0.000000e+00> : vector<1x128xf32>
    %164 = tpu.matmul %162, %163, %cst_53 {dimension_numbers = #tpu.dot_dimension_numbers<[1], [0], [0], [1], [0, 0, 1, 1], [], []>} : vector<1x512xbf16>, vector<512x128xbf16>, vector<1x128xf32> -> vector<1x128xf32>
    %c0_54 = arith.constant 0 : index
    %c0_55 = arith.constant 0 : index
    %165 = vector.load %arg13[%c0_54, %c0_55] : memref<1x128xf32, #tpu.memory_space<vmem>>, vector<1x128xf32>
    %166 = arith.addf %164, %165 : vector<1x128xf32>
    %c0_56 = arith.constant 0 : index
    %c0_57 = arith.constant 0 : index
    %c0_58 = arith.constant 0 : index
    %167 = vector.load %arg16[%c0_56, %c0_57, %c0_58] : memref<1x1x128xf32, #tpu.memory_space<vmem>>, vector<1x1x128xf32>
    %168 = vector.shape_cast %167 : vector<1x1x128xf32> to vector<1x128xf32>
    %169 = vector.shape_cast %166 : vector<1x128xf32> to vector<1x1x128xf32>
    tpu.vector_store %arg16[%c0_56, %c0_57, %c0_58], %169 {strides = array<i32>} : memref<1x1x128xf32, #tpu.memory_space<vmem>>, vector<1x1x128xf32>,
    %170 = arith.truncf %123 : vector<1x256xf32> to vector<1x256xbf16>
    %c0_59 = arith.constant 0 : index
    %c0_60 = arith.constant 0 : index
    %171 = vector.load %arg14[%c0_59, %c0_60] : memref<256x128xbf16, #tpu.memory_space<vmem>>, vector<256x128xbf16>
    %cst_61 = arith.constant dense<0.000000e+00> : vector<1x128xf32>
    %172 = tpu.matmul %170, %171, %cst_61 {dimension_numbers = #tpu.dot_dimension_numbers<[1], [0], [0], [1], [0, 0, 1, 1], [], []>} : vector<1x256xbf16>, vector<256x128xbf16>, vector<1x128xf32> -> vector<1x128xf32>
    %c0_62 = arith.constant 0 : index
    %c0_63 = arith.constant 0 : index
    %173 = vector.load %arg15[%c0_62, %c0_63] : memref<1x128xf32, #tpu.memory_space<vmem>>, vector<1x128xf32>
    %174 = arith.addf %172, %173 : vector<1x128xf32>
    %c0_64 = arith.constant 0 : index
    %c0_65 = arith.constant 0 : index
    %c0_66 = arith.constant 0 : index
    %175 = vector.load %arg17[%c0_64, %c0_65, %c0_66] : memref<1x1x128xf32, #tpu.memory_space<vmem>>, vector<1x1x128xf32>
    %176 = vector.shape_cast %175 : vector<1x1x128xf32> to vector<1x128xf32>
    %177 = vector.shape_cast %174 : vector<1x128xf32> to vector<1x1x128xf32>
    tpu.vector_store %arg17[%c0_64, %c0_65, %c0_66], %177 {strides = array<i32>} : memref<1x1x128xf32, #tpu.memory_space<vmem>>, vector<1x1x128xf32>,
    return
  }
  func.func @transform_0(%arg0: i32) -> (i32, i32, i32) {
    %c0_i32 = arith.constant 0 : i32
    %c0_i32_0 = arith.constant 0 : i32
    %c0_i32_1 = arith.constant 0 : i32
    return %arg0, %c0_i32, %c0_i32_0 : i32, i32, i32
  }
  func.func @transform_1(%arg0: i32) -> (i32, i32) {
    %c0_i32 = arith.constant 0 : i32
    %c0_i32_0 = arith.constant 0 : i32
    %c0_i32_1 = arith.constant 0 : i32
    return %c0_i32, %c0_i32_0 : i32, i32
  }
  func.func @transform_2(%arg0: i32) -> (i32, i32) {
    %c0_i32 = arith.constant 0 : i32
    %c0_i32_0 = arith.constant 0 : i32
    %c0_i32_1 = arith.constant 0 : i32
    return %c0_i32, %c0_i32_0 : i32, i32
  }
  func.func @transform_3(%arg0: i32) -> (i32, i32) {
    %c0_i32 = arith.constant 0 : i32
    %c0_i32_0 = arith.constant 0 : i32
    %c0_i32_1 = arith.constant 0 : i32
    return %c0_i32, %c0_i32_0 : i32, i32
  }
  func.func @transform_4(%arg0: i32) -> (i32, i32) {
    %c0_i32 = arith.constant 0 : i32
    %c0_i32_0 = arith.constant 0 : i32
    %c0_i32_1 = arith.constant 0 : i32
    return %c0_i32, %c0_i32_0 : i32, i32
  }
  func.func @transform_5(%arg0: i32) -> (i32, i32) {
    %c0_i32 = arith.constant 0 : i32
    %c0_i32_0 = arith.constant 0 : i32
    %c0_i32_1 = arith.constant 0 : i32
    return %c0_i32, %c0_i32_0 : i32, i32
  }
  func.func @transform_6(%arg0: i32) -> (i32, i32) {
    %c0_i32 = arith.constant 0 : i32
    %c0_i32_0 = arith.constant 0 : i32
    %c0_i32_1 = arith.constant 0 : i32
    return %c0_i32, %c0_i32_0 : i32, i32
  }
  func.func @transform_7(%arg0: i32) -> (i32, i32) {
    %c0_i32 = arith.constant 0 : i32
    %c0_i32_0 = arith.constant 0 : i32
    %c0_i32_1 = arith.constant 0 : i32
    return %c0_i32, %c0_i32_0 : i32, i32
  }
  func.func @transform_8(%arg0: i32) -> (i32, i32) {
    %c0_i32 = arith.constant 0 : i32
    %c0_i32_0 = arith.constant 0 : i32
    %c0_i32_1 = arith.constant 0 : i32
    return %c0_i32, %c0_i32_0 : i32, i32
  }
  func.func @transform_9(%arg0: i32) -> (i32, i32) {
    %c0_i32 = arith.constant 0 : i32
    %c0_i32_0 = arith.constant 0 : i32
    %c0_i32_1 = arith.constant 0 : i32
    return %c0_i32, %c0_i32_0 : i32, i32
  }
  func.func @transform_10(%arg0: i32) -> (i32, i32) {
    %c0_i32 = arith.constant 0 : i32
    %c0_i32_0 = arith.constant 0 : i32
    %c0_i32_1 = arith.constant 0 : i32
    return %c0_i32, %c0_i32_0 : i32, i32
  }
  func.func @transform_11(%arg0: i32) -> (i32, i32) {
    %c0_i32 = arith.constant 0 : i32
    %c0_i32_0 = arith.constant 0 : i32
    %c0_i32_1 = arith.constant 0 : i32
    return %c0_i32, %c0_i32_0 : i32, i32
  }
  func.func @transform_12(%arg0: i32) -> (i32, i32) {
    %c0_i32 = arith.constant 0 : i32
    %c0_i32_0 = arith.constant 0 : i32
    %c0_i32_1 = arith.constant 0 : i32
    return %c0_i32, %c0_i32_0 : i32, i32
  }
  func.func @transform_13(%arg0: i32) -> (i32, i32) {
    %c0_i32 = arith.constant 0 : i32
    %c0_i32_0 = arith.constant 0 : i32
    %c0_i32_1 = arith.constant 0 : i32
    return %c0_i32, %c0_i32_0 : i32, i32
  }
  func.func @transform_14(%arg0: i32) -> (i32, i32) {
    %c0_i32 = arith.constant 0 : i32
    %c0_i32_0 = arith.constant 0 : i32
    %c0_i32_1 = arith.constant 0 : i32
    return %c0_i32, %c0_i32_0 : i32, i32
  }
  func.func @transform_15(%arg0: i32) -> (i32, i32, i32) {
    %c0_i32 = arith.constant 0 : i32
    %c0_i32_0 = arith.constant 0 : i32
    %c0_i32_1 = arith.constant 0 : i32
    return %arg0, %c0_i32, %c0_i32_0 : i32, i32, i32
  }
  func.func @transform_16(%arg0: i32) -> (i32, i32, i32) {
    %c0_i32 = arith.constant 0 : i32
    %c0_i32_0 = arith.constant 0 : i32
    %c0_i32_1 = arith.constant 0 : i32
    return %arg0, %c0_i32, %c0_i32_0 : i32, i32, i32
  }
}

</mosaic_0001>

<llo_original>
// kernel: _lambda_.1
$region0: #{_lambda_.1}
  #allocation0 [shape = 'u32[]', space=smem, size = 0x4, offset = 0x4, fixed_abs, tag = 'smem constant byte address 0x4 - core index']
  #allocation1 [shape = 'u32[144,128]{1,0:T(1,128)}', space=vmem, size = 0x12000, scoped, tag = 'internal scratch']
  %s0 = inlined_call_operand.vmem [shape: bf16[2,1024,32], index: 0, kind: input, shape index: {}]
  %s1 = inlined_call_operand.vmem [shape: bf16[32,128], index: 1, kind: input, shape index: {}]
  %s2 = inlined_call_operand.vmem [shape: f32[1,128], index: 2, kind: input, shape index: {}]
  %s3 = inlined_call_operand.vmem [shape: bf16[1152,192], index: 3, kind: input, shape index: {}]
  %s4 = inlined_call_operand.vmem [shape: f32[1,192], index: 4, kind: input, shape index: {}]
  %s5 = inlined_call_operand.vmem [shape: bf16[88,205], index: 5, kind: input, shape index: {}]
  %s6 = inlined_call_operand.vmem [shape: bf16[1728,256], index: 6, kind: input, shape index: {}]
  %s7 = inlined_call_operand.vmem [shape: f32[1,256], index: 7, kind: input, shape index: {}]
  %s8 = inlined_call_operand.vmem [shape: bf16[32,41], index: 8, kind: input, shape index: {}]
  %s9 = inlined_call_operand.vmem [shape: bf16[2304,512], index: 9, kind: input, shape index: {}]
  %s10 = inlined_call_operand.vmem [shape: f32[1,512], index: 10, kind: input, shape index: {}]
  %s11 = inlined_call_operand.vmem [shape: bf16[512,128], index: 11, kind: input, shape index: {}]
  %s12 = inlined_call_operand.vmem [shape: f32[1,128], index: 12, kind: input, shape index: {}]
  %s13 = inlined_call_operand.vmem [shape: bf16[256,128], index: 13, kind: input, shape index: {}]
  %s14 = inlined_call_operand.vmem [shape: f32[1,128], index: 14, kind: input, shape index: {}]
  %s15 = inlined_call_operand.hbm [shape: f32[2,1,128], index: 15, kind: output, shape index: {0}]
  %s16 = inlined_call_operand.hbm [shape: f32[2,1,128], index: 16, kind: output, shape index: {1}]
  %17 = xla_tuple %s15, %s16
  %s18 = sld [smem:[#allocation0]]
  $region101: #{_lambda_.1} parent=0
    _
  %s20 = ssub.s32 1, %s18
  %s21 = scalar_select 0, %s20, %s18
  $region1: #{_lambda_.1} parent=0
    #allocation2 [shape = 'u8[1024]{0}', space=vmem, size = 0x400, scoped, tag = 'output window, operand 0']
    #allocation3 [shape = 's32[2]{0}', space=sflag, size = 0x8, scoped, tag = 'scoped memory for _lambda_.1']
    #allocation4 [shape = 'u8[1024]{0}', space=vmem, size = 0x400, scoped, tag = 'output window, operand 1']
    #allocation5 [shape = 's32[2]{0}', space=sflag, size = 0x8, scoped, tag = 'scoped memory for _lambda_.1']
    %22 = vsyncpa [#allocation3], 0
    %s23 = scalar_lea.sflag [#allocation3], 1
    %24 = vsyncpa %s23, 0
    %25 = vsyncpa [#allocation5], 0
    %s26 = scalar_lea.sflag [#allocation5], 1
    %27 = vsyncpa %s26, 0
    loop: start=0, step=1, limit=4
    $region2: #{_lambda_.1} parent=1 // loop_pre_header
      _
    $region3: #{_lambda_.1} parent=1 // loop_header
      %s29 = sphi 0, %s33
      %p30 = scmp.ge.s32.totalorder %s29, 4
      %s39 = sphi 0, %s41
      %s42 = sphi 0, %s39
      %s43 = sphi 0, %s42
      %s59 = sphi 0, %s43
      %s63 = sphi 0, %s63
      %s65 = sphi 0, %s63
      %s66 = sphi 0, %s65
      %s80 = sphi 0, %s66
      %s84 = sphi 0, %s84
      %s86 = sphi 0, %s84
      %s87 = sphi 0, %s86
      %s101 = sphi 0, %s87
      %s105 = sphi 0, %s105
      %s107 = sphi 0, %s105
      %s108 = sphi 0, %s107
      %s122 = sphi 0, %s108
      %s126 = sphi 0, %s126
      %s128 = sphi 0, %s126
      %s129 = sphi 0, %s128
      %s143 = sphi 0, %s129
      %s147 = sphi 0, %s147
      %s149 = sphi 0, %s147
      %s150 = sphi 0, %s149
      %s164 = sphi 0, %s150
      %s168 = sphi 0, %s168
      %s170 = sphi 0, %s168
      %s171 = sphi 0, %s170
      %s185 = sphi 0, %s171
      %s189 = sphi 0, %s189
      %s191 = sphi 0, %s189
      %s192 = sphi 0, %s191
      %s206 = sphi 0, %s192
      %s210 = sphi 0, %s210
      %s212 = sphi 0, %s210
      %s213 = sphi 0, %s212
      %s227 = sphi 0, %s213
      %s231 = sphi 0, %s231
      %s233 = sphi 0, %s231
      %s234 = sphi 0, %s233
      %s248 = sphi 0, %s234
      %s252 = sphi 0, %s252
      %s254 = sphi 0, %s252
      %s255 = sphi 0, %s254
      %s269 = sphi 0, %s255
      %s273 = sphi 0, %s273
      %s275 = sphi 0, %s273
      %s276 = sphi 0, %s275
      %s290 = sphi 0, %s276
      %s294 = sphi 0, %s294
      %s296 = sphi 0, %s294
      %s297 = sphi 0, %s296
      %s311 = sphi 0, %s297
      %s315 = sphi 0, %s315
      %s317 = sphi 0, %s315
      %s318 = sphi 0, %s317
      %s332 = sphi 0, %s318
      %s336 = sphi 0, %s336
      %s338 = sphi 0, %s336
      %s339 = sphi 0, %s338
      %s353 = sphi 0, %s339
      %s359 = sphi 0, %s361
      %s362 = sphi 0, %s359
      %s363 = sphi 0, %s362
      %s379 = sphi 0, %s363
      %s385 = sphi 0, %s387
      %s388 = sphi 0, %s385
      %s389 = sphi 0, %s388
      %s405 = sphi 0, %s389
    $region4: #{_lambda_.1} parent=1 // loop_header_branch
      %32 = sbr.rel (%p30) target = $region8
    $region5: #{_lambda_.1} parent=1 // loop_body
      %s34 = ssub.s32 %s29, 1
      %s35 = ssub.s32 %s29, 2
      %s36 = sadd.s32 %s29, 1
      %s37 = ssub.s32 %s29, %s36
      %p38 = scmp.eq.s32.totalorder %s37, 0
      %s40 = sadd.s32 %s39, 1
      %s41 = scalar_select %p38, %s39, %s40
      %p44 = pneg %p38
      %p45 = scmp.eq.s32.totalorder %s29, 1
      %p46 = por %p44, %p45
      %p47 = scmp.ne.s32.totalorder %s39, %s42
      %p48 = scmp.eq.s32.totalorder %s29, 0
      %p49 = por %p47, %p48
      %p50 = scmp.ne.s32.totalorder %s39, %s42
      %p51 = scmp.eq.s32.totalorder %s34, 1
      %p52 = por %p50, %p51
      %p53 = scmp.ne.s32.totalorder %s42, %s43
      %p54 = scmp.eq.s32.totalorder %s34, 0
      %p55 = por %p53, %p54
      %p56 = scmp.ne.s32.totalorder %s42, %s43
      %p57 = scmp.eq.s32.totalorder %s35, 1
      %p58 = por %p56, %p57
      %p60 = scmp.ne.s32.totalorder %s43, %s59
      %p61 = scmp.eq.s32.totalorder %s35, 0
      %p62 = por %p60, %p61
      %s64 = sadd.s32 %s63, 1
      %p67 = scmp.eq.s32.totalorder %s29, 1
      %p68 = scmp.ne.s32.totalorder %s63, %s65
      %p69 = scmp.eq.s32.totalorder %s29, 0
      %p70 = por %p68, %p69
      %p71 = scmp.ne.s32.totalorder %s63, %s65
      %p72 = scmp.eq.s32.totalorder %s34, 1
      %p73 = por %p71, %p72
      %p74 = scmp.ne.s32.totalorder %s65, %s66
      %p75 = scmp.eq.s32.totalorder %s34, 0
      %p76 = por %p74, %p75
      %p77 = scmp.ne.s32.totalorder %s65, %s66
      %p78 = scmp.eq.s32.totalorder %s35, 1
      %p79 = por %p77, %p78
      %p81 = scmp.ne.s32.totalorder %s66, %s80
      %p82 = scmp.eq.s32.totalorder %s35, 0
      %p83 = por %p81, %p82
      %s85 = sadd.s32 %s84, 1
      %p88 = scmp.eq.s32.totalorder %s29, 1
      %p89 = scmp.ne.s32.totalorder %s84, %s86
      %p90 = scmp.eq.s32.totalorder %s29, 0
      %p91 = por %p89, %p90
      %p92 = scmp.ne.s32.totalorder %s84, %s86
      %p93 = scmp.eq.s32.totalorder %s34, 1
      %p94 = por %p92, %p93
      %p95 = scmp.ne.s32.totalorder %s86, %s87
      %p96 = scmp.eq.s32.totalorder %s34, 0
      %p97 = por %p95, %p96
      %p98 = scmp.ne.s32.totalorder %s86, %s87
      %p99 = scmp.eq.s32.totalorder %s35, 1
      %p100 = por %p98, %p99
      %p102 = scmp.ne.s32.totalorder %s87, %s101
      %p103 = scmp.eq.s32.totalorder %s35, 0
      %p104 = por %p102, %p103
      %s106 = sadd.s32 %s105, 1
      %p109 = scmp.eq.s32.totalorder %s29, 1
      %p110 = scmp.ne.s32.totalorder %s105, %s107
      %p111 = scmp.eq.s32.totalorder %s29, 0
      %p112 = por %p110, %p111
      %p113 = scmp.ne.s32.totalorder %s105, %s107
      %p114 = scmp.eq.s32.totalorder %s34, 1
      %p115 = por %p113, %p114
      %p116 = scmp.ne.s32.totalorder %s107, %s108
      %p117 = scmp.eq.s32.totalorder %s34, 0
      %p118 = por %p116, %p117
      %p119 = scmp.ne.s32.totalorder %s107, %s108
      %p120 = scmp.eq.s32.totalorder %s35, 1
      %p121 = por %p119, %p120
      %p123 = scmp.ne.s32.totalorder %s108, %s122
      %p124 = scmp.eq.s32.totalorder %s35, 0
      %p125 = por %p123, %p124
      %s127 = sadd.s32 %s126, 1
      %p130 = scmp.eq.s32.totalorder %s29, 1
      %p131 = scmp.ne.s32.totalorder %s126, %s128
      %p132 = scmp.eq.s32.totalorder %s29, 0
      %p133 = por %p131, %p132
      %p134 = scmp.ne.s32.totalorder %s126, %s128
      %p135 = scmp.eq.s32.totalorder %s34, 1
      %p136 = por %p134, %p135
      %p137 = scmp.ne.s32.totalorder %s128, %s129
      %p138 = scmp.eq.s32.totalorder %s34, 0
      %p139 = por %p137, %p138
      %p140 = scmp.ne.s32.totalorder %s128, %s129
      %p141 = scmp.eq.s32.totalorder %s35, 1
      %p142 = por %p140, %p141
      %p144 = scmp.ne.s32.totalorder %s129, %s143
      %p145 = scmp.eq.s32.totalorder %s35, 0
      %p146 = por %p144, %p145
      %s148 = sadd.s32 %s147, 1
      %p151 = scmp.eq.s32.totalorder %s29, 1
      %p152 = scmp.ne.s32.totalorder %s147, %s149
      %p153 = scmp.eq.s32.totalorder %s29, 0
      %p154 = por %p152, %p153
      %p155 = scmp.ne.s32.totalorder %s147, %s149
      %p156 = scmp.eq.s32.totalorder %s34, 1
      %p157 = por %p155, %p156
      %p158 = scmp.ne.s32.totalorder %s149, %s150
      %p159 = scmp.eq.s32.totalorder %s34, 0
      %p160 = por %p158, %p159
      %p161 = scmp.ne.s32.totalorder %s149, %s150
      %p162 = scmp.eq.s32.totalorder %s35, 1
      %p163 = por %p161, %p162
      %p165 = scmp.ne.s32.totalorder %s150, %s164
      %p166 = scmp.eq.s32.totalorder %s35, 0
      %p167 = por %p165, %p166
      %s169 = sadd.s32 %s168, 1
      %p172 = scmp.eq.s32.totalorder %s29, 1
      %p173 = scmp.ne.s32.totalorder %s168, %s170
      %p174 = scmp.eq.s32.totalorder %s29, 0
      %p175 = por %p173, %p174
      %p176 = scmp.ne.s32.totalorder %s168, %s170
      %p177 = scmp.eq.s32.totalorder %s34, 1
      %p178 = por %p176, %p177
      %p179 = scmp.ne.s32.totalorder %s170, %s171
      %p180 = scmp.eq.s32.totalorder %s34, 0
      %p181 = por %p179, %p180
      %p182 = scmp.ne.s32.totalorder %s170, %s171
      %p183 = scmp.eq.s32.totalorder %s35, 1
      %p184 = por %p182, %p183
      %p186 = scmp.ne.s32.totalorder %s171, %s185
      %p187 = scmp.eq.s32.totalorder %s35, 0
      %p188 = por %p186, %p187
      %s190 = sadd.s32 %s189, 1
      %p193 = scmp.eq.s32.totalorder %s29, 1
      %p194 = scmp.ne.s32.totalorder %s189, %s191
      %p195 = scmp.eq.s32.totalorder %s29, 0
      %p196 = por %p194, %p195
      %p197 = scmp.ne.s32.totalorder %s189, %s191
      %p198 = scmp.eq.s32.totalorder %s34, 1
      %p199 = por %p197, %p198
      %p200 = scmp.ne.s32.totalorder %s191, %s192
      %p201 = scmp.eq.s32.totalorder %s34, 0
      %p202 = por %p200, %p201
      %p203 = scmp.ne.s32.totalorder %s191, %s192
      %p204 = scmp.eq.s32.totalorder %s35, 1
      %p205 = por %p203, %p204
      %p207 = scmp.ne.s32.totalorder %s192, %s206
      %p208 = scmp.eq.s32.totalorder %s35, 0
      %p209 = por %p207, %p208
      %s211 = sadd.s32 %s210, 1
      %p214 = scmp.eq.s32.totalorder %s29, 1
      %p215 = scmp.ne.s32.totalorder %s210, %s212
      %p216 = scmp.eq.s32.totalorder %s29, 0
      %p217 = por %p215, %p216
      %p218 = scmp.ne.s32.totalorder %s210, %s212
      %p219 = scmp.eq.s32.totalorder %s34, 1
      %p220 = por %p218, %p219
      %p221 = scmp.ne.s32.totalorder %s212, %s213
      %p222 = scmp.eq.s32.totalorder %s34, 0
      %p223 = por %p221, %p222
      %p224 = scmp.ne.s32.totalorder %s212, %s213
      %p225 = scmp.eq.s32.totalorder %s35, 1
      %p226 = por %p224, %p225
      %p228 = scmp.ne.s32.totalorder %s213, %s227
      %p229 = scmp.eq.s32.totalorder %s35, 0
      %p230 = por %p228, %p229
      %s232 = sadd.s32 %s231, 1
      %p235 = scmp.eq.s32.totalorder %s29, 1
      %p236 = scmp.ne.s32.totalorder %s231, %s233
      %p237 = scmp.eq.s32.totalorder %s29, 0
      %p238 = por %p236, %p237
      %p239 = scmp.ne.s32.totalorder %s231, %s233
      %p240 = scmp.eq.s32.totalorder %s34, 1
      %p241 = por %p239, %p240
      %p242 = scmp.ne.s32.totalorder %s233, %s234
      %p243 = scmp.eq.s32.totalorder %s34, 0
      %p244 = por %p242, %p243
      %p245 = scmp.ne.s32.totalorder %s233, %s234
      %p246 = scmp.eq.s32.totalorder %s35, 1
      %p247 = por %p245, %p246
      %p249 = scmp.ne.s32.totalorder %s234, %s248
      %p250 = scmp.eq.s32.totalorder %s35, 0
      %p251 = por %p249, %p250
      %s253 = sadd.s32 %s252, 1
      %p256 = scmp.eq.s32.totalorder %s29, 1
      %p257 = scmp.ne.s32.totalorder %s252, %s254
      %p258 = scmp.eq.s32.totalorder %s29, 0
      %p259 = por %p257, %p258
      %p260 = scmp.ne.s32.totalorder %s252, %s254
      %p261 = scmp.eq.s32.totalorder %s34, 1
      %p262 = por %p260, %p261
      %p263 = scmp.ne.s32.totalorder %s254, %s255
      %p264 = scmp.eq.s32.totalorder %s34, 0
      %p265 = por %p263, %p264
      %p266 = scmp.ne.s32.totalorder %s254, %s255
      %p267 = scmp.eq.s32.totalorder %s35, 1
      %p268 = por %p266, %p267
      %p270 = scmp.ne.s32.totalorder %s255, %s269
      %p271 = scmp.eq.s32.totalorder %s35, 0
      %p272 = por %p270, %p271
      %s274 = sadd.s32 %s273, 1
      %p277 = scmp.eq.s32.totalorder %s29, 1
      %p278 = scmp.ne.s32.totalorder %s273, %s275
      %p279 = scmp.eq.s32.totalorder %s29, 0
      %p280 = por %p278, %p279
      %p281 = scmp.ne.s32.totalorder %s273, %s275
      %p282 = scmp.eq.s32.totalorder %s34, 1
      %p283 = por %p281, %p282
      %p284 = scmp.ne.s32.totalorder %s275, %s276
      %p285 = scmp.eq.s32.totalorder %s34, 0
      %p286 = por %p284, %p285
      %p287 = scmp.ne.s32.totalorder %s275, %s276
      %p288 = scmp.eq.s32.totalorder %s35, 1
      %p289 = por %p287, %p288
      %p291 = scmp.ne.s32.totalorder %s276, %s290
      %p292 = scmp.eq.s32.totalorder %s35, 0
      %p293 = por %p291, %p292
      %s295 = sadd.s32 %s294, 1
      %p298 = scmp.eq.s32.totalorder %s29, 1
      %p299 = scmp.ne.s32.totalorder %s294, %s296
      %p300 = scmp.eq.s32.totalorder %s29, 0
      %p301 = por %p299, %p300
      %p302 = scmp.ne.s32.totalorder %s294, %s296
      %p303 = scmp.eq.s32.totalorder %s34, 1
      %p304 = por %p302, %p303
      %p305 = scmp.ne.s32.totalorder %s296, %s297
      %p306 = scmp.eq.s32.totalorder %s34, 0
      %p307 = por %p305, %p306
      %p308 = scmp.ne.s32.totalorder %s296, %s297
      %p309 = scmp.eq.s32.totalorder %s35, 1
      %p310 = por %p308, %p309
      %p312 = scmp.ne.s32.totalorder %s297, %s311
      %p313 = scmp.eq.s32.totalorder %s35, 0
      %p314 = por %p312, %p313
      %s316 = sadd.s32 %s315, 1
      %p319 = scmp.eq.s32.totalorder %s29, 1
      %p320 = scmp.ne.s32.totalorder %s315, %s317
      %p321 = scmp.eq.s32.totalorder %s29, 0
      %p322 = por %p320, %p321
      %p323 = scmp.ne.s32.totalorder %s315, %s317
      %p324 = scmp.eq.s32.totalorder %s34, 1
      %p325 = por %p323, %p324
      %p326 = scmp.ne.s32.totalorder %s317, %s318
      %p327 = scmp.eq.s32.totalorder %s34, 0
      %p328 = por %p326, %p327
      %p329 = scmp.ne.s32.totalorder %s317, %s318
      %p330 = scmp.eq.s32.totalorder %s35, 1
      %p331 = por %p329, %p330
      %p333 = scmp.ne.s32.totalorder %s318, %s332
      %p334 = scmp.eq.s32.totalorder %s35, 0
      %p335 = por %p333, %p334
      %s337 = sadd.s32 %s336, 1
      %p340 = scmp.eq.s32.totalorder %s29, 1
      %p341 = scmp.ne.s32.totalorder %s336, %s338
      %p342 = scmp.eq.s32.totalorder %s29, 0
      %p343 = por %p341, %p342
      %p344 = scmp.ne.s32.totalorder %s336, %s338
      %p345 = scmp.eq.s32.totalorder %s34, 1
      %p346 = por %p344, %p345
      %p347 = scmp.ne.s32.totalorder %s338, %s339
      %p348 = scmp.eq.s32.totalorder %s34, 0
      %p349 = por %p347, %p348
      %p350 = scmp.ne.s32.totalorder %s338, %s339
      %p351 = scmp.eq.s32.totalorder %s35, 1
      %p352 = por %p350, %p351
      %p354 = scmp.ne.s32.totalorder %s339, %s353
      %p355 = scmp.eq.s32.totalorder %s35, 0
      %p356 = por %p354, %p355
      %s357 = ssub.s32 %s29, %s36
      %p358 = scmp.eq.s32.totalorder %s357, 0
      %s360 = sadd.s32 %s359, 1
      %s361 = scalar_select %p358, %s359, %s360
      %p364 = pneg %p358
      %p365 = scmp.eq.s32.totalorder %s29, 1
      %p366 = por %p364, %p365
      %p367 = scmp.ne.s32.totalorder %s359, %s362
      %p368 = scmp.eq.s32.totalorder %s29, 0
      %p369 = por %p367, %p368
      %p370 = scmp.ne.s32.totalorder %s359, %s362
      %p371 = scmp.eq.s32.totalorder %s34, 1
      %p372 = por %p370, %p371
      %p373 = scmp.ne.s32.totalorder %s362, %s363
      %p374 = scmp.eq.s32.totalorder %s34, 0
      %p375 = por %p373, %p374
      %p376 = scmp.ne.s32.totalorder %s362, %s363
      %p377 = scmp.eq.s32.totalorder %s35, 1
      %p378 = por %p376, %p377
      %p380 = scmp.ne.s32.totalorder %s363, %s379
      %p381 = scmp.eq.s32.totalorder %s35, 0
      %p382 = por %p380, %p381
      %s383 = ssub.s32 %s29, %s36
      %p384 = scmp.eq.s32.totalorder %s383, 0
      %s386 = sadd.s32 %s385, 1
      %s387 = scalar_select %p384, %s385, %s386
      %p390 = pneg %p384
      %p391 = scmp.eq.s32.totalorder %s29, 1
      %p392 = por %p390, %p391
      %p393 = scmp.ne.s32.totalorder %s385, %s388
      %p394 = scmp.eq.s32.totalorder %s29, 0
      %p395 = por %p393, %p394
      %p396 = scmp.ne.s32.totalorder %s385, %s388
      %p397 = scmp.eq.s32.totalorder %s34, 1
      %p398 = por %p396, %p397
      %p399 = scmp.ne.s32.totalorder %s388, %s389
      %p400 = scmp.eq.s32.totalorder %s34, 0
      %p401 = por %p399, %p400
      %p402 = scmp.ne.s32.totalorder %s388, %s389
      %p403 = scmp.eq.s32.totalorder %s35, 1
      %p404 = por %p402, %p403
      %p406 = scmp.ne.s32.totalorder %s389, %s405
      %p407 = scmp.eq.s32.totalorder %s35, 0
      %p408 = por %p406, %p407
      %p409 = scmp.le.s32.totalorder 1, %s29
      %p410 = scmp.lt.s32.totalorder %s29, 3
      %p411 = pnand %p409, %p410
      %p412 = pneg %p411
      // Predicated region
      $region9: #{_lambda_.1} parent=5 // pred_check
        _
      $region10: #{_lambda_.1} parent=5 // pred_check_branch
        %414 = sbr.rel (%p411) target = $region12
      $region11: #{_lambda_.1} parent=5 // pred_region
        %s415 = ssub.s32 %s29, 1
        // Predicated region
        $region13: #{_lambda_.1} parent=11 // pred_check
          %p416 = pneg %p76
        $region14: #{_lambda_.1} parent=11 // pred_check_branch
          %418 = sbr.rel (%p416) target = $region16
        $region15: #{_lambda_.1} parent=11 // pred_region
          _
        $region16: #{_lambda_.1} parent=11 // pred_fallthru
          _
        // Predicated region
        $region17: #{_lambda_.1} parent=11 // pred_check
          %p419 = pneg %p97
        $region18: #{_lambda_.1} parent=11 // pred_check_branch
          %421 = sbr.rel (%p419) target = $region20
        $region19: #{_lambda_.1} parent=11 // pred_region
          _
        $region20: #{_lambda_.1} parent=11 // pred_fallthru
          _
        // Predicated region
        $region21: #{_lambda_.1} parent=11 // pred_check
          %p422 = pneg %p118
        $region22: #{_lambda_.1} parent=11 // pred_check_branch
          %424 = sbr.rel (%p422) target = $region24
        $region23: #{_lambda_.1} parent=11 // pred_region
          _
        $region24: #{_lambda_.1} parent=11 // pred_fallthru
          _
        // Predicated region
        $region25: #{_lambda_.1} parent=11 // pred_check
          %p425 = pneg %p139
        $region26: #{_lambda_.1} parent=11 // pred_check_branch
          %427 = sbr.rel (%p425) target = $region28
        $region27: #{_lambda_.1} parent=11 // pred_region
          _
        $region28: #{_lambda_.1} parent=11 // pred_fallthru
          _
        // Predicated region
        $region29: #{_lambda_.1} parent=11 // pred_check
          %p428 = pneg %p160
        $region30: #{_lambda_.1} parent=11 // pred_check_branch
          %430 = sbr.rel (%p428) target = $region32
        $region31: #{_lambda_.1} parent=11 // pred_region
          _
        $region32: #{_lambda_.1} parent=11 // pred_fallthru
          _
        // Predicated region
        $region33: #{_lambda_.1} parent=11 // pred_check
          %p431 = pneg %p181
        $region34: #{_lambda_.1} parent=11 // pred_check_branch
          %433 = sbr.rel (%p431) target = $region36
        $region35: #{_lambda_.1} parent=11 // pred_region
          _
        $region36: #{_lambda_.1} parent=11 // pred_fallthru
          _
        // Predicated region
        $region37: #{_lambda_.1} parent=11 // pred_check
          %p434 = pneg %p202
        $region38: #{_lambda_.1} parent=11 // pred_check_branch
          %436 = sbr.rel (%p434) target = $region40
        $region39: #{_lambda_.1} parent=11 // pred_region
          _
        $region40: #{_lambda_.1} parent=11 // pred_fallthru
          _
        // Predicated region
        $region41: #{_lambda_.1} parent=11 // pred_check
          %p437 = pneg %p223
        $region42: #{_lambda_.1} parent=11 // pred_check_branch
          %439 = sbr.rel (%p437) target = $region44
        $region43: #{_lambda_.1} parent=11 // pred_region
          _
        $region44: #{_lambda_.1} parent=11 // pred_fallthru
          _
        // Predicated region
        $region45: #{_lambda_.1} parent=11 // pred_check
          %p440 = pneg %p244
        $region46: #{_lambda_.1} parent=11 // pred_check_branch
          %442 = sbr.rel (%p440) target = $region48
        $region47: #{_lambda_.1} parent=11 // pred_region
          _
        $region48: #{_lambda_.1} parent=11 // pred_fallthru
          _
        // Predicated region
        $region49: #{_lambda_.1} parent=11 // pred_check
          %p443 = pneg %p265
        $region50: #{_lambda_.1} parent=11 // pred_check_branch
          %445 = sbr.rel (%p443) target = $region52
        $region51: #{_lambda_.1} parent=11 // pred_region
          _
        $region52: #{_lambda_.1} parent=11 // pred_fallthru
          _
        // Predicated region
        $region53: #{_lambda_.1} parent=11 // pred_check
          %p446 = pneg %p286
        $region54: #{_lambda_.1} parent=11 // pred_check_branch
          %448 = sbr.rel (%p446) target = $region56
        $region55: #{_lambda_.1} parent=11 // pred_region
          _
        $region56: #{_lambda_.1} parent=11 // pred_fallthru
          _
        // Predicated region
        $region57: #{_lambda_.1} parent=11 // pred_check
          %p449 = pneg %p307
        $region58: #{_lambda_.1} parent=11 // pred_check_branch
          %451 = sbr.rel (%p449) target = $region60
        $region59: #{_lambda_.1} parent=11 // pred_region
          _
        $region60: #{_lambda_.1} parent=11 // pred_fallthru
          _
        // Predicated region
        $region61: #{_lambda_.1} parent=11 // pred_check
          %p452 = pneg %p328
        $region62: #{_lambda_.1} parent=11 // pred_check_branch
          %454 = sbr.rel (%p452) target = $region64
        $region63: #{_lambda_.1} parent=11 // pred_region
          _
        $region64: #{_lambda_.1} parent=11 // pred_fallthru
          _
        // Predicated region
        $region65: #{_lambda_.1} parent=11 // pred_check
          %p455 = pneg %p349
        $region66: #{_lambda_.1} parent=11 // pred_check_branch
          %457 = sbr.rel (%p455) target = $region68
        $region67: #{_lambda_.1} parent=11 // pred_region
          _
        $region68: #{_lambda_.1} parent=11 // pred_fallthru
          _
      $region12: #{_lambda_.1} parent=5 // pred_fallthru
        _
      %p458 = scmp.lt.s32.totalorder %s29, 2
      // Predicated region
      $region69: #{_lambda_.1} parent=5 // pred_check
        %p459 = pneg %p458
      $region70: #{_lambda_.1} parent=5 // pred_check_branch
        %461 = sbr.rel (%p459) target = $region72
      $region71: #{_lambda_.1} parent=5 // pred_region
        // Predicated region
        $region73: #{_lambda_.1} parent=71 // pred_check
          %p462 = pneg %p49
        $region74: #{_lambda_.1} parent=71 // pred_check_branch
          %464 = sbr.rel (%p462) target = $region76
        $region75: #{_lambda_.1} parent=71 // pred_region
          %p465 = scmp.lt.s32.totalorder %s29, 1
          %s466 = scalar_select %p465, %s29, 1
          %s467 = smul.addr %s466, 128
          %s468 = smul.addr %s467, 4
          %s469 = scalar_lea.vmem %s0, %s468
        $region76: #{_lambda_.1} parent=71 // pred_fallthru
          _
      $region72: #{_lambda_.1} parent=5 // pred_fallthru
        _
      %p470 = scmp.le.s32.totalorder 1, %s29
      %p471 = scmp.lt.s32.totalorder %s29, 3
      %p472 = pnand %p470, %p471
      %p473 = pneg %p472
      // Predicated region
      $region77: #{_lambda_.1} parent=5 // pred_check
        _
      $region78: #{_lambda_.1} parent=5 // pred_check_branch
        %475 = sbr.rel (%p472) target = $region80
      $region79: #{_lambda_.1} parent=5 // pred_region
        %s476 = ssub.s32 %s29, 1
        %p477 = scmp.lt.s32.totalorder %s34, 1
        %s478 = scalar_select %p477, %s34, 1
        %s479 = smul.addr %s478, 128
        %s480 = smul.addr %s479, 4
        %s481 = scalar_lea.vmem %s0, %s480
        %p482 = pneg %p55
        %p483 = pneg %p52
        %p484 = pneg %p76
        %p485 = pneg %p73
        %p486 = pneg %p97
        %p487 = pneg %p94
        %p488 = pneg %p118
        %p489 = pneg %p115
        %p490 = pneg %p139
        %p491 = pneg %p136
        %p492 = pneg %p160
        %p493 = pneg %p157
        %p494 = pneg %p181
        %p495 = pneg %p178
        %p496 = pneg %p202
        %p497 = pneg %p199
        %p498 = pneg %p223
        %p499 = pneg %p220
        %p500 = pneg %p244
        %p501 = pneg %p241
        %p502 = pneg %p265
        %p503 = pneg %p262
        %p504 = pneg %p286
        %p505 = pneg %p283
        %p506 = pneg %p307
        %p507 = pneg %p304
        %p508 = pneg %p328
        %p509 = pneg %p325
        %p510 = pneg %p349
        %p511 = pneg %p346
        %p512 = pneg %p375
        %p513 = pneg %p372
        %s514 = sand.u32 %s362, 1
        %s515 = scalar_lea.sflag [#allocation3], %s514
        %s516 = sand.u32 %s362, 1
        %s517 = scalar_lea.vmem [#allocation2], %s516
        %p518 = pneg %p401
        %p519 = pneg %p398
        %s520 = sand.u32 %s388, 1
        %s521 = scalar_lea.sflag [#allocation5], %s520
        %s522 = sand.u32 %s388, 1
        %s523 = scalar_lea.vmem [#allocation4], %s522
        %p524 = scmp.lt.s32.totalorder %s34, 1
        %s525 = scalar_select %p524, %s34, 1
        %s526 = smul.addr %s525, 128
        %s527 = smul.addr %s526, 4
        %s528 = scalar_lea.vmem %s0, %s527
        %v530 = vld [vmem:[%s528] sm:$0xf]
        %v531 = vld [vmem:[%s528 + $0x4] sm:$0xf]
        %v532 = vld [vmem:[%s528 + $0x8] sm:$0xf]
        %v533 = vld [vmem:[%s528 + $0xc] sm:$0xf]
        %v534 = vld [vmem:[%s528 + $0x10] sm:$0xf]
        %v535 = vld [vmem:[%s528 + $0x14] sm:$0xf]
        %v536 = vld [vmem:[%s528 + $0x18] sm:$0xf]
        %v537 = vld [vmem:[%s528 + $0x1c] sm:$0xf]
        %v538 = vld [vmem:[%s528 + $0x20] sm:$0xf]
        %v539 = vld [vmem:[%s528 + $0x24] sm:$0xf]
        %v540 = vld [vmem:[%s528 + $0x28] sm:$0xf]
        %v541 = vld [vmem:[%s528 + $0x2c] sm:$0xf]
        %v542 = vld [vmem:[%s528 + $0x30] sm:$0xf]
        %v543 = vld [vmem:[%s528 + $0x34] sm:$0xf]
        %v544 = vld [vmem:[%s528 + $0x38] sm:$0xf]
        %v545 = vld [vmem:[%s528 + $0x3c] sm:$0xf]
        %v546 = vld [vmem:[%s528 + $0x40] sm:$0xf]
        %v547 = vld [vmem:[%s528 + $0x44] sm:$0xf]
        %v548 = vld [vmem:[%s528 + $0x48] sm:$0xf]
        %v549 = vld [vmem:[%s528 + $0x4c] sm:$0xf]
        %v550 = vld [vmem:[%s528 + $0x50] sm:$0xf]
        %v551 = vld [vmem:[%s528 + $0x54] sm:$0xf]
        %v552 = vld [vmem:[%s528 + $0x58] sm:$0xf]
        %v553 = vld [vmem:[%s528 + $0x5c] sm:$0xf]
        %v554 = vld [vmem:[%s528 + $0x60] sm:$0xf]
        %v555 = vld [vmem:[%s528 + $0x64] sm:$0xf]
        %v556 = vld [vmem:[%s528 + $0x68] sm:$0xf]
        %v557 = vld [vmem:[%s528 + $0x6c] sm:$0xf]
        %v558 = vld [vmem:[%s528 + $0x70] sm:$0xf]
        %v559 = vld [vmem:[%s528 + $0x74] sm:$0xf]
        %v560 = vld [vmem:[%s528 + $0x78] sm:$0xf]
        %v561 = vld [vmem:[%s528 + $0x7c] sm:$0xf]
        %v562 = vld [vmem:[%s528 + $0x80] sm:$0xf]
        %v563 = vld [vmem:[%s528 + $0x84] sm:$0xf]
        %v564 = vld [vmem:[%s528 + $0x88] sm:$0xf]
        %v565 = vld [vmem:[%s528 + $0x8c] sm:$0xf]
        %v566 = vld [vmem:[%s528 + $0x90] sm:$0xf]
        %v567 = vld [vmem:[%s528 + $0x94] sm:$0xf]
        %v568 = vld [vmem:[%s528 + $0x98] sm:$0xf]
        %v569 = vld [vmem:[%s528 + $0x9c] sm:$0xf]
        %v570 = vld [vmem:[%s528 + $0xa0] sm:$0xf]
        %v571 = vld [vmem:[%s528 + $0xa4] sm:$0xf]
        %v572 = vld [vmem:[%s528 + $0xa8] sm:$0xf]
        %v573 = vld [vmem:[%s528 + $0xac] sm:$0xf]
        %v574 = vld [vmem:[%s528 + $0xb0] sm:$0xf]
        %v575 = vld [vmem:[%s528 + $0xb4] sm:$0xf]
        %v576 = vld [vmem:[%s528 + $0xb8] sm:$0xf]
        %v577 = vld [vmem:[%s528 + $0xbc] sm:$0xf]
        %v578 = vld [vmem:[%s528 + $0xc0] sm:$0xf]
        %v579 = vld [vmem:[%s528 + $0xc4] sm:$0xf]
        %v580 = vld [vmem:[%s528 + $0xc8] sm:$0xf]
        %v581 = vld [vmem:[%s528 + $0xcc] sm:$0xf]
        %v582 = vld [vmem:[%s528 + $0xd0] sm:$0xf]
        %v583 = vld [vmem:[%s528 + $0xd4] sm:$0xf]
        %v584 = vld [vmem:[%s528 + $0xd8] sm:$0xf]
        %v585 = vld [vmem:[%s528 + $0xdc] sm:$0xf]
        %v586 = vld [vmem:[%s528 + $0xe0] sm:$0xf]
        %v587 = vld [vmem:[%s528 + $0xe4] sm:$0xf]
        %v588 = vld [vmem:[%s528 + $0xe8] sm:$0xf]
        %v589 = vld [vmem:[%s528 + $0xec] sm:$0xf]
        %v590 = vld [vmem:[%s528 + $0xf0] sm:$0xf]
        %v591 = vld [vmem:[%s528 + $0xf4] sm:$0xf]
        %v592 = vld [vmem:[%s528 + $0xf8] sm:$0xf]
        %v593 = vld [vmem:[%s528 + $0xfc] sm:$0xf]
        %v594 = vld [vmem:[%s528 + $0x100] sm:$0xf]
        %v595 = vld [vmem:[%s528 + $0x104] sm:$0xf]
        %v596 = vld [vmem:[%s528 + $0x108] sm:$0xf]
        %v597 = vld [vmem:[%s528 + $0x10c] sm:$0xf]
        %v598 = vld [vmem:[%s528 + $0x110] sm:$0xf]
        %v599 = vld [vmem:[%s528 + $0x114] sm:$0xf]
        %v600 = vld [vmem:[%s528 + $0x118] sm:$0xf]
        %v601 = vld [vmem:[%s528 + $0x11c] sm:$0xf]
        %v602 = vld [vmem:[%s528 + $0x120] sm:$0xf]
        %v603 = vld [vmem:[%s528 + $0x124] sm:$0xf]
        %v604 = vld [vmem:[%s528 + $0x128] sm:$0xf]
        %v605 = vld [vmem:[%s528 + $0x12c] sm:$0xf]
        %v606 = vld [vmem:[%s528 + $0x130] sm:$0xf]
        %v607 = vld [vmem:[%s528 + $0x134] sm:$0xf]
        %v608 = vld [vmem:[%s528 + $0x138] sm:$0xf]
        %v609 = vld [vmem:[%s528 + $0x13c] sm:$0xf]
        %v610 = vld [vmem:[%s528 + $0x140] sm:$0xf]
        %v611 = vld [vmem:[%s528 + $0x144] sm:$0xf]
        %v612 = vld [vmem:[%s528 + $0x148] sm:$0xf]
        %v613 = vld [vmem:[%s528 + $0x14c] sm:$0xf]
        %v614 = vld [vmem:[%s528 + $0x150] sm:$0xf]
        %v615 = vld [vmem:[%s528 + $0x154] sm:$0xf]
        %v616 = vld [vmem:[%s528 + $0x158] sm:$0xf]
        %v617 = vld [vmem:[%s528 + $0x15c] sm:$0xf]
        %v618 = vld [vmem:[%s528 + $0x160] sm:$0xf]
        %v619 = vld [vmem:[%s528 + $0x164] sm:$0xf]
        %v620 = vld [vmem:[%s528 + $0x168] sm:$0xf]
        %v621 = vld [vmem:[%s528 + $0x16c] sm:$0xf]
        %v622 = vld [vmem:[%s528 + $0x170] sm:$0xf]
        %v623 = vld [vmem:[%s528 + $0x174] sm:$0xf]
        %v624 = vld [vmem:[%s528 + $0x178] sm:$0xf]
        %v625 = vld [vmem:[%s528 + $0x17c] sm:$0xf]
        %v626 = vld [vmem:[%s528 + $0x180] sm:$0xf]
        %v627 = vld [vmem:[%s528 + $0x184] sm:$0xf]
        %v628 = vld [vmem:[%s528 + $0x188] sm:$0xf]
        %v629 = vld [vmem:[%s528 + $0x18c] sm:$0xf]
        %v630 = vld [vmem:[%s528 + $0x190] sm:$0xf]
        %v631 = vld [vmem:[%s528 + $0x194] sm:$0xf]
        %v632 = vld [vmem:[%s528 + $0x198] sm:$0xf]
        %v633 = vld [vmem:[%s528 + $0x19c] sm:$0xf]
        %v634 = vld [vmem:[%s528 + $0x1a0] sm:$0xf]
        %v635 = vld [vmem:[%s528 + $0x1a4] sm:$0xf]
        %v636 = vld [vmem:[%s528 + $0x1a8] sm:$0xf]
        %v637 = vld [vmem:[%s528 + $0x1ac] sm:$0xf]
        %v638 = vld [vmem:[%s528 + $0x1b0] sm:$0xf]
        %v639 = vld [vmem:[%s528 + $0x1b4] sm:$0xf]
        %v640 = vld [vmem:[%s528 + $0x1b8] sm:$0xf]
        %v641 = vld [vmem:[%s528 + $0x1bc] sm:$0xf]
        %v642 = vld [vmem:[%s528 + $0x1c0] sm:$0xf]
        %v643 = vld [vmem:[%s528 + $0x1c4] sm:$0xf]
        %v644 = vld [vmem:[%s528 + $0x1c8] sm:$0xf]
        %v645 = vld [vmem:[%s528 + $0x1cc] sm:$0xf]
        %v646 = vld [vmem:[%s528 + $0x1d0] sm:$0xf]
        %v647 = vld [vmem:[%s528 + $0x1d4] sm:$0xf]
        %v648 = vld [vmem:[%s528 + $0x1d8] sm:$0xf]
        %v649 = vld [vmem:[%s528 + $0x1dc] sm:$0xf]
        %v650 = vld [vmem:[%s528 + $0x1e0] sm:$0xf]
        %v651 = vld [vmem:[%s528 + $0x1e4] sm:$0xf]
        %v652 = vld [vmem:[%s528 + $0x1e8] sm:$0xf]
        %v653 = vld [vmem:[%s528 + $0x1ec] sm:$0xf]
        %v654 = vld [vmem:[%s528 + $0x1f0] sm:$0xf]
        %v655 = vld [vmem:[%s528 + $0x1f4] sm:$0xf]
        %v656 = vld [vmem:[%s528 + $0x1f8] sm:$0xf]
        %v657 = vld [vmem:[%s528 + $0x1fc] sm:$0xf]
        %v658 = vld [vmem:[%s1] sm:$0xf]
        %v659 = vld [vmem:[%s1 + $0x4] sm:$0xf]
        %v660 = vld [vmem:[%s1 + $0x8] sm:$0xf]
        %v661 = vld [vmem:[%s1 + $0xc] sm:$0xf]
        %v790 = vunpack.c.l.b16 %v530
        %v791 = vunpack.c.l.b16 %v531
        %v792 = vunpack.c.l.b16 %v532
        %v793 = vunpack.c.l.b16 %v533
        %v794 = vunpack.c.l.b16 %v534
        %v795 = vunpack.c.l.b16 %v535
        %v796 = vunpack.c.l.b16 %v536
        %v797 = vunpack.c.l.b16 %v537
        %v798 = vunpack.c.l.b16 %v538
        %v799 = vunpack.c.l.b16 %v539
        %v800 = vunpack.c.l.b16 %v540
        %v801 = vunpack.c.l.b16 %v541
        %v802 = vunpack.c.l.b16 %v542
        %v803 = vunpack.c.l.b16 %v543
        %v804 = vunpack.c.l.b16 %v544
        %v805 = vunpack.c.l.b16 %v545
        %v806 = vunpack.c.l.b16 %v546
        %v807 = vunpack.c.l.b16 %v547
        %v808 = vunpack.c.l.b16 %v548
        %v809 = vunpack.c.l.b16 %v549
        %v810 = vunpack.c.l.b16 %v550
        %v811 = vunpack.c.l.b16 %v551
        %v812 = vunpack.c.l.b16 %v552
        %v813 = vunpack.c.l.b16 %v553
        %v814 = vunpack.c.l.b16 %v554
        %v815 = vunpack.c.l.b16 %v555
        %v816 = vunpack.c.l.b16 %v556
        %v817 = vunpack.c.l.b16 %v557
        %v818 = vunpack.c.l.b16 %v558
        %v819 = vunpack.c.l.b16 %v559
        %v820 = vunpack.c.l.b16 %v560
        %v821 = vunpack.c.l.b16 %v561
        %v822 = vunpack.c.l.b16 %v562
        %v823 = vunpack.c.l.b16 %v563
        %v824 = vunpack.c.l.b16 %v564
        %v825 = vunpack.c.l.b16 %v565
        %v826 = vunpack.c.l.b16 %v566
        %v827 = vunpack.c.l.b16 %v567
        %v828 = vunpack.c.l.b16 %v568
        %v829 = vunpack.c.l.b16 %v569
        %v830 = vunpack.c.l.b16 %v570
        %v831 = vunpack.c.l.b16 %v571
        %v832 = vunpack.c.l.b16 %v572
        %v833 = vunpack.c.l.b16 %v573
        %v834 = vunpack.c.l.b16 %v574
        %v835 = vunpack.c.l.b16 %v575
        %v836 = vunpack.c.l.b16 %v576
        %v837 = vunpack.c.l.b16 %v577
        %v838 = vunpack.c.l.b16 %v578
        %v839 = vunpack.c.l.b16 %v579
        %v840 = vunpack.c.l.b16 %v580
        %v841 = vunpack.c.l.b16 %v581
        %v842 = vunpack.c.l.b16 %v582
        %v843 = vunpack.c.l.b16 %v583
        %v844 = vunpack.c.l.b16 %v584
        %v845 = vunpack.c.l.b16 %v585
        %v846 = vunpack.c.l.b16 %v586
        %v847 = vunpack.c.l.b16 %v587
        %v848 = vunpack.c.l.b16 %v588
        %v849 = vunpack.c.l.b16 %v589
        %v850 = vunpack.c.l.b16 %v590
        %v851 = vunpack.c.l.b16 %v591
        %v852 = vunpack.c.l.b16 %v592
        %v853 = vunpack.c.l.b16 %v593
        %v854 = vunpack.c.l.b16 %v594
        %v855 = vunpack.c.l.b16 %v595
        %v856 = vunpack.c.l.b16 %v596
        %v857 = vunpack.c.l.b16 %v597
        %v858 = vunpack.c.l.b16 %v598
        %v859 = vunpack.c.l.b16 %v599
        %v860 = vunpack.c.l.b16 %v600
        %v861 = vunpack.c.l.b16 %v601
        %v862 = vunpack.c.l.b16 %v602
        %v863 = vunpack.c.l.b16 %v603
        %v864 = vunpack.c.l.b16 %v604
        %v865 = vunpack.c.l.b16 %v605
        %v866 = vunpack.c.l.b16 %v606
        %v867 = vunpack.c.l.b16 %v607
        %v868 = vunpack.c.l.b16 %v608
        %v869 = vunpack.c.l.b16 %v609
        %v870 = vunpack.c.l.b16 %v610
        %v871 = vunpack.c.l.b16 %v611
        %v872 = vunpack.c.l.b16 %v612
        %v873 = vunpack.c.l.b16 %v613
        %v874 = vunpack.c.l.b16 %v614
        %v875 = vunpack.c.l.b16 %v615
        %v876 = vunpack.c.l.b16 %v616
        %v877 = vunpack.c.l.b16 %v617
        %v878 = vunpack.c.l.b16 %v618
        %v879 = vunpack.c.l.b16 %v619
        %v880 = vunpack.c.l.b16 %v620
        %v881 = vunpack.c.l.b16 %v621
        %v882 = vunpack.c.l.b16 %v622
        %v883 = vunpack.c.l.b16 %v623
        %v884 = vunpack.c.l.b16 %v624
        %v885 = vunpack.c.l.b16 %v625
        %v886 = vunpack.c.l.b16 %v626
        %v887 = vunpack.c.l.b16 %v627
        %v888 = vunpack.c.l.b16 %v628
        %v889 = vunpack.c.l.b16 %v629
        %v890 = vunpack.c.l.b16 %v630
        %v891 = vunpack.c.l.b16 %v631
        %v892 = vunpack.c.l.b16 %v632
        %v893 = vunpack.c.l.b16 %v633
        %v894 = vunpack.c.l.b16 %v634
        %v895 = vunpack.c.l.b16 %v635
        %v896 = vunpack.c.l.b16 %v636
        %v897 = vunpack.c.l.b16 %v637
        %v898 = vunpack.c.l.b16 %v638
        %v899 = vunpack.c.l.b16 %v639
        %v900 = vunpack.c.l.b16 %v640
        %v901 = vunpack.c.l.b16 %v641
        %v902 = vunpack.c.l.b16 %v642
        %v903 = vunpack.c.l.b16 %v643
        %v904 = vunpack.c.l.b16 %v644
        %v905 = vunpack.c.l.b16 %v645
        %v906 = vunpack.c.l.b16 %v646
        %v907 = vunpack.c.l.b16 %v647
        %v908 = vunpack.c.l.b16 %v648
        %v909 = vunpack.c.l.b16 %v649
        %v910 = vunpack.c.l.b16 %v650
        %v911 = vunpack.c.l.b16 %v651
        %v912 = vunpack.c.l.b16 %v652
        %v913 = vunpack.c.l.b16 %v653
        %v914 = vunpack.c.l.b16 %v654
        %v915 = vunpack.c.l.b16 %v655
        %v916 = vunpack.c.l.b16 %v656
        %v917 = vunpack.c.l.b16 %v657
        %v918 = vpack.c.b16 %v791, %v790
        %v919 = vpack.c.b16 %v793, %v792
        %v920 = vpack.c.b16 %v795, %v794
        %v921 = vpack.c.b16 %v797, %v796
        %v922 = vpack.c.b16 %v799, %v798
        %v923 = vpack.c.b16 %v801, %v800
        %v924 = vpack.c.b16 %v803, %v802
        %v925 = vpack.c.b16 %v805, %v804
        %v926 = vpack.c.b16 %v807, %v806
        %v927 = vpack.c.b16 %v809, %v808
        %v928 = vpack.c.b16 %v811, %v810
        %v929 = vpack.c.b16 %v813, %v812
        %v930 = vpack.c.b16 %v815, %v814
        %v931 = vpack.c.b16 %v817, %v816
        %v932 = vpack.c.b16 %v819, %v818
        %v933 = vpack.c.b16 %v821, %v820
        %v934 = vpack.c.b16 %v823, %v822
        %v935 = vpack.c.b16 %v825, %v824
        %v936 = vpack.c.b16 %v827, %v826
        %v937 = vpack.c.b16 %v829, %v828
        %v938 = vpack.c.b16 %v831, %v830
        %v939 = vpack.c.b16 %v833, %v832
        %v940 = vpack.c.b16 %v835, %v834
        %v941 = vpack.c.b16 %v837, %v836
        %v942 = vpack.c.b16 %v839, %v838
        %v943 = vpack.c.b16 %v841, %v840
        %v944 = vpack.c.b16 %v843, %v842
        %v945 = vpack.c.b16 %v845, %v844
        %v946 = vpack.c.b16 %v847, %v846
        %v947 = vpack.c.b16 %v849, %v848
        %v948 = vpack.c.b16 %v851, %v850
        %v949 = vpack.c.b16 %v853, %v852
        %v950 = vpack.c.b16 %v855, %v854
        %v951 = vpack.c.b16 %v857, %v856
        %v952 = vpack.c.b16 %v859, %v858
        %v953 = vpack.c.b16 %v861, %v860
        %v954 = vpack.c.b16 %v863, %v862
        %v955 = vpack.c.b16 %v865, %v864
        %v956 = vpack.c.b16 %v867, %v866
        %v957 = vpack.c.b16 %v869, %v868
        %v958 = vpack.c.b16 %v871, %v870
        %v959 = vpack.c.b16 %v873, %v872
        %v960 = vpack.c.b16 %v875, %v874
        %v961 = vpack.c.b16 %v877, %v876
        %v962 = vpack.c.b16 %v879, %v878
        %v963 = vpack.c.b16 %v881, %v880
        %v964 = vpack.c.b16 %v883, %v882
        %v965 = vpack.c.b16 %v885, %v884
        %v966 = vpack.c.b16 %v887, %v886
        %v967 = vpack.c.b16 %v889, %v888
        %v968 = vpack.c.b16 %v891, %v890
        %v969 = vpack.c.b16 %v893, %v892
        %v970 = vpack.c.b16 %v895, %v894
        %v971 = vpack.c.b16 %v897, %v896
        %v972 = vpack.c.b16 %v899, %v898
        %v973 = vpack.c.b16 %v901, %v900
        %v974 = vpack.c.b16 %v903, %v902
        %v975 = vpack.c.b16 %v905, %v904
        %v976 = vpack.c.b16 %v907, %v906
        %v977 = vpack.c.b16 %v909, %v908
        %v978 = vpack.c.b16 %v911, %v910
        %v979 = vpack.c.b16 %v913, %v912
        %v980 = vpack.c.b16 %v915, %v914
        %v981 = vpack.c.b16 %v917, %v916
        %v986 = vunpack.c.l.b16 %v658
        %v987 = vunpack.c.l.b16 %v659
        %v988 = vunpack.c.l.b16 %v660
        %v989 = vunpack.c.l.b16 %v661
        %v990 = vpack.c.b16 %v987, %v986
        %v991 = vpack.c.b16 %v989, %v988
        %vm994 = vcmask 261120
        %v996 = vsel %vm994, %v918, 0
        %v999 = vsel %vm994, %v919, 0
        %v1002 = vsel %vm994, %v920, 0
        %v1005 = vsel %vm994, %v921, 0
        %v1008 = vsel %vm994, %v922, 0
        %v1011 = vsel %vm994, %v923, 0
        %v1014 = vsel %vm994, %v924, 0
        %v1017 = vsel %vm994, %v925, 0
        %v1020 = vsel %vm994, %v926, 0
        %v1023 = vsel %vm994, %v927, 0
        %v1026 = vsel %vm994, %v928, 0
        %v1029 = vsel %vm994, %v929, 0
        %v1032 = vsel %vm994, %v930, 0
        %v1035 = vsel %vm994, %v931, 0
        %v1038 = vsel %vm994, %v932, 0
        %v1041 = vsel %vm994, %v933, 0
        %v1044 = vsel %vm994, %v934, 0
        %v1047 = vsel %vm994, %v935, 0
        %v1050 = vsel %vm994, %v936, 0
        %v1053 = vsel %vm994, %v937, 0
        %v1056 = vsel %vm994, %v938, 0
        %v1059 = vsel %vm994, %v939, 0
        %v1062 = vsel %vm994, %v940, 0
        %v1065 = vsel %vm994, %v941, 0
        %v1068 = vsel %vm994, %v942, 0
        %v1071 = vsel %vm994, %v943, 0
        %v1074 = vsel %vm994, %v944, 0
        %v1077 = vsel %vm994, %v945, 0
        %v1080 = vsel %vm994, %v946, 0
        %v1083 = vsel %vm994, %v947, 0
        %v1086 = vsel %vm994, %v948, 0
        %v1089 = vsel %vm994, %v949, 0
        %v1092 = vsel %vm994, %v950, 0
        %v1095 = vsel %vm994, %v951, 0
        %v1098 = vsel %vm994, %v952, 0
        %v1101 = vsel %vm994, %v953, 0
        %v1104 = vsel %vm994, %v954, 0
        %v1107 = vsel %vm994, %v955, 0
        %v1110 = vsel %vm994, %v956, 0
        %v1113 = vsel %vm994, %v957, 0
        %v1116 = vsel %vm994, %v958, 0
        %v1119 = vsel %vm994, %v959, 0
        %v1122 = vsel %vm994, %v960, 0
        %v1125 = vsel %vm994, %v961, 0
        %v1128 = vsel %vm994, %v962, 0
        %v1131 = vsel %vm994, %v963, 0
        %v1134 = vsel %vm994, %v964, 0
        %v1137 = vsel %vm994, %v965, 0
        %v1140 = vsel %vm994, %v966, 0
        %v1143 = vsel %vm994, %v967, 0
        %v1146 = vsel %vm994, %v968, 0
        %v1149 = vsel %vm994, %v969, 0
        %v1152 = vsel %vm994, %v970, 0
        %v1155 = vsel %vm994, %v971, 0
        %v1158 = vsel %vm994, %v972, 0
        %v1161 = vsel %vm994, %v973, 0
        %v1164 = vsel %vm994, %v974, 0
        %v1167 = vsel %vm994, %v975, 0
        %v1170 = vsel %vm994, %v976, 0
        %v1173 = vsel %vm994, %v977, 0
        %v1176 = vsel %vm994, %v978, 0
        %v1179 = vsel %vm994, %v979, 0
        %v1182 = vsel %vm994, %v980, 0
        %v1185 = vsel %vm994, %v981, 0
        %1187 = vmatprep.subr.bf16.mxu0 0
        %1188 = vmatpush1.bf16.msra.mxu0 0
        %1189 = vmatprep.subr.bf16.mxu0 0
        %1190 = vmatpush1.bf16.msra.mxu0 0
        %1191 = vmatprep.subr.bf16.mxu0 0
        %1192 = vmatpush1.bf16.msra.mxu0 0
        %1193 = vmatprep.subr.bf16.mxu0 0
        %1194 = vmatpush1.bf16.msra.mxu0 0
        %1195 = vmatprep.subr.bf16.mxu0 0
        %1196 = vmatpush1.bf16.msra.mxu0 0
        %1197 = vmatprep.subr.bf16.mxu0 0
        %1198 = vmatpush1.bf16.msra.mxu0 0
        %1199 = vmatprep.subr.bf16.mxu0 0
        %1200 = vmatpush1.bf16.msra.mxu0 %v991
        %1201 = vmatprep.subr.bf16.mxu0 0
        %1202 = vmatpush1.bf16.msra.mxu0 %v990
        %1203 = vmatprep.subr.bf16.mxu0 0
        %1204 = vmatpush2.bf16.msra.mxu0 0
        %1205 = vmatprep.subr.bf16.mxu0 0
        %1206 = vmatpush2.bf16.msra.mxu0 0
        %1207 = vmatprep.subr.bf16.mxu0 0
        %1208 = vmatpush2.bf16.msra.mxu0 0
        %1209 = vmatprep.subr.bf16.mxu0 0
        %1210 = vmatpush2.bf16.msra.mxu0 0
        %1211 = vmatprep.subr.bf16.mxu0 0
        %1212 = vmatpush2.bf16.msra.mxu0 0
        %1213 = vmatprep.subr.bf16.mxu0 0
        %1214 = vmatpush2.bf16.msra.mxu0 0
        %1215 = vmatprep.subr.bf16.mxu0 0
        %1216 = vmatpush2.bf16.msra.mxu0 0
        %1217 = vmatprep.subr.bf16.mxu0 0
        %1218 = vmatpush2.bf16.msra.mxu0 0
        %1219 = vmatprep.mubr.bf16.mxu0 0
        %1220 = vmatmul.mubr.bf16.gmra.mxu0 %v996
        %v1221 = vpop.f32.mrf.mxu0
        %v1222 = vadd.f32 0.0, %v1221
        %v1223 = vpop.f32.mrf.mxu0
        %v1224 = vpop.f32.mrf.mxu0
        %v1225 = vadd.f32 0.0, %v1224
        %v1226 = vpop.f32.mrf.mxu0
        %1227 = vmatprep.mubr.bf16.mxu0 0
        %1228 = vmatmul.mubr.bf16.gmra.mxu0 %v999
        %v1229 = vpop.f32.mrf.mxu0
        %v1230 = vadd.f32 0.0, %v1229
        %v1231 = vpop.f32.mrf.mxu0
        %v1232 = vpop.f32.mrf.mxu0
        %v1233 = vadd.f32 0.0, %v1232
        %v1234 = vpop.f32.mrf.mxu0
        %1235 = vmatprep.mubr.bf16.mxu0 0
        %1236 = vmatmul.mubr.bf16.gmra.mxu0 %v1002
        %v1237 = vpop.f32.mrf.mxu0
        %v1238 = vadd.f32 0.0, %v1237
        %v1239 = vpop.f32.mrf.mxu0
        %v1240 = vpop.f32.mrf.mxu0
        %v1241 = vadd.f32 0.0, %v1240
        %v1242 = vpop.f32.mrf.mxu0
        %1243 = vmatprep.mubr.bf16.mxu0 0
        %1244 = vmatmul.mubr.bf16.gmra.mxu0 %v1005
        %v1245 = vpop.f32.mrf.mxu0
        %v1246 = vadd.f32 0.0, %v1245
        %v1247 = vpop.f32.mrf.mxu0
        %v1248 = vpop.f32.mrf.mxu0
        %v1249 = vadd.f32 0.0, %v1248
        %v1250 = vpop.f32.mrf.mxu0
        %1251 = vmatprep.mubr.bf16.mxu0 0
        %1252 = vmatmul.mubr.bf16.gmra.mxu0 %v1008
        %v1253 = vpop.f32.mrf.mxu0
        %v1254 = vadd.f32 0.0, %v1253
        %v1255 = vpop.f32.mrf.mxu0
        %v1256 = vpop.f32.mrf.mxu0
        %v1257 = vadd.f32 0.0, %v1256
        %v1258 = vpop.f32.mrf.mxu0
        %1259 = vmatprep.mubr.bf16.mxu0 0
        %1260 = vmatmul.mubr.bf16.gmra.mxu0 %v1011
        %v1261 = vpop.f32.mrf.mxu0
        %v1262 = vadd.f32 0.0, %v1261
        %v1263 = vpop.f32.mrf.mxu0
        %v1264 = vpop.f32.mrf.mxu0
        %v1265 = vadd.f32 0.0, %v1264
        %v1266 = vpop.f32.mrf.mxu0
        %1267 = vmatprep.mubr.bf16.mxu0 0
        %1268 = vmatmul.mubr.bf16.gmra.mxu0 %v1014
        %v1269 = vpop.f32.mrf.mxu0
        %v1270 = vadd.f32 0.0, %v1269
        %v1271 = vpop.f32.mrf.mxu0
        %v1272 = vpop.f32.mrf.mxu0
        %v1273 = vadd.f32 0.0, %v1272
        %v1274 = vpop.f32.mrf.mxu0
        %1275 = vmatprep.mubr.bf16.mxu0 0
        %1276 = vmatmul.mubr.bf16.gmra.mxu0 %v1017
        %v1277 = vpop.f32.mrf.mxu0
        %v1278 = vadd.f32 0.0, %v1277
        %v1279 = vpop.f32.mrf.mxu0
        %v1280 = vpop.f32.mrf.mxu0
        %v1281 = vadd.f32 0.0, %v1280
        %v1282 = vpop.f32.mrf.mxu0
        %1283 = vmatprep.mubr.bf16.mxu0 0
        %1284 = vmatmul.mubr.bf16.gmra.mxu0 %v1020
        %v1285 = vpop.f32.mrf.mxu0
        %v1286 = vadd.f32 0.0, %v1285
        %v1287 = vpop.f32.mrf.mxu0
        %v1288 = vpop.f32.mrf.mxu0
        %v1289 = vadd.f32 0.0, %v1288
        %v1290 = vpop.f32.mrf.mxu0
        %1291 = vmatprep.mubr.bf16.mxu0 0
        %1292 = vmatmul.mubr.bf16.gmra.mxu0 %v1023
        %v1293 = vpop.f32.mrf.mxu0
        %v1294 = vadd.f32 0.0, %v1293
        %v1295 = vpop.f32.mrf.mxu0
        %v1296 = vpop.f32.mrf.mxu0
        %v1297 = vadd.f32 0.0, %v1296
        %v1298 = vpop.f32.mrf.mxu0
        %1299 = vmatprep.mubr.bf16.mxu0 0
        %1300 = vmatmul.mubr.bf16.gmra.mxu0 %v1026
        %v1301 = vpop.f32.mrf.mxu0
        %v1302 = vadd.f32 0.0, %v1301
        %v1303 = vpop.f32.mrf.mxu0
        %v1304 = vpop.f32.mrf.mxu0
        %v1305 = vadd.f32 0.0, %v1304
        %v1306 = vpop.f32.mrf.mxu0
        %1307 = vmatprep.mubr.bf16.mxu0 0
        %1308 = vmatmul.mubr.bf16.gmra.mxu0 %v1029
        %v1309 = vpop.f32.mrf.mxu0
        %v1310 = vadd.f32 0.0, %v1309
        %v1311 = vpop.f32.mrf.mxu0
        %v1312 = vpop.f32.mrf.mxu0
        %v1313 = vadd.f32 0.0, %v1312
        %v1314 = vpop.f32.mrf.mxu0
        %1315 = vmatprep.mubr.bf16.mxu0 0
        %1316 = vmatmul.mubr.bf16.gmra.mxu0 %v1032
        %v1317 = vpop.f32.mrf.mxu0
        %v1318 = vadd.f32 0.0, %v1317
        %v1319 = vpop.f32.mrf.mxu0
        %v1320 = vpop.f32.mrf.mxu0
        %v1321 = vadd.f32 0.0, %v1320
        %v1322 = vpop.f32.mrf.mxu0
        %1323 = vmatprep.mubr.bf16.mxu0 0
        %1324 = vmatmul.mubr.bf16.gmra.mxu0 %v1035
        %v1325 = vpop.f32.mrf.mxu0
        %v1326 = vadd.f32 0.0, %v1325
        %v1327 = vpop.f32.mrf.mxu0
        %v1328 = vpop.f32.mrf.mxu0
        %v1329 = vadd.f32 0.0, %v1328
        %v1330 = vpop.f32.mrf.mxu0
        %1331 = vmatprep.mubr.bf16.mxu0 0
        %1332 = vmatmul.mubr.bf16.gmra.mxu0 %v1038
        %v1333 = vpop.f32.mrf.mxu0
        %v1334 = vadd.f32 0.0, %v1333
        %v1335 = vpop.f32.mrf.mxu0
        %v1336 = vpop.f32.mrf.mxu0
        %v1337 = vadd.f32 0.0, %v1336
        %v1338 = vpop.f32.mrf.mxu0
        %1339 = vmatprep.mubr.bf16.mxu0 0
        %1340 = vmatmul.mubr.bf16.gmra.mxu0 %v1041
        %v1341 = vpop.f32.mrf.mxu0
        %v1342 = vadd.f32 0.0, %v1341
        %v1343 = vpop.f32.mrf.mxu0
        %v1344 = vpop.f32.mrf.mxu0
        %v1345 = vadd.f32 0.0, %v1344
        %v1346 = vpop.f32.mrf.mxu0
        %1347 = vmatprep.mubr.bf16.mxu0 0
        %1348 = vmatmul.mubr.bf16.gmra.mxu0 %v1044
        %v1349 = vpop.f32.mrf.mxu0
        %v1350 = vadd.f32 0.0, %v1349
        %v1351 = vpop.f32.mrf.mxu0
        %v1352 = vpop.f32.mrf.mxu0
        %v1353 = vadd.f32 0.0, %v1352
        %v1354 = vpop.f32.mrf.mxu0
        %1355 = vmatprep.mubr.bf16.mxu0 0
        %1356 = vmatmul.mubr.bf16.gmra.mxu0 %v1047
        %v1357 = vpop.f32.mrf.mxu0
        %v1358 = vadd.f32 0.0, %v1357
        %v1359 = vpop.f32.mrf.mxu0
        %v1360 = vpop.f32.mrf.mxu0
        %v1361 = vadd.f32 0.0, %v1360
        %v1362 = vpop.f32.mrf.mxu0
        %1363 = vmatprep.mubr.bf16.mxu0 0
        %1364 = vmatmul.mubr.bf16.gmra.mxu0 %v1050
        %v1365 = vpop.f32.mrf.mxu0
        %v1366 = vadd.f32 0.0, %v1365
        %v1367 = vpop.f32.mrf.mxu0
        %v1368 = vpop.f32.mrf.mxu0
        %v1369 = vadd.f32 0.0, %v1368
        %v1370 = vpop.f32.mrf.mxu0
        %1371 = vmatprep.mubr.bf16.mxu0 0
        %1372 = vmatmul.mubr.bf16.gmra.mxu0 %v1053
        %v1373 = vpop.f32.mrf.mxu0
        %v1374 = vadd.f32 0.0, %v1373
        %v1375 = vpop.f32.mrf.mxu0
        %v1376 = vpop.f32.mrf.mxu0
        %v1377 = vadd.f32 0.0, %v1376
        %v1378 = vpop.f32.mrf.mxu0
        %1379 = vmatprep.mubr.bf16.mxu0 0
        %1380 = vmatmul.mubr.bf16.gmra.mxu0 %v1056
        %v1381 = vpop.f32.mrf.mxu0
        %v1382 = vadd.f32 0.0, %v1381
        %v1383 = vpop.f32.mrf.mxu0
        %v1384 = vpop.f32.mrf.mxu0
        %v1385 = vadd.f32 0.0, %v1384
        %v1386 = vpop.f32.mrf.mxu0
        %1387 = vmatprep.mubr.bf16.mxu0 0
        %1388 = vmatmul.mubr.bf16.gmra.mxu0 %v1059
        %v1389 = vpop.f32.mrf.mxu0
        %v1390 = vadd.f32 0.0, %v1389
        %v1391 = vpop.f32.mrf.mxu0
        %v1392 = vpop.f32.mrf.mxu0
        %v1393 = vadd.f32 0.0, %v1392
        %v1394 = vpop.f32.mrf.mxu0
        %1395 = vmatprep.mubr.bf16.mxu0 0
        %1396 = vmatmul.mubr.bf16.gmra.mxu0 %v1062
        %v1397 = vpop.f32.mrf.mxu0
        %v1398 = vadd.f32 0.0, %v1397
        %v1399 = vpop.f32.mrf.mxu0
        %v1400 = vpop.f32.mrf.mxu0
        %v1401 = vadd.f32 0.0, %v1400
        %v1402 = vpop.f32.mrf.mxu0
        %1403 = vmatprep.mubr.bf16.mxu0 0
        %1404 = vmatmul.mubr.bf16.gmra.mxu0 %v1065
        %v1405 = vpop.f32.mrf.mxu0
        %v1406 = vadd.f32 0.0, %v1405
        %v1407 = vpop.f32.mrf.mxu0
        %v1408 = vpop.f32.mrf.mxu0
        %v1409 = vadd.f32 0.0, %v1408
        %v1410 = vpop.f32.mrf.mxu0
        %1411 = vmatprep.mubr.bf16.mxu0 0
        %1412 = vmatmul.mubr.bf16.gmra.mxu0 %v1068
        %v1413 = vpop.f32.mrf.mxu0
        %v1414 = vadd.f32 0.0, %v1413
        %v1415 = vpop.f32.mrf.mxu0
        %v1416 = vpop.f32.mrf.mxu0
        %v1417 = vadd.f32 0.0, %v1416
        %v1418 = vpop.f32.mrf.mxu0
        %1419 = vmatprep.mubr.bf16.mxu0 0
        %1420 = vmatmul.mubr.bf16.gmra.mxu0 %v1071
        %v1421 = vpop.f32.mrf.mxu0
        %v1422 = vadd.f32 0.0, %v1421
        %v1423 = vpop.f32.mrf.mxu0
        %v1424 = vpop.f32.mrf.mxu0
        %v1425 = vadd.f32 0.0, %v1424
        %v1426 = vpop.f32.mrf.mxu0
        %1427 = vmatprep.mubr.bf16.mxu0 0
        %1428 = vmatmul.mubr.bf16.gmra.mxu0 %v1074
        %v1429 = vpop.f32.mrf.mxu0
        %v1430 = vadd.f32 0.0, %v1429
        %v1431 = vpop.f32.mrf.mxu0
        %v1432 = vpop.f32.mrf.mxu0
        %v1433 = vadd.f32 0.0, %v1432
        %v1434 = vpop.f32.mrf.mxu0
        %1435 = vmatprep.mubr.bf16.mxu0 0
        %1436 = vmatmul.mubr.bf16.gmra.mxu0 %v1077
        %v1437 = vpop.f32.mrf.mxu0
        %v1438 = vadd.f32 0.0, %v1437
        %v1439 = vpop.f32.mrf.mxu0
        %v1440 = vpop.f32.mrf.mxu0
        %v1441 = vadd.f32 0.0, %v1440
        %v1442 = vpop.f32.mrf.mxu0
        %1443 = vmatprep.mubr.bf16.mxu0 0
        %1444 = vmatmul.mubr.bf16.gmra.mxu0 %v1080
        %v1445 = vpop.f32.mrf.mxu0
        %v1446 = vadd.f32 0.0, %v1445
        %v1447 = vpop.f32.mrf.mxu0
        %v1448 = vpop.f32.mrf.mxu0
        %v1449 = vadd.f32 0.0, %v1448
        %v1450 = vpop.f32.mrf.mxu0
        %1451 = vmatprep.mubr.bf16.mxu0 0
        %1452 = vmatmul.mubr.bf16.gmra.mxu0 %v1083
        %v1453 = vpop.f32.mrf.mxu0
        %v1454 = vadd.f32 0.0, %v1453
        %v1455 = vpop.f32.mrf.mxu0
        %v1456 = vpop.f32.mrf.mxu0
        %v1457 = vadd.f32 0.0, %v1456
        %v1458 = vpop.f32.mrf.mxu0
        %1459 = vmatprep.mubr.bf16.mxu0 0
        %1460 = vmatmul.mubr.bf16.gmra.mxu0 %v1086
        %v1461 = vpop.f32.mrf.mxu0
        %v1462 = vadd.f32 0.0, %v1461
        %v1463 = vpop.f32.mrf.mxu0
        %v1464 = vpop.f32.mrf.mxu0
        %v1465 = vadd.f32 0.0, %v1464
        %v1466 = vpop.f32.mrf.mxu0
        %1467 = vmatprep.mubr.bf16.mxu0 0
        %1468 = vmatmul.mubr.bf16.gmra.mxu0 %v1089
        %v1469 = vpop.f32.mrf.mxu0
        %v1470 = vadd.f32 0.0, %v1469
        %v1471 = vpop.f32.mrf.mxu0
        %v1472 = vpop.f32.mrf.mxu0
        %v1473 = vadd.f32 0.0, %v1472
        %v1474 = vpop.f32.mrf.mxu0
        %1475 = vmatprep.mubr.bf16.mxu0 0
        %1476 = vmatmul.mubr.bf16.gmra.mxu0 %v1092
        %v1477 = vpop.f32.mrf.mxu0
        %v1478 = vadd.f32 0.0, %v1477
        %v1479 = vpop.f32.mrf.mxu0
        %v1480 = vpop.f32.mrf.mxu0
        %v1481 = vadd.f32 0.0, %v1480
        %v1482 = vpop.f32.mrf.mxu0
        %1483 = vmatprep.mubr.bf16.mxu0 0
        %1484 = vmatmul.mubr.bf16.gmra.mxu0 %v1095
        %v1485 = vpop.f32.mrf.mxu0
        %v1486 = vadd.f32 0.0, %v1485
        %v1487 = vpop.f32.mrf.mxu0
        %v1488 = vpop.f32.mrf.mxu0
        %v1489 = vadd.f32 0.0, %v1488
        %v1490 = vpop.f32.mrf.mxu0
        %1491 = vmatprep.mubr.bf16.mxu0 0
        %1492 = vmatmul.mubr.bf16.gmra.mxu0 %v1098
        %v1493 = vpop.f32.mrf.mxu0
        %v1494 = vadd.f32 0.0, %v1493
        %v1495 = vpop.f32.mrf.mxu0
        %v1496 = vpop.f32.mrf.mxu0
        %v1497 = vadd.f32 0.0, %v1496
        %v1498 = vpop.f32.mrf.mxu0
        %1499 = vmatprep.mubr.bf16.mxu0 0
        %1500 = vmatmul.mubr.bf16.gmra.mxu0 %v1101
        %v1501 = vpop.f32.mrf.mxu0
        %v1502 = vadd.f32 0.0, %v1501
        %v1503 = vpop.f32.mrf.mxu0
        %v1504 = vpop.f32.mrf.mxu0
        %v1505 = vadd.f32 0.0, %v1504
        %v1506 = vpop.f32.mrf.mxu0
        %1507 = vmatprep.mubr.bf16.mxu0 0
        %1508 = vmatmul.mubr.bf16.gmra.mxu0 %v1104
        %v1509 = vpop.f32.mrf.mxu0
        %v1510 = vadd.f32 0.0, %v1509
        %v1511 = vpop.f32.mrf.mxu0
        %v1512 = vpop.f32.mrf.mxu0
        %v1513 = vadd.f32 0.0, %v1512
        %v1514 = vpop.f32.mrf.mxu0
        %1515 = vmatprep.mubr.bf16.mxu0 0
        %1516 = vmatmul.mubr.bf16.gmra.mxu0 %v1107
        %v1517 = vpop.f32.mrf.mxu0
        %v1518 = vadd.f32 0.0, %v1517
        %v1519 = vpop.f32.mrf.mxu0
        %v1520 = vpop.f32.mrf.mxu0
        %v1521 = vadd.f32 0.0, %v1520
        %v1522 = vpop.f32.mrf.mxu0
        %1523 = vmatprep.mubr.bf16.mxu0 0
        %1524 = vmatmul.mubr.bf16.gmra.mxu0 %v1110
        %v1525 = vpop.f32.mrf.mxu0
        %v1526 = vadd.f32 0.0, %v1525
        %v1527 = vpop.f32.mrf.mxu0
        %v1528 = vpop.f32.mrf.mxu0
        %v1529 = vadd.f32 0.0, %v1528
        %v1530 = vpop.f32.mrf.mxu0
        %1531 = vmatprep.mubr.bf16.mxu0 0
        %1532 = vmatmul.mubr.bf16.gmra.mxu0 %v1113
        %v1533 = vpop.f32.mrf.mxu0
        %v1534 = vadd.f32 0.0, %v1533
        %v1535 = vpop.f32.mrf.mxu0
        %v1536 = vpop.f32.mrf.mxu0
        %v1537 = vadd.f32 0.0, %v1536
        %v1538 = vpop.f32.mrf.mxu0
        %1539 = vmatprep.mubr.bf16.mxu0 0
        %1540 = vmatmul.mubr.bf16.gmra.mxu0 %v1116
        %v1541 = vpop.f32.mrf.mxu0
        %v1542 = vadd.f32 0.0, %v1541
        %v1543 = vpop.f32.mrf.mxu0
        %v1544 = vpop.f32.mrf.mxu0
        %v1545 = vadd.f32 0.0, %v1544
        %v1546 = vpop.f32.mrf.mxu0
        %1547 = vmatprep.mubr.bf16.mxu0 0
        %1548 = vmatmul.mubr.bf16.gmra.mxu0 %v1119
        %v1549 = vpop.f32.mrf.mxu0
        %v1550 = vadd.f32 0.0, %v1549
        %v1551 = vpop.f32.mrf.mxu0
        %v1552 = vpop.f32.mrf.mxu0
        %v1553 = vadd.f32 0.0, %v1552
        %v1554 = vpop.f32.mrf.mxu0
        %1555 = vmatprep.mubr.bf16.mxu0 0
        %1556 = vmatmul.mubr.bf16.gmra.mxu0 %v1122
        %v1557 = vpop.f32.mrf.mxu0
        %v1558 = vadd.f32 0.0, %v1557
        %v1559 = vpop.f32.mrf.mxu0
        %v1560 = vpop.f32.mrf.mxu0
        %v1561 = vadd.f32 0.0, %v1560
        %v1562 = vpop.f32.mrf.mxu0
        %1563 = vmatprep.mubr.bf16.mxu0 0
        %1564 = vmatmul.mubr.bf16.gmra.mxu0 %v1125
        %v1565 = vpop.f32.mrf.mxu0
        %v1566 = vadd.f32 0.0, %v1565
        %v1567 = vpop.f32.mrf.mxu0
        %v1568 = vpop.f32.mrf.mxu0
        %v1569 = vadd.f32 0.0, %v1568
        %v1570 = vpop.f32.mrf.mxu0
        %1571 = vmatprep.mubr.bf16.mxu0 0
        %1572 = vmatmul.mubr.bf16.gmra.mxu0 %v1128
        %v1573 = vpop.f32.mrf.mxu0
        %v1574 = vadd.f32 0.0, %v1573
        %v1575 = vpop.f32.mrf.mxu0
        %v1576 = vpop.f32.mrf.mxu0
        %v1577 = vadd.f32 0.0, %v1576
        %v1578 = vpop.f32.mrf.mxu0
        %1579 = vmatprep.mubr.bf16.mxu0 0
        %1580 = vmatmul.mubr.bf16.gmra.mxu0 %v1131
        %v1581 = vpop.f32.mrf.mxu0
        %v1582 = vadd.f32 0.0, %v1581
        %v1583 = vpop.f32.mrf.mxu0
        %v1584 = vpop.f32.mrf.mxu0
        %v1585 = vadd.f32 0.0, %v1584
        %v1586 = vpop.f32.mrf.mxu0
        %1587 = vmatprep.mubr.bf16.mxu0 0
        %1588 = vmatmul.mubr.bf16.gmra.mxu0 %v1134
        %v1589 = vpop.f32.mrf.mxu0
        %v1590 = vadd.f32 0.0, %v1589
        %v1591 = vpop.f32.mrf.mxu0
        %v1592 = vpop.f32.mrf.mxu0
        %v1593 = vadd.f32 0.0, %v1592
        %v1594 = vpop.f32.mrf.mxu0
        %1595 = vmatprep.mubr.bf16.mxu0 0
        %1596 = vmatmul.mubr.bf16.gmra.mxu0 %v1137
        %v1597 = vpop.f32.mrf.mxu0
        %v1598 = vadd.f32 0.0, %v1597
        %v1599 = vpop.f32.mrf.mxu0
        %v1600 = vpop.f32.mrf.mxu0
        %v1601 = vadd.f32 0.0, %v1600
        %v1602 = vpop.f32.mrf.mxu0
        %1603 = vmatprep.mubr.bf16.mxu0 0
        %1604 = vmatmul.mubr.bf16.gmra.mxu0 %v1140
        %v1605 = vpop.f32.mrf.mxu0
        %v1606 = vadd.f32 0.0, %v1605
        %v1607 = vpop.f32.mrf.mxu0
        %v1608 = vpop.f32.mrf.mxu0
        %v1609 = vadd.f32 0.0, %v1608
        %v1610 = vpop.f32.mrf.mxu0
        %1611 = vmatprep.mubr.bf16.mxu0 0
        %1612 = vmatmul.mubr.bf16.gmra.mxu0 %v1143
        %v1613 = vpop.f32.mrf.mxu0
        %v1614 = vadd.f32 0.0, %v1613
        %v1615 = vpop.f32.mrf.mxu0
        %v1616 = vpop.f32.mrf.mxu0
        %v1617 = vadd.f32 0.0, %v1616
        %v1618 = vpop.f32.mrf.mxu0
        %1619 = vmatprep.mubr.bf16.mxu0 0
        %1620 = vmatmul.mubr.bf16.gmra.mxu0 %v1146
        %v1621 = vpop.f32.mrf.mxu0
        %v1622 = vadd.f32 0.0, %v1621
        %v1623 = vpop.f32.mrf.mxu0
        %v1624 = vpop.f32.mrf.mxu0
        %v1625 = vadd.f32 0.0, %v1624
        %v1626 = vpop.f32.mrf.mxu0
        %1627 = vmatprep.mubr.bf16.mxu0 0
        %1628 = vmatmul.mubr.bf16.gmra.mxu0 %v1149
        %v1629 = vpop.f32.mrf.mxu0
        %v1630 = vadd.f32 0.0, %v1629
        %v1631 = vpop.f32.mrf.mxu0
        %v1632 = vpop.f32.mrf.mxu0
        %v1633 = vadd.f32 0.0, %v1632
        %v1634 = vpop.f32.mrf.mxu0
        %1635 = vmatprep.mubr.bf16.mxu0 0
        %1636 = vmatmul.mubr.bf16.gmra.mxu0 %v1152
        %v1637 = vpop.f32.mrf.mxu0
        %v1638 = vadd.f32 0.0, %v1637
        %v1639 = vpop.f32.mrf.mxu0
        %v1640 = vpop.f32.mrf.mxu0
        %v1641 = vadd.f32 0.0, %v1640
        %v1642 = vpop.f32.mrf.mxu0
        %1643 = vmatprep.mubr.bf16.mxu0 0
        %1644 = vmatmul.mubr.bf16.gmra.mxu0 %v1155
        %v1645 = vpop.f32.mrf.mxu0
        %v1646 = vadd.f32 0.0, %v1645
        %v1647 = vpop.f32.mrf.mxu0
        %v1648 = vpop.f32.mrf.mxu0
        %v1649 = vadd.f32 0.0, %v1648
        %v1650 = vpop.f32.mrf.mxu0
        %1651 = vmatprep.mubr.bf16.mxu0 0
        %1652 = vmatmul.mubr.bf16.gmra.mxu0 %v1158
        %v1653 = vpop.f32.mrf.mxu0
        %v1654 = vadd.f32 0.0, %v1653
        %v1655 = vpop.f32.mrf.mxu0
        %v1656 = vpop.f32.mrf.mxu0
        %v1657 = vadd.f32 0.0, %v1656
        %v1658 = vpop.f32.mrf.mxu0
        %1659 = vmatprep.mubr.bf16.mxu0 0
        %1660 = vmatmul.mubr.bf16.gmra.mxu0 %v1161
        %v1661 = vpop.f32.mrf.mxu0
        %v1662 = vadd.f32 0.0, %v1661
        %v1663 = vpop.f32.mrf.mxu0
        %v1664 = vpop.f32.mrf.mxu0
        %v1665 = vadd.f32 0.0, %v1664
        %v1666 = vpop.f32.mrf.mxu0
        %1667 = vmatprep.mubr.bf16.mxu0 0
        %1668 = vmatmul.mubr.bf16.gmra.mxu0 %v1164
        %v1669 = vpop.f32.mrf.mxu0
        %v1670 = vadd.f32 0.0, %v1669
        %v1671 = vpop.f32.mrf.mxu0
        %v1672 = vpop.f32.mrf.mxu0
        %v1673 = vadd.f32 0.0, %v1672
        %v1674 = vpop.f32.mrf.mxu0
        %1675 = vmatprep.mubr.bf16.mxu0 0
        %1676 = vmatmul.mubr.bf16.gmra.mxu0 %v1167
        %v1677 = vpop.f32.mrf.mxu0
        %v1678 = vadd.f32 0.0, %v1677
        %v1679 = vpop.f32.mrf.mxu0
        %v1680 = vpop.f32.mrf.mxu0
        %v1681 = vadd.f32 0.0, %v1680
        %v1682 = vpop.f32.mrf.mxu0
        %1683 = vmatprep.mubr.bf16.mxu0 0
        %1684 = vmatmul.mubr.bf16.gmra.mxu0 %v1170
        %v1685 = vpop.f32.mrf.mxu0
        %v1686 = vadd.f32 0.0, %v1685
        %v1687 = vpop.f32.mrf.mxu0
        %v1688 = vpop.f32.mrf.mxu0
        %v1689 = vadd.f32 0.0, %v1688
        %v1690 = vpop.f32.mrf.mxu0
        %1691 = vmatprep.mubr.bf16.mxu0 0
        %1692 = vmatmul.mubr.bf16.gmra.mxu0 %v1173
        %v1693 = vpop.f32.mrf.mxu0
        %v1694 = vadd.f32 0.0, %v1693
        %v1695 = vpop.f32.mrf.mxu0
        %v1696 = vpop.f32.mrf.mxu0
        %v1697 = vadd.f32 0.0, %v1696
        %v1698 = vpop.f32.mrf.mxu0
        %1699 = vmatprep.mubr.bf16.mxu0 0
        %1700 = vmatmul.mubr.bf16.gmra.mxu0 %v1176
        %v1701 = vpop.f32.mrf.mxu0
        %v1702 = vadd.f32 0.0, %v1701
        %v1703 = vpop.f32.mrf.mxu0
        %v1704 = vpop.f32.mrf.mxu0
        %v1705 = vadd.f32 0.0, %v1704
        %v1706 = vpop.f32.mrf.mxu0
        %1707 = vmatprep.mubr.bf16.mxu0 0
        %1708 = vmatmul.mubr.bf16.gmra.mxu0 %v1179
        %v1709 = vpop.f32.mrf.mxu0
        %v1710 = vadd.f32 0.0, %v1709
        %v1711 = vpop.f32.mrf.mxu0
        %v1712 = vpop.f32.mrf.mxu0
        %v1713 = vadd.f32 0.0, %v1712
        %v1714 = vpop.f32.mrf.mxu0
        %1715 = vmatprep.mubr.bf16.mxu0 0
        %1716 = vmatmul.mubr.bf16.gmra.mxu0 %v1182
        %v1717 = vpop.f32.mrf.mxu0
        %v1718 = vadd.f32 0.0, %v1717
        %v1719 = vpop.f32.mrf.mxu0
        %v1720 = vpop.f32.mrf.mxu0
        %v1721 = vadd.f32 0.0, %v1720
        %v1722 = vpop.f32.mrf.mxu0
        %1723 = vmatprep.mubr.bf16.mxu0 0
        %1724 = vmatmul.mubr.bf16.gmra.mxu0 %v1185
        %v1725 = vpop.f32.mrf.mxu0
        %v1726 = vadd.f32 0.0, %v1725
        %v1727 = vpop.f32.mrf.mxu0
        %v1728 = vpop.f32.mrf.mxu0
        %v1729 = vadd.f32 0.0, %v1728
        %v1730 = vpop.f32.mrf.mxu0
        %1731 = vdwg.mxu0
        %v1732 = vmax.f32 %v1222, %v1350
        %v1733 = vmax.f32 %v1225, %v1353
        %v1734 = vmax.f32 %v1230, %v1358
        %v1735 = vmax.f32 %v1233, %v1361
        %v1736 = vmax.f32 %v1238, %v1366
        %v1737 = vmax.f32 %v1241, %v1369
        %v1738 = vmax.f32 %v1246, %v1374
        %v1739 = vmax.f32 %v1249, %v1377
        %v1740 = vmax.f32 %v1254, %v1382
        %v1741 = vmax.f32 %v1257, %v1385
        %v1742 = vmax.f32 %v1262, %v1390
        %v1743 = vmax.f32 %v1265, %v1393
        %v1744 = vmax.f32 %v1270, %v1398
        %v1745 = vmax.f32 %v1273, %v1401
        %v1746 = vmax.f32 %v1278, %v1406
        %v1747 = vmax.f32 %v1281, %v1409
        %v1748 = vmax.f32 %v1286, %v1414
        %v1749 = vmax.f32 %v1289, %v1417
        %v1750 = vmax.f32 %v1294, %v1422
        %v1751 = vmax.f32 %v1297, %v1425
        %v1752 = vmax.f32 %v1302, %v1430
        %v1753 = vmax.f32 %v1305, %v1433
        %v1754 = vmax.f32 %v1310, %v1438
        %v1755 = vmax.f32 %v1313, %v1441
        %v1756 = vmax.f32 %v1318, %v1446
        %v1757 = vmax.f32 %v1321, %v1449
        %v1758 = vmax.f32 %v1326, %v1454
        %v1759 = vmax.f32 %v1329, %v1457
        %v1760 = vmax.f32 %v1334, %v1462
        %v1761 = vmax.f32 %v1337, %v1465
        %v1762 = vmax.f32 %v1342, %v1470
        %v1763 = vmax.f32 %v1345, %v1473
        %v1764 = vmax.f32 %v1478, %v1606
        %v1765 = vmax.f32 %v1481, %v1609
        %v1766 = vmax.f32 %v1486, %v1614
        %v1767 = vmax.f32 %v1489, %v1617
        %v1768 = vmax.f32 %v1494, %v1622
        %v1769 = vmax.f32 %v1497, %v1625
        %v1770 = vmax.f32 %v1502, %v1630
        %v1771 = vmax.f32 %v1505, %v1633
        %v1772 = vmax.f32 %v1510, %v1638
        %v1773 = vmax.f32 %v1513, %v1641
        %v1774 = vmax.f32 %v1518, %v1646
        %v1775 = vmax.f32 %v1521, %v1649
        %v1776 = vmax.f32 %v1526, %v1654
        %v1777 = vmax.f32 %v1529, %v1657
        %v1778 = vmax.f32 %v1534, %v1662
        %v1779 = vmax.f32 %v1537, %v1665
        %v1780 = vmax.f32 %v1542, %v1670
        %v1781 = vmax.f32 %v1545, %v1673
        %v1782 = vmax.f32 %v1550, %v1678
        %v1783 = vmax.f32 %v1553, %v1681
        %v1784 = vmax.f32 %v1558, %v1686
        %v1785 = vmax.f32 %v1561, %v1689
        %v1786 = vmax.f32 %v1566, %v1694
        %v1787 = vmax.f32 %v1569, %v1697
        %v1788 = vmax.f32 %v1574, %v1702
        %v1789 = vmax.f32 %v1577, %v1705
        %v1790 = vmax.f32 %v1582, %v1710
        %v1791 = vmax.f32 %v1585, %v1713
        %v1792 = vmax.f32 %v1590, %v1718
        %v1793 = vmax.f32 %v1593, %v1721
        %v1794 = vmax.f32 %v1598, %v1726
        %v1795 = vmax.f32 %v1601, %v1729
        %v1796 = vmax.f32 %v1732, %v1764
        %v1797 = vmax.f32 %v1733, %v1765
        %v1798 = vmax.f32 %v1734, %v1766
        %v1799 = vmax.f32 %v1735, %v1767
        %v1800 = vmax.f32 %v1736, %v1768
        %v1801 = vmax.f32 %v1737, %v1769
        %v1802 = vmax.f32 %v1738, %v1770
        %v1803 = vmax.f32 %v1739, %v1771
        %v1804 = vmax.f32 %v1740, %v1772
        %v1805 = vmax.f32 %v1741, %v1773
        %v1806 = vmax.f32 %v1742, %v1774
        %v1807 = vmax.f32 %v1743, %v1775
        %v1808 = vmax.f32 %v1744, %v1776
        %v1809 = vmax.f32 %v1745, %v1777
        %v1810 = vmax.f32 %v1746, %v1778
        %v1811 = vmax.f32 %v1747, %v1779
        %v1812 = vmax.f32 %v1748, %v1780
        %v1813 = vmax.f32 %v1749, %v1781
        %v1814 = vmax.f32 %v1750, %v1782
        %v1815 = vmax.f32 %v1751, %v1783
        %v1816 = vmax.f32 %v1752, %v1784
        %v1817 = vmax.f32 %v1753, %v1785
        %v1818 = vmax.f32 %v1754, %v1786
        %v1819 = vmax.f32 %v1755, %v1787
        %v1820 = vmax.f32 %v1756, %v1788
        %v1821 = vmax.f32 %v1757, %v1789
        %v1822 = vmax.f32 %v1758, %v1790
        %v1823 = vmax.f32 %v1759, %v1791
        %v1824 = vmax.f32 %v1760, %v1792
        %v1825 = vmax.f32 %v1761, %v1793
        %v1826 = vmax.f32 %v1762, %v1794
        %v1827 = vmax.f32 %v1763, %v1795
        %v1828 = vld [vmem:[%s2] sm:$0x1]
        %v1830 = vlaneseq
        %v1831 = vshrl.u32 %v1830, 7
        %v1832 = vsub.s32 0, %v1831
        %v1833 = vrot.slane %v1828, %v1832
        %v1835 = vadd.f32 %v1796, %v1833
        %v1836 = vadd.f32 %v1797, %v1833
        %v1837 = vadd.f32 %v1798, %v1833
        %v1838 = vadd.f32 %v1799, %v1833
        %v1839 = vadd.f32 %v1800, %v1833
        %v1840 = vadd.f32 %v1801, %v1833
        %v1841 = vadd.f32 %v1802, %v1833
        %v1842 = vadd.f32 %v1803, %v1833
        %v1843 = vadd.f32 %v1804, %v1833
        %v1844 = vadd.f32 %v1805, %v1833
        %v1845 = vadd.f32 %v1806, %v1833
        %v1846 = vadd.f32 %v1807, %v1833
        %v1847 = vadd.f32 %v1808, %v1833
        %v1848 = vadd.f32 %v1809, %v1833
        %v1849 = vadd.f32 %v1810, %v1833
        %v1850 = vadd.f32 %v1811, %v1833
        %v1851 = vadd.f32 %v1812, %v1833
        %v1852 = vadd.f32 %v1813, %v1833
        %v1853 = vadd.f32 %v1814, %v1833
        %v1854 = vadd.f32 %v1815, %v1833
        %v1855 = vadd.f32 %v1816, %v1833
        %v1856 = vadd.f32 %v1817, %v1833
        %v1857 = vadd.f32 %v1818, %v1833
        %v1858 = vadd.f32 %v1819, %v1833
        %v1859 = vadd.f32 %v1820, %v1833
        %v1860 = vadd.f32 %v1821, %v1833
        %v1861 = vadd.f32 %v1822, %v1833
        %v1862 = vadd.f32 %v1823, %v1833
        %v1863 = vadd.f32 %v1824, %v1833
        %v1864 = vadd.f32 %v1825, %v1833
        %v1865 = vadd.f32 %v1826, %v1833
        %v1866 = vadd.f32 %v1827, %v1833
        %vm1867 = vcmp.ge.f32.partialorder %v1835, 0.0
        %vm1868 = vcmp.ge.f32.partialorder %v1836, 0.0
        %vm1869 = vcmp.ge.f32.partialorder %v1837, 0.0
        %vm1870 = vcmp.ge.f32.partialorder %v1838, 0.0
        %vm1871 = vcmp.ge.f32.partialorder %v1839, 0.0
        %vm1872 = vcmp.ge.f32.partialorder %v1840, 0.0
        %vm1873 = vcmp.ge.f32.partialorder %v1841, 0.0
        %vm1874 = vcmp.ge.f32.partialorder %v1842, 0.0
        %vm1875 = vcmp.ge.f32.partialorder %v1843, 0.0
        %vm1876 = vcmp.ge.f32.partialorder %v1844, 0.0
        %vm1877 = vcmp.ge.f32.partialorder %v1845, 0.0
        %vm1878 = vcmp.ge.f32.partialorder %v1846, 0.0
        %vm1879 = vcmp.ge.f32.partialorder %v1847, 0.0
        %vm1880 = vcmp.ge.f32.partialorder %v1848, 0.0
        %vm1881 = vcmp.ge.f32.partialorder %v1849, 0.0
        %vm1882 = vcmp.ge.f32.partialorder %v1850, 0.0
        %vm1883 = vcmp.ge.f32.partialorder %v1851, 0.0
        %vm1884 = vcmp.ge.f32.partialorder %v1852, 0.0
        %vm1885 = vcmp.ge.f32.partialorder %v1853, 0.0
        %vm1886 = vcmp.ge.f32.partialorder %v1854, 0.0
        %vm1887 = vcmp.ge.f32.partialorder %v1855, 0.0
        %vm1888 = vcmp.ge.f32.partialorder %v1856, 0.0
        %vm1889 = vcmp.ge.f32.partialorder %v1857, 0.0
        %vm1890 = vcmp.ge.f32.partialorder %v1858, 0.0
        %vm1891 = vcmp.ge.f32.partialorder %v1859, 0.0
        %vm1892 = vcmp.ge.f32.partialorder %v1860, 0.0
        %vm1893 = vcmp.ge.f32.partialorder %v1861, 0.0
        %vm1894 = vcmp.ge.f32.partialorder %v1862, 0.0
        %vm1895 = vcmp.ge.f32.partialorder %v1863, 0.0
        %vm1896 = vcmp.ge.f32.partialorder %v1864, 0.0
        %vm1897 = vcmp.ge.f32.partialorder %v1865, 0.0
        %vm1898 = vcmp.ge.f32.partialorder %v1866, 0.0
        %v1899 = vmul.f32 %v1835, 0.2
        %v1900 = vmul.f32 %v1836, 0.2
        %v1901 = vmul.f32 %v1837, 0.2
        %v1902 = vmul.f32 %v1838, 0.2
        %v1903 = vmul.f32 %v1839, 0.2
        %v1904 = vmul.f32 %v1840, 0.2
        %v1905 = vmul.f32 %v1841, 0.2
        %v1906 = vmul.f32 %v1842, 0.2
        %v1907 = vmul.f32 %v1843, 0.2
        %v1908 = vmul.f32 %v1844, 0.2
        %v1909 = vmul.f32 %v1845, 0.2
        %v1910 = vmul.f32 %v1846, 0.2
        %v1911 = vmul.f32 %v1847, 0.2
        %v1912 = vmul.f32 %v1848, 0.2
        %v1913 = vmul.f32 %v1849, 0.2
        %v1914 = vmul.f32 %v1850, 0.2
        %v1915 = vmul.f32 %v1851, 0.2
        %v1916 = vmul.f32 %v1852, 0.2
        %v1917 = vmul.f32 %v1853, 0.2
        %v1918 = vmul.f32 %v1854, 0.2
        %v1919 = vmul.f32 %v1855, 0.2
        %v1920 = vmul.f32 %v1856, 0.2
        %v1921 = vmul.f32 %v1857, 0.2
        %v1922 = vmul.f32 %v1858, 0.2
        %v1923 = vmul.f32 %v1859, 0.2
        %v1924 = vmul.f32 %v1860, 0.2
        %v1925 = vmul.f32 %v1861, 0.2
        %v1926 = vmul.f32 %v1862, 0.2
        %v1927 = vmul.f32 %v1863, 0.2
        %v1928 = vmul.f32 %v1864, 0.2
        %v1929 = vmul.f32 %v1865, 0.2
        %v1930 = vmul.f32 %v1866, 0.2
        %v1931 = vsel %vm1867, %v1835, %v1899
        %v1932 = vsel %vm1868, %v1836, %v1900
        %v1933 = vsel %vm1869, %v1837, %v1901
        %v1934 = vsel %vm1870, %v1838, %v1902
        %v1935 = vsel %vm1871, %v1839, %v1903
        %v1936 = vsel %vm1872, %v1840, %v1904
        %v1937 = vsel %vm1873, %v1841, %v1905
        %v1938 = vsel %vm1874, %v1842, %v1906
        %v1939 = vsel %vm1875, %v1843, %v1907
        %v1940 = vsel %vm1876, %v1844, %v1908
        %v1941 = vsel %vm1877, %v1845, %v1909
        %v1942 = vsel %vm1878, %v1846, %v1910
        %v1943 = vsel %vm1879, %v1847, %v1911
        %v1944 = vsel %vm1880, %v1848, %v1912
        %v1945 = vsel %vm1881, %v1849, %v1913
        %v1946 = vsel %vm1882, %v1850, %v1914
        %v1947 = vsel %vm1883, %v1851, %v1915
        %v1948 = vsel %vm1884, %v1852, %v1916
        %v1949 = vsel %vm1885, %v1853, %v1917
        %v1950 = vsel %vm1886, %v1854, %v1918
        %v1951 = vsel %vm1887, %v1855, %v1919
        %v1952 = vsel %vm1888, %v1856, %v1920
        %v1953 = vsel %vm1889, %v1857, %v1921
        %v1954 = vsel %vm1890, %v1858, %v1922
        %v1955 = vsel %vm1891, %v1859, %v1923
        %v1956 = vsel %vm1892, %v1860, %v1924
        %v1957 = vsel %vm1893, %v1861, %v1925
        %v1958 = vsel %vm1894, %v1862, %v1926
        %v1959 = vsel %vm1895, %v1863, %v1927
        %v1960 = vsel %vm1896, %v1864, %v1928
        %v1961 = vsel %vm1897, %v1865, %v1929
        %v1962 = vsel %vm1898, %v1866, %v1930
        %v1963 = vpack.c.bf16 %v1932, %v1931
        %v1964 = vpack.c.bf16 %v1934, %v1933
        %v1965 = vpack.c.bf16 %v1936, %v1935
        %v1966 = vpack.c.bf16 %v1938, %v1937
        %v1967 = vpack.c.bf16 %v1940, %v1939
        %v1968 = vpack.c.bf16 %v1942, %v1941
        %v1969 = vpack.c.bf16 %v1944, %v1943
        %v1970 = vpack.c.bf16 %v1946, %v1945
        %v1971 = vpack.c.bf16 %v1948, %v1947
        %v1972 = vpack.c.bf16 %v1950, %v1949
        %v1973 = vpack.c.bf16 %v1952, %v1951
        %v1974 = vpack.c.bf16 %v1954, %v1953
        %v1975 = vpack.c.bf16 %v1956, %v1955
        %v1976 = vpack.c.bf16 %v1958, %v1957
        %v1977 = vpack.c.bf16 %v1960, %v1959
        %v1978 = vpack.c.bf16 %v1962, %v1961
        %vm1979 = vsmask.f32 7424
        %v1981 = vshrl.u32 %v1963, 16
        %v1983 = vshll.u32 %v1963, 16
        %v1985 = vrot.slane %v1983, 1
        %v1986 = vor.u32 %v1981, %v1985
        %v1988 = vshll.u32 %v1964, 16
        %v1990 = vrot.slane %v1988, 1
        %v1991 = vsel %vm1979, %v1986, %v1990
        %v1992 = vshrl.u32 %v1964, 16
        %v1994 = vor.u32 %v1992, %v1990
        %v1996 = vshll.u32 %v1965, 16
        %v1998 = vrot.slane %v1996, 1
        %v1999 = vsel %vm1979, %v1994, %v1998
        %v2000 = vshrl.u32 %v1965, 16
        %v2002 = vor.u32 %v2000, %v1998
        %v2004 = vshll.u32 %v1966, 16
        %v2006 = vrot.slane %v2004, 1
        %v2007 = vsel %vm1979, %v2002, %v2006
        %v2008 = vshrl.u32 %v1966, 16
        %v2010 = vor.u32 %v2008, %v2006
        %v2012 = vshll.u32 %v1967, 16
        %v2014 = vrot.slane %v2012, 1
        %v2015 = vsel %vm1979, %v2010, %v2014
        %v2016 = vshrl.u32 %v1967, 16
        %v2018 = vor.u32 %v2016, %v2014
        %v2020 = vshll.u32 %v1968, 16
        %v2022 = vrot.slane %v2020, 1
        %v2023 = vsel %vm1979, %v2018, %v2022
        %v2024 = vshrl.u32 %v1968, 16
        %v2026 = vor.u32 %v2024, %v2022
        %v2028 = vshll.u32 %v1969, 16
        %v2030 = vrot.slane %v2028, 1
        %v2031 = vsel %vm1979, %v2026, %v2030
        %v2032 = vshrl.u32 %v1969, 16
        %v2034 = vor.u32 %v2032, %v2030
        %v2036 = vshll.u32 %v1970, 16
        %v2038 = vrot.slane %v2036, 1
        %v2039 = vsel %vm1979, %v2034, %v2038
        %v2040 = vshrl.u32 %v1970, 16
        %v2042 = vor.u32 %v2040, %v2038
        %v2044 = vshll.u32 %v1971, 16
        %v2046 = vrot.slane %v2044, 1
        %v2047 = vsel %vm1979, %v2042, %v2046
        %v2048 = vshrl.u32 %v1971, 16
        %v2050 = vor.u32 %v2048, %v2046
        %v2052 = vshll.u32 %v1972, 16
        %v2054 = vrot.slane %v2052, 1
        %v2055 = vsel %vm1979, %v2050, %v2054
        %v2056 = vshrl.u32 %v1972, 16
        %v2058 = vor.u32 %v2056, %v2054
        %v2060 = vshll.u32 %v1973, 16
        %v2062 = vrot.slane %v2060, 1
        %v2063 = vsel %vm1979, %v2058, %v2062
        %v2064 = vshrl.u32 %v1973, 16
        %v2066 = vor.u32 %v2064, %v2062
        %v2068 = vshll.u32 %v1974, 16
        %v2070 = vrot.slane %v2068, 1
        %v2071 = vsel %vm1979, %v2066, %v2070
        %v2072 = vshrl.u32 %v1974, 16
        %v2074 = vor.u32 %v2072, %v2070
        %v2076 = vshll.u32 %v1975, 16
        %v2078 = vrot.slane %v2076, 1
        %v2079 = vsel %vm1979, %v2074, %v2078
        %v2080 = vshrl.u32 %v1975, 16
        %v2082 = vor.u32 %v2080, %v2078
        %v2084 = vshll.u32 %v1976, 16
        %v2086 = vrot.slane %v2084, 1
        %v2087 = vsel %vm1979, %v2082, %v2086
        %v2088 = vshrl.u32 %v1976, 16
        %v2090 = vor.u32 %v2088, %v2086
        %vm2119 = vcmask 1046528
        %v2120 = vrot.slane %v1963, 1
        %v2121 = vrot.slane %v1964, 1
        %v2122 = vsel %vm2119, %v2120, %v2121
        %v2123 = vrot.slane %v1965, 1
        %v2124 = vsel %vm2119, %v2121, %v2123
        %v2125 = vrot.slane %v1966, 1
        %v2126 = vsel %vm2119, %v2123, %v2125
        %v2127 = vrot.slane %v1967, 1
        %v2128 = vsel %vm2119, %v2125, %v2127
        %v2129 = vrot.slane %v1968, 1
        %v2130 = vsel %vm2119, %v2127, %v2129
        %v2131 = vrot.slane %v1969, 1
        %v2132 = vsel %vm2119, %v2129, %v2131
        %v2133 = vrot.slane %v1970, 1
        %v2134 = vsel %vm2119, %v2131, %v2133
        %v2135 = vrot.slane %v1971, 1
        %v2136 = vsel %vm2119, %v2133, %v2135
        %v2137 = vrot.slane %v1972, 1
        %v2138 = vsel %vm2119, %v2135, %v2137
        %v2139 = vrot.slane %v1973, 1
        %v2140 = vsel %vm2119, %v2137, %v2139
        %v2141 = vrot.slane %v1974, 1
        %v2142 = vsel %vm2119, %v2139, %v2141
        %v2143 = vrot.slane %v1975, 1
        %v2144 = vsel %vm2119, %v2141, %v2143
        %v2145 = vrot.slane %v1976, 1
        %v2146 = vsel %vm2119, %v2143, %v2145
        %v2162 = vshll.u32 %v1977, 16
        %v2164 = vrot.slane %v2162, 1
        %v2165 = vsel %vm1979, %v2090, %v2164
        %v2166 = vshrl.u32 %v1977, 16
        %v2168 = vor.u32 %v2166, %v2164
        %v2172 = vrot.slane %v1977, 1
        %v2173 = vsel %vm2119, %v2145, %v2172
        %v2177 = vshll.u32 %v1978, 16
        %v2179 = vrot.slane %v2177, 1
        %v2180 = vsel %vm1979, %v2168, %v2179
        %v2181 = vshrl.u32 %v1978, 16
        %v2183 = vor.u32 %v2181, %v2179
        %v2187 = vrot.slane %v1978, 1
        %v2188 = vsel %vm2119, %v2172, %v2187
        %v2191 = vld [vmem:[%s3] sm:$0xff]
        %v2192 = vld [vmem:[%s3 + $0x8] sm:$0xff]
        %v2193 = vld [vmem:[%s3 + $0x10] sm:$0xff]
        %v2194 = vld [vmem:[%s3 + $0x18] sm:$0xff]
        %v2195 = vld [vmem:[%s3 + $0x20] sm:$0xff]
        %v2196 = vld [vmem:[%s3 + $0x28] sm:$0xff]
        %v2197 = vld [vmem:[%s3 + $0x30] sm:$0xff]
        %v2198 = vld [vmem:[%s3 + $0x38] sm:$0xff]
        %v2199 = vld [vmem:[%s3 + $0x40] sm:$0xff]
        %v2200 = vld [vmem:[%s3 + $0x48] sm:$0xff]
        %v2201 = vld [vmem:[%s3 + $0x50] sm:$0xff]
        %v2202 = vld [vmem:[%s3 + $0x58] sm:$0xff]
        %v2203 = vld [vmem:[%s3 + $0x60] sm:$0xff]
        %v2204 = vld [vmem:[%s3 + $0x68] sm:$0xff]
        %v2205 = vld [vmem:[%s3 + $0x70] sm:$0xff]
        %v2206 = vld [vmem:[%s3 + $0x78] sm:$0xff]
        %v2207 = vld [vmem:[%s3 + $0x80] sm:$0xff]
        %v2208 = vld [vmem:[%s3 + $0x88] sm:$0xff]
        %v2209 = vld [vmem:[%s3 + $0x90] sm:$0xff]
        %v2210 = vld [vmem:[%s3 + $0x98] sm:$0xff]
        %v2211 = vld [vmem:[%s3 + $0xa0] sm:$0xff]
        %v2212 = vld [vmem:[%s3 + $0xa8] sm:$0xff]
        %v2213 = vld [vmem:[%s3 + $0xb0] sm:$0xff]
        %v2214 = vld [vmem:[%s3 + $0xb8] sm:$0xff]
        %v2215 = vld [vmem:[%s3 + $0xc0] sm:$0xff]
        %v2216 = vld [vmem:[%s3 + $0xc8] sm:$0xff]
        %v2217 = vld [vmem:[%s3 + $0xd0] sm:$0xff]
        %v2218 = vld [vmem:[%s3 + $0xd8] sm:$0xff]
        %v2219 = vld [vmem:[%s3 + $0xe0] sm:$0xff]
        %v2220 = vld [vmem:[%s3 + $0xe8] sm:$0xff]
        %v2221 = vld [vmem:[%s3 + $0xf0] sm:$0xff]
        %v2222 = vld [vmem:[%s3 + $0xf8] sm:$0xff]
        %v2223 = vld [vmem:[%s3 + $0x100] sm:$0xff]
        %v2224 = vld [vmem:[%s3 + $0x108] sm:$0xff]
        %v2225 = vld [vmem:[%s3 + $0x110] sm:$0xff]
        %v2226 = vld [vmem:[%s3 + $0x118] sm:$0xff]
        %v2227 = vld [vmem:[%s3 + $0x120] sm:$0xff]
        %v2228 = vld [vmem:[%s3 + $0x128] sm:$0xff]
        %v2229 = vld [vmem:[%s3 + $0x130] sm:$0xff]
        %v2230 = vld [vmem:[%s3 + $0x138] sm:$0xff]
        %v2231 = vld [vmem:[%s3 + $0x140] sm:$0xff]
        %v2232 = vld [vmem:[%s3 + $0x148] sm:$0xff]
        %v2233 = vld [vmem:[%s3 + $0x150] sm:$0xff]
        %v2234 = vld [vmem:[%s3 + $0x158] sm:$0xff]
        %v2235 = vld [vmem:[%s3 + $0x160] sm:$0xff]
        %v2236 = vld [vmem:[%s3 + $0x168] sm:$0xff]
        %v2237 = vld [vmem:[%s3 + $0x170] sm:$0xff]
        %v2238 = vld [vmem:[%s3 + $0x178] sm:$0xff]
        %v2239 = vld [vmem:[%s3 + $0x180] sm:$0xff]
        %v2240 = vld [vmem:[%s3 + $0x188] sm:$0xff]
        %v2241 = vld [vmem:[%s3 + $0x190] sm:$0xff]
        %v2242 = vld [vmem:[%s3 + $0x198] sm:$0xff]
        %v2243 = vld [vmem:[%s3 + $0x1a0] sm:$0xff]
        %v2244 = vld [vmem:[%s3 + $0x1a8] sm:$0xff]
        %v2245 = vld [vmem:[%s3 + $0x1b0] sm:$0xff]
        %v2246 = vld [vmem:[%s3 + $0x1b8] sm:$0xff]
        %v2247 = vld [vmem:[%s3 + $0x1c0] sm:$0xff]
        %v2248 = vld [vmem:[%s3 + $0x1c8] sm:$0xff]
        %v2249 = vld [vmem:[%s3 + $0x1d0] sm:$0xff]
        %v2250 = vld [vmem:[%s3 + $0x1d8] sm:$0xff]
        %v2251 = vld [vmem:[%s3 + $0x1e0] sm:$0xff]
        %v2252 = vld [vmem:[%s3 + $0x1e8] sm:$0xff]
        %v2253 = vld [vmem:[%s3 + $0x1f0] sm:$0xff]
        %v2254 = vld [vmem:[%s3 + $0x1f8] sm:$0xff]
        %v2255 = vld [vmem:[%s3 + $0x200] sm:$0xff]
        %v2256 = vld [vmem:[%s3 + $0x208] sm:$0xff]
        %v2257 = vld [vmem:[%s3 + $0x210] sm:$0xff]
        %v2258 = vld [vmem:[%s3 + $0x218] sm:$0xff]
        %v2259 = vld [vmem:[%s3 + $0x220] sm:$0xff]
        %v2260 = vld [vmem:[%s3 + $0x228] sm:$0xff]
        %v2261 = vld [vmem:[%s3 + $0x230] sm:$0xff]
        %v2262 = vld [vmem:[%s3 + $0x238] sm:$0xff]
        %v2263 = vld [vmem:[%s3 + $0x240] sm:$0xff]
        %v2264 = vld [vmem:[%s3 + $0x248] sm:$0xff]
        %v2265 = vld [vmem:[%s3 + $0x250] sm:$0xff]
        %v2266 = vld [vmem:[%s3 + $0x258] sm:$0xff]
        %v2267 = vld [vmem:[%s3 + $0x260] sm:$0xff]
        %v2268 = vld [vmem:[%s3 + $0x268] sm:$0xff]
        %v2269 = vld [vmem:[%s3 + $0x270] sm:$0xff]
        %v2270 = vld [vmem:[%s3 + $0x278] sm:$0xff]
        %v2271 = vld [vmem:[%s3 + $0x280] sm:$0xff]
        %v2272 = vld [vmem:[%s3 + $0x288] sm:$0xff]
        %v2273 = vld [vmem:[%s3 + $0x290] sm:$0xff]
        %v2274 = vld [vmem:[%s3 + $0x298] sm:$0xff]
        %v2275 = vld [vmem:[%s3 + $0x2a0] sm:$0xff]
        %v2276 = vld [vmem:[%s3 + $0x2a8] sm:$0xff]
        %v2277 = vld [vmem:[%s3 + $0x2b0] sm:$0xff]
        %v2278 = vld [vmem:[%s3 + $0x2b8] sm:$0xff]
        %v2279 = vld [vmem:[%s3 + $0x2c0] sm:$0xff]
        %v2280 = vld [vmem:[%s3 + $0x2c8] sm:$0xff]
        %v2281 = vld [vmem:[%s3 + $0x2d0] sm:$0xff]
        %v2282 = vld [vmem:[%s3 + $0x2d8] sm:$0xff]
        %v2283 = vld [vmem:[%s3 + $0x2e0] sm:$0xff]
        %v2284 = vld [vmem:[%s3 + $0x2e8] sm:$0xff]
        %v2285 = vld [vmem:[%s3 + $0x2f0] sm:$0xff]
        %v2286 = vld [vmem:[%s3 + $0x2f8] sm:$0xff]
        %v2287 = vld [vmem:[%s3 + $0x300] sm:$0xff]
        %v2288 = vld [vmem:[%s3 + $0x308] sm:$0xff]
        %v2289 = vld [vmem:[%s3 + $0x310] sm:$0xff]
        %v2290 = vld [vmem:[%s3 + $0x318] sm:$0xff]
        %v2291 = vld [vmem:[%s3 + $0x320] sm:$0xff]
        %v2292 = vld [vmem:[%s3 + $0x328] sm:$0xff]
        %v2293 = vld [vmem:[%s3 + $0x330] sm:$0xff]
        %v2294 = vld [vmem:[%s3 + $0x338] sm:$0xff]
        %v2295 = vld [vmem:[%s3 + $0x340] sm:$0xff]
        %v2296 = vld [vmem:[%s3 + $0x348] sm:$0xff]
        %v2297 = vld [vmem:[%s3 + $0x350] sm:$0xff]
        %v2298 = vld [vmem:[%s3 + $0x358] sm:$0xff]
        %v2299 = vld [vmem:[%s3 + $0x360] sm:$0xff]
        %v2300 = vld [vmem:[%s3 + $0x368] sm:$0xff]
        %v2301 = vld [vmem:[%s3 + $0x370] sm:$0xff]
        %v2302 = vld [vmem:[%s3 + $0x378] sm:$0xff]
        %v2303 = vld [vmem:[%s3 + $0x380] sm:$0xff]
        %v2304 = vld [vmem:[%s3 + $0x388] sm:$0xff]
        %v2305 = vld [vmem:[%s3 + $0x390] sm:$0xff]
        %v2306 = vld [vmem:[%s3 + $0x398] sm:$0xff]
        %v2307 = vld [vmem:[%s3 + $0x3a0] sm:$0xff]
        %v2308 = vld [vmem:[%s3 + $0x3a8] sm:$0xff]
        %v2309 = vld [vmem:[%s3 + $0x3b0] sm:$0xff]
        %v2310 = vld [vmem:[%s3 + $0x3b8] sm:$0xff]
        %v2311 = vld [vmem:[%s3 + $0x3c0] sm:$0xff]
        %v2312 = vld [vmem:[%s3 + $0x3c8] sm:$0xff]
        %v2313 = vld [vmem:[%s3 + $0x3d0] sm:$0xff]
        %v2314 = vld [vmem:[%s3 + $0x3d8] sm:$0xff]
        %v2315 = vld [vmem:[%s3 + $0x3e0] sm:$0xff]
        %v2316 = vld [vmem:[%s3 + $0x3e8] sm:$0xff]
        %v2317 = vld [vmem:[%s3 + $0x3f0] sm:$0xff]
        %v2318 = vld [vmem:[%s3 + $0x3f8] sm:$0xff]
        %v2319 = vld [vmem:[%s3 + $0x400] sm:$0xff]
        %v2320 = vld [vmem:[%s3 + $0x408] sm:$0xff]
        %v2321 = vld [vmem:[%s3 + $0x410] sm:$0xff]
        %v2322 = vld [vmem:[%s3 + $0x418] sm:$0xff]
        %v2323 = vld [vmem:[%s3 + $0x420] sm:$0xff]
        %v2324 = vld [vmem:[%s3 + $0x428] sm:$0xff]
        %v2325 = vld [vmem:[%s3 + $0x430] sm:$0xff]
        %v2326 = vld [vmem:[%s3 + $0x438] sm:$0xff]
        %v2327 = vld [vmem:[%s3 + $0x440] sm:$0xff]
        %v2328 = vld [vmem:[%s3 + $0x448] sm:$0xff]
        %v2329 = vld [vmem:[%s3 + $0x450] sm:$0xff]
        %v2330 = vld [vmem:[%s3 + $0x458] sm:$0xff]
        %v2331 = vld [vmem:[%s3 + $0x460] sm:$0xff]
        %v2332 = vld [vmem:[%s3 + $0x468] sm:$0xff]
        %v2333 = vld [vmem:[%s3 + $0x470] sm:$0xff]
        %v2334 = vld [vmem:[%s3 + $0x478] sm:$0xff]
        %v2479 = vunpack.c.l.b16 %v2191
        %v2480 = vunpack.c.h.b16 %v2191
        %v2481 = vunpack.c.l.b16 %v2192
        %v2482 = vunpack.c.h.b16 %v2192
        %v2483 = vunpack.c.l.b16 %v2193
        %v2484 = vunpack.c.h.b16 %v2193
        %v2485 = vunpack.c.l.b16 %v2194
        %v2486 = vunpack.c.h.b16 %v2194
        %v2487 = vunpack.c.l.b16 %v2195
        %v2488 = vunpack.c.h.b16 %v2195
        %v2489 = vunpack.c.l.b16 %v2196
        %v2490 = vunpack.c.h.b16 %v2196
        %v2491 = vunpack.c.l.b16 %v2197
        %v2492 = vunpack.c.h.b16 %v2197
        %v2493 = vunpack.c.l.b16 %v2198
        %v2494 = vunpack.c.h.b16 %v2198
        %v2495 = vunpack.c.l.b16 %v2199
        %v2496 = vunpack.c.h.b16 %v2199
        %v2497 = vunpack.c.l.b16 %v2200
        %v2498 = vunpack.c.h.b16 %v2200
        %v2499 = vunpack.c.l.b16 %v2201
        %v2500 = vunpack.c.h.b16 %v2201
        %v2501 = vunpack.c.l.b16 %v2202
        %v2502 = vunpack.c.h.b16 %v2202
        %v2503 = vunpack.c.l.b16 %v2203
        %v2504 = vunpack.c.h.b16 %v2203
        %v2505 = vunpack.c.l.b16 %v2204
        %v2506 = vunpack.c.h.b16 %v2204
        %v2507 = vunpack.c.l.b16 %v2205
        %v2508 = vunpack.c.h.b16 %v2205
        %v2509 = vunpack.c.l.b16 %v2206
        %v2510 = vunpack.c.h.b16 %v2206
        %v2511 = vunpack.c.l.b16 %v2207
        %v2512 = vunpack.c.h.b16 %v2207
        %v2513 = vunpack.c.l.b16 %v2208
        %v2514 = vunpack.c.h.b16 %v2208
        %v2515 = vunpack.c.l.b16 %v2209
        %v2516 = vunpack.c.h.b16 %v2209
        %v2517 = vunpack.c.l.b16 %v2210
        %v2518 = vunpack.c.h.b16 %v2210
        %v2519 = vunpack.c.l.b16 %v2211
        %v2520 = vunpack.c.h.b16 %v2211
        %v2521 = vunpack.c.l.b16 %v2212
        %v2522 = vunpack.c.h.b16 %v2212
        %v2523 = vunpack.c.l.b16 %v2213
        %v2524 = vunpack.c.h.b16 %v2213
        %v2525 = vunpack.c.l.b16 %v2214
        %v2526 = vunpack.c.h.b16 %v2214
        %v2527 = vunpack.c.l.b16 %v2215
        %v2528 = vunpack.c.h.b16 %v2215
        %v2529 = vunpack.c.l.b16 %v2216
        %v2530 = vunpack.c.h.b16 %v2216
        %v2531 = vunpack.c.l.b16 %v2217
        %v2532 = vunpack.c.h.b16 %v2217
        %v2533 = vunpack.c.l.b16 %v2218
        %v2534 = vunpack.c.h.b16 %v2218
        %v2535 = vunpack.c.l.b16 %v2219
        %v2536 = vunpack.c.h.b16 %v2219
        %v2537 = vunpack.c.l.b16 %v2220
        %v2538 = vunpack.c.h.b16 %v2220
        %v2539 = vunpack.c.l.b16 %v2221
        %v2540 = vunpack.c.h.b16 %v2221
        %v2541 = vunpack.c.l.b16 %v2222
        %v2542 = vunpack.c.h.b16 %v2222
        %v2543 = vunpack.c.l.b16 %v2223
        %v2544 = vunpack.c.h.b16 %v2223
        %v2545 = vunpack.c.l.b16 %v2224
        %v2546 = vunpack.c.h.b16 %v2224
        %v2547 = vunpack.c.l.b16 %v2225
        %v2548 = vunpack.c.h.b16 %v2225
        %v2549 = vunpack.c.l.b16 %v2226
        %v2550 = vunpack.c.h.b16 %v2226
        %v2551 = vunpack.c.l.b16 %v2227
        %v2552 = vunpack.c.h.b16 %v2227
        %v2553 = vunpack.c.l.b16 %v2228
        %v2554 = vunpack.c.h.b16 %v2228
        %v2555 = vunpack.c.l.b16 %v2229
        %v2556 = vunpack.c.h.b16 %v2229
        %v2557 = vunpack.c.l.b16 %v2230
        %v2558 = vunpack.c.h.b16 %v2230
        %v2559 = vunpack.c.l.b16 %v2231
        %v2560 = vunpack.c.h.b16 %v2231
        %v2561 = vunpack.c.l.b16 %v2232
        %v2562 = vunpack.c.h.b16 %v2232
        %v2563 = vunpack.c.l.b16 %v2233
        %v2564 = vunpack.c.h.b16 %v2233
        %v2565 = vunpack.c.l.b16 %v2234
        %v2566 = vunpack.c.h.b16 %v2234
        %v2567 = vunpack.c.l.b16 %v2235
        %v2568 = vunpack.c.h.b16 %v2235
        %v2569 = vunpack.c.l.b16 %v2236
        %v2570 = vunpack.c.h.b16 %v2236
        %v2571 = vunpack.c.l.b16 %v2237
        %v2572 = vunpack.c.h.b16 %v2237
        %v2573 = vunpack.c.l.b16 %v2238
        %v2574 = vunpack.c.h.b16 %v2238
        %v2575 = vunpack.c.l.b16 %v2239
        %v2576 = vunpack.c.h.b16 %v2239
        %v2577 = vunpack.c.l.b16 %v2240
        %v2578 = vunpack.c.h.b16 %v2240
        %v2579 = vunpack.c.l.b16 %v2241
        %v2580 = vunpack.c.h.b16 %v2241
        %v2581 = vunpack.c.l.b16 %v2242
        %v2582 = vunpack.c.h.b16 %v2242
        %v2583 = vunpack.c.l.b16 %v2243
        %v2584 = vunpack.c.h.b16 %v2243
        %v2585 = vunpack.c.l.b16 %v2244
        %v2586 = vunpack.c.h.b16 %v2244
        %v2587 = vunpack.c.l.b16 %v2245
        %v2588 = vunpack.c.h.b16 %v2245
        %v2589 = vunpack.c.l.b16 %v2246
        %v2590 = vunpack.c.h.b16 %v2246
        %v2591 = vunpack.c.l.b16 %v2247
        %v2592 = vunpack.c.h.b16 %v2247
        %v2593 = vunpack.c.l.b16 %v2248
        %v2594 = vunpack.c.h.b16 %v2248
        %v2595 = vunpack.c.l.b16 %v2249
        %v2596 = vunpack.c.h.b16 %v2249
        %v2597 = vunpack.c.l.b16 %v2250
        %v2598 = vunpack.c.h.b16 %v2250
        %v2599 = vunpack.c.l.b16 %v2251
        %v2600 = vunpack.c.h.b16 %v2251
        %v2601 = vunpack.c.l.b16 %v2252
        %v2602 = vunpack.c.h.b16 %v2252
        %v2603 = vunpack.c.l.b16 %v2253
        %v2604 = vunpack.c.h.b16 %v2253
        %v2605 = vunpack.c.l.b16 %v2254
        %v2606 = vunpack.c.h.b16 %v2254
        %v2607 = vunpack.c.l.b16 %v2255
        %v2608 = vunpack.c.h.b16 %v2255
        %v2609 = vunpack.c.l.b16 %v2256
        %v2610 = vunpack.c.h.b16 %v2256
        %v2611 = vunpack.c.l.b16 %v2257
        %v2612 = vunpack.c.h.b16 %v2257
        %v2613 = vunpack.c.l.b16 %v2258
        %v2614 = vunpack.c.h.b16 %v2258
        %v2615 = vunpack.c.l.b16 %v2259
        %v2616 = vunpack.c.h.b16 %v2259
        %v2617 = vunpack.c.l.b16 %v2260
        %v2618 = vunpack.c.h.b16 %v2260
        %v2619 = vunpack.c.l.b16 %v2261
        %v2620 = vunpack.c.h.b16 %v2261
        %v2621 = vunpack.c.l.b16 %v2262
        %v2622 = vunpack.c.h.b16 %v2262
        %v2623 = vunpack.c.l.b16 %v2263
        %v2624 = vunpack.c.h.b16 %v2263
        %v2625 = vunpack.c.l.b16 %v2264
        %v2626 = vunpack.c.h.b16 %v2264
        %v2627 = vunpack.c.l.b16 %v2265
        %v2628 = vunpack.c.h.b16 %v2265
        %v2629 = vunpack.c.l.b16 %v2266
        %v2630 = vunpack.c.h.b16 %v2266
        %v2631 = vunpack.c.l.b16 %v2267
        %v2632 = vunpack.c.h.b16 %v2267
        %v2633 = vunpack.c.l.b16 %v2268
        %v2634 = vunpack.c.h.b16 %v2268
        %v2635 = vunpack.c.l.b16 %v2269
        %v2636 = vunpack.c.h.b16 %v2269
        %v2637 = vunpack.c.l.b16 %v2270
        %v2638 = vunpack.c.h.b16 %v2270
        %v2639 = vunpack.c.l.b16 %v2271
        %v2640 = vunpack.c.h.b16 %v2271
        %v2641 = vunpack.c.l.b16 %v2272
        %v2642 = vunpack.c.h.b16 %v2272
        %v2643 = vunpack.c.l.b16 %v2273
        %v2644 = vunpack.c.h.b16 %v2273
        %v2645 = vunpack.c.l.b16 %v2274
        %v2646 = vunpack.c.h.b16 %v2274
        %v2647 = vunpack.c.l.b16 %v2275
        %v2648 = vunpack.c.h.b16 %v2275
        %v2649 = vunpack.c.l.b16 %v2276
        %v2650 = vunpack.c.h.b16 %v2276
        %v2651 = vunpack.c.l.b16 %v2277
        %v2652 = vunpack.c.h.b16 %v2277
        %v2653 = vunpack.c.l.b16 %v2278
        %v2654 = vunpack.c.h.b16 %v2278
        %v2655 = vunpack.c.l.b16 %v2279
        %v2656 = vunpack.c.h.b16 %v2279
        %v2657 = vunpack.c.l.b16 %v2280
        %v2658 = vunpack.c.h.b16 %v2280
        %v2659 = vunpack.c.l.b16 %v2281
        %v2660 = vunpack.c.h.b16 %v2281
        %v2661 = vunpack.c.l.b16 %v2282
        %v2662 = vunpack.c.h.b16 %v2282
        %v2663 = vunpack.c.l.b16 %v2283
        %v2664 = vunpack.c.h.b16 %v2283
        %v2665 = vunpack.c.l.b16 %v2284
        %v2666 = vunpack.c.h.b16 %v2284
        %v2667 = vunpack.c.l.b16 %v2285
        %v2668 = vunpack.c.h.b16 %v2285
        %v2669 = vunpack.c.l.b16 %v2286
        %v2670 = vunpack.c.h.b16 %v2286
        %v2671 = vunpack.c.l.b16 %v2287
        %v2672 = vunpack.c.h.b16 %v2287
        %v2673 = vunpack.c.l.b16 %v2288
        %v2674 = vunpack.c.h.b16 %v2288
        %v2675 = vunpack.c.l.b16 %v2289
        %v2676 = vunpack.c.h.b16 %v2289
        %v2677 = vunpack.c.l.b16 %v2290
        %v2678 = vunpack.c.h.b16 %v2290
        %v2679 = vunpack.c.l.b16 %v2291
        %v2680 = vunpack.c.h.b16 %v2291
        %v2681 = vunpack.c.l.b16 %v2292
        %v2682 = vunpack.c.h.b16 %v2292
        %v2683 = vunpack.c.l.b16 %v2293
        %v2684 = vunpack.c.h.b16 %v2293
        %v2685 = vunpack.c.l.b16 %v2294
        %v2686 = vunpack.c.h.b16 %v2294
        %v2687 = vunpack.c.l.b16 %v2295
        %v2688 = vunpack.c.h.b16 %v2295
        %v2689 = vunpack.c.l.b16 %v2296
        %v2690 = vunpack.c.h.b16 %v2296
        %v2691 = vunpack.c.l.b16 %v2297
        %v2692 = vunpack.c.h.b16 %v2297
        %v2693 = vunpack.c.l.b16 %v2298
        %v2694 = vunpack.c.h.b16 %v2298
        %v2695 = vunpack.c.l.b16 %v2299
        %v2696 = vunpack.c.h.b16 %v2299
        %v2697 = vunpack.c.l.b16 %v2300
        %v2698 = vunpack.c.h.b16 %v2300
        %v2699 = vunpack.c.l.b16 %v2301
        %v2700 = vunpack.c.h.b16 %v2301
        %v2701 = vunpack.c.l.b16 %v2302
        %v2702 = vunpack.c.h.b16 %v2302
        %v2703 = vunpack.c.l.b16 %v2303
        %v2704 = vunpack.c.h.b16 %v2303
        %v2705 = vunpack.c.l.b16 %v2304
        %v2706 = vunpack.c.h.b16 %v2304
        %v2707 = vunpack.c.l.b16 %v2305
        %v2708 = vunpack.c.h.b16 %v2305
        %v2709 = vunpack.c.l.b16 %v2306
        %v2710 = vunpack.c.h.b16 %v2306
        %v2711 = vunpack.c.l.b16 %v2307
        %v2712 = vunpack.c.h.b16 %v2307
        %v2713 = vunpack.c.l.b16 %v2308
        %v2714 = vunpack.c.h.b16 %v2308
        %v2715 = vunpack.c.l.b16 %v2309
        %v2716 = vunpack.c.h.b16 %v2309
        %v2717 = vunpack.c.l.b16 %v2310
        %v2718 = vunpack.c.h.b16 %v2310
        %v2719 = vunpack.c.l.b16 %v2311
        %v2720 = vunpack.c.h.b16 %v2311
        %v2721 = vunpack.c.l.b16 %v2312
        %v2722 = vunpack.c.h.b16 %v2312
        %v2723 = vunpack.c.l.b16 %v2313
        %v2724 = vunpack.c.h.b16 %v2313
        %v2725 = vunpack.c.l.b16 %v2314
        %v2726 = vunpack.c.h.b16 %v2314
        %v2727 = vunpack.c.l.b16 %v2315
        %v2728 = vunpack.c.h.b16 %v2315
        %v2729 = vunpack.c.l.b16 %v2316
        %v2730 = vunpack.c.h.b16 %v2316
        %v2731 = vunpack.c.l.b16 %v2317
        %v2732 = vunpack.c.h.b16 %v2317
        %v2733 = vunpack.c.l.b16 %v2318
        %v2734 = vunpack.c.h.b16 %v2318
        %v2735 = vunpack.c.l.b16 %v2319
        %v2736 = vunpack.c.h.b16 %v2319
        %v2737 = vunpack.c.l.b16 %v2320
        %v2738 = vunpack.c.h.b16 %v2320
        %v2739 = vunpack.c.l.b16 %v2321
        %v2740 = vunpack.c.h.b16 %v2321
        %v2741 = vunpack.c.l.b16 %v2322
        %v2742 = vunpack.c.h.b16 %v2322
        %v2743 = vunpack.c.l.b16 %v2323
        %v2744 = vunpack.c.h.b16 %v2323
        %v2745 = vunpack.c.l.b16 %v2324
        %v2746 = vunpack.c.h.b16 %v2324
        %v2747 = vunpack.c.l.b16 %v2325
        %v2748 = vunpack.c.h.b16 %v2325
        %v2749 = vunpack.c.l.b16 %v2326
        %v2750 = vunpack.c.h.b16 %v2326
        %v2751 = vunpack.c.l.b16 %v2327
        %v2752 = vunpack.c.h.b16 %v2327
        %v2753 = vunpack.c.l.b16 %v2328
        %v2754 = vunpack.c.h.b16 %v2328
        %v2755 = vunpack.c.l.b16 %v2329
        %v2756 = vunpack.c.h.b16 %v2329
        %v2757 = vunpack.c.l.b16 %v2330
        %v2758 = vunpack.c.h.b16 %v2330
        %v2759 = vunpack.c.l.b16 %v2331
        %v2760 = vunpack.c.h.b16 %v2331
        %v2761 = vunpack.c.l.b16 %v2332
        %v2762 = vunpack.c.h.b16 %v2332
        %v2763 = vunpack.c.l.b16 %v2333
        %v2764 = vunpack.c.h.b16 %v2333
        %v2765 = vunpack.c.l.b16 %v2334
        %v2766 = vunpack.c.h.b16 %v2334
        %v2767 = vpack.c.b16 %v2481, %v2479
        %v2768 = vpack.c.b16 %v2482, %v2480
        %v2769 = vpack.c.b16 %v2485, %v2483
        %v2770 = vpack.c.b16 %v2486, %v2484
        %v2771 = vpack.c.b16 %v2489, %v2487
        %v2772 = vpack.c.b16 %v2490, %v2488
        %v2773 = vpack.c.b16 %v2493, %v2491
        %v2774 = vpack.c.b16 %v2494, %v2492
        %v2775 = vpack.c.b16 %v2497, %v2495
        %v2776 = vpack.c.b16 %v2498, %v2496
        %v2777 = vpack.c.b16 %v2501, %v2499
        %v2778 = vpack.c.b16 %v2502, %v2500
        %v2779 = vpack.c.b16 %v2505, %v2503
        %v2780 = vpack.c.b16 %v2506, %v2504
        %v2781 = vpack.c.b16 %v2509, %v2507
        %v2782 = vpack.c.b16 %v2510, %v2508
        %v2783 = vpack.c.b16 %v2513, %v2511
        %v2784 = vpack.c.b16 %v2514, %v2512
        %v2785 = vpack.c.b16 %v2517, %v2515
        %v2786 = vpack.c.b16 %v2518, %v2516
        %v2787 = vpack.c.b16 %v2521, %v2519
        %v2788 = vpack.c.b16 %v2522, %v2520
        %v2789 = vpack.c.b16 %v2525, %v2523
        %v2790 = vpack.c.b16 %v2526, %v2524
        %v2791 = vpack.c.b16 %v2529, %v2527
        %v2792 = vpack.c.b16 %v2530, %v2528
        %v2793 = vpack.c.b16 %v2533, %v2531
        %v2794 = vpack.c.b16 %v2534, %v2532
        %v2795 = vpack.c.b16 %v2537, %v2535
        %v2796 = vpack.c.b16 %v2538, %v2536
        %v2797 = vpack.c.b16 %v2541, %v2539
        %v2798 = vpack.c.b16 %v2542, %v2540
        %v2799 = vpack.c.b16 %v2545, %v2543
        %v2800 = vpack.c.b16 %v2546, %v2544
        %v2801 = vpack.c.b16 %v2549, %v2547
        %v2802 = vpack.c.b16 %v2550, %v2548
        %v2803 = vpack.c.b16 %v2553, %v2551
        %v2804 = vpack.c.b16 %v2554, %v2552
        %v2805 = vpack.c.b16 %v2557, %v2555
        %v2806 = vpack.c.b16 %v2558, %v2556
        %v2807 = vpack.c.b16 %v2561, %v2559
        %v2808 = vpack.c.b16 %v2562, %v2560
        %v2809 = vpack.c.b16 %v2565, %v2563
        %v2810 = vpack.c.b16 %v2566, %v2564
        %v2811 = vpack.c.b16 %v2569, %v2567
        %v2812 = vpack.c.b16 %v2570, %v2568
        %v2813 = vpack.c.b16 %v2573, %v2571
        %v2814 = vpack.c.b16 %v2574, %v2572
        %v2815 = vpack.c.b16 %v2577, %v2575
        %v2816 = vpack.c.b16 %v2578, %v2576
        %v2817 = vpack.c.b16 %v2581, %v2579
        %v2818 = vpack.c.b16 %v2582, %v2580
        %v2819 = vpack.c.b16 %v2585, %v2583
        %v2820 = vpack.c.b16 %v2586, %v2584
        %v2821 = vpack.c.b16 %v2589, %v2587
        %v2822 = vpack.c.b16 %v2590, %v2588
        %v2823 = vpack.c.b16 %v2593, %v2591
        %v2824 = vpack.c.b16 %v2594, %v2592
        %v2825 = vpack.c.b16 %v2597, %v2595
        %v2826 = vpack.c.b16 %v2598, %v2596
        %v2827 = vpack.c.b16 %v2601, %v2599
        %v2828 = vpack.c.b16 %v2602, %v2600
        %v2829 = vpack.c.b16 %v2605, %v2603
        %v2830 = vpack.c.b16 %v2606, %v2604
        %v2831 = vpack.c.b16 %v2609, %v2607
        %v2832 = vpack.c.b16 %v2610, %v2608
        %v2833 = vpack.c.b16 %v2613, %v2611
        %v2834 = vpack.c.b16 %v2614, %v2612
        %v2835 = vpack.c.b16 %v2617, %v2615
        %v2836 = vpack.c.b16 %v2618, %v2616
        %v2837 = vpack.c.b16 %v2621, %v2619
        %v2838 = vpack.c.b16 %v2622, %v2620
        %v2839 = vpack.c.b16 %v2625, %v2623
        %v2840 = vpack.c.b16 %v2626, %v2624
        %v2841 = vpack.c.b16 %v2629, %v2627
        %v2842 = vpack.c.b16 %v2630, %v2628
        %v2843 = vpack.c.b16 %v2633, %v2631
        %v2844 = vpack.c.b16 %v2634, %v2632
        %v2845 = vpack.c.b16 %v2637, %v2635
        %v2846 = vpack.c.b16 %v2638, %v2636
        %v2847 = vpack.c.b16 %v2641, %v2639
        %v2848 = vpack.c.b16 %v2642, %v2640
        %v2849 = vpack.c.b16 %v2645, %v2643
        %v2850 = vpack.c.b16 %v2646, %v2644
        %v2851 = vpack.c.b16 %v2649, %v2647
        %v2852 = vpack.c.b16 %v2650, %v2648
        %v2853 = vpack.c.b16 %v2653, %v2651
        %v2854 = vpack.c.b16 %v2654, %v2652
        %v2855 = vpack.c.b16 %v2657, %v2655
        %v2856 = vpack.c.b16 %v2658, %v2656
        %v2857 = vpack.c.b16 %v2661, %v2659
        %v2858 = vpack.c.b16 %v2662, %v2660
        %v2859 = vpack.c.b16 %v2665, %v2663
        %v2860 = vpack.c.b16 %v2666, %v2664
        %v2861 = vpack.c.b16 %v2669, %v2667
        %v2862 = vpack.c.b16 %v2670, %v2668
        %v2863 = vpack.c.b16 %v2673, %v2671
        %v2864 = vpack.c.b16 %v2674, %v2672
        %v2865 = vpack.c.b16 %v2677, %v2675
        %v2866 = vpack.c.b16 %v2678, %v2676
        %v2867 = vpack.c.b16 %v2681, %v2679
        %v2868 = vpack.c.b16 %v2682, %v2680
        %v2869 = vpack.c.b16 %v2685, %v2683
        %v2870 = vpack.c.b16 %v2686, %v2684
        %v2871 = vpack.c.b16 %v2689, %v2687
        %v2872 = vpack.c.b16 %v2690, %v2688
        %v2873 = vpack.c.b16 %v2693, %v2691
        %v2874 = vpack.c.b16 %v2694, %v2692
        %v2875 = vpack.c.b16 %v2697, %v2695
        %v2876 = vpack.c.b16 %v2698, %v2696
        %v2877 = vpack.c.b16 %v2701, %v2699
        %v2878 = vpack.c.b16 %v2702, %v2700
        %v2879 = vpack.c.b16 %v2705, %v2703
        %v2880 = vpack.c.b16 %v2706, %v2704
        %v2881 = vpack.c.b16 %v2709, %v2707
        %v2882 = vpack.c.b16 %v2710, %v2708
        %v2883 = vpack.c.b16 %v2713, %v2711
        %v2884 = vpack.c.b16 %v2714, %v2712
        %v2885 = vpack.c.b16 %v2717, %v2715
        %v2886 = vpack.c.b16 %v2718, %v2716
        %v2887 = vpack.c.b16 %v2721, %v2719
        %v2888 = vpack.c.b16 %v2722, %v2720
        %v2889 = vpack.c.b16 %v2725, %v2723
        %v2890 = vpack.c.b16 %v2726, %v2724
        %v2891 = vpack.c.b16 %v2729, %v2727
        %v2892 = vpack.c.b16 %v2730, %v2728
        %v2893 = vpack.c.b16 %v2733, %v2731
        %v2894 = vpack.c.b16 %v2734, %v2732
        %v2895 = vpack.c.b16 %v2737, %v2735
        %v2896 = vpack.c.b16 %v2738, %v2736
        %v2897 = vpack.c.b16 %v2741, %v2739
        %v2898 = vpack.c.b16 %v2742, %v2740
        %v2899 = vpack.c.b16 %v2745, %v2743
        %v2900 = vpack.c.b16 %v2746, %v2744
        %v2901 = vpack.c.b16 %v2749, %v2747
        %v2902 = vpack.c.b16 %v2750, %v2748
        %v2903 = vpack.c.b16 %v2753, %v2751
        %v2904 = vpack.c.b16 %v2754, %v2752
        %v2905 = vpack.c.b16 %v2757, %v2755
        %v2906 = vpack.c.b16 %v2758, %v2756
        %v2907 = vpack.c.b16 %v2761, %v2759
        %v2908 = vpack.c.b16 %v2762, %v2760
        %v2909 = vpack.c.b16 %v2765, %v2763
        %v2910 = vpack.c.b16 %v2766, %v2764
        %3055 = vmatprep.subr.bf16.mxu0 %v2782
        %3056 = vmatpush1.bf16.msra.mxu0 %v2781
        %3057 = vmatprep.subr.bf16.mxu0 %v2780
        %3058 = vmatpush1.bf16.msra.mxu0 %v2779
        %3059 = vmatprep.subr.bf16.mxu0 %v2778
        %3060 = vmatpush1.bf16.msra.mxu0 %v2777
        %3061 = vmatprep.subr.bf16.mxu0 %v2776
        %3062 = vmatpush1.bf16.msra.mxu0 %v2775
        %3063 = vmatprep.subr.bf16.mxu0 %v2774
        %3064 = vmatpush1.bf16.msra.mxu0 %v2773
        %3065 = vmatprep.subr.bf16.mxu0 %v2772
        %3066 = vmatpush1.bf16.msra.mxu0 %v2771
        %3067 = vmatprep.subr.bf16.mxu0 %v2770
        %3068 = vmatpush1.bf16.msra.mxu0 %v2769
        %3069 = vmatprep.subr.bf16.mxu0 %v2768
        %3070 = vmatpush1.bf16.msra.mxu0 %v2767
        %3071 = vmatprep.subr.bf16.mxu0 %v2798
        %3072 = vmatpush2.bf16.msra.mxu0 %v2797
        %3073 = vmatprep.subr.bf16.mxu0 %v2796
        %3074 = vmatpush2.bf16.msra.mxu0 %v2795
        %3075 = vmatprep.subr.bf16.mxu0 %v2794
        %3076 = vmatpush2.bf16.msra.mxu0 %v2793
        %3077 = vmatprep.subr.bf16.mxu0 %v2792
        %3078 = vmatpush2.bf16.msra.mxu0 %v2791
        %3079 = vmatprep.subr.bf16.mxu0 %v2790
        %3080 = vmatpush2.bf16.msra.mxu0 %v2789
        %3081 = vmatprep.subr.bf16.mxu0 %v2788
        %3082 = vmatpush2.bf16.msra.mxu0 %v2787
        %3083 = vmatprep.subr.bf16.mxu0 %v2786
        %3084 = vmatpush2.bf16.msra.mxu0 %v2785
        %3085 = vmatprep.subr.bf16.mxu0 %v2784
        %3086 = vmatpush2.bf16.msra.mxu0 %v2783
        %3087 = vmatprep.mubr.bf16.mxu0 %v1991
        %3088 = vmatmul.mubr.bf16.gmra.mxu0 %v1963
        %v3089 = vpop.f32.mrf.mxu0
        %v3090 = vadd.f32 0.0, %v3089
        %v3091 = vpop.f32.mrf.mxu0
        %v3092 = vadd.f32 0.0, %v3091
        %v3093 = vpop.f32.mrf.mxu0
        %v3094 = vadd.f32 0.0, %v3093
        %v3095 = vpop.f32.mrf.mxu0
        %v3096 = vadd.f32 0.0, %v3095
        %3097 = vmatprep.mubr.bf16.mxu0 %v1999
        %3098 = vmatmul.mubr.bf16.gmra.mxu0 %v1964
        %v3099 = vpop.f32.mrf.mxu0
        %v3100 = vadd.f32 0.0, %v3099
        %v3101 = vpop.f32.mrf.mxu0
        %v3102 = vadd.f32 0.0, %v3101
        %v3103 = vpop.f32.mrf.mxu0
        %v3104 = vadd.f32 0.0, %v3103
        %v3105 = vpop.f32.mrf.mxu0
        %v3106 = vadd.f32 0.0, %v3105
        %3107 = vmatprep.mubr.bf16.mxu0 %v2007
        %3108 = vmatmul.mubr.bf16.gmra.mxu0 %v1965
        %v3109 = vpop.f32.mrf.mxu0
        %v3110 = vadd.f32 0.0, %v3109
        %v3111 = vpop.f32.mrf.mxu0
        %v3112 = vadd.f32 0.0, %v3111
        %v3113 = vpop.f32.mrf.mxu0
        %v3114 = vadd.f32 0.0, %v3113
        %v3115 = vpop.f32.mrf.mxu0
        %v3116 = vadd.f32 0.0, %v3115
        %3117 = vmatprep.mubr.bf16.mxu0 %v2015
        %3118 = vmatmul.mubr.bf16.gmra.mxu0 %v1966
        %v3119 = vpop.f32.mrf.mxu0
        %v3120 = vadd.f32 0.0, %v3119
        %v3121 = vpop.f32.mrf.mxu0
        %v3122 = vadd.f32 0.0, %v3121
        %v3123 = vpop.f32.mrf.mxu0
        %v3124 = vadd.f32 0.0, %v3123
        %v3125 = vpop.f32.mrf.mxu0
        %v3126 = vadd.f32 0.0, %v3125
        %3127 = vmatprep.mubr.bf16.mxu0 %v2023
        %3128 = vmatmul.mubr.bf16.gmra.mxu0 %v1967
        %v3129 = vpop.f32.mrf.mxu0
        %v3130 = vadd.f32 0.0, %v3129
        %v3131 = vpop.f32.mrf.mxu0
        %v3132 = vadd.f32 0.0, %v3131
        %v3133 = vpop.f32.mrf.mxu0
        %v3134 = vadd.f32 0.0, %v3133
        %v3135 = vpop.f32.mrf.mxu0
        %v3136 = vadd.f32 0.0, %v3135
        %3137 = vmatprep.mubr.bf16.mxu0 %v2031
        %3138 = vmatmul.mubr.bf16.gmra.mxu0 %v1968
        %v3139 = vpop.f32.mrf.mxu0
        %v3140 = vadd.f32 0.0, %v3139
        %v3141 = vpop.f32.mrf.mxu0
        %v3142 = vadd.f32 0.0, %v3141
        %v3143 = vpop.f32.mrf.mxu0
        %v3144 = vadd.f32 0.0, %v3143
        %v3145 = vpop.f32.mrf.mxu0
        %v3146 = vadd.f32 0.0, %v3145
        %3147 = vmatprep.mubr.bf16.mxu0 %v2039
        %3148 = vmatmul.mubr.bf16.gmra.mxu0 %v1969
        %v3149 = vpop.f32.mrf.mxu0
        %v3150 = vadd.f32 0.0, %v3149
        %v3151 = vpop.f32.mrf.mxu0
        %v3152 = vadd.f32 0.0, %v3151
        %v3153 = vpop.f32.mrf.mxu0
        %v3154 = vadd.f32 0.0, %v3153
        %v3155 = vpop.f32.mrf.mxu0
        %v3156 = vadd.f32 0.0, %v3155
        %3157 = vmatprep.mubr.bf16.mxu0 %v2047
        %3158 = vmatmul.mubr.bf16.gmra.mxu0 %v1970
        %v3159 = vpop.f32.mrf.mxu0
        %v3160 = vadd.f32 0.0, %v3159
        %v3161 = vpop.f32.mrf.mxu0
        %v3162 = vadd.f32 0.0, %v3161
        %v3163 = vpop.f32.mrf.mxu0
        %v3164 = vadd.f32 0.0, %v3163
        %v3165 = vpop.f32.mrf.mxu0
        %v3166 = vadd.f32 0.0, %v3165
        %3167 = vmatprep.mubr.bf16.mxu0 %v2055
        %3168 = vmatmul.mubr.bf16.gmra.mxu0 %v1971
        %v3169 = vpop.f32.mrf.mxu0
        %v3170 = vadd.f32 0.0, %v3169
        %v3171 = vpop.f32.mrf.mxu0
        %v3172 = vadd.f32 0.0, %v3171
        %v3173 = vpop.f32.mrf.mxu0
        %v3174 = vadd.f32 0.0, %v3173
        %v3175 = vpop.f32.mrf.mxu0
        %v3176 = vadd.f32 0.0, %v3175
        %3177 = vmatprep.mubr.bf16.mxu0 %v2063
        %3178 = vmatmul.mubr.bf16.gmra.mxu0 %v1972
        %v3179 = vpop.f32.mrf.mxu0
        %v3180 = vadd.f32 0.0, %v3179
        %v3181 = vpop.f32.mrf.mxu0
        %v3182 = vadd.f32 0.0, %v3181
        %v3183 = vpop.f32.mrf.mxu0
        %v3184 = vadd.f32 0.0, %v3183
        %v3185 = vpop.f32.mrf.mxu0
        %v3186 = vadd.f32 0.0, %v3185
        %3187 = vmatprep.mubr.bf16.mxu0 %v2071
        %3188 = vmatmul.mubr.bf16.gmra.mxu0 %v1973
        %v3189 = vpop.f32.mrf.mxu0
        %v3190 = vadd.f32 0.0, %v3189
        %v3191 = vpop.f32.mrf.mxu0
        %v3192 = vadd.f32 0.0, %v3191
        %v3193 = vpop.f32.mrf.mxu0
        %v3194 = vadd.f32 0.0, %v3193
        %v3195 = vpop.f32.mrf.mxu0
        %v3196 = vadd.f32 0.0, %v3195
        %3197 = vmatprep.mubr.bf16.mxu0 %v2079
        %3198 = vmatmul.mubr.bf16.gmra.mxu0 %v1974
        %v3199 = vpop.f32.mrf.mxu0
        %v3200 = vadd.f32 0.0, %v3199
        %v3201 = vpop.f32.mrf.mxu0
        %v3202 = vadd.f32 0.0, %v3201
        %v3203 = vpop.f32.mrf.mxu0
        %v3204 = vadd.f32 0.0, %v3203
        %v3205 = vpop.f32.mrf.mxu0
        %v3206 = vadd.f32 0.0, %v3205
        %3207 = vmatprep.mubr.bf16.mxu0 %v2087
        %3208 = vmatmul.mubr.bf16.gmra.mxu0 %v1975
        %v3209 = vpop.f32.mrf.mxu0
        %v3210 = vadd.f32 0.0, %v3209
        %v3211 = vpop.f32.mrf.mxu0
        %v3212 = vadd.f32 0.0, %v3211
        %v3213 = vpop.f32.mrf.mxu0
        %v3214 = vadd.f32 0.0, %v3213
        %v3215 = vpop.f32.mrf.mxu0
        %v3216 = vadd.f32 0.0, %v3215
        %3217 = vmatprep.mubr.bf16.mxu0 %v2090
        %3218 = vmatmul.mubr.bf16.gmra.mxu0 %v1976
        %v3219 = vpop.f32.mrf.mxu0
        %v3220 = vadd.f32 0.0, %v3219
        %v3221 = vpop.f32.mrf.mxu0
        %v3222 = vadd.f32 0.0, %v3221
        %v3223 = vpop.f32.mrf.mxu0
        %v3224 = vadd.f32 0.0, %v3223
        %v3225 = vpop.f32.mrf.mxu0
        %v3226 = vadd.f32 0.0, %v3225
        %3227 = vdwg.mxu0
        %3228 = vmatprep.subr.bf16.mxu0 %v2814
        %3229 = vmatpush1.bf16.msra.mxu0 %v2813
        %3230 = vmatprep.subr.bf16.mxu0 %v2812
        %3231 = vmatpush1.bf16.msra.mxu0 %v2811
        %3232 = vmatprep.subr.bf16.mxu0 %v2810
        %3233 = vmatpush1.bf16.msra.mxu0 %v2809
        %3234 = vmatprep.subr.bf16.mxu0 %v2808
        %3235 = vmatpush1.bf16.msra.mxu0 %v2807
        %3236 = vmatprep.subr.bf16.mxu0 %v2806
        %3237 = vmatpush1.bf16.msra.mxu0 %v2805
        %3238 = vmatprep.subr.bf16.mxu0 %v2804
        %3239 = vmatpush1.bf16.msra.mxu0 %v2803
        %3240 = vmatprep.subr.bf16.mxu0 %v2802
        %3241 = vmatpush1.bf16.msra.mxu0 %v2801
        %3242 = vmatprep.subr.bf16.mxu0 %v2800
        %3243 = vmatpush1.bf16.msra.mxu0 %v2799
        %3244 = vmatprep.subr.bf16.mxu0 %v2830
        %3245 = vmatpush2.bf16.msra.mxu0 %v2829
        %3246 = vmatprep.subr.bf16.mxu0 %v2828
        %3247 = vmatpush2.bf16.msra.mxu0 %v2827
        %3248 = vmatprep.subr.bf16.mxu0 %v2826
        %3249 = vmatpush2.bf16.msra.mxu0 %v2825
        %3250 = vmatprep.subr.bf16.mxu0 %v2824
        %3251 = vmatpush2.bf16.msra.mxu0 %v2823
        %3252 = vmatprep.subr.bf16.mxu0 %v2822
        %3253 = vmatpush2.bf16.msra.mxu0 %v2821
        %3254 = vmatprep.subr.bf16.mxu0 %v2820
        %3255 = vmatpush2.bf16.msra.mxu0 %v2819
        %3256 = vmatprep.subr.bf16.mxu0 %v2818
        %3257 = vmatpush2.bf16.msra.mxu0 %v2817
        %3258 = vmatprep.subr.bf16.mxu0 %v2816
        %3259 = vmatpush2.bf16.msra.mxu0 %v2815
        %3260 = vmatprep.mubr.bf16.mxu0 %v1964
        %3261 = vmatmul.mubr.bf16.gmra.mxu0 %v2122
        %v3262 = vpop.f32.mrf.mxu0
        %v3263 = vadd.f32 %v3090, %v3262
        %v3264 = vpop.f32.mrf.mxu0
        %v3265 = vadd.f32 %v3092, %v3264
        %v3266 = vpop.f32.mrf.mxu0
        %v3267 = vadd.f32 %v3094, %v3266
        %v3268 = vpop.f32.mrf.mxu0
        %v3269 = vadd.f32 %v3096, %v3268
        %3270 = vmatprep.mubr.bf16.mxu0 %v1965
        %3271 = vmatmul.mubr.bf16.gmra.mxu0 %v2124
        %v3272 = vpop.f32.mrf.mxu0
        %v3273 = vadd.f32 %v3100, %v3272
        %v3274 = vpop.f32.mrf.mxu0
        %v3275 = vadd.f32 %v3102, %v3274
        %v3276 = vpop.f32.mrf.mxu0
        %v3277 = vadd.f32 %v3104, %v3276
        %v3278 = vpop.f32.mrf.mxu0
        %v3279 = vadd.f32 %v3106, %v3278
        %3280 = vmatprep.mubr.bf16.mxu0 %v1966
        %3281 = vmatmul.mubr.bf16.gmra.mxu0 %v2126
        %v3282 = vpop.f32.mrf.mxu0
        %v3283 = vadd.f32 %v3110, %v3282
        %v3284 = vpop.f32.mrf.mxu0
        %v3285 = vadd.f32 %v3112, %v3284
        %v3286 = vpop.f32.mrf.mxu0
        %v3287 = vadd.f32 %v3114, %v3286
        %v3288 = vpop.f32.mrf.mxu0
        %v3289 = vadd.f32 %v3116, %v3288
        %3290 = vmatprep.mubr.bf16.mxu0 %v1967
        %3291 = vmatmul.mubr.bf16.gmra.mxu0 %v2128
        %v3292 = vpop.f32.mrf.mxu0
        %v3293 = vadd.f32 %v3120, %v3292
        %v3294 = vpop.f32.mrf.mxu0
        %v3295 = vadd.f32 %v3122, %v3294
        %v3296 = vpop.f32.mrf.mxu0
        %v3297 = vadd.f32 %v3124, %v3296
        %v3298 = vpop.f32.mrf.mxu0
        %v3299 = vadd.f32 %v3126, %v3298
        %3300 = vmatprep.mubr.bf16.mxu0 %v1968
        %3301 = vmatmul.mubr.bf16.gmra.mxu0 %v2130
        %v3302 = vpop.f32.mrf.mxu0
        %v3303 = vadd.f32 %v3130, %v3302
        %v3304 = vpop.f32.mrf.mxu0
        %v3305 = vadd.f32 %v3132, %v3304
        %v3306 = vpop.f32.mrf.mxu0
        %v3307 = vadd.f32 %v3134, %v3306
        %v3308 = vpop.f32.mrf.mxu0
        %v3309 = vadd.f32 %v3136, %v3308
        %3310 = vmatprep.mubr.bf16.mxu0 %v1969
        %3311 = vmatmul.mubr.bf16.gmra.mxu0 %v2132
        %v3312 = vpop.f32.mrf.mxu0
        %v3313 = vadd.f32 %v3140, %v3312
        %v3314 = vpop.f32.mrf.mxu0
        %v3315 = vadd.f32 %v3142, %v3314
        %v3316 = vpop.f32.mrf.mxu0
        %v3317 = vadd.f32 %v3144, %v3316
        %v3318 = vpop.f32.mrf.mxu0
        %v3319 = vadd.f32 %v3146, %v3318
        %3320 = vmatprep.mubr.bf16.mxu0 %v1970
        %3321 = vmatmul.mubr.bf16.gmra.mxu0 %v2134
        %v3322 = vpop.f32.mrf.mxu0
        %v3323 = vadd.f32 %v3150, %v3322
        %v3324 = vpop.f32.mrf.mxu0
        %v3325 = vadd.f32 %v3152, %v3324
        %v3326 = vpop.f32.mrf.mxu0
        %v3327 = vadd.f32 %v3154, %v3326
        %v3328 = vpop.f32.mrf.mxu0
        %v3329 = vadd.f32 %v3156, %v3328
        %3330 = vmatprep.mubr.bf16.mxu0 %v1971
        %3331 = vmatmul.mubr.bf16.gmra.mxu0 %v2136
        %v3332 = vpop.f32.mrf.mxu0
        %v3333 = vadd.f32 %v3160, %v3332
        %v3334 = vpop.f32.mrf.mxu0
        %v3335 = vadd.f32 %v3162, %v3334
        %v3336 = vpop.f32.mrf.mxu0
        %v3337 = vadd.f32 %v3164, %v3336
        %v3338 = vpop.f32.mrf.mxu0
        %v3339 = vadd.f32 %v3166, %v3338
        %3340 = vmatprep.mubr.bf16.mxu0 %v1972
        %3341 = vmatmul.mubr.bf16.gmra.mxu0 %v2138
        %v3342 = vpop.f32.mrf.mxu0
        %v3343 = vadd.f32 %v3170, %v3342
        %v3344 = vpop.f32.mrf.mxu0
        %v3345 = vadd.f32 %v3172, %v3344
        %v3346 = vpop.f32.mrf.mxu0
        %v3347 = vadd.f32 %v3174, %v3346
        %v3348 = vpop.f32.mrf.mxu0
        %v3349 = vadd.f32 %v3176, %v3348
        %3350 = vmatprep.mubr.bf16.mxu0 %v1973
        %3351 = vmatmul.mubr.bf16.gmra.mxu0 %v2140
        %v3352 = vpop.f32.mrf.mxu0
        %v3353 = vadd.f32 %v3180, %v3352
        %v3354 = vpop.f32.mrf.mxu0
        %v3355 = vadd.f32 %v3182, %v3354
        %v3356 = vpop.f32.mrf.mxu0
        %v3357 = vadd.f32 %v3184, %v3356
        %v3358 = vpop.f32.mrf.mxu0
        %v3359 = vadd.f32 %v3186, %v3358
        %3360 = vmatprep.mubr.bf16.mxu0 %v1974
        %3361 = vmatmul.mubr.bf16.gmra.mxu0 %v2142
        %v3362 = vpop.f32.mrf.mxu0
        %v3363 = vadd.f32 %v3190, %v3362
        %v3364 = vpop.f32.mrf.mxu0
        %v3365 = vadd.f32 %v3192, %v3364
        %v3366 = vpop.f32.mrf.mxu0
        %v3367 = vadd.f32 %v3194, %v3366
        %v3368 = vpop.f32.mrf.mxu0
        %v3369 = vadd.f32 %v3196, %v3368
        %3370 = vmatprep.mubr.bf16.mxu0 %v1975
        %3371 = vmatmul.mubr.bf16.gmra.mxu0 %v2144
        %v3372 = vpop.f32.mrf.mxu0
        %v3373 = vadd.f32 %v3200, %v3372
        %v3374 = vpop.f32.mrf.mxu0
        %v3375 = vadd.f32 %v3202, %v3374
        %v3376 = vpop.f32.mrf.mxu0
        %v3377 = vadd.f32 %v3204, %v3376
        %v3378 = vpop.f32.mrf.mxu0
        %v3379 = vadd.f32 %v3206, %v3378
        %3380 = vmatprep.mubr.bf16.mxu0 %v1976
        %3381 = vmatmul.mubr.bf16.gmra.mxu0 %v2146
        %v3382 = vpop.f32.mrf.mxu0
        %v3383 = vadd.f32 %v3210, %v3382
        %v3384 = vpop.f32.mrf.mxu0
        %v3385 = vadd.f32 %v3212, %v3384
        %v3386 = vpop.f32.mrf.mxu0
        %v3387 = vadd.f32 %v3214, %v3386
        %v3388 = vpop.f32.mrf.mxu0
        %v3389 = vadd.f32 %v3216, %v3388
        %3390 = vmatprep.mubr.bf16.mxu0 %v1977
        %3391 = vmatmul.mubr.bf16.gmra.mxu0 %v2145
        %v3392 = vpop.f32.mrf.mxu0
        %v3393 = vadd.f32 %v3220, %v3392
        %v3394 = vpop.f32.mrf.mxu0
        %v3395 = vadd.f32 %v3222, %v3394
        %v3396 = vpop.f32.mrf.mxu0
        %v3397 = vadd.f32 %v3224, %v3396
        %v3398 = vpop.f32.mrf.mxu0
        %v3399 = vadd.f32 %v3226, %v3398
        %3400 = vdwg.mxu0
        %3401 = vmatprep.subr.bf16.mxu0 %v2846
        %3402 = vmatpush1.bf16.msra.mxu0 %v2845
        %3403 = vmatprep.subr.bf16.mxu0 %v2844
        %3404 = vmatpush1.bf16.msra.mxu0 %v2843
        %3405 = vmatprep.subr.bf16.mxu0 %v2842
        %3406 = vmatpush1.bf16.msra.mxu0 %v2841
        %3407 = vmatprep.subr.bf16.mxu0 %v2840
        %3408 = vmatpush1.bf16.msra.mxu0 %v2839
        %3409 = vmatprep.subr.bf16.mxu0 %v2838
        %3410 = vmatpush1.bf16.msra.mxu0 %v2837
        %3411 = vmatprep.subr.bf16.mxu0 %v2836
        %3412 = vmatpush1.bf16.msra.mxu0 %v2835
        %3413 = vmatprep.subr.bf16.mxu0 %v2834
        %3414 = vmatpush1.bf16.msra.mxu0 %v2833
        %3415 = vmatprep.subr.bf16.mxu0 %v2832
        %3416 = vmatpush1.bf16.msra.mxu0 %v2831
        %3417 = vmatprep.subr.bf16.mxu0 %v2862
        %3418 = vmatpush2.bf16.msra.mxu0 %v2861
        %3419 = vmatprep.subr.bf16.mxu0 %v2860
        %3420 = vmatpush2.bf16.msra.mxu0 %v2859
        %3421 = vmatprep.subr.bf16.mxu0 %v2858
        %3422 = vmatpush2.bf16.msra.mxu0 %v2857
        %3423 = vmatprep.subr.bf16.mxu0 %v2856
        %3424 = vmatpush2.bf16.msra.mxu0 %v2855
        %3425 = vmatprep.subr.bf16.mxu0 %v2854
        %3426 = vmatpush2.bf16.msra.mxu0 %v2853
        %3427 = vmatprep.subr.bf16.mxu0 %v2852
        %3428 = vmatpush2.bf16.msra.mxu0 %v2851
        %3429 = vmatprep.subr.bf16.mxu0 %v2850
        %3430 = vmatpush2.bf16.msra.mxu0 %v2849
        %3431 = vmatprep.subr.bf16.mxu0 %v2848
        %3432 = vmatpush2.bf16.msra.mxu0 %v2847
        %3433 = vmatprep.mubr.bf16.mxu0 %v2124
        %3434 = vmatmul.mubr.bf16.gmra.mxu0 %v1999
        %v3435 = vpop.f32.mrf.mxu0
        %v3436 = vadd.f32 %v3263, %v3435
        %v3437 = vpop.f32.mrf.mxu0
        %v3438 = vadd.f32 %v3265, %v3437
        %v3439 = vpop.f32.mrf.mxu0
        %v3440 = vadd.f32 %v3267, %v3439
        %v3441 = vpop.f32.mrf.mxu0
        %v3442 = vadd.f32 %v3269, %v3441
        %3443 = vmatprep.mubr.bf16.mxu0 %v2126
        %3444 = vmatmul.mubr.bf16.gmra.mxu0 %v2007
        %v3445 = vpop.f32.mrf.mxu0
        %v3446 = vadd.f32 %v3273, %v3445
        %v3447 = vpop.f32.mrf.mxu0
        %v3448 = vadd.f32 %v3275, %v3447
        %v3449 = vpop.f32.mrf.mxu0
        %v3450 = vadd.f32 %v3277, %v3449
        %v3451 = vpop.f32.mrf.mxu0
        %v3452 = vadd.f32 %v3279, %v3451
        %3453 = vmatprep.mubr.bf16.mxu0 %v2128
        %3454 = vmatmul.mubr.bf16.gmra.mxu0 %v2015
        %v3455 = vpop.f32.mrf.mxu0
        %v3456 = vadd.f32 %v3283, %v3455
        %v3457 = vpop.f32.mrf.mxu0
        %v3458 = vadd.f32 %v3285, %v3457
        %v3459 = vpop.f32.mrf.mxu0
        %v3460 = vadd.f32 %v3287, %v3459
        %v3461 = vpop.f32.mrf.mxu0
        %v3462 = vadd.f32 %v3289, %v3461
        %3463 = vmatprep.mubr.bf16.mxu0 %v2130
        %3464 = vmatmul.mubr.bf16.gmra.mxu0 %v2023
        %v3465 = vpop.f32.mrf.mxu0
        %v3466 = vadd.f32 %v3293, %v3465
        %v3467 = vpop.f32.mrf.mxu0
        %v3468 = vadd.f32 %v3295, %v3467
        %v3469 = vpop.f32.mrf.mxu0
        %v3470 = vadd.f32 %v3297, %v3469
        %v3471 = vpop.f32.mrf.mxu0
        %v3472 = vadd.f32 %v3299, %v3471
        %3473 = vmatprep.mubr.bf16.mxu0 %v2132
        %3474 = vmatmul.mubr.bf16.gmra.mxu0 %v2031
        %v3475 = vpop.f32.mrf.mxu0
        %v3476 = vadd.f32 %v3303, %v3475
        %v3477 = vpop.f32.mrf.mxu0
        %v3478 = vadd.f32 %v3305, %v3477
        %v3479 = vpop.f32.mrf.mxu0
        %v3480 = vadd.f32 %v3307, %v3479
        %v3481 = vpop.f32.mrf.mxu0
        %v3482 = vadd.f32 %v3309, %v3481
        %3483 = vmatprep.mubr.bf16.mxu0 %v2134
        %3484 = vmatmul.mubr.bf16.gmra.mxu0 %v2039
        %v3485 = vpop.f32.mrf.mxu0
        %v3486 = vadd.f32 %v3313, %v3485
        %v3487 = vpop.f32.mrf.mxu0
        %v3488 = vadd.f32 %v3315, %v3487
        %v3489 = vpop.f32.mrf.mxu0
        %v3490 = vadd.f32 %v3317, %v3489
        %v3491 = vpop.f32.mrf.mxu0
        %v3492 = vadd.f32 %v3319, %v3491
        %3493 = vmatprep.mubr.bf16.mxu0 %v2136
        %3494 = vmatmul.mubr.bf16.gmra.mxu0 %v2047
        %v3495 = vpop.f32.mrf.mxu0
        %v3496 = vadd.f32 %v3323, %v3495
        %v3497 = vpop.f32.mrf.mxu0
        %v3498 = vadd.f32 %v3325, %v3497
        %v3499 = vpop.f32.mrf.mxu0
        %v3500 = vadd.f32 %v3327, %v3499
        %v3501 = vpop.f32.mrf.mxu0
        %v3502 = vadd.f32 %v3329, %v3501
        %3503 = vmatprep.mubr.bf16.mxu0 %v2138
        %3504 = vmatmul.mubr.bf16.gmra.mxu0 %v2055
        %v3505 = vpop.f32.mrf.mxu0
        %v3506 = vadd.f32 %v3333, %v3505
        %v3507 = vpop.f32.mrf.mxu0
        %v3508 = vadd.f32 %v3335, %v3507
        %v3509 = vpop.f32.mrf.mxu0
        %v3510 = vadd.f32 %v3337, %v3509
        %v3511 = vpop.f32.mrf.mxu0
        %v3512 = vadd.f32 %v3339, %v3511
        %3513 = vmatprep.mubr.bf16.mxu0 %v2140
        %3514 = vmatmul.mubr.bf16.gmra.mxu0 %v2063
        %v3515 = vpop.f32.mrf.mxu0
        %v3516 = vadd.f32 %v3343, %v3515
        %v3517 = vpop.f32.mrf.mxu0
        %v3518 = vadd.f32 %v3345, %v3517
        %v3519 = vpop.f32.mrf.mxu0
        %v3520 = vadd.f32 %v3347, %v3519
        %v3521 = vpop.f32.mrf.mxu0
        %v3522 = vadd.f32 %v3349, %v3521
        %3523 = vmatprep.mubr.bf16.mxu0 %v2142
        %3524 = vmatmul.mubr.bf16.gmra.mxu0 %v2071
        %v3525 = vpop.f32.mrf.mxu0
        %v3526 = vadd.f32 %v3353, %v3525
        %v3527 = vpop.f32.mrf.mxu0
        %v3528 = vadd.f32 %v3355, %v3527
        %v3529 = vpop.f32.mrf.mxu0
        %v3530 = vadd.f32 %v3357, %v3529
        %v3531 = vpop.f32.mrf.mxu0
        %v3532 = vadd.f32 %v3359, %v3531
        %3533 = vmatprep.mubr.bf16.mxu0 %v2144
        %3534 = vmatmul.mubr.bf16.gmra.mxu0 %v2079
        %v3535 = vpop.f32.mrf.mxu0
        %v3536 = vadd.f32 %v3363, %v3535
        %v3537 = vpop.f32.mrf.mxu0
        %v3538 = vadd.f32 %v3365, %v3537
        %v3539 = vpop.f32.mrf.mxu0
        %v3540 = vadd.f32 %v3367, %v3539
        %v3541 = vpop.f32.mrf.mxu0
        %v3542 = vadd.f32 %v3369, %v3541
        %3543 = vmatprep.mubr.bf16.mxu0 %v2146
        %3544 = vmatmul.mubr.bf16.gmra.mxu0 %v2087
        %v3545 = vpop.f32.mrf.mxu0
        %v3546 = vadd.f32 %v3373, %v3545
        %v3547 = vpop.f32.mrf.mxu0
        %v3548 = vadd.f32 %v3375, %v3547
        %v3549 = vpop.f32.mrf.mxu0
        %v3550 = vadd.f32 %v3377, %v3549
        %v3551 = vpop.f32.mrf.mxu0
        %v3552 = vadd.f32 %v3379, %v3551
        %3553 = vmatprep.mubr.bf16.mxu0 %v2173
        %3554 = vmatmul.mubr.bf16.gmra.mxu0 %v2165
        %v3555 = vpop.f32.mrf.mxu0
        %v3556 = vadd.f32 %v3383, %v3555
        %v3557 = vpop.f32.mrf.mxu0
        %v3558 = vadd.f32 %v3385, %v3557
        %v3559 = vpop.f32.mrf.mxu0
        %v3560 = vadd.f32 %v3387, %v3559
        %v3561 = vpop.f32.mrf.mxu0
        %v3562 = vadd.f32 %v3389, %v3561
        %3563 = vmatprep.mubr.bf16.mxu0 %v2172
        %3564 = vmatmul.mubr.bf16.gmra.mxu0 %v2168
        %v3565 = vpop.f32.mrf.mxu0
        %v3566 = vadd.f32 %v3393, %v3565
        %v3567 = vpop.f32.mrf.mxu0
        %v3568 = vadd.f32 %v3395, %v3567
        %v3569 = vpop.f32.mrf.mxu0
        %v3570 = vadd.f32 %v3397, %v3569
        %v3571 = vpop.f32.mrf.mxu0
        %v3572 = vadd.f32 %v3399, %v3571
        %3573 = vdwg.mxu0
        %3574 = vmatprep.subr.bf16.mxu0 %v2878
        %3575 = vmatpush1.bf16.msra.mxu0 %v2877
        %3576 = vmatprep.subr.bf16.mxu0 %v2876
        %3577 = vmatpush1.bf16.msra.mxu0 %v2875
        %3578 = vmatprep.subr.bf16.mxu0 %v2874
        %3579 = vmatpush1.bf16.msra.mxu0 %v2873
        %3580 = vmatprep.subr.bf16.mxu0 %v2872
        %3581 = vmatpush1.bf16.msra.mxu0 %v2871
        %3582 = vmatprep.subr.bf16.mxu0 %v2870
        %3583 = vmatpush1.bf16.msra.mxu0 %v2869
        %3584 = vmatprep.subr.bf16.mxu0 %v2868
        %3585 = vmatpush1.bf16.msra.mxu0 %v2867
        %3586 = vmatprep.subr.bf16.mxu0 %v2866
        %3587 = vmatpush1.bf16.msra.mxu0 %v2865
        %3588 = vmatprep.subr.bf16.mxu0 %v2864
        %3589 = vmatpush1.bf16.msra.mxu0 %v2863
        %3590 = vmatprep.subr.bf16.mxu0 %v2894
        %3591 = vmatpush2.bf16.msra.mxu0 %v2893
        %3592 = vmatprep.subr.bf16.mxu0 %v2892
        %3593 = vmatpush2.bf16.msra.mxu0 %v2891
        %3594 = vmatprep.subr.bf16.mxu0 %v2890
        %3595 = vmatpush2.bf16.msra.mxu0 %v2889
        %3596 = vmatprep.subr.bf16.mxu0 %v2888
        %3597 = vmatpush2.bf16.msra.mxu0 %v2887
        %3598 = vmatprep.subr.bf16.mxu0 %v2886
        %3599 = vmatpush2.bf16.msra.mxu0 %v2885
        %3600 = vmatprep.subr.bf16.mxu0 %v2884
        %3601 = vmatpush2.bf16.msra.mxu0 %v2883
        %3602 = vmatprep.subr.bf16.mxu0 %v2882
        %3603 = vmatpush2.bf16.msra.mxu0 %v2881
        %3604 = vmatprep.subr.bf16.mxu0 %v2880
        %3605 = vmatpush2.bf16.msra.mxu0 %v2879
        %3606 = vmatprep.mubr.bf16.mxu0 %v2007
        %3607 = vmatmul.mubr.bf16.gmra.mxu0 %v1965
        %v3608 = vpop.f32.mrf.mxu0
        %v3609 = vadd.f32 %v3436, %v3608
        %v3610 = vpop.f32.mrf.mxu0
        %v3611 = vadd.f32 %v3438, %v3610
        %v3612 = vpop.f32.mrf.mxu0
        %v3613 = vadd.f32 %v3440, %v3612
        %v3614 = vpop.f32.mrf.mxu0
        %v3615 = vadd.f32 %v3442, %v3614
        %3616 = vmatprep.mubr.bf16.mxu0 %v2015
        %3617 = vmatmul.mubr.bf16.gmra.mxu0 %v1966
        %v3618 = vpop.f32.mrf.mxu0
        %v3619 = vadd.f32 %v3446, %v3618
        %v3620 = vpop.f32.mrf.mxu0
        %v3621 = vadd.f32 %v3448, %v3620
        %v3622 = vpop.f32.mrf.mxu0
        %v3623 = vadd.f32 %v3450, %v3622
        %v3624 = vpop.f32.mrf.mxu0
        %v3625 = vadd.f32 %v3452, %v3624
        %3626 = vmatprep.mubr.bf16.mxu0 %v2023
        %3627 = vmatmul.mubr.bf16.gmra.mxu0 %v1967
        %v3628 = vpop.f32.mrf.mxu0
        %v3629 = vadd.f32 %v3456, %v3628
        %v3630 = vpop.f32.mrf.mxu0
        %v3631 = vadd.f32 %v3458, %v3630
        %v3632 = vpop.f32.mrf.mxu0
        %v3633 = vadd.f32 %v3460, %v3632
        %v3634 = vpop.f32.mrf.mxu0
        %v3635 = vadd.f32 %v3462, %v3634
        %3636 = vmatprep.mubr.bf16.mxu0 %v2031
        %3637 = vmatmul.mubr.bf16.gmra.mxu0 %v1968
        %v3638 = vpop.f32.mrf.mxu0
        %v3639 = vadd.f32 %v3466, %v3638
        %v3640 = vpop.f32.mrf.mxu0
        %v3641 = vadd.f32 %v3468, %v3640
        %v3642 = vpop.f32.mrf.mxu0
        %v3643 = vadd.f32 %v3470, %v3642
        %v3644 = vpop.f32.mrf.mxu0
        %v3645 = vadd.f32 %v3472, %v3644
        %3646 = vmatprep.mubr.bf16.mxu0 %v2039
        %3647 = vmatmul.mubr.bf16.gmra.mxu0 %v1969
        %v3648 = vpop.f32.mrf.mxu0
        %v3649 = vadd.f32 %v3476, %v3648
        %v3650 = vpop.f32.mrf.mxu0
        %v3651 = vadd.f32 %v3478, %v3650
        %v3652 = vpop.f32.mrf.mxu0
        %v3653 = vadd.f32 %v3480, %v3652
        %v3654 = vpop.f32.mrf.mxu0
        %v3655 = vadd.f32 %v3482, %v3654
        %3656 = vmatprep.mubr.bf16.mxu0 %v2047
        %3657 = vmatmul.mubr.bf16.gmra.mxu0 %v1970
        %v3658 = vpop.f32.mrf.mxu0
        %v3659 = vadd.f32 %v3486, %v3658
        %v3660 = vpop.f32.mrf.mxu0
        %v3661 = vadd.f32 %v3488, %v3660
        %v3662 = vpop.f32.mrf.mxu0
        %v3663 = vadd.f32 %v3490, %v3662
        %v3664 = vpop.f32.mrf.mxu0
        %v3665 = vadd.f32 %v3492, %v3664
        %3666 = vmatprep.mubr.bf16.mxu0 %v2055
        %3667 = vmatmul.mubr.bf16.gmra.mxu0 %v1971
        %v3668 = vpop.f32.mrf.mxu0
        %v3669 = vadd.f32 %v3496, %v3668
        %v3670 = vpop.f32.mrf.mxu0
        %v3671 = vadd.f32 %v3498, %v3670
        %v3672 = vpop.f32.mrf.mxu0
        %v3673 = vadd.f32 %v3500, %v3672
        %v3674 = vpop.f32.mrf.mxu0
        %v3675 = vadd.f32 %v3502, %v3674
        %3676 = vmatprep.mubr.bf16.mxu0 %v2063
        %3677 = vmatmul.mubr.bf16.gmra.mxu0 %v1972
        %v3678 = vpop.f32.mrf.mxu0
        %v3679 = vadd.f32 %v3506, %v3678
        %v3680 = vpop.f32.mrf.mxu0
        %v3681 = vadd.f32 %v3508, %v3680
        %v3682 = vpop.f32.mrf.mxu0
        %v3683 = vadd.f32 %v3510, %v3682
        %v3684 = vpop.f32.mrf.mxu0
        %v3685 = vadd.f32 %v3512, %v3684
        %3686 = vmatprep.mubr.bf16.mxu0 %v2071
        %3687 = vmatmul.mubr.bf16.gmra.mxu0 %v1973
        %v3688 = vpop.f32.mrf.mxu0
        %v3689 = vadd.f32 %v3516, %v3688
        %v3690 = vpop.f32.mrf.mxu0
        %v3691 = vadd.f32 %v3518, %v3690
        %v3692 = vpop.f32.mrf.mxu0
        %v3693 = vadd.f32 %v3520, %v3692
        %v3694 = vpop.f32.mrf.mxu0
        %v3695 = vadd.f32 %v3522, %v3694
        %3696 = vmatprep.mubr.bf16.mxu0 %v2079
        %3697 = vmatmul.mubr.bf16.gmra.mxu0 %v1974
        %v3698 = vpop.f32.mrf.mxu0
        %v3699 = vadd.f32 %v3526, %v3698
        %v3700 = vpop.f32.mrf.mxu0
        %v3701 = vadd.f32 %v3528, %v3700
        %v3702 = vpop.f32.mrf.mxu0
        %v3703 = vadd.f32 %v3530, %v3702
        %v3704 = vpop.f32.mrf.mxu0
        %v3705 = vadd.f32 %v3532, %v3704
        %3706 = vmatprep.mubr.bf16.mxu0 %v2087
        %3707 = vmatmul.mubr.bf16.gmra.mxu0 %v1975
        %v3708 = vpop.f32.mrf.mxu0
        %v3709 = vadd.f32 %v3536, %v3708
        %v3710 = vpop.f32.mrf.mxu0
        %v3711 = vadd.f32 %v3538, %v3710
        %v3712 = vpop.f32.mrf.mxu0
        %v3713 = vadd.f32 %v3540, %v3712
        %v3714 = vpop.f32.mrf.mxu0
        %v3715 = vadd.f32 %v3542, %v3714
        %3716 = vmatprep.mubr.bf16.mxu0 %v2165
        %3717 = vmatmul.mubr.bf16.gmra.mxu0 %v1976
        %v3718 = vpop.f32.mrf.mxu0
        %v3719 = vadd.f32 %v3546, %v3718
        %v3720 = vpop.f32.mrf.mxu0
        %v3721 = vadd.f32 %v3548, %v3720
        %v3722 = vpop.f32.mrf.mxu0
        %v3723 = vadd.f32 %v3550, %v3722
        %v3724 = vpop.f32.mrf.mxu0
        %v3725 = vadd.f32 %v3552, %v3724
        %3726 = vmatprep.mubr.bf16.mxu0 %v2180
        %3727 = vmatmul.mubr.bf16.gmra.mxu0 %v1977
        %v3728 = vpop.f32.mrf.mxu0
        %v3729 = vadd.f32 %v3556, %v3728
        %v3730 = vpop.f32.mrf.mxu0
        %v3731 = vadd.f32 %v3558, %v3730
        %v3732 = vpop.f32.mrf.mxu0
        %v3733 = vadd.f32 %v3560, %v3732
        %v3734 = vpop.f32.mrf.mxu0
        %v3735 = vadd.f32 %v3562, %v3734
        %3736 = vmatprep.mubr.bf16.mxu0 %v2183
        %3737 = vmatmul.mubr.bf16.gmra.mxu0 %v1978
        %v3738 = vpop.f32.mrf.mxu0
        %v3739 = vadd.f32 %v3566, %v3738
        %v3740 = vpop.f32.mrf.mxu0
        %v3741 = vadd.f32 %v3568, %v3740
        %v3742 = vpop.f32.mrf.mxu0
        %v3743 = vadd.f32 %v3570, %v3742
        %v3744 = vpop.f32.mrf.mxu0
        %v3745 = vadd.f32 %v3572, %v3744
        %3746 = vdwg.mxu0
        %3747 = vmatprep.subr.bf16.mxu0 %v2910
        %3748 = vmatpush1.bf16.msra.mxu0 %v2909
        %3749 = vmatprep.subr.bf16.mxu0 %v2908
        %3750 = vmatpush1.bf16.msra.mxu0 %v2907
        %3751 = vmatprep.subr.bf16.mxu0 %v2906
        %3752 = vmatpush1.bf16.msra.mxu0 %v2905
        %3753 = vmatprep.subr.bf16.mxu0 %v2904
        %3754 = vmatpush1.bf16.msra.mxu0 %v2903
        %3755 = vmatprep.subr.bf16.mxu0 %v2902
        %3756 = vmatpush1.bf16.msra.mxu0 %v2901
        %3757 = vmatprep.subr.bf16.mxu0 %v2900
        %3758 = vmatpush1.bf16.msra.mxu0 %v2899
        %3759 = vmatprep.subr.bf16.mxu0 %v2898
        %3760 = vmatpush1.bf16.msra.mxu0 %v2897
        %3761 = vmatprep.subr.bf16.mxu0 %v2896
        %3762 = vmatpush1.bf16.msra.mxu0 %v2895
        %3763 = vmatprep.subr.bf16.mxu0 0
        %3764 = vmatpush2.bf16.msra.mxu0 0
        %3765 = vmatprep.subr.bf16.mxu0 0
        %3766 = vmatpush2.bf16.msra.mxu0 0
        %3767 = vmatprep.subr.bf16.mxu0 0
        %3768 = vmatpush2.bf16.msra.mxu0 0
        %3769 = vmatprep.subr.bf16.mxu0 0
        %3770 = vmatpush2.bf16.msra.mxu0 0
        %3771 = vmatprep.subr.bf16.mxu0 0
        %3772 = vmatpush2.bf16.msra.mxu0 0
        %3773 = vmatprep.subr.bf16.mxu0 0
        %3774 = vmatpush2.bf16.msra.mxu0 0
        %3775 = vmatprep.subr.bf16.mxu0 0
        %3776 = vmatpush2.bf16.msra.mxu0 0
        %3777 = vmatprep.subr.bf16.mxu0 0
        %3778 = vmatpush2.bf16.msra.mxu0 0
        %3779 = vmatprep.mubr.bf16.mxu0 0
        %3780 = vmatmul.mubr.bf16.gmra.mxu0 %v2126
        %v3781 = vpop.f32.mrf.mxu0
        %v3782 = vadd.f32 %v3609, %v3781
        %v3783 = vpop.f32.mrf.mxu0
        %v3784 = vadd.f32 %v3611, %v3783
        %v3785 = vpop.f32.mrf.mxu0
        %v3786 = vadd.f32 %v3613, %v3785
        %v3787 = vpop.f32.mrf.mxu0
        %v3788 = vadd.f32 %v3615, %v3787
        %3789 = vmatprep.mubr.bf16.mxu0 0
        %3790 = vmatmul.mubr.bf16.gmra.mxu0 %v2128
        %v3791 = vpop.f32.mrf.mxu0
        %v3792 = vadd.f32 %v3619, %v3791
        %v3793 = vpop.f32.mrf.mxu0
        %v3794 = vadd.f32 %v3621, %v3793
        %v3795 = vpop.f32.mrf.mxu0
        %v3796 = vadd.f32 %v3623, %v3795
        %v3797 = vpop.f32.mrf.mxu0
        %v3798 = vadd.f32 %v3625, %v3797
        %3799 = vmatprep.mubr.bf16.mxu0 0
        %3800 = vmatmul.mubr.bf16.gmra.mxu0 %v2130
        %v3801 = vpop.f32.mrf.mxu0
        %v3802 = vadd.f32 %v3629, %v3801
        %v3803 = vpop.f32.mrf.mxu0
        %v3804 = vadd.f32 %v3631, %v3803
        %v3805 = vpop.f32.mrf.mxu0
        %v3806 = vadd.f32 %v3633, %v3805
        %v3807 = vpop.f32.mrf.mxu0
        %v3808 = vadd.f32 %v3635, %v3807
        %3809 = vmatprep.mubr.bf16.mxu0 0
        %3810 = vmatmul.mubr.bf16.gmra.mxu0 %v2132
        %v3811 = vpop.f32.mrf.mxu0
        %v3812 = vadd.f32 %v3639, %v3811
        %v3813 = vpop.f32.mrf.mxu0
        %v3814 = vadd.f32 %v3641, %v3813
        %v3815 = vpop.f32.mrf.mxu0
        %v3816 = vadd.f32 %v3643, %v3815
        %v3817 = vpop.f32.mrf.mxu0
        %v3818 = vadd.f32 %v3645, %v3817
        %3819 = vmatprep.mubr.bf16.mxu0 0
        %3820 = vmatmul.mubr.bf16.gmra.mxu0 %v2134
        %v3821 = vpop.f32.mrf.mxu0
        %v3822 = vadd.f32 %v3649, %v3821
        %v3823 = vpop.f32.mrf.mxu0
        %v3824 = vadd.f32 %v3651, %v3823
        %v3825 = vpop.f32.mrf.mxu0
        %v3826 = vadd.f32 %v3653, %v3825
        %v3827 = vpop.f32.mrf.mxu0
        %v3828 = vadd.f32 %v3655, %v3827
        %3829 = vmatprep.mubr.bf16.mxu0 0
        %3830 = vmatmul.mubr.bf16.gmra.mxu0 %v2136
        %v3831 = vpop.f32.mrf.mxu0
        %v3832 = vadd.f32 %v3659, %v3831
        %v3833 = vpop.f32.mrf.mxu0
        %v3834 = vadd.f32 %v3661, %v3833
        %v3835 = vpop.f32.mrf.mxu0
        %v3836 = vadd.f32 %v3663, %v3835
        %v3837 = vpop.f32.mrf.mxu0
        %v3838 = vadd.f32 %v3665, %v3837
        %3839 = vmatprep.mubr.bf16.mxu0 0
        %3840 = vmatmul.mubr.bf16.gmra.mxu0 %v2138
        %v3841 = vpop.f32.mrf.mxu0
        %v3842 = vadd.f32 %v3669, %v3841
        %v3843 = vpop.f32.mrf.mxu0
        %v3844 = vadd.f32 %v3671, %v3843
        %v3845 = vpop.f32.mrf.mxu0
        %v3846 = vadd.f32 %v3673, %v3845
        %v3847 = vpop.f32.mrf.mxu0
        %v3848 = vadd.f32 %v3675, %v3847
        %3849 = vmatprep.mubr.bf16.mxu0 0
        %3850 = vmatmul.mubr.bf16.gmra.mxu0 %v2140
        %v3851 = vpop.f32.mrf.mxu0
        %v3852 = vadd.f32 %v3679, %v3851
        %v3853 = vpop.f32.mrf.mxu0
        %v3854 = vadd.f32 %v3681, %v3853
        %v3855 = vpop.f32.mrf.mxu0
        %v3856 = vadd.f32 %v3683, %v3855
        %v3857 = vpop.f32.mrf.mxu0
        %v3858 = vadd.f32 %v3685, %v3857
        %3859 = vmatprep.mubr.bf16.mxu0 0
        %3860 = vmatmul.mubr.bf16.gmra.mxu0 %v2142
        %v3861 = vpop.f32.mrf.mxu0
        %v3862 = vadd.f32 %v3689, %v3861
        %v3863 = vpop.f32.mrf.mxu0
        %v3864 = vadd.f32 %v3691, %v3863
        %v3865 = vpop.f32.mrf.mxu0
        %v3866 = vadd.f32 %v3693, %v3865
        %v3867 = vpop.f32.mrf.mxu0
        %v3868 = vadd.f32 %v3695, %v3867
        %3869 = vmatprep.mubr.bf16.mxu0 0
        %3870 = vmatmul.mubr.bf16.gmra.mxu0 %v2144
        %v3871 = vpop.f32.mrf.mxu0
        %v3872 = vadd.f32 %v3699, %v3871
        %v3873 = vpop.f32.mrf.mxu0
        %v3874 = vadd.f32 %v3701, %v3873
        %v3875 = vpop.f32.mrf.mxu0
        %v3876 = vadd.f32 %v3703, %v3875
        %v3877 = vpop.f32.mrf.mxu0
        %v3878 = vadd.f32 %v3705, %v3877
        %3879 = vmatprep.mubr.bf16.mxu0 0
        %3880 = vmatmul.mubr.bf16.gmra.mxu0 %v2146
        %v3881 = vpop.f32.mrf.mxu0
        %v3882 = vadd.f32 %v3709, %v3881
        %v3883 = vpop.f32.mrf.mxu0
        %v3884 = vadd.f32 %v3711, %v3883
        %v3885 = vpop.f32.mrf.mxu0
        %v3886 = vadd.f32 %v3713, %v3885
        %v3887 = vpop.f32.mrf.mxu0
        %v3888 = vadd.f32 %v3715, %v3887
        %3889 = vmatprep.mubr.bf16.mxu0 0
        %3890 = vmatmul.mubr.bf16.gmra.mxu0 %v2173
        %v3891 = vpop.f32.mrf.mxu0
        %v3892 = vadd.f32 %v3719, %v3891
        %v3893 = vpop.f32.mrf.mxu0
        %v3894 = vadd.f32 %v3721, %v3893
        %v3895 = vpop.f32.mrf.mxu0
        %v3896 = vadd.f32 %v3723, %v3895
        %v3897 = vpop.f32.mrf.mxu0
        %v3898 = vadd.f32 %v3725, %v3897
        %3899 = vmatprep.mubr.bf16.mxu0 0
        %3900 = vmatmul.mubr.bf16.gmra.mxu0 %v2188
        %v3901 = vpop.f32.mrf.mxu0
        %v3902 = vadd.f32 %v3729, %v3901
        %v3903 = vpop.f32.mrf.mxu0
        %v3904 = vadd.f32 %v3731, %v3903
        %v3905 = vpop.f32.mrf.mxu0
        %v3906 = vadd.f32 %v3733, %v3905
        %v3907 = vpop.f32.mrf.mxu0
        %v3908 = vadd.f32 %v3735, %v3907
        %3909 = vmatprep.mubr.bf16.mxu0 0
        %3910 = vmatmul.mubr.bf16.gmra.mxu0 %v2187
        %v3911 = vpop.f32.mrf.mxu0
        %v3912 = vadd.f32 %v3739, %v3911
        %v3913 = vpop.f32.mrf.mxu0
        %v3914 = vadd.f32 %v3741, %v3913
        %v3915 = vpop.f32.mrf.mxu0
        %v3916 = vadd.f32 %v3743, %v3915
        %v3917 = vpop.f32.mrf.mxu0
        %v3918 = vadd.f32 %v3745, %v3917
        %3919 = vdwg.mxu0
        %vm3972 = vcmask 1046528
        %v3973 = vrot.slane %v3782, 1
        %v3974 = vrot.slane %v3786, 1
        %v3975 = vsel %vm3972, %v3973, %v3974
        %v3976 = vrot.slane %v3784, 1
        %v3977 = vrot.slane %v3788, 1
        %v3978 = vsel %vm3972, %v3976, %v3977
        %v3979 = vrot.slane %v3792, 1
        %v3980 = vsel %vm3972, %v3974, %v3979
        %v3981 = vrot.slane %v3794, 1
        %v3982 = vsel %vm3972, %v3977, %v3981
        %v3983 = vrot.slane %v3796, 1
        %v3984 = vsel %vm3972, %v3979, %v3983
        %v3985 = vrot.slane %v3798, 1
        %v3986 = vsel %vm3972, %v3981, %v3985
        %v3987 = vrot.slane %v3802, 1
        %v3988 = vsel %vm3972, %v3983, %v3987
        %v3989 = vrot.slane %v3804, 1
        %v3990 = vsel %vm3972, %v3985, %v3989
        %v3991 = vrot.slane %v3806, 1
        %v3992 = vsel %vm3972, %v3987, %v3991
        %v3993 = vrot.slane %v3808, 1
        %v3994 = vsel %vm3972, %v3989, %v3993
        %v3995 = vrot.slane %v3812, 1
        %v3996 = vsel %vm3972, %v3991, %v3995
        %v3997 = vrot.slane %v3814, 1
        %v3998 = vsel %vm3972, %v3993, %v3997
        %v3999 = vrot.slane %v3816, 1
        %v4000 = vsel %vm3972, %v3995, %v3999
        %v4001 = vrot.slane %v3818, 1
        %v4002 = vsel %vm3972, %v3997, %v4001
        %v4003 = vrot.slane %v3822, 1
        %v4004 = vsel %vm3972, %v3999, %v4003
        %v4005 = vrot.slane %v3824, 1
        %v4006 = vsel %vm3972, %v4001, %v4005
        %v4007 = vrot.slane %v3826, 1
        %v4008 = vsel %vm3972, %v4003, %v4007
        %v4009 = vrot.slane %v3828, 1
        %v4010 = vsel %vm3972, %v4005, %v4009
        %v4011 = vrot.slane %v3832, 1
        %v4012 = vsel %vm3972, %v4007, %v4011
        %v4013 = vrot.slane %v3834, 1
        %v4014 = vsel %vm3972, %v4009, %v4013
        %v4015 = vrot.slane %v3836, 1
        %v4016 = vsel %vm3972, %v4011, %v4015
        %v4017 = vrot.slane %v3838, 1
        %v4018 = vsel %vm3972, %v4013, %v4017
        %v4019 = vrot.slane %v3842, 1
        %v4020 = vsel %vm3972, %v4015, %v4019
        %v4021 = vrot.slane %v3844, 1
        %v4022 = vsel %vm3972, %v4017, %v4021
        %v4023 = vrot.slane %v3846, 1
        %v4024 = vsel %vm3972, %v4019, %v4023
        %v4025 = vrot.slane %v3848, 1
        %v4026 = vsel %vm3972, %v4021, %v4025
        %v4027 = vrot.slane %v3852, 1
        %v4028 = vsel %vm3972, %v4023, %v4027
        %v4029 = vrot.slane %v3854, 1
        %v4030 = vsel %vm3972, %v4025, %v4029
        %v4031 = vrot.slane %v3856, 1
        %v4032 = vsel %vm3972, %v4027, %v4031
        %v4033 = vrot.slane %v3858, 1
        %v4034 = vsel %vm3972, %v4029, %v4033
        %v4035 = vrot.slane %v3862, 1
        %v4036 = vsel %vm3972, %v4031, %v4035
        %v4037 = vrot.slane %v3864, 1
        %v4038 = vsel %vm3972, %v4033, %v4037
        %v4039 = vrot.slane %v3866, 1
        %v4040 = vsel %vm3972, %v4035, %v4039
        %v4041 = vrot.slane %v3868, 1
        %v4042 = vsel %vm3972, %v4037, %v4041
        %v4043 = vrot.slane %v3872, 1
        %v4044 = vsel %vm3972, %v4039, %v4043
        %v4045 = vrot.slane %v3874, 1
        %v4046 = vsel %vm3972, %v4041, %v4045
        %v4047 = vrot.slane %v3876, 1
        %v4048 = vsel %vm3972, %v4043, %v4047
        %v4049 = vrot.slane %v3878, 1
        %v4050 = vsel %vm3972, %v4045, %v4049
        %v4051 = vrot.slane %v3882, 1
        %v4052 = vsel %vm3972, %v4047, %v4051
        %v4053 = vrot.slane %v3884, 1
        %v4054 = vsel %vm3972, %v4049, %v4053
        %v4055 = vrot.slane %v3886, 1
        %v4056 = vsel %vm3972, %v4051, %v4055
        %v4057 = vrot.slane %v3888, 1
        %v4058 = vsel %vm3972, %v4053, %v4057
        %v4059 = vrot.slane %v3892, 1
        %v4060 = vsel %vm3972, %v4055, %v4059
        %v4061 = vrot.slane %v3894, 1
        %v4062 = vsel %vm3972, %v4057, %v4061
        %v4063 = vrot.slane %v3896, 1
        %v4064 = vsel %vm3972, %v4059, %v4063
        %v4065 = vrot.slane %v3898, 1
        %v4066 = vsel %vm3972, %v4061, %v4065
        %v4067 = vrot.slane %v3902, 1
        %v4068 = vsel %vm3972, %v4063, %v4067
        %v4069 = vrot.slane %v3904, 1
        %v4070 = vsel %vm3972, %v4065, %v4069
        %v4071 = vrot.slane %v3906, 1
        %v4072 = vsel %vm3972, %v4067, %v4071
        %v4073 = vrot.slane %v3908, 1
        %v4074 = vsel %vm3972, %v4069, %v4073
        %v4127 = vmax.f32 %v3782, %v3975
        %v4128 = vmax.f32 %v3784, %v3978
        %v4129 = vmax.f32 %v3786, %v3980
        %v4130 = vmax.f32 %v3788, %v3982
        %v4131 = vmax.f32 %v3792, %v3984
        %v4132 = vmax.f32 %v3794, %v3986
        %v4133 = vmax.f32 %v3796, %v3988
        %v4134 = vmax.f32 %v3798, %v3990
        %v4135 = vmax.f32 %v3802, %v3992
        %v4136 = vmax.f32 %v3804, %v3994
        %v4137 = vmax.f32 %v3806, %v3996
        %v4138 = vmax.f32 %v3808, %v3998
        %v4139 = vmax.f32 %v3812, %v4000
        %v4140 = vmax.f32 %v3814, %v4002
        %v4141 = vmax.f32 %v3816, %v4004
        %v4142 = vmax.f32 %v3818, %v4006
        %v4143 = vmax.f32 %v3822, %v4008
        %v4144 = vmax.f32 %v3824, %v4010
        %v4145 = vmax.f32 %v3826, %v4012
        %v4146 = vmax.f32 %v3828, %v4014
        %v4147 = vmax.f32 %v3832, %v4016
        %v4148 = vmax.f32 %v3834, %v4018
        %v4149 = vmax.f32 %v3836, %v4020
        %v4150 = vmax.f32 %v3838, %v4022
        %v4151 = vmax.f32 %v3842, %v4024
        %v4152 = vmax.f32 %v3844, %v4026
        %v4153 = vmax.f32 %v3846, %v4028
        %v4154 = vmax.f32 %v3848, %v4030
        %v4155 = vmax.f32 %v3852, %v4032
        %v4156 = vmax.f32 %v3854, %v4034
        %v4157 = vmax.f32 %v3856, %v4036
        %v4158 = vmax.f32 %v3858, %v4038
        %v4159 = vmax.f32 %v3862, %v4040
        %v4160 = vmax.f32 %v3864, %v4042
        %v4161 = vmax.f32 %v3866, %v4044
        %v4162 = vmax.f32 %v3868, %v4046
        %v4163 = vmax.f32 %v3872, %v4048
        %v4164 = vmax.f32 %v3874, %v4050
        %v4165 = vmax.f32 %v3876, %v4052
        %v4166 = vmax.f32 %v3878, %v4054
        %v4167 = vmax.f32 %v3882, %v4056
        %v4168 = vmax.f32 %v3884, %v4058
        %v4169 = vmax.f32 %v3886, %v4060
        %v4170 = vmax.f32 %v3888, %v4062
        %v4171 = vmax.f32 %v3892, %v4064
        %v4172 = vmax.f32 %v3894, %v4066
        %v4173 = vmax.f32 %v3896, %v4068
        %v4174 = vmax.f32 %v3898, %v4070
        %v4175 = vmax.f32 %v3902, %v4072
        %v4176 = vmax.f32 %v3904, %v4074
        %v4177 = vmax.f32 %v3906, %v4071
        %v4178 = vmax.f32 %v3908, %v4073
        %v4183 = vrot.slane %v3912, 1
        %v4184 = vsel %vm3972, %v4071, %v4183
        %v4185 = vrot.slane %v3914, 1
        %v4186 = vsel %vm3972, %v4073, %v4185
        %v4187 = vrot.slane %v3916, 1
        %v4188 = vsel %vm3972, %v4183, %v4187
        %v4189 = vrot.slane %v3918, 1
        %v4190 = vsel %vm3972, %v4185, %v4189
        %v4197 = vmax.f32 %v3906, %v4184
        %v4198 = vmax.f32 %v3908, %v4186
        %v4199 = vmax.f32 %v3912, %v4188
        %v4200 = vmax.f32 %v3914, %v4190
        %v4201 = vmax.f32 %v3916, %v4187
        %v4202 = vmax.f32 %v3918, %v4189
        %v4203 = vmax.f32 %v4127, %v4131
        %v4204 = vmax.f32 %v4128, %v4132
        %v4205 = vmax.f32 %v4129, %v4133
        %v4206 = vmax.f32 %v4130, %v4134
        %v4207 = vmax.f32 %v4131, %v4135
        %v4208 = vmax.f32 %v4132, %v4136
        %v4209 = vmax.f32 %v4133, %v4137
        %v4210 = vmax.f32 %v4134, %v4138
        %v4211 = vmax.f32 %v4135, %v4139
        %v4212 = vmax.f32 %v4136, %v4140
        %v4213 = vmax.f32 %v4137, %v4141
        %v4214 = vmax.f32 %v4138, %v4142
        %v4215 = vmax.f32 %v4139, %v4143
        %v4216 = vmax.f32 %v4140, %v4144
        %v4217 = vmax.f32 %v4141, %v4145
        %v4218 = vmax.f32 %v4142, %v4146
        %v4219 = vmax.f32 %v4143, %v4147
        %v4220 = vmax.f32 %v4144, %v4148
        %v4221 = vmax.f32 %v4145, %v4149
        %v4222 = vmax.f32 %v4146, %v4150
        %v4223 = vmax.f32 %v4147, %v4151
        %v4224 = vmax.f32 %v4148, %v4152
        %v4225 = vmax.f32 %v4149, %v4153
        %v4226 = vmax.f32 %v4150, %v4154
        %v4227 = vmax.f32 %v4151, %v4155
        %v4228 = vmax.f32 %v4152, %v4156
        %v4229 = vmax.f32 %v4153, %v4157
        %v4230 = vmax.f32 %v4154, %v4158
        %v4231 = vmax.f32 %v4155, %v4159
        %v4232 = vmax.f32 %v4156, %v4160
        %v4233 = vmax.f32 %v4157, %v4161
        %v4234 = vmax.f32 %v4158, %v4162
        %v4235 = vmax.f32 %v4159, %v4163
        %v4236 = vmax.f32 %v4160, %v4164
        %v4237 = vmax.f32 %v4161, %v4165
        %v4238 = vmax.f32 %v4162, %v4166
        %v4239 = vmax.f32 %v4163, %v4167
        %v4240 = vmax.f32 %v4164, %v4168
        %v4241 = vmax.f32 %v4165, %v4169
        %v4242 = vmax.f32 %v4166, %v4170
        %v4243 = vmax.f32 %v4167, %v4171
        %v4244 = vmax.f32 %v4168, %v4172
        %v4245 = vmax.f32 %v4169, %v4173
        %v4246 = vmax.f32 %v4170, %v4174
        %v4247 = vmax.f32 %v4171, %v4175
        %v4248 = vmax.f32 %v4172, %v4176
        %v4249 = vmax.f32 %v4173, %v4197
        %v4250 = vmax.f32 %v4174, %v4198
        %v4251 = vmax.f32 %v4175, %v4199
        %v4252 = vmax.f32 %v4176, %v4200
        %v4253 = vmax.f32 %v4177, %v4201
        %v4254 = vmax.f32 %v4178, %v4202
        %v4255 = vld [vmem:[%s4] sm:$0x3]
        %v4257 = vlaneseq
        %v4258 = vshrl.u32 %v4257, 7
        %v4259 = vsub.s32 0, %v4258
        %v4260 = vrot.slane %v4255, %v4259
        %v4261 = vlaneseq
        %v4262 = vshrl.u32 %v4261, 7
        %v4263 = vsub.s32 1, %v4262
        %v4264 = vrot.slane %v4255, %v4263
        %v4267 = vadd.f32 %v4203, %v4260
        %v4268 = vadd.f32 %v4204, %v4264
        %v4269 = vadd.f32 %v4205, %v4260
        %v4270 = vadd.f32 %v4206, %v4264
        %v4271 = vadd.f32 %v4207, %v4260
        %v4272 = vadd.f32 %v4208, %v4264
        %v4273 = vadd.f32 %v4209, %v4260
        %v4274 = vadd.f32 %v4210, %v4264
        %v4275 = vadd.f32 %v4211, %v4260
        %v4276 = vadd.f32 %v4212, %v4264
        %v4277 = vadd.f32 %v4213, %v4260
        %v4278 = vadd.f32 %v4214, %v4264
        %v4279 = vadd.f32 %v4215, %v4260
        %v4280 = vadd.f32 %v4216, %v4264
        %v4281 = vadd.f32 %v4217, %v4260
        %v4282 = vadd.f32 %v4218, %v4264
        %v4283 = vadd.f32 %v4219, %v4260
        %v4284 = vadd.f32 %v4220, %v4264
        %v4285 = vadd.f32 %v4221, %v4260
        %v4286 = vadd.f32 %v4222, %v4264
        %v4287 = vadd.f32 %v4223, %v4260
        %v4288 = vadd.f32 %v4224, %v4264
        %v4289 = vadd.f32 %v4225, %v4260
        %v4290 = vadd.f32 %v4226, %v4264
        %v4291 = vadd.f32 %v4227, %v4260
        %v4292 = vadd.f32 %v4228, %v4264
        %v4293 = vadd.f32 %v4229, %v4260
        %v4294 = vadd.f32 %v4230, %v4264
        %v4295 = vadd.f32 %v4231, %v4260
        %v4296 = vadd.f32 %v4232, %v4264
        %v4297 = vadd.f32 %v4233, %v4260
        %v4298 = vadd.f32 %v4234, %v4264
        %v4299 = vadd.f32 %v4235, %v4260
        %v4300 = vadd.f32 %v4236, %v4264
        %v4301 = vadd.f32 %v4237, %v4260
        %v4302 = vadd.f32 %v4238, %v4264
        %v4303 = vadd.f32 %v4239, %v4260
        %v4304 = vadd.f32 %v4240, %v4264
        %v4305 = vadd.f32 %v4241, %v4260
        %v4306 = vadd.f32 %v4242, %v4264
        %v4307 = vadd.f32 %v4243, %v4260
        %v4308 = vadd.f32 %v4244, %v4264
        %v4309 = vadd.f32 %v4245, %v4260
        %v4310 = vadd.f32 %v4246, %v4264
        %v4311 = vadd.f32 %v4247, %v4260
        %v4312 = vadd.f32 %v4248, %v4264
        %v4313 = vadd.f32 %v4249, %v4260
        %v4314 = vadd.f32 %v4250, %v4264
        %v4315 = vadd.f32 %v4251, %v4260
        %v4316 = vadd.f32 %v4252, %v4264
        %v4317 = vadd.f32 %v4253, %v4260
        %v4318 = vadd.f32 %v4254, %v4264
        %vm4319 = vcmp.ge.f32.partialorder %v4267, 0.0
        %vm4320 = vcmp.ge.f32.partialorder %v4268, 0.0
        %vm4321 = vcmp.ge.f32.partialorder %v4269, 0.0
        %vm4322 = vcmp.ge.f32.partialorder %v4270, 0.0
        %vm4323 = vcmp.ge.f32.partialorder %v4271, 0.0
        %vm4324 = vcmp.ge.f32.partialorder %v4272, 0.0
        %vm4325 = vcmp.ge.f32.partialorder %v4273, 0.0
        %vm4326 = vcmp.ge.f32.partialorder %v4274, 0.0
        %vm4327 = vcmp.ge.f32.partialorder %v4275, 0.0
        %vm4328 = vcmp.ge.f32.partialorder %v4276, 0.0
        %vm4329 = vcmp.ge.f32.partialorder %v4277, 0.0
        %vm4330 = vcmp.ge.f32.partialorder %v4278, 0.0
        %vm4331 = vcmp.ge.f32.partialorder %v4279, 0.0
        %vm4332 = vcmp.ge.f32.partialorder %v4280, 0.0
        %vm4333 = vcmp.ge.f32.partialorder %v4281, 0.0
        %vm4334 = vcmp.ge.f32.partialorder %v4282, 0.0
        %vm4335 = vcmp.ge.f32.partialorder %v4283, 0.0
        %vm4336 = vcmp.ge.f32.partialorder %v4284, 0.0
        %vm4337 = vcmp.ge.f32.partialorder %v4285, 0.0
        %vm4338 = vcmp.ge.f32.partialorder %v4286, 0.0
        %vm4339 = vcmp.ge.f32.partialorder %v4287, 0.0
        %vm4340 = vcmp.ge.f32.partialorder %v4288, 0.0
        %vm4341 = vcmp.ge.f32.partialorder %v4289, 0.0
        %vm4342 = vcmp.ge.f32.partialorder %v4290, 0.0
        %vm4343 = vcmp.ge.f32.partialorder %v4291, 0.0
        %vm4344 = vcmp.ge.f32.partialorder %v4292, 0.0
        %vm4345 = vcmp.ge.f32.partialorder %v4293, 0.0
        %vm4346 = vcmp.ge.f32.partialorder %v4294, 0.0
        %vm4347 = vcmp.ge.f32.partialorder %v4295, 0.0
        %vm4348 = vcmp.ge.f32.partialorder %v4296, 0.0
        %vm4349 = vcmp.ge.f32.partialorder %v4297, 0.0
        %vm4350 = vcmp.ge.f32.partialorder %v4298, 0.0
        %vm4351 = vcmp.ge.f32.partialorder %v4299, 0.0
        %vm4352 = vcmp.ge.f32.partialorder %v4300, 0.0
        %vm4353 = vcmp.ge.f32.partialorder %v4301, 0.0
        %vm4354 = vcmp.ge.f32.partialorder %v4302, 0.0
        %vm4355 = vcmp.ge.f32.partialorder %v4303, 0.0
        %vm4356 = vcmp.ge.f32.partialorder %v4304, 0.0
        %vm4357 = vcmp.ge.f32.partialorder %v4305, 0.0
        %vm4358 = vcmp.ge.f32.partialorder %v4306, 0.0
        %vm4359 = vcmp.ge.f32.partialorder %v4307, 0.0
        %vm4360 = vcmp.ge.f32.partialorder %v4308, 0.0
        %vm4361 = vcmp.ge.f32.partialorder %v4309, 0.0
        %vm4362 = vcmp.ge.f32.partialorder %v4310, 0.0
        %vm4363 = vcmp.ge.f32.partialorder %v4311, 0.0
        %vm4364 = vcmp.ge.f32.partialorder %v4312, 0.0
        %vm4365 = vcmp.ge.f32.partialorder %v4313, 0.0
        %vm4366 = vcmp.ge.f32.partialorder %v4314, 0.0
        %vm4367 = vcmp.ge.f32.partialorder %v4315, 0.0
        %vm4368 = vcmp.ge.f32.partialorder %v4316, 0.0
        %vm4369 = vcmp.ge.f32.partialorder %v4317, 0.0
        %vm4370 = vcmp.ge.f32.partialorder %v4318, 0.0
        %v4371 = vmul.f32 %v4267, 0.2
        %v4372 = vmul.f32 %v4268, 0.2
        %v4373 = vmul.f32 %v4269, 0.2
        %v4374 = vmul.f32 %v4270, 0.2
        %v4375 = vmul.f32 %v4271, 0.2
        %v4376 = vmul.f32 %v4272, 0.2
        %v4377 = vmul.f32 %v4273, 0.2
        %v4378 = vmul.f32 %v4274, 0.2
        %v4379 = vmul.f32 %v4275, 0.2
        %v4380 = vmul.f32 %v4276, 0.2
        %v4381 = vmul.f32 %v4277, 0.2
        %v4382 = vmul.f32 %v4278, 0.2
        %v4383 = vmul.f32 %v4279, 0.2
        %v4384 = vmul.f32 %v4280, 0.2
        %v4385 = vmul.f32 %v4281, 0.2
        %v4386 = vmul.f32 %v4282, 0.2
        %v4387 = vmul.f32 %v4283, 0.2
        %v4388 = vmul.f32 %v4284, 0.2
        %v4389 = vmul.f32 %v4285, 0.2
        %v4390 = vmul.f32 %v4286, 0.2
        %v4391 = vmul.f32 %v4287, 0.2
        %v4392 = vmul.f32 %v4288, 0.2
        %v4393 = vmul.f32 %v4289, 0.2
        %v4394 = vmul.f32 %v4290, 0.2
        %v4395 = vmul.f32 %v4291, 0.2
        %v4396 = vmul.f32 %v4292, 0.2
        %v4397 = vmul.f32 %v4293, 0.2
        %v4398 = vmul.f32 %v4294, 0.2
        %v4399 = vmul.f32 %v4295, 0.2
        %v4400 = vmul.f32 %v4296, 0.2
        %v4401 = vmul.f32 %v4297, 0.2
        %v4402 = vmul.f32 %v4298, 0.2
        %v4403 = vmul.f32 %v4299, 0.2
        %v4404 = vmul.f32 %v4300, 0.2
        %v4405 = vmul.f32 %v4301, 0.2
        %v4406 = vmul.f32 %v4302, 0.2
        %v4407 = vmul.f32 %v4303, 0.2
        %v4408 = vmul.f32 %v4304, 0.2
        %v4409 = vmul.f32 %v4305, 0.2
        %v4410 = vmul.f32 %v4306, 0.2
        %v4411 = vmul.f32 %v4307, 0.2
        %v4412 = vmul.f32 %v4308, 0.2
        %v4413 = vmul.f32 %v4309, 0.2
        %v4414 = vmul.f32 %v4310, 0.2
        %v4415 = vmul.f32 %v4311, 0.2
        %v4416 = vmul.f32 %v4312, 0.2
        %v4417 = vmul.f32 %v4313, 0.2
        %v4418 = vmul.f32 %v4314, 0.2
        %v4419 = vmul.f32 %v4315, 0.2
        %v4420 = vmul.f32 %v4316, 0.2
        %v4421 = vmul.f32 %v4317, 0.2
        %v4422 = vmul.f32 %v4318, 0.2
        %v4423 = vsel %vm4319, %v4267, %v4371
        %v4424 = vsel %vm4320, %v4268, %v4372
        %v4425 = vsel %vm4321, %v4269, %v4373
        %v4426 = vsel %vm4322, %v4270, %v4374
        %v4427 = vsel %vm4323, %v4271, %v4375
        %v4428 = vsel %vm4324, %v4272, %v4376
        %v4429 = vsel %vm4325, %v4273, %v4377
        %v4430 = vsel %vm4326, %v4274, %v4378
        %v4431 = vsel %vm4327, %v4275, %v4379
        %v4432 = vsel %vm4328, %v4276, %v4380
        %v4433 = vsel %vm4329, %v4277, %v4381
        %v4434 = vsel %vm4330, %v4278, %v4382
        %v4435 = vsel %vm4331, %v4279, %v4383
        %v4436 = vsel %vm4332, %v4280, %v4384
        %v4437 = vsel %vm4333, %v4281, %v4385
        %v4438 = vsel %vm4334, %v4282, %v4386
        %v4439 = vsel %vm4335, %v4283, %v4387
        %v4440 = vsel %vm4336, %v4284, %v4388
        %v4441 = vsel %vm4337, %v4285, %v4389
        %v4442 = vsel %vm4338, %v4286, %v4390
        %v4443 = vsel %vm4339, %v4287, %v4391
        %v4444 = vsel %vm4340, %v4288, %v4392
        %v4445 = vsel %vm4341, %v4289, %v4393
        %v4446 = vsel %vm4342, %v4290, %v4394
        %v4447 = vsel %vm4343, %v4291, %v4395
        %v4448 = vsel %vm4344, %v4292, %v4396
        %v4449 = vsel %vm4345, %v4293, %v4397
        %v4450 = vsel %vm4346, %v4294, %v4398
        %v4451 = vsel %vm4347, %v4295, %v4399
        %v4452 = vsel %vm4348, %v4296, %v4400
        %v4453 = vsel %vm4349, %v4297, %v4401
        %v4454 = vsel %vm4350, %v4298, %v4402
        %v4455 = vsel %vm4351, %v4299, %v4403
        %v4456 = vsel %vm4352, %v4300, %v4404
        %v4457 = vsel %vm4353, %v4301, %v4405
        %v4458 = vsel %vm4354, %v4302, %v4406
        %v4459 = vsel %vm4355, %v4303, %v4407
        %v4460 = vsel %vm4356, %v4304, %v4408
        %v4461 = vsel %vm4357, %v4305, %v4409
        %v4462 = vsel %vm4358, %v4306, %v4410
        %v4463 = vsel %vm4359, %v4307, %v4411
        %v4464 = vsel %vm4360, %v4308, %v4412
        %v4465 = vsel %vm4361, %v4309, %v4413
        %v4466 = vsel %vm4362, %v4310, %v4414
        %v4467 = vsel %vm4363, %v4311, %v4415
        %v4468 = vsel %vm4364, %v4312, %v4416
        %v4469 = vsel %vm4365, %v4313, %v4417
        %v4470 = vsel %vm4366, %v4314, %v4418
        %v4471 = vsel %vm4367, %v4315, %v4419
        %v4472 = vsel %vm4368, %v4316, %v4420
        %v4473 = vsel %vm4369, %v4317, %v4421
        %v4474 = vsel %vm4370, %v4318, %v4422
        %v4475 = vld [vmem:[%s5] sm:$0xff]
        %v4476 = vld [vmem:[%s5 + $0x8] sm:$0xff]
        %v4477 = vld [vmem:[%s5 + $0x10] sm:$0xff]
        %v4478 = vld [vmem:[%s5 + $0x18] sm:$0xff]
        %v4479 = vld [vmem:[%s5 + $0x20] sm:$0xff]
        %v4480 = vld [vmem:[%s5 + $0x28] sm:$0xff]
        %v4481 = vld [vmem:[%s5 + $0x30] sm:$0xff]
        %v4482 = vld [vmem:[%s5 + $0x38] sm:$0xff]
        %v4483 = vld [vmem:[%s5 + $0x40] sm:$0xff]
        %v4484 = vld [vmem:[%s5 + $0x48] sm:$0xff]
        %v4485 = vld [vmem:[%s5 + $0x50] sm:$0xff]
        %v4486 = vpack.c.bf16 %v4425, %v4423
        %v4487 = vpack.c.bf16 %v4426, %v4424
        %v4488 = vpack.c.bf16 %v4429, %v4427
        %v4489 = vpack.c.bf16 %v4430, %v4428
        %v4490 = vpack.c.bf16 %v4433, %v4431
        %v4491 = vpack.c.bf16 %v4434, %v4432
        %v4492 = vpack.c.bf16 %v4437, %v4435
        %v4493 = vpack.c.bf16 %v4438, %v4436
        %v4494 = vpack.c.bf16 %v4441, %v4439
        %v4495 = vpack.c.bf16 %v4442, %v4440
        %v4496 = vpack.c.bf16 %v4445, %v4443
        %v4497 = vpack.c.bf16 %v4446, %v4444
        %v4498 = vpack.c.bf16 %v4449, %v4447
        %v4499 = vpack.c.bf16 %v4450, %v4448
        %v4500 = vpack.c.bf16 %v4453, %v4451
        %v4501 = vpack.c.bf16 %v4454, %v4452
        %v4502 = vpack.c.bf16 %v4457, %v4455
        %v4503 = vpack.c.bf16 %v4458, %v4456
        %v4504 = vpack.c.bf16 %v4461, %v4459
        %v4505 = vpack.c.bf16 %v4462, %v4460
        %v4506 = vpack.c.bf16 %v4465, %v4463
        %v4507 = vpack.c.bf16 %v4466, %v4464
        %v4508 = vpack.c.bf16 %v4469, %v4467
        %v4509 = vpack.c.bf16 %v4470, %v4468
        %v4510 = vpack.c.bf16 %v4473, %v4471
        %v4511 = vpack.c.bf16 %v4474, %v4472
        %v4523 = vunpack.c.l.b16 %v4475
        %v4524 = vunpack.c.h.b16 %v4475
        %v4525 = vunpack.c.l.b16 %v4476
        %v4526 = vunpack.c.h.b16 %v4476
        %v4527 = vunpack.c.l.b16 %v4477
        %v4528 = vunpack.c.h.b16 %v4477
        %v4529 = vunpack.c.l.b16 %v4478
        %v4530 = vunpack.c.h.b16 %v4478
        %v4531 = vunpack.c.l.b16 %v4479
        %v4532 = vunpack.c.h.b16 %v4479
        %v4533 = vunpack.c.l.b16 %v4480
        %v4534 = vunpack.c.h.b16 %v4480
        %v4535 = vunpack.c.l.b16 %v4481
        %v4536 = vunpack.c.h.b16 %v4481
        %v4537 = vunpack.c.l.b16 %v4482
        %v4538 = vunpack.c.h.b16 %v4482
        %v4539 = vunpack.c.l.b16 %v4483
        %v4540 = vunpack.c.h.b16 %v4483
        %v4541 = vunpack.c.l.b16 %v4484
        %v4542 = vunpack.c.h.b16 %v4484
        %v4543 = vunpack.c.l.b16 %v4485
        %v4544 = vunpack.c.h.b16 %v4485
        %v4545 = vpack.c.b16 %v4525, %v4523
        %v4546 = vpack.c.b16 %v4526, %v4524
        %v4547 = vpack.c.b16 %v4529, %v4527
        %v4548 = vpack.c.b16 %v4530, %v4528
        %v4549 = vpack.c.b16 %v4533, %v4531
        %v4550 = vpack.c.b16 %v4534, %v4532
        %v4551 = vpack.c.b16 %v4537, %v4535
        %v4552 = vpack.c.b16 %v4538, %v4536
        %v4553 = vpack.c.b16 %v4541, %v4539
        %v4554 = vpack.c.b16 %v4542, %v4540
        %v4555 = vpack.c.b16 %v4543, %v4543
        %v4556 = vpack.c.b16 %v4544, %v4544
        %vm4563 = vcmask 629760
        %v4565 = vsel %vm4563, %v4546, 0
        %v4568 = vsel %vm4563, %v4548, 0
        %v4571 = vsel %vm4563, %v4550, 0
        %v4574 = vsel %vm4563, %v4552, 0
        %v4577 = vsel %vm4563, %v4554, 0
        %v4580 = vsel %vm4563, %v4556, 0
        %vm4582 = vcmask 1045504
        %v4583 = vsel %vm4582, 4294967295, 65535
        %v4584 = vsel %vm3972, %v4583, 0
        %v4586 = vand.u32 %v4510, %v4584
        %v4589 = vand.u32 %v4511, %v4584
        %4591 = vmatprep.subr.bf16.mxu0 %v4501
        %4592 = vmatpush1.bf16.msra.mxu0 %v4500
        %4593 = vmatprep.subr.bf16.mxu0 %v4499
        %4594 = vmatpush1.bf16.msra.mxu0 %v4498
        %4595 = vmatprep.subr.bf16.mxu0 %v4497
        %4596 = vmatpush1.bf16.msra.mxu0 %v4496
        %4597 = vmatprep.subr.bf16.mxu0 %v4495
        %4598 = vmatpush1.bf16.msra.mxu0 %v4494
        %4599 = vmatprep.subr.bf16.mxu0 %v4493
        %4600 = vmatpush1.bf16.msra.mxu0 %v4492
        %4601 = vmatprep.subr.bf16.mxu0 %v4491
        %4602 = vmatpush1.bf16.msra.mxu0 %v4490
        %4603 = vmatprep.subr.bf16.mxu0 %v4489
        %4604 = vmatpush1.bf16.msra.mxu0 %v4488
        %4605 = vmatprep.subr.bf16.mxu0 %v4487
        %4606 = vmatpush1.bf16.msra.mxu0 %v4486
        %4607 = vmatprep.subr.bf16.mxu0 0
        %4608 = vmatpush2.bf16.msra.mxu0 0
        %4609 = vmatprep.subr.bf16.mxu0 0
        %4610 = vmatpush2.bf16.msra.mxu0 0
        %4611 = vmatprep.subr.bf16.mxu0 0
        %4612 = vmatpush2.bf16.msra.mxu0 0
        %4613 = vmatprep.subr.bf16.mxu0 %v4589
        %4614 = vmatpush2.bf16.msra.mxu0 %v4586
        %4615 = vmatprep.subr.bf16.mxu0 %v4509
        %4616 = vmatpush2.bf16.msra.mxu0 %v4508
        %4617 = vmatprep.subr.bf16.mxu0 %v4507
        %4618 = vmatpush2.bf16.msra.mxu0 %v4506
        %4619 = vmatprep.subr.bf16.mxu0 %v4505
        %4620 = vmatpush2.bf16.msra.mxu0 %v4504
        %4621 = vmatprep.subr.bf16.mxu0 %v4503
        %4622 = vmatpush2.bf16.msra.mxu0 %v4502
        %4623 = vmatprep.mubr.bf16.mxu0 %v4565
        %4624 = vmatmul.mubr.bf16.gmra.mxu0 %v4545
        %v4625 = vpop.f32.mrf.mxu0
        %v4626 = vadd.f32 0.0, %v4625
        %v4627 = vpop.f32.mrf.mxu0
        %v4628 = vadd.f32 0.0, %v4627
        %v4629 = vpop.f32.mrf.mxu0
        %v4630 = vadd.f32 0.0, %v4629
        %v4631 = vpop.f32.mrf.mxu0
        %v4632 = vadd.f32 0.0, %v4631
        %4633 = vmatprep.mubr.bf16.mxu0 %v4568
        %4634 = vmatmul.mubr.bf16.gmra.mxu0 %v4547
        %v4635 = vpop.f32.mrf.mxu0
        %v4636 = vadd.f32 0.0, %v4635
        %v4637 = vpop.f32.mrf.mxu0
        %v4638 = vadd.f32 0.0, %v4637
        %v4639 = vpop.f32.mrf.mxu0
        %v4640 = vadd.f32 0.0, %v4639
        %v4641 = vpop.f32.mrf.mxu0
        %v4642 = vadd.f32 0.0, %v4641
        %4643 = vmatprep.mubr.bf16.mxu0 %v4571
        %4644 = vmatmul.mubr.bf16.gmra.mxu0 %v4549
        %v4645 = vpop.f32.mrf.mxu0
        %v4646 = vadd.f32 0.0, %v4645
        %v4647 = vpop.f32.mrf.mxu0
        %v4648 = vadd.f32 0.0, %v4647
        %v4649 = vpop.f32.mrf.mxu0
        %v4650 = vadd.f32 0.0, %v4649
        %v4651 = vpop.f32.mrf.mxu0
        %v4652 = vadd.f32 0.0, %v4651
        %4653 = vmatprep.mubr.bf16.mxu0 %v4574
        %4654 = vmatmul.mubr.bf16.gmra.mxu0 %v4551
        %v4655 = vpop.f32.mrf.mxu0
        %v4656 = vadd.f32 0.0, %v4655
        %v4657 = vpop.f32.mrf.mxu0
        %v4658 = vadd.f32 0.0, %v4657
        %v4659 = vpop.f32.mrf.mxu0
        %v4660 = vadd.f32 0.0, %v4659
        %v4661 = vpop.f32.mrf.mxu0
        %v4662 = vadd.f32 0.0, %v4661
        %4663 = vmatprep.mubr.bf16.mxu0 %v4577
        %4664 = vmatmul.mubr.bf16.gmra.mxu0 %v4553
        %v4665 = vpop.f32.mrf.mxu0
        %v4666 = vadd.f32 0.0, %v4665
        %v4667 = vpop.f32.mrf.mxu0
        %v4668 = vadd.f32 0.0, %v4667
        %v4669 = vpop.f32.mrf.mxu0
        %v4670 = vadd.f32 0.0, %v4669
        %v4671 = vpop.f32.mrf.mxu0
        %v4672 = vadd.f32 0.0, %v4671
        %4673 = vmatprep.mubr.bf16.mxu0 %v4580
        %4674 = vmatmul.mubr.bf16.gmra.mxu0 %v4555
        %v4675 = vpop.f32.mrf.mxu0
        %v4676 = vadd.f32 0.0, %v4675
        %v4677 = vpop.f32.mrf.mxu0
        %v4678 = vadd.f32 0.0, %v4677
        %v4679 = vpop.f32.mrf.mxu0
        %v4680 = vpop.f32.mrf.mxu0
        %4681 = vdwg.mxu0
        %v4682 = vpack.c.bf16 %v4630, %v4626
        %v4683 = vpack.c.bf16 %v4632, %v4628
        %v4684 = vpack.c.bf16 %v4640, %v4636
        %v4685 = vpack.c.bf16 %v4642, %v4638
        %v4686 = vpack.c.bf16 %v4650, %v4646
        %v4687 = vpack.c.bf16 %v4652, %v4648
        %v4688 = vpack.c.bf16 %v4660, %v4656
        %v4689 = vpack.c.bf16 %v4662, %v4658
        %v4690 = vld [vmem:[%s6] sm:$0xff]
        %v4691 = vld [vmem:[%s6 + $0x8] sm:$0xff]
        %v4692 = vld [vmem:[%s6 + $0x10] sm:$0xff]
        %v4693 = vld [vmem:[%s6 + $0x18] sm:$0xff]
        %v4694 = vld [vmem:[%s6 + $0x20] sm:$0xff]
        %v4695 = vld [vmem:[%s6 + $0x28] sm:$0xff]
        %v4696 = vld [vmem:[%s6 + $0x30] sm:$0xff]
        %v4697 = vld [vmem:[%s6 + $0x38] sm:$0xff]
        %v4698 = vld [vmem:[%s6 + $0x40] sm:$0xff]
        %v4699 = vld [vmem:[%s6 + $0x48] sm:$0xff]
        %v4700 = vld [vmem:[%s6 + $0x50] sm:$0xff]
        %v4701 = vld [vmem:[%s6 + $0x58] sm:$0xff]
        %v4702 = vld [vmem:[%s6 + $0x60] sm:$0xff]
        %v4703 = vld [vmem:[%s6 + $0x68] sm:$0xff]
        %v4704 = vld [vmem:[%s6 + $0x70] sm:$0xff]
        %v4705 = vld [vmem:[%s6 + $0x78] sm:$0xff]
        %v4706 = vld [vmem:[%s6 + $0x80] sm:$0xff]
        %v4707 = vld [vmem:[%s6 + $0x88] sm:$0xff]
        %v4708 = vld [vmem:[%s6 + $0x90] sm:$0xff]
        %v4709 = vld [vmem:[%s6 + $0x98] sm:$0xff]
        %v4710 = vld [vmem:[%s6 + $0xa0] sm:$0xff]
        %v4711 = vld [vmem:[%s6 + $0xa8] sm:$0xff]
        %v4712 = vld [vmem:[%s6 + $0xb0] sm:$0xff]
        %v4713 = vld [vmem:[%s6 + $0xb8] sm:$0xff]
        %v4714 = vld [vmem:[%s6 + $0xc0] sm:$0xff]
        %v4715 = vld [vmem:[%s6 + $0xc8] sm:$0xff]
        %v4716 = vld [vmem:[%s6 + $0xd0] sm:$0xff]
        %v4717 = vld [vmem:[%s6 + $0xd8] sm:$0xff]
        %v4718 = vld [vmem:[%s6 + $0xe0] sm:$0xff]
        %v4719 = vld [vmem:[%s6 + $0xe8] sm:$0xff]
        %v4720 = vld [vmem:[%s6 + $0xf0] sm:$0xff]
        %v4721 = vld [vmem:[%s6 + $0xf8] sm:$0xff]
        %v4722 = vld [vmem:[%s6 + $0x100] sm:$0xff]
        %v4723 = vld [vmem:[%s6 + $0x108] sm:$0xff]
        %v4724 = vld [vmem:[%s6 + $0x110] sm:$0xff]
        %v4725 = vld [vmem:[%s6 + $0x118] sm:$0xff]
        %v4726 = vld [vmem:[%s6 + $0x120] sm:$0xff]
        %v4727 = vld [vmem:[%s6 + $0x128] sm:$0xff]
        %v4728 = vld [vmem:[%s6 + $0x130] sm:$0xff]
        %v4729 = vld [vmem:[%s6 + $0x138] sm:$0xff]
        %v4730 = vld [vmem:[%s6 + $0x140] sm:$0xff]
        %v4731 = vld [vmem:[%s6 + $0x148] sm:$0xff]
        %v4732 = vld [vmem:[%s6 + $0x150] sm:$0xff]
        %v4733 = vld [vmem:[%s6 + $0x158] sm:$0xff]
        %v4734 = vld [vmem:[%s6 + $0x160] sm:$0xff]
        %v4735 = vld [vmem:[%s6 + $0x168] sm:$0xff]
        %v4736 = vld [vmem:[%s6 + $0x170] sm:$0xff]
        %v4737 = vld [vmem:[%s6 + $0x178] sm:$0xff]
        %v4739 = vshrl.u32 %v4682, 16
        %v4741 = vshll.u32 %v4682, 16
        %v4743 = vrot.slane %v4741, 1
        %v4744 = vor.u32 %v4739, %v4743
        %v4746 = vshll.u32 %v4684, 16
        %v4748 = vrot.slane %v4746, 1
        %v4749 = vsel %vm1979, %v4744, %v4748
        %v4751 = vshrl.u32 %v4683, 16
        %v4753 = vshll.u32 %v4683, 16
        %v4755 = vrot.slane %v4753, 1
        %v4756 = vor.u32 %v4751, %v4755
        %v4758 = vshll.u32 %v4685, 16
        %v4760 = vrot.slane %v4758, 1
        %v4761 = vsel %vm1979, %v4756, %v4760
        %v4762 = vshrl.u32 %v4684, 16
        %v4764 = vor.u32 %v4762, %v4748
        %v4766 = vshll.u32 %v4686, 16
        %v4768 = vrot.slane %v4766, 1
        %v4769 = vsel %vm1979, %v4764, %v4768
        %v4770 = vshrl.u32 %v4685, 16
        %v4772 = vor.u32 %v4770, %v4760
        %v4774 = vshll.u32 %v4687, 16
        %v4776 = vrot.slane %v4774, 1
        %v4777 = vsel %vm1979, %v4772, %v4776
        %v4778 = vshrl.u32 %v4686, 16
        %v4780 = vor.u32 %v4778, %v4768
        %v4782 = vshll.u32 %v4688, 16
        %v4784 = vrot.slane %v4782, 1
        %v4785 = vsel %vm1979, %v4780, %v4784
        %v4786 = vshrl.u32 %v4687, 16
        %v4788 = vor.u32 %v4786, %v4776
        %v4790 = vshll.u32 %v4689, 16
        %v4792 = vrot.slane %v4790, 1
        %v4793 = vsel %vm1979, %v4788, %v4792
        %v4794 = vshrl.u32 %v4688, 16
        %v4796 = vor.u32 %v4794, %v4784
        %v4797 = vshrl.u32 %v4689, 16
        %v4799 = vor.u32 %v4797, %v4792
        %v4828 = vunpack.c.l.b16 %v4714
        %v4829 = vunpack.c.h.b16 %v4714
        %v4830 = vunpack.c.l.b16 %v4715
        %v4831 = vunpack.c.h.b16 %v4715
        %v4832 = vunpack.c.l.b16 %v4716
        %v4833 = vunpack.c.h.b16 %v4716
        %v4834 = vunpack.c.l.b16 %v4717
        %v4835 = vunpack.c.h.b16 %v4717
        %v4836 = vunpack.c.l.b16 %v4718
        %v4837 = vunpack.c.h.b16 %v4718
        %v4838 = vunpack.c.l.b16 %v4719
        %v4839 = vunpack.c.h.b16 %v4719
        %v4840 = vunpack.c.l.b16 %v4720
        %v4841 = vunpack.c.h.b16 %v4720
        %v4842 = vunpack.c.l.b16 %v4721
        %v4843 = vunpack.c.h.b16 %v4721
        %v4844 = vunpack.c.l.b16 %v4722
        %v4845 = vunpack.c.h.b16 %v4722
        %v4846 = vunpack.c.l.b16 %v4723
        %v4847 = vunpack.c.h.b16 %v4723
        %v4848 = vunpack.c.l.b16 %v4724
        %v4849 = vunpack.c.h.b16 %v4724
        %v4850 = vunpack.c.l.b16 %v4725
        %v4851 = vunpack.c.h.b16 %v4725
        %v4852 = vunpack.c.l.b16 %v4726
        %v4853 = vunpack.c.h.b16 %v4726
        %v4854 = vunpack.c.l.b16 %v4727
        %v4855 = vunpack.c.h.b16 %v4727
        %v4856 = vunpack.c.l.b16 %v4728
        %v4857 = vunpack.c.h.b16 %v4728
        %v4858 = vunpack.c.l.b16 %v4729
        %v4859 = vunpack.c.h.b16 %v4729
        %v4860 = vunpack.c.l.b16 %v4730
        %v4861 = vunpack.c.h.b16 %v4730
        %v4862 = vunpack.c.l.b16 %v4731
        %v4863 = vunpack.c.h.b16 %v4731
        %v4864 = vunpack.c.l.b16 %v4732
        %v4865 = vunpack.c.h.b16 %v4732
        %v4866 = vunpack.c.l.b16 %v4733
        %v4867 = vunpack.c.h.b16 %v4733
        %v4868 = vunpack.c.l.b16 %v4734
        %v4869 = vunpack.c.h.b16 %v4734
        %v4870 = vunpack.c.l.b16 %v4735
        %v4871 = vunpack.c.h.b16 %v4735
        %v4872 = vunpack.c.l.b16 %v4736
        %v4873 = vunpack.c.h.b16 %v4736
        %v4874 = vunpack.c.l.b16 %v4737
        %v4875 = vunpack.c.h.b16 %v4737
        %v4876 = vpack.c.b16 %v4830, %v4828
        %v4877 = vpack.c.b16 %v4831, %v4829
        %v4878 = vpack.c.b16 %v4834, %v4832
        %v4879 = vpack.c.b16 %v4835, %v4833
        %v4880 = vpack.c.b16 %v4838, %v4836
        %v4881 = vpack.c.b16 %v4839, %v4837
        %v4882 = vpack.c.b16 %v4842, %v4840
        %v4883 = vpack.c.b16 %v4843, %v4841
        %v4884 = vpack.c.b16 %v4846, %v4844
        %v4885 = vpack.c.b16 %v4847, %v4845
        %v4886 = vpack.c.b16 %v4850, %v4848
        %v4887 = vpack.c.b16 %v4851, %v4849
        %v4888 = vpack.c.b16 %v4854, %v4852
        %v4889 = vpack.c.b16 %v4855, %v4853
        %v4890 = vpack.c.b16 %v4858, %v4856
        %v4891 = vpack.c.b16 %v4859, %v4857
        %v4892 = vpack.c.b16 %v4862, %v4860
        %v4893 = vpack.c.b16 %v4863, %v4861
        %v4894 = vpack.c.b16 %v4866, %v4864
        %v4895 = vpack.c.b16 %v4867, %v4865
        %v4896 = vpack.c.b16 %v4870, %v4868
        %v4897 = vpack.c.b16 %v4871, %v4869
        %v4898 = vpack.c.b16 %v4874, %v4872
        %v4899 = vpack.c.b16 %v4875, %v4873
        %vm4924 = vcmask 523264
        %v4926 = vsel %vm4924, %v4761, 0
        %v4929 = vsel %vm4924, %v4777, 0
        %v4932 = vsel %vm4924, %v4793, 0
        %v4935 = vsel %vm4924, %v4799, 0
        %4937 = vmatprep.subr.bf16.mxu0 %v4891
        %4938 = vmatpush1.bf16.msra.mxu0 %v4890
        %4939 = vmatprep.subr.bf16.mxu0 %v4889
        %4940 = vmatpush1.bf16.msra.mxu0 %v4888
        %4941 = vmatprep.subr.bf16.mxu0 %v4887
        %4942 = vmatpush1.bf16.msra.mxu0 %v4886
        %4943 = vmatprep.subr.bf16.mxu0 %v4885
        %4944 = vmatpush1.bf16.msra.mxu0 %v4884
        %4945 = vmatprep.subr.bf16.mxu0 %v4883
        %4946 = vmatpush1.bf16.msra.mxu0 %v4882
        %4947 = vmatprep.subr.bf16.mxu0 %v4881
        %4948 = vmatpush1.bf16.msra.mxu0 %v4880
        %4949 = vmatprep.subr.bf16.mxu0 %v4879
        %4950 = vmatpush1.bf16.msra.mxu0 %v4878
        %4951 = vmatprep.subr.bf16.mxu0 %v4877
        %4952 = vmatpush1.bf16.msra.mxu0 %v4876
        %4953 = vmatprep.subr.bf16.mxu0 0
        %4954 = vmatpush2.bf16.msra.mxu0 0
        %4955 = vmatprep.subr.bf16.mxu0 0
        %4956 = vmatpush2.bf16.msra.mxu0 0
        %4957 = vmatprep.subr.bf16.mxu0 0
        %4958 = vmatpush2.bf16.msra.mxu0 0
        %4959 = vmatprep.subr.bf16.mxu0 0
        %4960 = vmatpush2.bf16.msra.mxu0 0
        %4961 = vmatprep.subr.bf16.mxu0 %v4899
        %4962 = vmatpush2.bf16.msra.mxu0 %v4898
        %4963 = vmatprep.subr.bf16.mxu0 %v4897
        %4964 = vmatpush2.bf16.msra.mxu0 %v4896
        %4965 = vmatprep.subr.bf16.mxu0 %v4895
        %4966 = vmatpush2.bf16.msra.mxu0 %v4894
        %4967 = vmatprep.subr.bf16.mxu0 %v4893
        %4968 = vmatpush2.bf16.msra.mxu0 %v4892
        %4969 = vmatprep.mubr.bf16.mxu0 %v4926
        %4970 = vmatmul.mubr.bf16.gmra.mxu0 %v4749
        %v4971 = vpop.f32.mrf.mxu0
        %v4972 = vadd.f32 0.0, %v4971
        %v4973 = vpop.f32.mrf.mxu0
        %v4974 = vadd.f32 0.0, %v4973
        %v4975 = vpop.f32.mrf.mxu0
        %v4976 = vadd.f32 0.0, %v4975
        %v4977 = vpop.f32.mrf.mxu0
        %v4978 = vadd.f32 0.0, %v4977
        %4979 = vmatprep.mubr.bf16.mxu0 %v4929
        %4980 = vmatmul.mubr.bf16.gmra.mxu0 %v4769
        %v4981 = vpop.f32.mrf.mxu0
        %v4982 = vadd.f32 0.0, %v4981
        %v4983 = vpop.f32.mrf.mxu0
        %v4984 = vadd.f32 0.0, %v4983
        %v4985 = vpop.f32.mrf.mxu0
        %v4986 = vadd.f32 0.0, %v4985
        %v4987 = vpop.f32.mrf.mxu0
        %v4988 = vadd.f32 0.0, %v4987
        %4989 = vmatprep.mubr.bf16.mxu0 %v4932
        %4990 = vmatmul.mubr.bf16.gmra.mxu0 %v4785
        %v4991 = vpop.f32.mrf.mxu0
        %v4992 = vadd.f32 0.0, %v4991
        %v4993 = vpop.f32.mrf.mxu0
        %v4994 = vadd.f32 0.0, %v4993
        %v4995 = vpop.f32.mrf.mxu0
        %v4996 = vadd.f32 0.0, %v4995
        %v4997 = vpop.f32.mrf.mxu0
        %v4998 = vadd.f32 0.0, %v4997
        %4999 = vmatprep.mubr.bf16.mxu0 %v4935
        %5000 = vmatmul.mubr.bf16.gmra.mxu0 %v4796
        %v5001 = vpop.f32.mrf.mxu0
        %v5002 = vadd.f32 0.0, %v5001
        %v5003 = vpop.f32.mrf.mxu0
        %v5004 = vadd.f32 0.0, %v5003
        %v5005 = vpop.f32.mrf.mxu0
        %v5006 = vpop.f32.mrf.mxu0
        %5007 = vdwg.mxu0
        %v5032 = vunpack.c.l.b16 %v4690
        %v5033 = vunpack.c.h.b16 %v4690
        %v5034 = vunpack.c.l.b16 %v4691
        %v5035 = vunpack.c.h.b16 %v4691
        %v5036 = vunpack.c.l.b16 %v4692
        %v5037 = vunpack.c.h.b16 %v4692
        %v5038 = vunpack.c.l.b16 %v4693
        %v5039 = vunpack.c.h.b16 %v4693
        %v5040 = vunpack.c.l.b16 %v4694
        %v5041 = vunpack.c.h.b16 %v4694
        %v5042 = vunpack.c.l.b16 %v4695
        %v5043 = vunpack.c.h.b16 %v4695
        %v5044 = vunpack.c.l.b16 %v4696
        %v5045 = vunpack.c.h.b16 %v4696
        %v5046 = vunpack.c.l.b16 %v4697
        %v5047 = vunpack.c.h.b16 %v4697
        %v5048 = vunpack.c.l.b16 %v4698
        %v5049 = vunpack.c.h.b16 %v4698
        %v5050 = vunpack.c.l.b16 %v4699
        %v5051 = vunpack.c.h.b16 %v4699
        %v5052 = vunpack.c.l.b16 %v4700
        %v5053 = vunpack.c.h.b16 %v4700
        %v5054 = vunpack.c.l.b16 %v4701
        %v5055 = vunpack.c.h.b16 %v4701
        %v5056 = vunpack.c.l.b16 %v4702
        %v5057 = vunpack.c.h.b16 %v4702
        %v5058 = vunpack.c.l.b16 %v4703
        %v5059 = vunpack.c.h.b16 %v4703
        %v5060 = vunpack.c.l.b16 %v4704
        %v5061 = vunpack.c.h.b16 %v4704
        %v5062 = vunpack.c.l.b16 %v4705
        %v5063 = vunpack.c.h.b16 %v4705
        %v5064 = vunpack.c.l.b16 %v4706
        %v5065 = vunpack.c.h.b16 %v4706
        %v5066 = vunpack.c.l.b16 %v4707
        %v5067 = vunpack.c.h.b16 %v4707
        %v5068 = vunpack.c.l.b16 %v4708
        %v5069 = vunpack.c.h.b16 %v4708
        %v5070 = vunpack.c.l.b16 %v4709
        %v5071 = vunpack.c.h.b16 %v4709
        %v5072 = vunpack.c.l.b16 %v4710
        %v5073 = vunpack.c.h.b16 %v4710
        %v5074 = vunpack.c.l.b16 %v4711
        %v5075 = vunpack.c.h.b16 %v4711
        %v5076 = vunpack.c.l.b16 %v4712
        %v5077 = vunpack.c.h.b16 %v4712
        %v5078 = vunpack.c.l.b16 %v4713
        %v5079 = vunpack.c.h.b16 %v4713
        %v5080 = vpack.c.b16 %v5034, %v5032
        %v5081 = vpack.c.b16 %v5035, %v5033
        %v5082 = vpack.c.b16 %v5038, %v5036
        %v5083 = vpack.c.b16 %v5039, %v5037
        %v5084 = vpack.c.b16 %v5042, %v5040
        %v5085 = vpack.c.b16 %v5043, %v5041
        %v5086 = vpack.c.b16 %v5046, %v5044
        %v5087 = vpack.c.b16 %v5047, %v5045
        %v5088 = vpack.c.b16 %v5050, %v5048
        %v5089 = vpack.c.b16 %v5051, %v5049
        %v5090 = vpack.c.b16 %v5054, %v5052
        %v5091 = vpack.c.b16 %v5055, %v5053
        %v5092 = vpack.c.b16 %v5058, %v5056
        %v5093 = vpack.c.b16 %v5059, %v5057
        %v5094 = vpack.c.b16 %v5062, %v5060
        %v5095 = vpack.c.b16 %v5063, %v5061
        %v5096 = vpack.c.b16 %v5066, %v5064
        %v5097 = vpack.c.b16 %v5067, %v5065
        %v5098 = vpack.c.b16 %v5070, %v5068
        %v5099 = vpack.c.b16 %v5071, %v5069
        %v5100 = vpack.c.b16 %v5074, %v5072
        %v5101 = vpack.c.b16 %v5075, %v5073
        %v5102 = vpack.c.b16 %v5078, %v5076
        %v5103 = vpack.c.b16 %v5079, %v5077
        %v5128 = vsel %vm4924, %v4683, 0
        %v5130 = vsel %vm4924, %v4685, 0
        %v5132 = vsel %vm4924, %v4687, 0
        %v5134 = vsel %vm4924, %v4689, 0
        %5136 = vmatprep.subr.bf16.mxu0 %v5095
        %5137 = vmatpush1.bf16.msra.mxu0 %v5094
        %5138 = vmatprep.subr.bf16.mxu0 %v5093
        %5139 = vmatpush1.bf16.msra.mxu0 %v5092
        %5140 = vmatprep.subr.bf16.mxu0 %v5091
        %5141 = vmatpush1.bf16.msra.mxu0 %v5090
        %5142 = vmatprep.subr.bf16.mxu0 %v5089
        %5143 = vmatpush1.bf16.msra.mxu0 %v5088
        %5144 = vmatprep.subr.bf16.mxu0 %v5087
        %5145 = vmatpush1.bf16.msra.mxu0 %v5086
        %5146 = vmatprep.subr.bf16.mxu0 %v5085
        %5147 = vmatpush1.bf16.msra.mxu0 %v5084
        %5148 = vmatprep.subr.bf16.mxu0 %v5083
        %5149 = vmatpush1.bf16.msra.mxu0 %v5082
        %5150 = vmatprep.subr.bf16.mxu0 %v5081
        %5151 = vmatpush1.bf16.msra.mxu0 %v5080
        %5152 = vmatprep.subr.bf16.mxu0 0
        %5153 = vmatpush2.bf16.msra.mxu0 0
        %5154 = vmatprep.subr.bf16.mxu0 0
        %5155 = vmatpush2.bf16.msra.mxu0 0
        %5156 = vmatprep.subr.bf16.mxu0 0
        %5157 = vmatpush2.bf16.msra.mxu0 0
        %5158 = vmatprep.subr.bf16.mxu0 0
        %5159 = vmatpush2.bf16.msra.mxu0 0
        %5160 = vmatprep.subr.bf16.mxu0 %v5103
        %5161 = vmatpush2.bf16.msra.mxu0 %v5102
        %5162 = vmatprep.subr.bf16.mxu0 %v5101
        %5163 = vmatpush2.bf16.msra.mxu0 %v5100
        %5164 = vmatprep.subr.bf16.mxu0 %v5099
        %5165 = vmatpush2.bf16.msra.mxu0 %v5098
        %5166 = vmatprep.subr.bf16.mxu0 %v5097
        %5167 = vmatpush2.bf16.msra.mxu0 %v5096
        %5168 = vmatprep.mubr.bf16.mxu0 %v5128
        %5169 = vmatmul.mubr.bf16.gmra.mxu0 %v4682
        %v5170 = vpop.f32.mrf.mxu0
        %v5171 = vadd.f32 %v4972, %v5170
        %v5172 = vpop.f32.mrf.mxu0
        %v5173 = vadd.f32 %v4974, %v5172
        %v5174 = vpop.f32.mrf.mxu0
        %v5175 = vadd.f32 %v4976, %v5174
        %v5176 = vpop.f32.mrf.mxu0
        %v5177 = vadd.f32 %v4978, %v5176
        %5178 = vmatprep.mubr.bf16.mxu0 %v5130
        %5179 = vmatmul.mubr.bf16.gmra.mxu0 %v4684
        %v5180 = vpop.f32.mrf.mxu0
        %v5181 = vadd.f32 %v4982, %v5180
        %v5182 = vpop.f32.mrf.mxu0
        %v5183 = vadd.f32 %v4984, %v5182
        %v5184 = vpop.f32.mrf.mxu0
        %v5185 = vadd.f32 %v4986, %v5184
        %v5186 = vpop.f32.mrf.mxu0
        %v5187 = vadd.f32 %v4988, %v5186
        %5188 = vmatprep.mubr.bf16.mxu0 %v5132
        %5189 = vmatmul.mubr.bf16.gmra.mxu0 %v4686
        %v5190 = vpop.f32.mrf.mxu0
        %v5191 = vadd.f32 %v4992, %v5190
        %v5192 = vpop.f32.mrf.mxu0
        %v5193 = vadd.f32 %v4994, %v5192
        %v5194 = vpop.f32.mrf.mxu0
        %v5195 = vadd.f32 %v4996, %v5194
        %v5196 = vpop.f32.mrf.mxu0
        %v5197 = vadd.f32 %v4998, %v5196
        %5198 = vmatprep.mubr.bf16.mxu0 %v5134
        %5199 = vmatmul.mubr.bf16.gmra.mxu0 %v4688
        %v5200 = vpop.f32.mrf.mxu0
        %v5201 = vadd.f32 %v5002, %v5200
        %v5202 = vpop.f32.mrf.mxu0
        %v5203 = vadd.f32 %v5004, %v5202
        %v5204 = vpop.f32.mrf.mxu0
        %v5205 = vpop.f32.mrf.mxu0
        %5206 = vdwg.mxu0
        %v5207 = vld [vmem:[%s6 + $0x180] sm:$0xff]
        %v5208 = vld [vmem:[%s6 + $0x188] sm:$0xff]
        %v5209 = vld [vmem:[%s6 + $0x190] sm:$0xff]
        %v5210 = vld [vmem:[%s6 + $0x198] sm:$0xff]
        %v5211 = vld [vmem:[%s6 + $0x1a0] sm:$0xff]
        %v5212 = vld [vmem:[%s6 + $0x1a8] sm:$0xff]
        %v5213 = vld [vmem:[%s6 + $0x1b0] sm:$0xff]
        %v5214 = vld [vmem:[%s6 + $0x1b8] sm:$0xff]
        %v5215 = vld [vmem:[%s6 + $0x1c0] sm:$0xff]
        %v5216 = vld [vmem:[%s6 + $0x1c8] sm:$0xff]
        %v5217 = vld [vmem:[%s6 + $0x1d0] sm:$0xff]
        %v5218 = vld [vmem:[%s6 + $0x1d8] sm:$0xff]
        %v5219 = vld [vmem:[%s6 + $0x1e0] sm:$0xff]
        %v5220 = vld [vmem:[%s6 + $0x1e8] sm:$0xff]
        %v5221 = vld [vmem:[%s6 + $0x1f0] sm:$0xff]
        %v5222 = vld [vmem:[%s6 + $0x1f8] sm:$0xff]
        %v5223 = vld [vmem:[%s6 + $0x200] sm:$0xff]
        %v5224 = vld [vmem:[%s6 + $0x208] sm:$0xff]
        %v5225 = vld [vmem:[%s6 + $0x210] sm:$0xff]
        %v5226 = vld [vmem:[%s6 + $0x218] sm:$0xff]
        %v5227 = vld [vmem:[%s6 + $0x220] sm:$0xff]
        %v5228 = vld [vmem:[%s6 + $0x228] sm:$0xff]
        %v5229 = vld [vmem:[%s6 + $0x230] sm:$0xff]
        %v5230 = vld [vmem:[%s6 + $0x238] sm:$0xff]
        %v5239 = vrot.slane %v4682, 1
        %v5240 = vrot.slane %v4684, 1
        %v5241 = vsel %vm2119, %v5239, %v5240
        %v5242 = vrot.slane %v4683, 1
        %v5243 = vrot.slane %v4685, 1
        %v5244 = vsel %vm2119, %v5242, %v5243
        %v5245 = vrot.slane %v4686, 1
        %v5246 = vsel %vm2119, %v5240, %v5245
        %v5247 = vrot.slane %v4687, 1
        %v5248 = vsel %vm2119, %v5243, %v5247
        %v5249 = vrot.slane %v4688, 1
        %v5250 = vsel %vm2119, %v5245, %v5249
        %v5251 = vrot.slane %v4689, 1
        %v5252 = vsel %vm2119, %v5247, %v5251
        %v5281 = vunpack.c.l.b16 %v5207
        %v5282 = vunpack.c.h.b16 %v5207
        %v5283 = vunpack.c.l.b16 %v5208
        %v5284 = vunpack.c.h.b16 %v5208
        %v5285 = vunpack.c.l.b16 %v5209
        %v5286 = vunpack.c.h.b16 %v5209
        %v5287 = vunpack.c.l.b16 %v5210
        %v5288 = vunpack.c.h.b16 %v5210
        %v5289 = vunpack.c.l.b16 %v5211
        %v5290 = vunpack.c.h.b16 %v5211
        %v5291 = vunpack.c.l.b16 %v5212
        %v5292 = vunpack.c.h.b16 %v5212
        %v5293 = vunpack.c.l.b16 %v5213
        %v5294 = vunpack.c.h.b16 %v5213
        %v5295 = vunpack.c.l.b16 %v5214
        %v5296 = vunpack.c.h.b16 %v5214
        %v5297 = vunpack.c.l.b16 %v5215
        %v5298 = vunpack.c.h.b16 %v5215
        %v5299 = vunpack.c.l.b16 %v5216
        %v5300 = vunpack.c.h.b16 %v5216
        %v5301 = vunpack.c.l.b16 %v5217
        %v5302 = vunpack.c.h.b16 %v5217
        %v5303 = vunpack.c.l.b16 %v5218
        %v5304 = vunpack.c.h.b16 %v5218
        %v5305 = vunpack.c.l.b16 %v5219
        %v5306 = vunpack.c.h.b16 %v5219
        %v5307 = vunpack.c.l.b16 %v5220
        %v5308 = vunpack.c.h.b16 %v5220
        %v5309 = vunpack.c.l.b16 %v5221
        %v5310 = vunpack.c.h.b16 %v5221
        %v5311 = vunpack.c.l.b16 %v5222
        %v5312 = vunpack.c.h.b16 %v5222
        %v5313 = vunpack.c.l.b16 %v5223
        %v5314 = vunpack.c.h.b16 %v5223
        %v5315 = vunpack.c.l.b16 %v5224
        %v5316 = vunpack.c.h.b16 %v5224
        %v5317 = vunpack.c.l.b16 %v5225
        %v5318 = vunpack.c.h.b16 %v5225
        %v5319 = vunpack.c.l.b16 %v5226
        %v5320 = vunpack.c.h.b16 %v5226
        %v5321 = vunpack.c.l.b16 %v5227
        %v5322 = vunpack.c.h.b16 %v5227
        %v5323 = vunpack.c.l.b16 %v5228
        %v5324 = vunpack.c.h.b16 %v5228
        %v5325 = vunpack.c.l.b16 %v5229
        %v5326 = vunpack.c.h.b16 %v5229
        %v5327 = vunpack.c.l.b16 %v5230
        %v5328 = vunpack.c.h.b16 %v5230
        %v5329 = vpack.c.b16 %v5283, %v5281
        %v5330 = vpack.c.b16 %v5284, %v5282
        %v5331 = vpack.c.b16 %v5287, %v5285
        %v5332 = vpack.c.b16 %v5288, %v5286
        %v5333 = vpack.c.b16 %v5291, %v5289
        %v5334 = vpack.c.b16 %v5292, %v5290
        %v5335 = vpack.c.b16 %v5295, %v5293
        %v5336 = vpack.c.b16 %v5296, %v5294
        %v5337 = vpack.c.b16 %v5299, %v5297
        %v5338 = vpack.c.b16 %v5300, %v5298
        %v5339 = vpack.c.b16 %v5303, %v5301
        %v5340 = vpack.c.b16 %v5304, %v5302
        %v5341 = vpack.c.b16 %v5307, %v5305
        %v5342 = vpack.c.b16 %v5308, %v5306
        %v5343 = vpack.c.b16 %v5311, %v5309
        %v5344 = vpack.c.b16 %v5312, %v5310
        %v5345 = vpack.c.b16 %v5315, %v5313
        %v5346 = vpack.c.b16 %v5316, %v5314
        %v5347 = vpack.c.b16 %v5319, %v5317
        %v5348 = vpack.c.b16 %v5320, %v5318
        %v5349 = vpack.c.b16 %v5323, %v5321
        %v5350 = vpack.c.b16 %v5324, %v5322
        %v5351 = vpack.c.b16 %v5327, %v5325
        %v5352 = vpack.c.b16 %v5328, %v5326
        %v5378 = vsel %vm4924, %v5244, 0
        %v5381 = vsel %vm4924, %v5248, 0
        %v5384 = vsel %vm4924, %v5252, 0
        %v5387 = vsel %vm4924, %v5251, 0
        %5389 = vmatprep.subr.bf16.mxu0 %v5344
        %5390 = vmatpush1.bf16.msra.mxu0 %v5343
        %5391 = vmatprep.subr.bf16.mxu0 %v5342
        %5392 = vmatpush1.bf16.msra.mxu0 %v5341
        %5393 = vmatprep.subr.bf16.mxu0 %v5340
        %5394 = vmatpush1.bf16.msra.mxu0 %v5339
        %5395 = vmatprep.subr.bf16.mxu0 %v5338
        %5396 = vmatpush1.bf16.msra.mxu0 %v5337
        %5397 = vmatprep.subr.bf16.mxu0 %v5336
        %5398 = vmatpush1.bf16.msra.mxu0 %v5335
        %5399 = vmatprep.subr.bf16.mxu0 %v5334
        %5400 = vmatpush1.bf16.msra.mxu0 %v5333
        %5401 = vmatprep.subr.bf16.mxu0 %v5332
        %5402 = vmatpush1.bf16.msra.mxu0 %v5331
        %5403 = vmatprep.subr.bf16.mxu0 %v5330
        %5404 = vmatpush1.bf16.msra.mxu0 %v5329
        %5405 = vmatprep.subr.bf16.mxu0 0
        %5406 = vmatpush2.bf16.msra.mxu0 0
        %5407 = vmatprep.subr.bf16.mxu0 0
        %5408 = vmatpush2.bf16.msra.mxu0 0
        %5409 = vmatprep.subr.bf16.mxu0 0
        %5410 = vmatpush2.bf16.msra.mxu0 0
        %5411 = vmatprep.subr.bf16.mxu0 0
        %5412 = vmatpush2.bf16.msra.mxu0 0
        %5413 = vmatprep.subr.bf16.mxu0 %v5352
        %5414 = vmatpush2.bf16.msra.mxu0 %v5351
        %5415 = vmatprep.subr.bf16.mxu0 %v5350
        %5416 = vmatpush2.bf16.msra.mxu0 %v5349
        %5417 = vmatprep.subr.bf16.mxu0 %v5348
        %5418 = vmatpush2.bf16.msra.mxu0 %v5347
        %5419 = vmatprep.subr.bf16.mxu0 %v5346
        %5420 = vmatpush2.bf16.msra.mxu0 %v5345
        %5421 = vmatprep.mubr.bf16.mxu0 %v5378
        %5422 = vmatmul.mubr.bf16.gmra.mxu0 %v5241
        %v5423 = vpop.f32.mrf.mxu0
        %v5424 = vadd.f32 0.0, %v5423
        %v5425 = vpop.f32.mrf.mxu0
        %v5426 = vadd.f32 0.0, %v5425
        %v5427 = vpop.f32.mrf.mxu0
        %v5428 = vadd.f32 0.0, %v5427
        %v5429 = vpop.f32.mrf.mxu0
        %v5430 = vadd.f32 0.0, %v5429
        %5431 = vmatprep.mubr.bf16.mxu0 %v5381
        %5432 = vmatmul.mubr.bf16.gmra.mxu0 %v5246
        %v5433 = vpop.f32.mrf.mxu0
        %v5434 = vadd.f32 0.0, %v5433
        %v5435 = vpop.f32.mrf.mxu0
        %v5436 = vadd.f32 0.0, %v5435
        %v5437 = vpop.f32.mrf.mxu0
        %v5438 = vadd.f32 0.0, %v5437
        %v5439 = vpop.f32.mrf.mxu0
        %v5440 = vadd.f32 0.0, %v5439
        %5441 = vmatprep.mubr.bf16.mxu0 %v5384
        %5442 = vmatmul.mubr.bf16.gmra.mxu0 %v5250
        %v5443 = vpop.f32.mrf.mxu0
        %v5444 = vadd.f32 0.0, %v5443
        %v5445 = vpop.f32.mrf.mxu0
        %v5446 = vadd.f32 0.0, %v5445
        %v5447 = vpop.f32.mrf.mxu0
        %v5448 = vadd.f32 0.0, %v5447
        %v5449 = vpop.f32.mrf.mxu0
        %v5450 = vadd.f32 0.0, %v5449
        %5451 = vmatprep.mubr.bf16.mxu0 %v5387
        %5452 = vmatmul.mubr.bf16.gmra.mxu0 %v5249
        %v5453 = vpop.f32.mrf.mxu0
        %v5454 = vadd.f32 0.0, %v5453
        %v5455 = vpop.f32.mrf.mxu0
        %v5456 = vadd.f32 0.0, %v5455
        %v5457 = vpop.f32.mrf.mxu0
        %v5458 = vpop.f32.mrf.mxu0
        %5459 = vdwg.mxu0
        %v5460 = vadd.f32 %v5171, %v5424
        %v5461 = vadd.f32 %v5173, %v5426
        %v5462 = vadd.f32 %v5175, %v5428
        %v5463 = vadd.f32 %v5177, %v5430
        %v5464 = vadd.f32 %v5181, %v5434
        %v5465 = vadd.f32 %v5183, %v5436
        %v5466 = vadd.f32 %v5185, %v5438
        %v5467 = vadd.f32 %v5187, %v5440
        %v5468 = vadd.f32 %v5191, %v5444
        %v5469 = vadd.f32 %v5193, %v5446
        %v5470 = vadd.f32 %v5195, %v5448
        %v5471 = vadd.f32 %v5197, %v5450
        %v5472 = vadd.f32 %v5201, %v5454
        %v5473 = vadd.f32 %v5203, %v5456
        %v5474 = vpack.c.bf16 %v4636, %v4630
        %v5475 = vpack.c.bf16 %v4638, %v4632
        %v5476 = vpack.c.bf16 %v4646, %v4640
        %v5477 = vpack.c.bf16 %v4648, %v4642
        %v5478 = vpack.c.bf16 %v4656, %v4650
        %v5479 = vpack.c.bf16 %v4658, %v4652
        %v5480 = vpack.c.bf16 %v4666, %v4660
        %v5481 = vpack.c.bf16 %v4668, %v4662
        %v5482 = vld [vmem:[%s6 + $0x240] sm:$0xff]
        %v5483 = vld [vmem:[%s6 + $0x248] sm:$0xff]
        %v5484 = vld [vmem:[%s6 + $0x250] sm:$0xff]
        %v5485 = vld [vmem:[%s6 + $0x258] sm:$0xff]
        %v5486 = vld [vmem:[%s6 + $0x260] sm:$0xff]
        %v5487 = vld [vmem:[%s6 + $0x268] sm:$0xff]
        %v5488 = vld [vmem:[%s6 + $0x270] sm:$0xff]
        %v5489 = vld [vmem:[%s6 + $0x278] sm:$0xff]
        %v5490 = vld [vmem:[%s6 + $0x280] sm:$0xff]
        %v5491 = vld [vmem:[%s6 + $0x288] sm:$0xff]
        %v5492 = vld [vmem:[%s6 + $0x290] sm:$0xff]
        %v5493 = vld [vmem:[%s6 + $0x298] sm:$0xff]
        %v5494 = vld [vmem:[%s6 + $0x2a0] sm:$0xff]
        %v5495 = vld [vmem:[%s6 + $0x2a8] sm:$0xff]
        %v5496 = vld [vmem:[%s6 + $0x2b0] sm:$0xff]
        %v5497 = vld [vmem:[%s6 + $0x2b8] sm:$0xff]
        %v5498 = vld [vmem:[%s6 + $0x2c0] sm:$0xff]
        %v5499 = vld [vmem:[%s6 + $0x2c8] sm:$0xff]
        %v5500 = vld [vmem:[%s6 + $0x2d0] sm:$0xff]
        %v5501 = vld [vmem:[%s6 + $0x2d8] sm:$0xff]
        %v5502 = vld [vmem:[%s6 + $0x2e0] sm:$0xff]
        %v5503 = vld [vmem:[%s6 + $0x2e8] sm:$0xff]
        %v5504 = vld [vmem:[%s6 + $0x2f0] sm:$0xff]
        %v5505 = vld [vmem:[%s6 + $0x2f8] sm:$0xff]
        %v5507 = vshrl.u32 %v5474, 16
        %v5509 = vshll.u32 %v5474, 16
        %v5511 = vrot.slane %v5509, 1
        %v5512 = vor.u32 %v5507, %v5511
        %v5514 = vshll.u32 %v5476, 16
        %v5516 = vrot.slane %v5514, 1
        %v5517 = vsel %vm1979, %v5512, %v5516
        %v5519 = vshrl.u32 %v5475, 16
        %v5521 = vshll.u32 %v5475, 16
        %v5523 = vrot.slane %v5521, 1
        %v5524 = vor.u32 %v5519, %v5523
        %v5526 = vshll.u32 %v5477, 16
        %v5528 = vrot.slane %v5526, 1
        %v5529 = vsel %vm1979, %v5524, %v5528
        %v5530 = vshrl.u32 %v5476, 16
        %v5532 = vor.u32 %v5530, %v5516
        %v5534 = vshll.u32 %v5478, 16
        %v5536 = vrot.slane %v5534, 1
        %v5537 = vsel %vm1979, %v5532, %v5536
        %v5538 = vshrl.u32 %v5477, 16
        %v5540 = vor.u32 %v5538, %v5528
        %v5542 = vshll.u32 %v5479, 16
        %v5544 = vrot.slane %v5542, 1
        %v5545 = vsel %vm1979, %v5540, %v5544
        %v5546 = vshrl.u32 %v5478, 16
        %v5548 = vor.u32 %v5546, %v5536
        %v5550 = vshll.u32 %v5480, 16
        %v5552 = vrot.slane %v5550, 1
        %v5553 = vsel %vm1979, %v5548, %v5552
        %v5554 = vshrl.u32 %v5479, 16
        %v5556 = vor.u32 %v5554, %v5544
        %v5558 = vshll.u32 %v5481, 16
        %v5560 = vrot.slane %v5558, 1
        %v5561 = vsel %vm1979, %v5556, %v5560
        %v5562 = vshrl.u32 %v5480, 16
        %v5564 = vor.u32 %v5562, %v5552
        %v5565 = vshrl.u32 %v5481, 16
        %v5567 = vor.u32 %v5565, %v5560
        %v5596 = vunpack.c.l.b16 %v5482
        %v5597 = vunpack.c.h.b16 %v5482
        %v5598 = vunpack.c.l.b16 %v5483
        %v5599 = vunpack.c.h.b16 %v5483
        %v5600 = vunpack.c.l.b16 %v5484
        %v5601 = vunpack.c.h.b16 %v5484
        %v5602 = vunpack.c.l.b16 %v5485
        %v5603 = vunpack.c.h.b16 %v5485
        %v5604 = vunpack.c.l.b16 %v5486
        %v5605 = vunpack.c.h.b16 %v5486
        %v5606 = vunpack.c.l.b16 %v5487
        %v5607 = vunpack.c.h.b16 %v5487
        %v5608 = vunpack.c.l.b16 %v5488
        %v5609 = vunpack.c.h.b16 %v5488
        %v5610 = vunpack.c.l.b16 %v5489
        %v5611 = vunpack.c.h.b16 %v5489
        %v5612 = vunpack.c.l.b16 %v5490
        %v5613 = vunpack.c.h.b16 %v5490
        %v5614 = vunpack.c.l.b16 %v5491
        %v5615 = vunpack.c.h.b16 %v5491
        %v5616 = vunpack.c.l.b16 %v5492
        %v5617 = vunpack.c.h.b16 %v5492
        %v5618 = vunpack.c.l.b16 %v5493
        %v5619 = vunpack.c.h.b16 %v5493
        %v5620 = vunpack.c.l.b16 %v5494
        %v5621 = vunpack.c.h.b16 %v5494
        %v5622 = vunpack.c.l.b16 %v5495
        %v5623 = vunpack.c.h.b16 %v5495
        %v5624 = vunpack.c.l.b16 %v5496
        %v5625 = vunpack.c.h.b16 %v5496
        %v5626 = vunpack.c.l.b16 %v5497
        %v5627 = vunpack.c.h.b16 %v5497
        %v5628 = vunpack.c.l.b16 %v5498
        %v5629 = vunpack.c.h.b16 %v5498
        %v5630 = vunpack.c.l.b16 %v5499
        %v5631 = vunpack.c.h.b16 %v5499
        %v5632 = vunpack.c.l.b16 %v5500
        %v5633 = vunpack.c.h.b16 %v5500
        %v5634 = vunpack.c.l.b16 %v5501
        %v5635 = vunpack.c.h.b16 %v5501
        %v5636 = vunpack.c.l.b16 %v5502
        %v5637 = vunpack.c.h.b16 %v5502
        %v5638 = vunpack.c.l.b16 %v5503
        %v5639 = vunpack.c.h.b16 %v5503
        %v5640 = vunpack.c.l.b16 %v5504
        %v5641 = vunpack.c.h.b16 %v5504
        %v5642 = vunpack.c.l.b16 %v5505
        %v5643 = vunpack.c.h.b16 %v5505
        %v5644 = vpack.c.b16 %v5598, %v5596
        %v5645 = vpack.c.b16 %v5599, %v5597
        %v5646 = vpack.c.b16 %v5602, %v5600
        %v5647 = vpack.c.b16 %v5603, %v5601
        %v5648 = vpack.c.b16 %v5606, %v5604
        %v5649 = vpack.c.b16 %v5607, %v5605
        %v5650 = vpack.c.b16 %v5610, %v5608
        %v5651 = vpack.c.b16 %v5611, %v5609
        %v5652 = vpack.c.b16 %v5614, %v5612
        %v5653 = vpack.c.b16 %v5615, %v5613
        %v5654 = vpack.c.b16 %v5618, %v5616
        %v5655 = vpack.c.b16 %v5619, %v5617
        %v5656 = vpack.c.b16 %v5622, %v5620
        %v5657 = vpack.c.b16 %v5623, %v5621
        %v5658 = vpack.c.b16 %v5626, %v5624
        %v5659 = vpack.c.b16 %v5627, %v5625
        %v5660 = vpack.c.b16 %v5630, %v5628
        %v5661 = vpack.c.b16 %v5631, %v5629
        %v5662 = vpack.c.b16 %v5634, %v5632
        %v5663 = vpack.c.b16 %v5635, %v5633
        %v5664 = vpack.c.b16 %v5638, %v5636
        %v5665 = vpack.c.b16 %v5639, %v5637
        %v5666 = vpack.c.b16 %v5642, %v5640
        %v5667 = vpack.c.b16 %v5643, %v5641
        %v5693 = vsel %vm4924, %v5529, 0
        %v5696 = vsel %vm4924, %v5545, 0
        %v5699 = vsel %vm4924, %v5561, 0
        %v5702 = vsel %vm4924, %v5567, 0
        %5704 = vmatprep.subr.bf16.mxu0 %v5659
        %5705 = vmatpush1.bf16.msra.mxu0 %v5658
        %5706 = vmatprep.subr.bf16.mxu0 %v5657
        %5707 = vmatpush1.bf16.msra.mxu0 %v5656
        %5708 = vmatprep.subr.bf16.mxu0 %v5655
        %5709 = vmatpush1.bf16.msra.mxu0 %v5654
        %5710 = vmatprep.subr.bf16.mxu0 %v5653
        %5711 = vmatpush1.bf16.msra.mxu0 %v5652
        %5712 = vmatprep.subr.bf16.mxu0 %v5651
        %5713 = vmatpush1.bf16.msra.mxu0 %v5650
        %5714 = vmatprep.subr.bf16.mxu0 %v5649
        %5715 = vmatpush1.bf16.msra.mxu0 %v5648
        %5716 = vmatprep.subr.bf16.mxu0 %v5647
        %5717 = vmatpush1.bf16.msra.mxu0 %v5646
        %5718 = vmatprep.subr.bf16.mxu0 %v5645
        %5719 = vmatpush1.bf16.msra.mxu0 %v5644
        %5720 = vmatprep.subr.bf16.mxu0 0
        %5721 = vmatpush2.bf16.msra.mxu0 0
        %5722 = vmatprep.subr.bf16.mxu0 0
        %5723 = vmatpush2.bf16.msra.mxu0 0
        %5724 = vmatprep.subr.bf16.mxu0 0
        %5725 = vmatpush2.bf16.msra.mxu0 0
        %5726 = vmatprep.subr.bf16.mxu0 0
        %5727 = vmatpush2.bf16.msra.mxu0 0
        %5728 = vmatprep.subr.bf16.mxu0 %v5667
        %5729 = vmatpush2.bf16.msra.mxu0 %v5666
        %5730 = vmatprep.subr.bf16.mxu0 %v5665
        %5731 = vmatpush2.bf16.msra.mxu0 %v5664
        %5732 = vmatprep.subr.bf16.mxu0 %v5663
        %5733 = vmatpush2.bf16.msra.mxu0 %v5662
        %5734 = vmatprep.subr.bf16.mxu0 %v5661
        %5735 = vmatpush2.bf16.msra.mxu0 %v5660
        %5736 = vmatprep.mubr.bf16.mxu0 %v5693
        %5737 = vmatmul.mubr.bf16.gmra.mxu0 %v5517
        %v5738 = vpop.f32.mrf.mxu0
        %v5739 = vadd.f32 0.0, %v5738
        %v5740 = vpop.f32.mrf.mxu0
        %v5741 = vadd.f32 0.0, %v5740
        %v5742 = vpop.f32.mrf.mxu0
        %v5743 = vadd.f32 0.0, %v5742
        %v5744 = vpop.f32.mrf.mxu0
        %v5745 = vadd.f32 0.0, %v5744
        %5746 = vmatprep.mubr.bf16.mxu0 %v5696
        %5747 = vmatmul.mubr.bf16.gmra.mxu0 %v5537
        %v5748 = vpop.f32.mrf.mxu0
        %v5749 = vadd.f32 0.0, %v5748
        %v5750 = vpop.f32.mrf.mxu0
        %v5751 = vadd.f32 0.0, %v5750
        %v5752 = vpop.f32.mrf.mxu0
        %v5753 = vadd.f32 0.0, %v5752
        %v5754 = vpop.f32.mrf.mxu0
        %v5755 = vadd.f32 0.0, %v5754
        %5756 = vmatprep.mubr.bf16.mxu0 %v5699
        %5757 = vmatmul.mubr.bf16.gmra.mxu0 %v5553
        %v5758 = vpop.f32.mrf.mxu0
        %v5759 = vadd.f32 0.0, %v5758
        %v5760 = vpop.f32.mrf.mxu0
        %v5761 = vadd.f32 0.0, %v5760
        %v5762 = vpop.f32.mrf.mxu0
        %v5763 = vadd.f32 0.0, %v5762
        %v5764 = vpop.f32.mrf.mxu0
        %v5765 = vadd.f32 0.0, %v5764
        %5766 = vmatprep.mubr.bf16.mxu0 %v5702
        %5767 = vmatmul.mubr.bf16.gmra.mxu0 %v5564
        %v5768 = vpop.f32.mrf.mxu0
        %v5769 = vadd.f32 0.0, %v5768
        %v5770 = vpop.f32.mrf.mxu0
        %v5771 = vadd.f32 0.0, %v5770
        %v5772 = vpop.f32.mrf.mxu0
        %v5773 = vpop.f32.mrf.mxu0
        %5774 = vdwg.mxu0
        %v5775 = vadd.f32 %v5460, %v5739
        %v5776 = vadd.f32 %v5461, %v5741
        %v5777 = vadd.f32 %v5462, %v5743
        %v5778 = vadd.f32 %v5463, %v5745
        %v5779 = vadd.f32 %v5464, %v5749
        %v5780 = vadd.f32 %v5465, %v5751
        %v5781 = vadd.f32 %v5466, %v5753
        %v5782 = vadd.f32 %v5467, %v5755
        %v5783 = vadd.f32 %v5468, %v5759
        %v5784 = vadd.f32 %v5469, %v5761
        %v5785 = vadd.f32 %v5470, %v5763
        %v5786 = vadd.f32 %v5471, %v5765
        %v5787 = vadd.f32 %v5472, %v5769
        %v5788 = vadd.f32 %v5473, %v5771
        %v5789 = vld [vmem:[%s6 + $0x300] sm:$0xff]
        %v5790 = vld [vmem:[%s6 + $0x308] sm:$0xff]
        %v5791 = vld [vmem:[%s6 + $0x310] sm:$0xff]
        %v5792 = vld [vmem:[%s6 + $0x318] sm:$0xff]
        %v5793 = vld [vmem:[%s6 + $0x320] sm:$0xff]
        %v5794 = vld [vmem:[%s6 + $0x328] sm:$0xff]
        %v5795 = vld [vmem:[%s6 + $0x330] sm:$0xff]
        %v5796 = vld [vmem:[%s6 + $0x338] sm:$0xff]
        %v5797 = vld [vmem:[%s6 + $0x340] sm:$0xff]
        %v5798 = vld [vmem:[%s6 + $0x348] sm:$0xff]
        %v5799 = vld [vmem:[%s6 + $0x350] sm:$0xff]
        %v5800 = vld [vmem:[%s6 + $0x358] sm:$0xff]
        %v5801 = vld [vmem:[%s6 + $0x360] sm:$0xff]
        %v5802 = vld [vmem:[%s6 + $0x368] sm:$0xff]
        %v5803 = vld [vmem:[%s6 + $0x370] sm:$0xff]
        %v5804 = vld [vmem:[%s6 + $0x378] sm:$0xff]
        %v5805 = vld [vmem:[%s6 + $0x380] sm:$0xff]
        %v5806 = vld [vmem:[%s6 + $0x388] sm:$0xff]
        %v5807 = vld [vmem:[%s6 + $0x390] sm:$0xff]
        %v5808 = vld [vmem:[%s6 + $0x398] sm:$0xff]
        %v5809 = vld [vmem:[%s6 + $0x3a0] sm:$0xff]
        %v5810 = vld [vmem:[%s6 + $0x3a8] sm:$0xff]
        %v5811 = vld [vmem:[%s6 + $0x3b0] sm:$0xff]
        %v5812 = vld [vmem:[%s6 + $0x3b8] sm:$0xff]
        %v5821 = vrot.slane %v5474, 1
        %v5822 = vrot.slane %v5476, 1
        %v5823 = vsel %vm2119, %v5821, %v5822
        %v5824 = vrot.slane %v5475, 1
        %v5825 = vrot.slane %v5477, 1
        %v5826 = vsel %vm2119, %v5824, %v5825
        %v5827 = vrot.slane %v5478, 1
        %v5828 = vsel %vm2119, %v5822, %v5827
        %v5829 = vrot.slane %v5479, 1
        %v5830 = vsel %vm2119, %v5825, %v5829
        %v5831 = vrot.slane %v5480, 1
        %v5832 = vsel %vm2119, %v5827, %v5831
        %v5833 = vrot.slane %v5481, 1
        %v5834 = vsel %vm2119, %v5829, %v5833
        %v5863 = vunpack.c.l.b16 %v5789
        %v5864 = vunpack.c.h.b16 %v5789
        %v5865 = vunpack.c.l.b16 %v5790
        %v5866 = vunpack.c.h.b16 %v5790
        %v5867 = vunpack.c.l.b16 %v5791
        %v5868 = vunpack.c.h.b16 %v5791
        %v5869 = vunpack.c.l.b16 %v5792
        %v5870 = vunpack.c.h.b16 %v5792
        %v5871 = vunpack.c.l.b16 %v5793
        %v5872 = vunpack.c.h.b16 %v5793
        %v5873 = vunpack.c.l.b16 %v5794
        %v5874 = vunpack.c.h.b16 %v5794
        %v5875 = vunpack.c.l.b16 %v5795
        %v5876 = vunpack.c.h.b16 %v5795
        %v5877 = vunpack.c.l.b16 %v5796
        %v5878 = vunpack.c.h.b16 %v5796
        %v5879 = vunpack.c.l.b16 %v5797
        %v5880 = vunpack.c.h.b16 %v5797
        %v5881 = vunpack.c.l.b16 %v5798
        %v5882 = vunpack.c.h.b16 %v5798
        %v5883 = vunpack.c.l.b16 %v5799
        %v5884 = vunpack.c.h.b16 %v5799
        %v5885 = vunpack.c.l.b16 %v5800
        %v5886 = vunpack.c.h.b16 %v5800
        %v5887 = vunpack.c.l.b16 %v5801
        %v5888 = vunpack.c.h.b16 %v5801
        %v5889 = vunpack.c.l.b16 %v5802
        %v5890 = vunpack.c.h.b16 %v5802
        %v5891 = vunpack.c.l.b16 %v5803
        %v5892 = vunpack.c.h.b16 %v5803
        %v5893 = vunpack.c.l.b16 %v5804
        %v5894 = vunpack.c.h.b16 %v5804
        %v5895 = vunpack.c.l.b16 %v5805
        %v5896 = vunpack.c.h.b16 %v5805
        %v5897 = vunpack.c.l.b16 %v5806
        %v5898 = vunpack.c.h.b16 %v5806
        %v5899 = vunpack.c.l.b16 %v5807
        %v5900 = vunpack.c.h.b16 %v5807
        %v5901 = vunpack.c.l.b16 %v5808
        %v5902 = vunpack.c.h.b16 %v5808
        %v5903 = vunpack.c.l.b16 %v5809
        %v5904 = vunpack.c.h.b16 %v5809
        %v5905 = vunpack.c.l.b16 %v5810
        %v5906 = vunpack.c.h.b16 %v5810
        %v5907 = vunpack.c.l.b16 %v5811
        %v5908 = vunpack.c.h.b16 %v5811
        %v5909 = vunpack.c.l.b16 %v5812
        %v5910 = vunpack.c.h.b16 %v5812
        %v5911 = vpack.c.b16 %v5865, %v5863
        %v5912 = vpack.c.b16 %v5866, %v5864
        %v5913 = vpack.c.b16 %v5869, %v5867
        %v5914 = vpack.c.b16 %v5870, %v5868
        %v5915 = vpack.c.b16 %v5873, %v5871
        %v5916 = vpack.c.b16 %v5874, %v5872
        %v5917 = vpack.c.b16 %v5877, %v5875
        %v5918 = vpack.c.b16 %v5878, %v5876
        %v5919 = vpack.c.b16 %v5881, %v5879
        %v5920 = vpack.c.b16 %v5882, %v5880
        %v5921 = vpack.c.b16 %v5885, %v5883
        %v5922 = vpack.c.b16 %v5886, %v5884
        %v5923 = vpack.c.b16 %v5889, %v5887
        %v5924 = vpack.c.b16 %v5890, %v5888
        %v5925 = vpack.c.b16 %v5893, %v5891
        %v5926 = vpack.c.b16 %v5894, %v5892
        %v5927 = vpack.c.b16 %v5897, %v5895
        %v5928 = vpack.c.b16 %v5898, %v5896
        %v5929 = vpack.c.b16 %v5901, %v5899
        %v5930 = vpack.c.b16 %v5902, %v5900
        %v5931 = vpack.c.b16 %v5905, %v5903
        %v5932 = vpack.c.b16 %v5906, %v5904
        %v5933 = vpack.c.b16 %v5909, %v5907
        %v5934 = vpack.c.b16 %v5910, %v5908
        %v5960 = vsel %vm4924, %v5826, 0
        %v5963 = vsel %vm4924, %v5830, 0
        %v5966 = vsel %vm4924, %v5834, 0
        %v5969 = vsel %vm4924, %v5833, 0
        %5971 = vmatprep.subr.bf16.mxu0 %v5926
        %5972 = vmatpush1.bf16.msra.mxu0 %v5925
        %5973 = vmatprep.subr.bf16.mxu0 %v5924
        %5974 = vmatpush1.bf16.msra.mxu0 %v5923
        %5975 = vmatprep.subr.bf16.mxu0 %v5922
        %5976 = vmatpush1.bf16.msra.mxu0 %v5921
        %5977 = vmatprep.subr.bf16.mxu0 %v5920
        %5978 = vmatpush1.bf16.msra.mxu0 %v5919
        %5979 = vmatprep.subr.bf16.mxu0 %v5918
        %5980 = vmatpush1.bf16.msra.mxu0 %v5917
        %5981 = vmatprep.subr.bf16.mxu0 %v5916
        %5982 = vmatpush1.bf16.msra.mxu0 %v5915
        %5983 = vmatprep.subr.bf16.mxu0 %v5914
        %5984 = vmatpush1.bf16.msra.mxu0 %v5913
        %5985 = vmatprep.subr.bf16.mxu0 %v5912
        %5986 = vmatpush1.bf16.msra.mxu0 %v5911
        %5987 = vmatprep.subr.bf16.mxu0 0
        %5988 = vmatpush2.bf16.msra.mxu0 0
        %5989 = vmatprep.subr.bf16.mxu0 0
        %5990 = vmatpush2.bf16.msra.mxu0 0
        %5991 = vmatprep.subr.bf16.mxu0 0
        %5992 = vmatpush2.bf16.msra.mxu0 0
        %5993 = vmatprep.subr.bf16.mxu0 0
        %5994 = vmatpush2.bf16.msra.mxu0 0
        %5995 = vmatprep.subr.bf16.mxu0 %v5934
        %5996 = vmatpush2.bf16.msra.mxu0 %v5933
        %5997 = vmatprep.subr.bf16.mxu0 %v5932
        %5998 = vmatpush2.bf16.msra.mxu0 %v5931
        %5999 = vmatprep.subr.bf16.mxu0 %v5930
        %6000 = vmatpush2.bf16.msra.mxu0 %v5929
        %6001 = vmatprep.subr.bf16.mxu0 %v5928
        %6002 = vmatpush2.bf16.msra.mxu0 %v5927
        %6003 = vmatprep.mubr.bf16.mxu0 %v5960
        %6004 = vmatmul.mubr.bf16.gmra.mxu0 %v5823
        %v6005 = vpop.f32.mrf.mxu0
        %v6006 = vadd.f32 0.0, %v6005
        %v6007 = vpop.f32.mrf.mxu0
        %v6008 = vadd.f32 0.0, %v6007
        %v6009 = vpop.f32.mrf.mxu0
        %v6010 = vadd.f32 0.0, %v6009
        %v6011 = vpop.f32.mrf.mxu0
        %v6012 = vadd.f32 0.0, %v6011
        %6013 = vmatprep.mubr.bf16.mxu0 %v5963
        %6014 = vmatmul.mubr.bf16.gmra.mxu0 %v5828
        %v6015 = vpop.f32.mrf.mxu0
        %v6016 = vadd.f32 0.0, %v6015
        %v6017 = vpop.f32.mrf.mxu0
        %v6018 = vadd.f32 0.0, %v6017
        %v6019 = vpop.f32.mrf.mxu0
        %v6020 = vadd.f32 0.0, %v6019
        %v6021 = vpop.f32.mrf.mxu0
        %v6022 = vadd.f32 0.0, %v6021
        %6023 = vmatprep.mubr.bf16.mxu0 %v5966
        %6024 = vmatmul.mubr.bf16.gmra.mxu0 %v5832
        %v6025 = vpop.f32.mrf.mxu0
        %v6026 = vadd.f32 0.0, %v6025
        %v6027 = vpop.f32.mrf.mxu0
        %v6028 = vadd.f32 0.0, %v6027
        %v6029 = vpop.f32.mrf.mxu0
        %v6030 = vadd.f32 0.0, %v6029
        %v6031 = vpop.f32.mrf.mxu0
        %v6032 = vadd.f32 0.0, %v6031
        %6033 = vmatprep.mubr.bf16.mxu0 %v5969
        %6034 = vmatmul.mubr.bf16.gmra.mxu0 %v5831
        %v6035 = vpop.f32.mrf.mxu0
        %v6036 = vadd.f32 0.0, %v6035
        %v6037 = vpop.f32.mrf.mxu0
        %v6038 = vadd.f32 0.0, %v6037
        %v6039 = vpop.f32.mrf.mxu0
        %v6040 = vpop.f32.mrf.mxu0
        %6041 = vdwg.mxu0
        %v6042 = vadd.f32 %v5775, %v6006
        %v6043 = vadd.f32 %v5776, %v6008
        %v6044 = vadd.f32 %v5777, %v6010
        %v6045 = vadd.f32 %v5778, %v6012
        %v6046 = vadd.f32 %v5779, %v6016
        %v6047 = vadd.f32 %v5780, %v6018
        %v6048 = vadd.f32 %v5781, %v6020
        %v6049 = vadd.f32 %v5782, %v6022
        %v6050 = vadd.f32 %v5783, %v6026
        %v6051 = vadd.f32 %v5784, %v6028
        %v6052 = vadd.f32 %v5785, %v6030
        %v6053 = vadd.f32 %v5786, %v6032
        %v6054 = vadd.f32 %v5787, %v6036
        %v6055 = vadd.f32 %v5788, %v6038
        %v6056 = vld [vmem:[%s6 + $0x3c0] sm:$0xff]
        %v6057 = vld [vmem:[%s6 + $0x3c8] sm:$0xff]
        %v6058 = vld [vmem:[%s6 + $0x3d0] sm:$0xff]
        %v6059 = vld [vmem:[%s6 + $0x3d8] sm:$0xff]
        %v6060 = vld [vmem:[%s6 + $0x3e0] sm:$0xff]
        %v6061 = vld [vmem:[%s6 + $0x3e8] sm:$0xff]
        %v6062 = vld [vmem:[%s6 + $0x3f0] sm:$0xff]
        %v6063 = vld [vmem:[%s6 + $0x3f8] sm:$0xff]
        %v6064 = vld [vmem:[%s6 + $0x400] sm:$0xff]
        %v6065 = vld [vmem:[%s6 + $0x408] sm:$0xff]
        %v6066 = vld [vmem:[%s6 + $0x410] sm:$0xff]
        %v6067 = vld [vmem:[%s6 + $0x418] sm:$0xff]
        %v6068 = vld [vmem:[%s6 + $0x420] sm:$0xff]
        %v6069 = vld [vmem:[%s6 + $0x428] sm:$0xff]
        %v6070 = vld [vmem:[%s6 + $0x430] sm:$0xff]
        %v6071 = vld [vmem:[%s6 + $0x438] sm:$0xff]
        %v6072 = vld [vmem:[%s6 + $0x440] sm:$0xff]
        %v6073 = vld [vmem:[%s6 + $0x448] sm:$0xff]
        %v6074 = vld [vmem:[%s6 + $0x450] sm:$0xff]
        %v6075 = vld [vmem:[%s6 + $0x458] sm:$0xff]
        %v6076 = vld [vmem:[%s6 + $0x460] sm:$0xff]
        %v6077 = vld [vmem:[%s6 + $0x468] sm:$0xff]
        %v6078 = vld [vmem:[%s6 + $0x470] sm:$0xff]
        %v6079 = vld [vmem:[%s6 + $0x478] sm:$0xff]
        %vm6080 = vsmask.f32 6400
        %v6081 = vrot.slane %v5507, 1
        %v6082 = vrot.slane %v5509, 2
        %v6083 = vor.u32 %v6081, %v6082
        %v6084 = vrot.slane %v5530, 1
        %v6085 = vrot.slane %v5514, 2
        %v6086 = vor.u32 %v6084, %v6085
        %v6087 = vsel %vm6080, %v6083, %v6086
        %v6088 = vrot.slane %v5519, 1
        %v6089 = vrot.slane %v5521, 2
        %v6090 = vor.u32 %v6088, %v6089
        %v6091 = vrot.slane %v5538, 1
        %v6092 = vrot.slane %v5526, 2
        %v6093 = vor.u32 %v6091, %v6092
        %v6094 = vsel %vm6080, %v6090, %v6093
        %v6095 = vrot.slane %v5546, 1
        %v6096 = vrot.slane %v5534, 2
        %v6097 = vor.u32 %v6095, %v6096
        %v6098 = vsel %vm6080, %v6086, %v6097
        %v6099 = vrot.slane %v5554, 1
        %v6100 = vrot.slane %v5542, 2
        %v6101 = vor.u32 %v6099, %v6100
        %v6102 = vsel %vm6080, %v6093, %v6101
        %v6103 = vrot.slane %v5562, 1
        %v6104 = vrot.slane %v5550, 2
        %v6105 = vor.u32 %v6103, %v6104
        %v6106 = vsel %vm6080, %v6097, %v6105
        %v6107 = vrot.slane %v5565, 1
        %v6108 = vrot.slane %v5558, 2
        %v6109 = vor.u32 %v6107, %v6108
        %v6110 = vsel %vm6080, %v6101, %v6109
        %v6139 = vunpack.c.l.b16 %v6056
        %v6140 = vunpack.c.h.b16 %v6056
        %v6141 = vunpack.c.l.b16 %v6057
        %v6142 = vunpack.c.h.b16 %v6057
        %v6143 = vunpack.c.l.b16 %v6058
        %v6144 = vunpack.c.h.b16 %v6058
        %v6145 = vunpack.c.l.b16 %v6059
        %v6146 = vunpack.c.h.b16 %v6059
        %v6147 = vunpack.c.l.b16 %v6060
        %v6148 = vunpack.c.h.b16 %v6060
        %v6149 = vunpack.c.l.b16 %v6061
        %v6150 = vunpack.c.h.b16 %v6061
        %v6151 = vunpack.c.l.b16 %v6062
        %v6152 = vunpack.c.h.b16 %v6062
        %v6153 = vunpack.c.l.b16 %v6063
        %v6154 = vunpack.c.h.b16 %v6063
        %v6155 = vunpack.c.l.b16 %v6064
        %v6156 = vunpack.c.h.b16 %v6064
        %v6157 = vunpack.c.l.b16 %v6065
        %v6158 = vunpack.c.h.b16 %v6065
        %v6159 = vunpack.c.l.b16 %v6066
        %v6160 = vunpack.c.h.b16 %v6066
        %v6161 = vunpack.c.l.b16 %v6067
        %v6162 = vunpack.c.h.b16 %v6067
        %v6163 = vunpack.c.l.b16 %v6068
        %v6164 = vunpack.c.h.b16 %v6068
        %v6165 = vunpack.c.l.b16 %v6069
        %v6166 = vunpack.c.h.b16 %v6069
        %v6167 = vunpack.c.l.b16 %v6070
        %v6168 = vunpack.c.h.b16 %v6070
        %v6169 = vunpack.c.l.b16 %v6071
        %v6170 = vunpack.c.h.b16 %v6071
        %v6171 = vunpack.c.l.b16 %v6072
        %v6172 = vunpack.c.h.b16 %v6072
        %v6173 = vunpack.c.l.b16 %v6073
        %v6174 = vunpack.c.h.b16 %v6073
        %v6175 = vunpack.c.l.b16 %v6074
        %v6176 = vunpack.c.h.b16 %v6074
        %v6177 = vunpack.c.l.b16 %v6075
        %v6178 = vunpack.c.h.b16 %v6075
        %v6179 = vunpack.c.l.b16 %v6076
        %v6180 = vunpack.c.h.b16 %v6076
        %v6181 = vunpack.c.l.b16 %v6077
        %v6182 = vunpack.c.h.b16 %v6077
        %v6183 = vunpack.c.l.b16 %v6078
        %v6184 = vunpack.c.h.b16 %v6078
        %v6185 = vunpack.c.l.b16 %v6079
        %v6186 = vunpack.c.h.b16 %v6079
        %v6187 = vpack.c.b16 %v6141, %v6139
        %v6188 = vpack.c.b16 %v6142, %v6140
        %v6189 = vpack.c.b16 %v6145, %v6143
        %v6190 = vpack.c.b16 %v6146, %v6144
        %v6191 = vpack.c.b16 %v6149, %v6147
        %v6192 = vpack.c.b16 %v6150, %v6148
        %v6193 = vpack.c.b16 %v6153, %v6151
        %v6194 = vpack.c.b16 %v6154, %v6152
        %v6195 = vpack.c.b16 %v6157, %v6155
        %v6196 = vpack.c.b16 %v6158, %v6156
        %v6197 = vpack.c.b16 %v6161, %v6159
        %v6198 = vpack.c.b16 %v6162, %v6160
        %v6199 = vpack.c.b16 %v6165, %v6163
        %v6200 = vpack.c.b16 %v6166, %v6164
        %v6201 = vpack.c.b16 %v6169, %v6167
        %v6202 = vpack.c.b16 %v6170, %v6168
        %v6203 = vpack.c.b16 %v6173, %v6171
        %v6204 = vpack.c.b16 %v6174, %v6172
        %v6205 = vpack.c.b16 %v6177, %v6175
        %v6206 = vpack.c.b16 %v6178, %v6176
        %v6207 = vpack.c.b16 %v6181, %v6179
        %v6208 = vpack.c.b16 %v6182, %v6180
        %v6209 = vpack.c.b16 %v6185, %v6183
        %v6210 = vpack.c.b16 %v6186, %v6184
        %v6236 = vsel %vm4924, %v6094, 0
        %v6239 = vsel %vm4924, %v6102, 0
        %v6242 = vsel %vm4924, %v6110, 0
        %v6245 = vsel %vm4924, %v6109, 0
        %6247 = vmatprep.subr.bf16.mxu0 %v6202
        %6248 = vmatpush1.bf16.msra.mxu0 %v6201
        %6249 = vmatprep.subr.bf16.mxu0 %v6200
        %6250 = vmatpush1.bf16.msra.mxu0 %v6199
        %6251 = vmatprep.subr.bf16.mxu0 %v6198
        %6252 = vmatpush1.bf16.msra.mxu0 %v6197
        %6253 = vmatprep.subr.bf16.mxu0 %v6196
        %6254 = vmatpush1.bf16.msra.mxu0 %v6195
        %6255 = vmatprep.subr.bf16.mxu0 %v6194
        %6256 = vmatpush1.bf16.msra.mxu0 %v6193
        %6257 = vmatprep.subr.bf16.mxu0 %v6192
        %6258 = vmatpush1.bf16.msra.mxu0 %v6191
        %6259 = vmatprep.subr.bf16.mxu0 %v6190
        %6260 = vmatpush1.bf16.msra.mxu0 %v6189
        %6261 = vmatprep.subr.bf16.mxu0 %v6188
        %6262 = vmatpush1.bf16.msra.mxu0 %v6187
        %6263 = vmatprep.subr.bf16.mxu0 0
        %6264 = vmatpush2.bf16.msra.mxu0 0
        %6265 = vmatprep.subr.bf16.mxu0 0
        %6266 = vmatpush2.bf16.msra.mxu0 0
        %6267 = vmatprep.subr.bf16.mxu0 0
        %6268 = vmatpush2.bf16.msra.mxu0 0
        %6269 = vmatprep.subr.bf16.mxu0 0
        %6270 = vmatpush2.bf16.msra.mxu0 0
        %6271 = vmatprep.subr.bf16.mxu0 %v6210
        %6272 = vmatpush2.bf16.msra.mxu0 %v6209
        %6273 = vmatprep.subr.bf16.mxu0 %v6208
        %6274 = vmatpush2.bf16.msra.mxu0 %v6207
        %6275 = vmatprep.subr.bf16.mxu0 %v6206
        %6276 = vmatpush2.bf16.msra.mxu0 %v6205
        %6277 = vmatprep.subr.bf16.mxu0 %v6204
        %6278 = vmatpush2.bf16.msra.mxu0 %v6203
        %6279 = vmatprep.mubr.bf16.mxu0 %v6236
        %6280 = vmatmul.mubr.bf16.gmra.mxu0 %v6087
        %v6281 = vpop.f32.mrf.mxu0
        %v6282 = vadd.f32 0.0, %v6281
        %v6283 = vpop.f32.mrf.mxu0
        %v6284 = vadd.f32 0.0, %v6283
        %v6285 = vpop.f32.mrf.mxu0
        %v6286 = vadd.f32 0.0, %v6285
        %v6287 = vpop.f32.mrf.mxu0
        %v6288 = vadd.f32 0.0, %v6287
        %6289 = vmatprep.mubr.bf16.mxu0 %v6239
        %6290 = vmatmul.mubr.bf16.gmra.mxu0 %v6098
        %v6291 = vpop.f32.mrf.mxu0
        %v6292 = vadd.f32 0.0, %v6291
        %v6293 = vpop.f32.mrf.mxu0
        %v6294 = vadd.f32 0.0, %v6293
        %v6295 = vpop.f32.mrf.mxu0
        %v6296 = vadd.f32 0.0, %v6295
        %v6297 = vpop.f32.mrf.mxu0
        %v6298 = vadd.f32 0.0, %v6297
        %6299 = vmatprep.mubr.bf16.mxu0 %v6242
        %6300 = vmatmul.mubr.bf16.gmra.mxu0 %v6106
        %v6301 = vpop.f32.mrf.mxu0
        %v6302 = vadd.f32 0.0, %v6301
        %v6303 = vpop.f32.mrf.mxu0
        %v6304 = vadd.f32 0.0, %v6303
        %v6305 = vpop.f32.mrf.mxu0
        %v6306 = vadd.f32 0.0, %v6305
        %v6307 = vpop.f32.mrf.mxu0
        %v6308 = vadd.f32 0.0, %v6307
        %6309 = vmatprep.mubr.bf16.mxu0 %v6245
        %6310 = vmatmul.mubr.bf16.gmra.mxu0 %v6105
        %v6311 = vpop.f32.mrf.mxu0
        %v6312 = vadd.f32 0.0, %v6311
        %v6313 = vpop.f32.mrf.mxu0
        %v6314 = vadd.f32 0.0, %v6313
        %v6315 = vpop.f32.mrf.mxu0
        %v6316 = vpop.f32.mrf.mxu0
        %6317 = vdwg.mxu0
        %v6318 = vadd.f32 %v6042, %v6282
        %v6319 = vadd.f32 %v6043, %v6284
        %v6320 = vadd.f32 %v6044, %v6286
        %v6321 = vadd.f32 %v6045, %v6288
        %v6322 = vadd.f32 %v6046, %v6292
        %v6323 = vadd.f32 %v6047, %v6294
        %v6324 = vadd.f32 %v6048, %v6296
        %v6325 = vadd.f32 %v6049, %v6298
        %v6326 = vadd.f32 %v6050, %v6302
        %v6327 = vadd.f32 %v6051, %v6304
        %v6328 = vadd.f32 %v6052, %v6306
        %v6329 = vadd.f32 %v6053, %v6308
        %v6330 = vadd.f32 %v6054, %v6312
        %v6331 = vadd.f32 %v6055, %v6314
        %v6332 = vpack.c.bf16 %v4670, %v4666
        %v6333 = vpack.c.bf16 %v4672, %v4668
        %v6334 = vld [vmem:[%s6 + $0x480] sm:$0xff]
        %v6335 = vld [vmem:[%s6 + $0x488] sm:$0xff]
        %v6336 = vld [vmem:[%s6 + $0x490] sm:$0xff]
        %v6337 = vld [vmem:[%s6 + $0x498] sm:$0xff]
        %v6338 = vld [vmem:[%s6 + $0x4a0] sm:$0xff]
        %v6339 = vld [vmem:[%s6 + $0x4a8] sm:$0xff]
        %v6340 = vld [vmem:[%s6 + $0x4b0] sm:$0xff]
        %v6341 = vld [vmem:[%s6 + $0x4b8] sm:$0xff]
        %v6342 = vld [vmem:[%s6 + $0x4c0] sm:$0xff]
        %v6343 = vld [vmem:[%s6 + $0x4c8] sm:$0xff]
        %v6344 = vld [vmem:[%s6 + $0x4d0] sm:$0xff]
        %v6345 = vld [vmem:[%s6 + $0x4d8] sm:$0xff]
        %v6346 = vld [vmem:[%s6 + $0x4e0] sm:$0xff]
        %v6347 = vld [vmem:[%s6 + $0x4e8] sm:$0xff]
        %v6348 = vld [vmem:[%s6 + $0x4f0] sm:$0xff]
        %v6349 = vld [vmem:[%s6 + $0x4f8] sm:$0xff]
        %v6350 = vld [vmem:[%s6 + $0x500] sm:$0xff]
        %v6351 = vld [vmem:[%s6 + $0x508] sm:$0xff]
        %v6352 = vld [vmem:[%s6 + $0x510] sm:$0xff]
        %v6353 = vld [vmem:[%s6 + $0x518] sm:$0xff]
        %v6354 = vld [vmem:[%s6 + $0x520] sm:$0xff]
        %v6355 = vld [vmem:[%s6 + $0x528] sm:$0xff]
        %v6356 = vld [vmem:[%s6 + $0x530] sm:$0xff]
        %v6357 = vld [vmem:[%s6 + $0x538] sm:$0xff]
        %v6360 = vrot.slane %v6332, 1
        %v6361 = vsel %vm2119, %v5249, %v6360
        %v6362 = vrot.slane %v6333, 1
        %v6363 = vsel %vm2119, %v5251, %v6362
        %v6390 = vunpack.c.l.b16 %v6334
        %v6391 = vunpack.c.h.b16 %v6334
        %v6392 = vunpack.c.l.b16 %v6335
        %v6393 = vunpack.c.h.b16 %v6335
        %v6394 = vunpack.c.l.b16 %v6336
        %v6395 = vunpack.c.h.b16 %v6336
        %v6396 = vunpack.c.l.b16 %v6337
        %v6397 = vunpack.c.h.b16 %v6337
        %v6398 = vunpack.c.l.b16 %v6338
        %v6399 = vunpack.c.h.b16 %v6338
        %v6400 = vunpack.c.l.b16 %v6339
        %v6401 = vunpack.c.h.b16 %v6339
        %v6402 = vunpack.c.l.b16 %v6340
        %v6403 = vunpack.c.h.b16 %v6340
        %v6404 = vunpack.c.l.b16 %v6341
        %v6405 = vunpack.c.h.b16 %v6341
        %v6406 = vunpack.c.l.b16 %v6342
        %v6407 = vunpack.c.h.b16 %v6342
        %v6408 = vunpack.c.l.b16 %v6343
        %v6409 = vunpack.c.h.b16 %v6343
        %v6410 = vunpack.c.l.b16 %v6344
        %v6411 = vunpack.c.h.b16 %v6344
        %v6412 = vunpack.c.l.b16 %v6345
        %v6413 = vunpack.c.h.b16 %v6345
        %v6414 = vunpack.c.l.b16 %v6346
        %v6415 = vunpack.c.h.b16 %v6346
        %v6416 = vunpack.c.l.b16 %v6347
        %v6417 = vunpack.c.h.b16 %v6347
        %v6418 = vunpack.c.l.b16 %v6348
        %v6419 = vunpack.c.h.b16 %v6348
        %v6420 = vunpack.c.l.b16 %v6349
        %v6421 = vunpack.c.h.b16 %v6349
        %v6422 = vunpack.c.l.b16 %v6350
        %v6423 = vunpack.c.h.b16 %v6350
        %v6424 = vunpack.c.l.b16 %v6351
        %v6425 = vunpack.c.h.b16 %v6351
        %v6426 = vunpack.c.l.b16 %v6352
        %v6427 = vunpack.c.h.b16 %v6352
        %v6428 = vunpack.c.l.b16 %v6353
        %v6429 = vunpack.c.h.b16 %v6353
        %v6430 = vunpack.c.l.b16 %v6354
        %v6431 = vunpack.c.h.b16 %v6354
        %v6432 = vunpack.c.l.b16 %v6355
        %v6433 = vunpack.c.h.b16 %v6355
        %v6434 = vunpack.c.l.b16 %v6356
        %v6435 = vunpack.c.h.b16 %v6356
        %v6436 = vunpack.c.l.b16 %v6357
        %v6437 = vunpack.c.h.b16 %v6357
        %v6438 = vpack.c.b16 %v6392, %v6390
        %v6439 = vpack.c.b16 %v6393, %v6391
        %v6440 = vpack.c.b16 %v6396, %v6394
        %v6441 = vpack.c.b16 %v6397, %v6395
        %v6442 = vpack.c.b16 %v6400, %v6398
        %v6443 = vpack.c.b16 %v6401, %v6399
        %v6444 = vpack.c.b16 %v6404, %v6402
        %v6445 = vpack.c.b16 %v6405, %v6403
        %v6446 = vpack.c.b16 %v6408, %v6406
        %v6447 = vpack.c.b16 %v6409, %v6407
        %v6448 = vpack.c.b16 %v6412, %v6410
        %v6449 = vpack.c.b16 %v6413, %v6411
        %v6450 = vpack.c.b16 %v6416, %v6414
        %v6451 = vpack.c.b16 %v6417, %v6415
        %v6452 = vpack.c.b16 %v6420, %v6418
        %v6453 = vpack.c.b16 %v6421, %v6419
        %v6454 = vpack.c.b16 %v6424, %v6422
        %v6455 = vpack.c.b16 %v6425, %v6423
        %v6456 = vpack.c.b16 %v6428, %v6426
        %v6457 = vpack.c.b16 %v6429, %v6427
        %v6458 = vpack.c.b16 %v6432, %v6430
        %v6459 = vpack.c.b16 %v6433, %v6431
        %v6460 = vpack.c.b16 %v6436, %v6434
        %v6461 = vpack.c.b16 %v6437, %v6435
        %v6487 = vsel %vm4924, %v6363, 0
        %v6490 = vsel %vm4924, %v6362, 0
        %6492 = vmatprep.subr.bf16.mxu0 %v6453
        %6493 = vmatpush1.bf16.msra.mxu0 %v6452
        %6494 = vmatprep.subr.bf16.mxu0 %v6451
        %6495 = vmatpush1.bf16.msra.mxu0 %v6450
        %6496 = vmatprep.subr.bf16.mxu0 %v6449
        %6497 = vmatpush1.bf16.msra.mxu0 %v6448
        %6498 = vmatprep.subr.bf16.mxu0 %v6447
        %6499 = vmatpush1.bf16.msra.mxu0 %v6446
        %6500 = vmatprep.subr.bf16.mxu0 %v6445
        %6501 = vmatpush1.bf16.msra.mxu0 %v6444
        %6502 = vmatprep.subr.bf16.mxu0 %v6443
        %6503 = vmatpush1.bf16.msra.mxu0 %v6442
        %6504 = vmatprep.subr.bf16.mxu0 %v6441
        %6505 = vmatpush1.bf16.msra.mxu0 %v6440
        %6506 = vmatprep.subr.bf16.mxu0 %v6439
        %6507 = vmatpush1.bf16.msra.mxu0 %v6438
        %6508 = vmatprep.subr.bf16.mxu0 0
        %6509 = vmatpush2.bf16.msra.mxu0 0
        %6510 = vmatprep.subr.bf16.mxu0 0
        %6511 = vmatpush2.bf16.msra.mxu0 0
        %6512 = vmatprep.subr.bf16.mxu0 0
        %6513 = vmatpush2.bf16.msra.mxu0 0
        %6514 = vmatprep.subr.bf16.mxu0 0
        %6515 = vmatpush2.bf16.msra.mxu0 0
        %6516 = vmatprep.subr.bf16.mxu0 %v6461
        %6517 = vmatpush2.bf16.msra.mxu0 %v6460
        %6518 = vmatprep.subr.bf16.mxu0 %v6459
        %6519 = vmatpush2.bf16.msra.mxu0 %v6458
        %6520 = vmatprep.subr.bf16.mxu0 %v6457
        %6521 = vmatpush2.bf16.msra.mxu0 %v6456
        %6522 = vmatprep.subr.bf16.mxu0 %v6455
        %6523 = vmatpush2.bf16.msra.mxu0 %v6454
        %6524 = vmatprep.mubr.bf16.mxu0 %v5381
        %6525 = vmatmul.mubr.bf16.gmra.mxu0 %v5246
        %v6526 = vpop.f32.mrf.mxu0
        %v6527 = vadd.f32 0.0, %v6526
        %v6528 = vpop.f32.mrf.mxu0
        %v6529 = vadd.f32 0.0, %v6528
        %v6530 = vpop.f32.mrf.mxu0
        %v6531 = vadd.f32 0.0, %v6530
        %v6532 = vpop.f32.mrf.mxu0
        %v6533 = vadd.f32 0.0, %v6532
        %6534 = vmatprep.mubr.bf16.mxu0 %v5384
        %6535 = vmatmul.mubr.bf16.gmra.mxu0 %v5250
        %v6536 = vpop.f32.mrf.mxu0
        %v6537 = vadd.f32 0.0, %v6536
        %v6538 = vpop.f32.mrf.mxu0
        %v6539 = vadd.f32 0.0, %v6538
        %v6540 = vpop.f32.mrf.mxu0
        %v6541 = vadd.f32 0.0, %v6540
        %v6542 = vpop.f32.mrf.mxu0
        %v6543 = vadd.f32 0.0, %v6542
        %6544 = vmatprep.mubr.bf16.mxu0 %v6487
        %6545 = vmatmul.mubr.bf16.gmra.mxu0 %v6361
        %v6546 = vpop.f32.mrf.mxu0
        %v6547 = vadd.f32 0.0, %v6546
        %v6548 = vpop.f32.mrf.mxu0
        %v6549 = vadd.f32 0.0, %v6548
        %v6550 = vpop.f32.mrf.mxu0
        %v6551 = vadd.f32 0.0, %v6550
        %v6552 = vpop.f32.mrf.mxu0
        %v6553 = vadd.f32 0.0, %v6552
        %6554 = vmatprep.mubr.bf16.mxu0 %v6490
        %6555 = vmatmul.mubr.bf16.gmra.mxu0 %v6360
        %v6556 = vpop.f32.mrf.mxu0
        %v6557 = vadd.f32 0.0, %v6556
        %v6558 = vpop.f32.mrf.mxu0
        %v6559 = vadd.f32 0.0, %v6558
        %v6560 = vpop.f32.mrf.mxu0
        %v6561 = vpop.f32.mrf.mxu0
        %6562 = vdwg.mxu0
        %v6563 = vadd.f32 %v6318, %v6527
        %v6564 = vadd.f32 %v6319, %v6529
        %v6565 = vadd.f32 %v6320, %v6531
        %v6566 = vadd.f32 %v6321, %v6533
        %v6567 = vadd.f32 %v6322, %v6537
        %v6568 = vadd.f32 %v6323, %v6539
        %v6569 = vadd.f32 %v6324, %v6541
        %v6570 = vadd.f32 %v6325, %v6543
        %v6571 = vadd.f32 %v6326, %v6547
        %v6572 = vadd.f32 %v6327, %v6549
        %v6573 = vadd.f32 %v6328, %v6551
        %v6574 = vadd.f32 %v6329, %v6553
        %v6575 = vadd.f32 %v6330, %v6557
        %v6576 = vadd.f32 %v6331, %v6559
        %v6577 = vld [vmem:[%s6 + $0x540] sm:$0xff]
        %v6578 = vld [vmem:[%s6 + $0x548] sm:$0xff]
        %v6579 = vld [vmem:[%s6 + $0x550] sm:$0xff]
        %v6580 = vld [vmem:[%s6 + $0x558] sm:$0xff]
        %v6581 = vld [vmem:[%s6 + $0x560] sm:$0xff]
        %v6582 = vld [vmem:[%s6 + $0x568] sm:$0xff]
        %v6583 = vld [vmem:[%s6 + $0x570] sm:$0xff]
        %v6584 = vld [vmem:[%s6 + $0x578] sm:$0xff]
        %v6585 = vld [vmem:[%s6 + $0x580] sm:$0xff]
        %v6586 = vld [vmem:[%s6 + $0x588] sm:$0xff]
        %v6587 = vld [vmem:[%s6 + $0x590] sm:$0xff]
        %v6588 = vld [vmem:[%s6 + $0x598] sm:$0xff]
        %v6589 = vld [vmem:[%s6 + $0x5a0] sm:$0xff]
        %v6590 = vld [vmem:[%s6 + $0x5a8] sm:$0xff]
        %v6591 = vld [vmem:[%s6 + $0x5b0] sm:$0xff]
        %v6592 = vld [vmem:[%s6 + $0x5b8] sm:$0xff]
        %v6593 = vld [vmem:[%s6 + $0x5c0] sm:$0xff]
        %v6594 = vld [vmem:[%s6 + $0x5c8] sm:$0xff]
        %v6595 = vld [vmem:[%s6 + $0x5d0] sm:$0xff]
        %v6596 = vld [vmem:[%s6 + $0x5d8] sm:$0xff]
        %v6597 = vld [vmem:[%s6 + $0x5e0] sm:$0xff]
        %v6598 = vld [vmem:[%s6 + $0x5e8] sm:$0xff]
        %v6599 = vld [vmem:[%s6 + $0x5f0] sm:$0xff]
        %v6600 = vld [vmem:[%s6 + $0x5f8] sm:$0xff]
        %v6601 = vrot.slane %v4762, 1
        %v6602 = vrot.slane %v4746, 2
        %v6603 = vor.u32 %v6601, %v6602
        %v6604 = vrot.slane %v4778, 1
        %v6605 = vrot.slane %v4766, 2
        %v6606 = vor.u32 %v6604, %v6605
        %v6607 = vsel %vm6080, %v6603, %v6606
        %v6608 = vrot.slane %v4770, 1
        %v6609 = vrot.slane %v4758, 2
        %v6610 = vor.u32 %v6608, %v6609
        %v6611 = vrot.slane %v4786, 1
        %v6612 = vrot.slane %v4774, 2
        %v6613 = vor.u32 %v6611, %v6612
        %v6614 = vsel %vm6080, %v6610, %v6613
        %v6615 = vrot.slane %v4794, 1
        %v6616 = vrot.slane %v4782, 2
        %v6617 = vor.u32 %v6615, %v6616
        %v6618 = vsel %vm6080, %v6606, %v6617
        %v6619 = vrot.slane %v4797, 1
        %v6620 = vrot.slane %v4790, 2
        %v6621 = vor.u32 %v6619, %v6620
        %v6622 = vsel %vm6080, %v6613, %v6621
        %v6624 = vshrl.u32 %v6332, 16
        %v6626 = vrot.slane %v6624, 1
        %v6627 = vshll.u32 %v6332, 16
        %v6629 = vrot.slane %v6627, 2
        %v6630 = vor.u32 %v6626, %v6629
        %v6631 = vsel %vm6080, %v6617, %v6630
        %v6633 = vshrl.u32 %v6333, 16
        %v6635 = vrot.slane %v6633, 1
        %v6636 = vshll.u32 %v6333, 16
        %v6638 = vrot.slane %v6636, 2
        %v6639 = vor.u32 %v6635, %v6638
        %v6640 = vsel %vm6080, %v6621, %v6639
        %v6669 = vunpack.c.l.b16 %v6577
        %v6670 = vunpack.c.h.b16 %v6577
        %v6671 = vunpack.c.l.b16 %v6578
        %v6672 = vunpack.c.h.b16 %v6578
        %v6673 = vunpack.c.l.b16 %v6579
        %v6674 = vunpack.c.h.b16 %v6579
        %v6675 = vunpack.c.l.b16 %v6580
        %v6676 = vunpack.c.h.b16 %v6580
        %v6677 = vunpack.c.l.b16 %v6581
        %v6678 = vunpack.c.h.b16 %v6581
        %v6679 = vunpack.c.l.b16 %v6582
        %v6680 = vunpack.c.h.b16 %v6582
        %v6681 = vunpack.c.l.b16 %v6583
        %v6682 = vunpack.c.h.b16 %v6583
        %v6683 = vunpack.c.l.b16 %v6584
        %v6684 = vunpack.c.h.b16 %v6584
        %v6685 = vunpack.c.l.b16 %v6585
        %v6686 = vunpack.c.h.b16 %v6585
        %v6687 = vunpack.c.l.b16 %v6586
        %v6688 = vunpack.c.h.b16 %v6586
        %v6689 = vunpack.c.l.b16 %v6587
        %v6690 = vunpack.c.h.b16 %v6587
        %v6691 = vunpack.c.l.b16 %v6588
        %v6692 = vunpack.c.h.b16 %v6588
        %v6693 = vunpack.c.l.b16 %v6589
        %v6694 = vunpack.c.h.b16 %v6589
        %v6695 = vunpack.c.l.b16 %v6590
        %v6696 = vunpack.c.h.b16 %v6590
        %v6697 = vunpack.c.l.b16 %v6591
        %v6698 = vunpack.c.h.b16 %v6591
        %v6699 = vunpack.c.l.b16 %v6592
        %v6700 = vunpack.c.h.b16 %v6592
        %v6701 = vunpack.c.l.b16 %v6593
        %v6702 = vunpack.c.h.b16 %v6593
        %v6703 = vunpack.c.l.b16 %v6594
        %v6704 = vunpack.c.h.b16 %v6594
        %v6705 = vunpack.c.l.b16 %v6595
        %v6706 = vunpack.c.h.b16 %v6595
        %v6707 = vunpack.c.l.b16 %v6596
        %v6708 = vunpack.c.h.b16 %v6596
        %v6709 = vunpack.c.l.b16 %v6597
        %v6710 = vunpack.c.h.b16 %v6597
        %v6711 = vunpack.c.l.b16 %v6598
        %v6712 = vunpack.c.h.b16 %v6598
        %v6713 = vunpack.c.l.b16 %v6599
        %v6714 = vunpack.c.h.b16 %v6599
        %v6715 = vunpack.c.l.b16 %v6600
        %v6716 = vunpack.c.h.b16 %v6600
        %v6717 = vpack.c.b16 %v6671, %v6669
        %v6718 = vpack.c.b16 %v6672, %v6670
        %v6719 = vpack.c.b16 %v6675, %v6673
        %v6720 = vpack.c.b16 %v6676, %v6674
        %v6721 = vpack.c.b16 %v6679, %v6677
        %v6722 = vpack.c.b16 %v6680, %v6678
        %v6723 = vpack.c.b16 %v6683, %v6681
        %v6724 = vpack.c.b16 %v6684, %v6682
        %v6725 = vpack.c.b16 %v6687, %v6685
        %v6726 = vpack.c.b16 %v6688, %v6686
        %v6727 = vpack.c.b16 %v6691, %v6689
        %v6728 = vpack.c.b16 %v6692, %v6690
        %v6729 = vpack.c.b16 %v6695, %v6693
        %v6730 = vpack.c.b16 %v6696, %v6694
        %v6731 = vpack.c.b16 %v6699, %v6697
        %v6732 = vpack.c.b16 %v6700, %v6698
        %v6733 = vpack.c.b16 %v6703, %v6701
        %v6734 = vpack.c.b16 %v6704, %v6702
        %v6735 = vpack.c.b16 %v6707, %v6705
        %v6736 = vpack.c.b16 %v6708, %v6706
        %v6737 = vpack.c.b16 %v6711, %v6709
        %v6738 = vpack.c.b16 %v6712, %v6710
        %v6739 = vpack.c.b16 %v6715, %v6713
        %v6740 = vpack.c.b16 %v6716, %v6714
        %v6766 = vsel %vm4924, %v6614, 0
        %v6769 = vsel %vm4924, %v6622, 0
        %v6772 = vsel %vm4924, %v6640, 0
        %v6775 = vsel %vm4924, %v6639, 0
        %6777 = vmatprep.subr.bf16.mxu0 %v6732
        %6778 = vmatpush1.bf16.msra.mxu0 %v6731
        %6779 = vmatprep.subr.bf16.mxu0 %v6730
        %6780 = vmatpush1.bf16.msra.mxu0 %v6729
        %6781 = vmatprep.subr.bf16.mxu0 %v6728
        %6782 = vmatpush1.bf16.msra.mxu0 %v6727
        %6783 = vmatprep.subr.bf16.mxu0 %v6726
        %6784 = vmatpush1.bf16.msra.mxu0 %v6725
        %6785 = vmatprep.subr.bf16.mxu0 %v6724
        %6786 = vmatpush1.bf16.msra.mxu0 %v6723
        %6787 = vmatprep.subr.bf16.mxu0 %v6722
        %6788 = vmatpush1.bf16.msra.mxu0 %v6721
        %6789 = vmatprep.subr.bf16.mxu0 %v6720
        %6790 = vmatpush1.bf16.msra.mxu0 %v6719
        %6791 = vmatprep.subr.bf16.mxu0 %v6718
        %6792 = vmatpush1.bf16.msra.mxu0 %v6717
        %6793 = vmatprep.subr.bf16.mxu0 0
        %6794 = vmatpush2.bf16.msra.mxu0 0
        %6795 = vmatprep.subr.bf16.mxu0 0
        %6796 = vmatpush2.bf16.msra.mxu0 0
        %6797 = vmatprep.subr.bf16.mxu0 0
        %6798 = vmatpush2.bf16.msra.mxu0 0
        %6799 = vmatprep.subr.bf16.mxu0 0
        %6800 = vmatpush2.bf16.msra.mxu0 0
        %6801 = vmatprep.subr.bf16.mxu0 %v6740
        %6802 = vmatpush2.bf16.msra.mxu0 %v6739
        %6803 = vmatprep.subr.bf16.mxu0 %v6738
        %6804 = vmatpush2.bf16.msra.mxu0 %v6737
        %6805 = vmatprep.subr.bf16.mxu0 %v6736
        %6806 = vmatpush2.bf16.msra.mxu0 %v6735
        %6807 = vmatprep.subr.bf16.mxu0 %v6734
        %6808 = vmatpush2.bf16.msra.mxu0 %v6733
        %6809 = vmatprep.mubr.bf16.mxu0 %v6766
        %6810 = vmatmul.mubr.bf16.gmra.mxu0 %v6607
        %v6811 = vpop.f32.mrf.mxu0
        %v6812 = vadd.f32 0.0, %v6811
        %v6813 = vpop.f32.mrf.mxu0
        %v6814 = vadd.f32 0.0, %v6813
        %v6815 = vpop.f32.mrf.mxu0
        %v6816 = vadd.f32 0.0, %v6815
        %v6817 = vpop.f32.mrf.mxu0
        %v6818 = vadd.f32 0.0, %v6817
        %6819 = vmatprep.mubr.bf16.mxu0 %v6769
        %6820 = vmatmul.mubr.bf16.gmra.mxu0 %v6618
        %v6821 = vpop.f32.mrf.mxu0
        %v6822 = vadd.f32 0.0, %v6821
        %v6823 = vpop.f32.mrf.mxu0
        %v6824 = vadd.f32 0.0, %v6823
        %v6825 = vpop.f32.mrf.mxu0
        %v6826 = vadd.f32 0.0, %v6825
        %v6827 = vpop.f32.mrf.mxu0
        %v6828 = vadd.f32 0.0, %v6827
        %6829 = vmatprep.mubr.bf16.mxu0 %v6772
        %6830 = vmatmul.mubr.bf16.gmra.mxu0 %v6631
        %v6831 = vpop.f32.mrf.mxu0
        %v6832 = vadd.f32 0.0, %v6831
        %v6833 = vpop.f32.mrf.mxu0
        %v6834 = vadd.f32 0.0, %v6833
        %v6835 = vpop.f32.mrf.mxu0
        %v6836 = vadd.f32 0.0, %v6835
        %v6837 = vpop.f32.mrf.mxu0
        %v6838 = vadd.f32 0.0, %v6837
        %6839 = vmatprep.mubr.bf16.mxu0 %v6775
        %6840 = vmatmul.mubr.bf16.gmra.mxu0 %v6630
        %v6841 = vpop.f32.mrf.mxu0
        %v6842 = vadd.f32 0.0, %v6841
        %v6843 = vpop.f32.mrf.mxu0
        %v6844 = vadd.f32 0.0, %v6843
        %v6845 = vpop.f32.mrf.mxu0
        %v6846 = vpop.f32.mrf.mxu0
        %6847 = vdwg.mxu0
        %v6848 = vadd.f32 %v6563, %v6812
        %v6849 = vadd.f32 %v6564, %v6814
        %v6850 = vadd.f32 %v6565, %v6816
        %v6851 = vadd.f32 %v6566, %v6818
        %v6852 = vadd.f32 %v6567, %v6822
        %v6853 = vadd.f32 %v6568, %v6824
        %v6854 = vadd.f32 %v6569, %v6826
        %v6855 = vadd.f32 %v6570, %v6828
        %v6856 = vadd.f32 %v6571, %v6832
        %v6857 = vadd.f32 %v6572, %v6834
        %v6858 = vadd.f32 %v6573, %v6836
        %v6859 = vadd.f32 %v6574, %v6838
        %v6860 = vadd.f32 %v6575, %v6842
        %v6861 = vadd.f32 %v6576, %v6844
        %v6862 = vpack.c.bf16 %v4676, %v4676
        %v6863 = vpack.c.bf16 %v4678, %v4678
        %v6864 = vld [vmem:[%s6 + $0x600] sm:$0xff]
        %v6865 = vld [vmem:[%s6 + $0x608] sm:$0xff]
        %v6866 = vld [vmem:[%s6 + $0x610] sm:$0xff]
        %v6867 = vld [vmem:[%s6 + $0x618] sm:$0xff]
        %v6868 = vld [vmem:[%s6 + $0x620] sm:$0xff]
        %v6869 = vld [vmem:[%s6 + $0x628] sm:$0xff]
        %v6870 = vld [vmem:[%s6 + $0x630] sm:$0xff]
        %v6871 = vld [vmem:[%s6 + $0x638] sm:$0xff]
        %v6872 = vld [vmem:[%s6 + $0x640] sm:$0xff]
        %v6873 = vld [vmem:[%s6 + $0x648] sm:$0xff]
        %v6874 = vld [vmem:[%s6 + $0x650] sm:$0xff]
        %v6875 = vld [vmem:[%s6 + $0x658] sm:$0xff]
        %v6876 = vld [vmem:[%s6 + $0x660] sm:$0xff]
        %v6877 = vld [vmem:[%s6 + $0x668] sm:$0xff]
        %v6878 = vld [vmem:[%s6 + $0x670] sm:$0xff]
        %v6879 = vld [vmem:[%s6 + $0x678] sm:$0xff]
        %v6880 = vld [vmem:[%s6 + $0x680] sm:$0xff]
        %v6881 = vld [vmem:[%s6 + $0x688] sm:$0xff]
        %v6882 = vld [vmem:[%s6 + $0x690] sm:$0xff]
        %v6883 = vld [vmem:[%s6 + $0x698] sm:$0xff]
        %v6884 = vld [vmem:[%s6 + $0x6a0] sm:$0xff]
        %v6885 = vld [vmem:[%s6 + $0x6a8] sm:$0xff]
        %v6886 = vld [vmem:[%s6 + $0x6b0] sm:$0xff]
        %v6887 = vld [vmem:[%s6 + $0x6b8] sm:$0xff]
        %vm6890 = vcmask 1045504
        %v6891 = vrot.slane %v4684, 2
        %v6892 = vrot.slane %v4686, 2
        %v6893 = vsel %vm6890, %v6891, %v6892
        %v6894 = vrot.slane %v4685, 2
        %v6895 = vrot.slane %v4687, 2
        %v6896 = vsel %vm6890, %v6894, %v6895
        %v6897 = vrot.slane %v4688, 2
        %v6898 = vsel %vm6890, %v6892, %v6897
        %v6899 = vrot.slane %v4689, 2
        %v6900 = vsel %vm6890, %v6895, %v6899
        %v6901 = vrot.slane %v6332, 2
        %v6902 = vsel %vm6890, %v6897, %v6901
        %v6903 = vrot.slane %v6333, 2
        %v6904 = vsel %vm6890, %v6899, %v6903
        %v6905 = vrot.slane %v6862, 2
        %v6906 = vsel %vm6890, %v6901, %v6905
        %v6907 = vrot.slane %v6863, 2
        %v6908 = vsel %vm6890, %v6903, %v6907
        %v6937 = vunpack.c.l.b16 %v6864
        %v6938 = vunpack.c.h.b16 %v6864
        %v6939 = vunpack.c.l.b16 %v6865
        %v6940 = vunpack.c.h.b16 %v6865
        %v6941 = vunpack.c.l.b16 %v6866
        %v6942 = vunpack.c.h.b16 %v6866
        %v6943 = vunpack.c.l.b16 %v6867
        %v6944 = vunpack.c.h.b16 %v6867
        %v6945 = vunpack.c.l.b16 %v6868
        %v6946 = vunpack.c.h.b16 %v6868
        %v6947 = vunpack.c.l.b16 %v6869
        %v6948 = vunpack.c.h.b16 %v6869
        %v6949 = vunpack.c.l.b16 %v6870
        %v6950 = vunpack.c.h.b16 %v6870
        %v6951 = vunpack.c.l.b16 %v6871
        %v6952 = vunpack.c.h.b16 %v6871
        %v6953 = vunpack.c.l.b16 %v6872
        %v6954 = vunpack.c.h.b16 %v6872
        %v6955 = vunpack.c.l.b16 %v6873
        %v6956 = vunpack.c.h.b16 %v6873
        %v6957 = vunpack.c.l.b16 %v6874
        %v6958 = vunpack.c.h.b16 %v6874
        %v6959 = vunpack.c.l.b16 %v6875
        %v6960 = vunpack.c.h.b16 %v6875
        %v6961 = vunpack.c.l.b16 %v6876
        %v6962 = vunpack.c.h.b16 %v6876
        %v6963 = vunpack.c.l.b16 %v6877
        %v6964 = vunpack.c.h.b16 %v6877
        %v6965 = vunpack.c.l.b16 %v6878
        %v6966 = vunpack.c.h.b16 %v6878
        %v6967 = vunpack.c.l.b16 %v6879
        %v6968 = vunpack.c.h.b16 %v6879
        %v6969 = vunpack.c.l.b16 %v6880
        %v6970 = vunpack.c.h.b16 %v6880
        %v6971 = vunpack.c.l.b16 %v6881
        %v6972 = vunpack.c.h.b16 %v6881
        %v6973 = vunpack.c.l.b16 %v6882
        %v6974 = vunpack.c.h.b16 %v6882
        %v6975 = vunpack.c.l.b16 %v6883
        %v6976 = vunpack.c.h.b16 %v6883
        %v6977 = vunpack.c.l.b16 %v6884
        %v6978 = vunpack.c.h.b16 %v6884
        %v6979 = vunpack.c.l.b16 %v6885
        %v6980 = vunpack.c.h.b16 %v6885
        %v6981 = vunpack.c.l.b16 %v6886
        %v6982 = vunpack.c.h.b16 %v6886
        %v6983 = vunpack.c.l.b16 %v6887
        %v6984 = vunpack.c.h.b16 %v6887
        %v6985 = vpack.c.b16 %v6939, %v6937
        %v6986 = vpack.c.b16 %v6940, %v6938
        %v6987 = vpack.c.b16 %v6943, %v6941
        %v6988 = vpack.c.b16 %v6944, %v6942
        %v6989 = vpack.c.b16 %v6947, %v6945
        %v6990 = vpack.c.b16 %v6948, %v6946
        %v6991 = vpack.c.b16 %v6951, %v6949
        %v6992 = vpack.c.b16 %v6952, %v6950
        %v6993 = vpack.c.b16 %v6955, %v6953
        %v6994 = vpack.c.b16 %v6956, %v6954
        %v6995 = vpack.c.b16 %v6959, %v6957
        %v6996 = vpack.c.b16 %v6960, %v6958
        %v6997 = vpack.c.b16 %v6963, %v6961
        %v6998 = vpack.c.b16 %v6964, %v6962
        %v6999 = vpack.c.b16 %v6967, %v6965
        %v7000 = vpack.c.b16 %v6968, %v6966
        %v7001 = vpack.c.b16 %v6971, %v6969
        %v7002 = vpack.c.b16 %v6972, %v6970
        %v7003 = vpack.c.b16 %v6975, %v6973
        %v7004 = vpack.c.b16 %v6976, %v6974
        %v7005 = vpack.c.b16 %v6979, %v6977
        %v7006 = vpack.c.b16 %v6980, %v6978
        %v7007 = vpack.c.b16 %v6983, %v6981
        %v7008 = vpack.c.b16 %v6984, %v6982
        %v7034 = vsel %vm4924, %v6896, 0
        %v7037 = vsel %vm4924, %v6900, 0
        %v7040 = vsel %vm4924, %v6904, 0
        %v7043 = vsel %vm4924, %v6908, 0
        %7045 = vmatprep.subr.bf16.mxu0 %v7000
        %7046 = vmatpush1.bf16.msra.mxu0 %v6999
        %7047 = vmatprep.subr.bf16.mxu0 %v6998
        %7048 = vmatpush1.bf16.msra.mxu0 %v6997
        %7049 = vmatprep.subr.bf16.mxu0 %v6996
        %7050 = vmatpush1.bf16.msra.mxu0 %v6995
        %7051 = vmatprep.subr.bf16.mxu0 %v6994
        %7052 = vmatpush1.bf16.msra.mxu0 %v6993
        %7053 = vmatprep.subr.bf16.mxu0 %v6992
        %7054 = vmatpush1.bf16.msra.mxu0 %v6991
        %7055 = vmatprep.subr.bf16.mxu0 %v6990
        %7056 = vmatpush1.bf16.msra.mxu0 %v6989
        %7057 = vmatprep.subr.bf16.mxu0 %v6988
        %7058 = vmatpush1.bf16.msra.mxu0 %v6987
        %7059 = vmatprep.subr.bf16.mxu0 %v6986
        %7060 = vmatpush1.bf16.msra.mxu0 %v6985
        %7061 = vmatprep.subr.bf16.mxu0 0
        %7062 = vmatpush2.bf16.msra.mxu0 0
        %7063 = vmatprep.subr.bf16.mxu0 0
        %7064 = vmatpush2.bf16.msra.mxu0 0
        %7065 = vmatprep.subr.bf16.mxu0 0
        %7066 = vmatpush2.bf16.msra.mxu0 0
        %7067 = vmatprep.subr.bf16.mxu0 0
        %7068 = vmatpush2.bf16.msra.mxu0 0
        %7069 = vmatprep.subr.bf16.mxu0 %v7008
        %7070 = vmatpush2.bf16.msra.mxu0 %v7007
        %7071 = vmatprep.subr.bf16.mxu0 %v7006
        %7072 = vmatpush2.bf16.msra.mxu0 %v7005
        %7073 = vmatprep.subr.bf16.mxu0 %v7004
        %7074 = vmatpush2.bf16.msra.mxu0 %v7003
        %7075 = vmatprep.subr.bf16.mxu0 %v7002
        %7076 = vmatpush2.bf16.msra.mxu0 %v7001
        %7077 = vmatprep.mubr.bf16.mxu0 %v7034
        %7078 = vmatmul.mubr.bf16.gmra.mxu0 %v6893
        %v7079 = vpop.f32.mrf.mxu0
        %v7080 = vadd.f32 0.0, %v7079
        %v7081 = vpop.f32.mrf.mxu0
        %v7082 = vadd.f32 0.0, %v7081
        %v7083 = vpop.f32.mrf.mxu0
        %v7084 = vadd.f32 0.0, %v7083
        %v7085 = vpop.f32.mrf.mxu0
        %v7086 = vadd.f32 0.0, %v7085
        %7087 = vmatprep.mubr.bf16.mxu0 %v7037
        %7088 = vmatmul.mubr.bf16.gmra.mxu0 %v6898
        %v7089 = vpop.f32.mrf.mxu0
        %v7090 = vadd.f32 0.0, %v7089
        %v7091 = vpop.f32.mrf.mxu0
        %v7092 = vadd.f32 0.0, %v7091
        %v7093 = vpop.f32.mrf.mxu0
        %v7094 = vadd.f32 0.0, %v7093
        %v7095 = vpop.f32.mrf.mxu0
        %v7096 = vadd.f32 0.0, %v7095
        %7097 = vmatprep.mubr.bf16.mxu0 %v7040
        %7098 = vmatmul.mubr.bf16.gmra.mxu0 %v6902
        %v7099 = vpop.f32.mrf.mxu0
        %v7100 = vadd.f32 0.0, %v7099
        %v7101 = vpop.f32.mrf.mxu0
        %v7102 = vadd.f32 0.0, %v7101
        %v7103 = vpop.f32.mrf.mxu0
        %v7104 = vadd.f32 0.0, %v7103
        %v7105 = vpop.f32.mrf.mxu0
        %v7106 = vadd.f32 0.0, %v7105
        %7107 = vmatprep.mubr.bf16.mxu0 %v7043
        %7108 = vmatmul.mubr.bf16.gmra.mxu0 %v6906
        %v7109 = vpop.f32.mrf.mxu0
        %v7110 = vadd.f32 0.0, %v7109
        %v7111 = vpop.f32.mrf.mxu0
        %v7112 = vadd.f32 0.0, %v7111
        %v7113 = vpop.f32.mrf.mxu0
        %v7114 = vpop.f32.mrf.mxu0
        %7115 = vdwg.mxu0
        %v7116 = vadd.f32 %v6848, %v7080
        %v7117 = vadd.f32 %v6849, %v7082
        %v7118 = vadd.f32 %v6850, %v7084
        %v7119 = vadd.f32 %v6851, %v7086
        %v7120 = vadd.f32 %v6852, %v7090
        %v7121 = vadd.f32 %v6853, %v7092
        %v7122 = vadd.f32 %v6854, %v7094
        %v7123 = vadd.f32 %v6855, %v7096
        %v7124 = vadd.f32 %v6856, %v7100
        %v7125 = vadd.f32 %v6857, %v7102
        %v7126 = vadd.f32 %v6858, %v7104
        %v7127 = vadd.f32 %v6859, %v7106
        %v7128 = vadd.f32 %v6860, %v7110
        %v7129 = vadd.f32 %v6861, %v7112
        %v7142 = vrot.slane %v7116, 1
        %v7143 = vrot.slane %v7118, 1
        %v7144 = vsel %vm3972, %v7142, %v7143
        %v7145 = vrot.slane %v7117, 1
        %v7146 = vrot.slane %v7119, 1
        %v7147 = vsel %vm3972, %v7145, %v7146
        %v7148 = vrot.slane %v7120, 1
        %v7149 = vsel %vm3972, %v7143, %v7148
        %v7150 = vrot.slane %v7121, 1
        %v7151 = vsel %vm3972, %v7146, %v7150
        %v7152 = vrot.slane %v7122, 1
        %v7153 = vsel %vm3972, %v7148, %v7152
        %v7154 = vrot.slane %v7123, 1
        %v7155 = vsel %vm3972, %v7150, %v7154
        %v7156 = vrot.slane %v7124, 1
        %v7157 = vsel %vm3972, %v7152, %v7156
        %v7158 = vrot.slane %v7125, 1
        %v7159 = vsel %vm3972, %v7154, %v7158
        %v7160 = vrot.slane %v7126, 1
        %v7161 = vsel %vm3972, %v7156, %v7160
        %v7162 = vrot.slane %v7127, 1
        %v7163 = vsel %vm3972, %v7158, %v7162
        %v7176 = vmax.f32 %v7116, %v7144
        %v7177 = vmax.f32 %v7117, %v7147
        %v7178 = vmax.f32 %v7118, %v7149
        %v7179 = vmax.f32 %v7119, %v7151
        %v7180 = vmax.f32 %v7120, %v7153
        %v7181 = vmax.f32 %v7121, %v7155
        %v7182 = vmax.f32 %v7122, %v7157
        %v7183 = vmax.f32 %v7123, %v7159
        %v7184 = vmax.f32 %v7124, %v7161
        %v7185 = vmax.f32 %v7125, %v7163
        %v7186 = vmax.f32 %v7126, %v7160
        %v7187 = vmax.f32 %v7127, %v7162
        %v7190 = vrot.slane %v7128, 1
        %v7191 = vsel %vm3972, %v7160, %v7190
        %v7192 = vrot.slane %v7129, 1
        %v7193 = vsel %vm3972, %v7162, %v7192
        %v7198 = vmax.f32 %v7126, %v7191
        %v7199 = vmax.f32 %v7127, %v7193
        %v7200 = vmax.f32 %v7128, %v7190
        %v7201 = vmax.f32 %v7129, %v7192
        %v7214 = vrot.slane %v7178, 1
        %v7215 = vrot.slane %v7180, 1
        %v7216 = vsel %vm3972, %v7214, %v7215
        %v7217 = vrot.slane %v7179, 1
        %v7218 = vrot.slane %v7181, 1
        %v7219 = vsel %vm3972, %v7217, %v7218
        %v7220 = vrot.slane %v7182, 1
        %v7221 = vsel %vm3972, %v7215, %v7220
        %v7222 = vrot.slane %v7183, 1
        %v7223 = vsel %vm3972, %v7218, %v7222
        %v7224 = vrot.slane %v7184, 1
        %v7225 = vsel %vm3972, %v7220, %v7224
        %v7226 = vrot.slane %v7185, 1
        %v7227 = vsel %vm3972, %v7222, %v7226
        %v7228 = vrot.slane %v7198, 1
        %v7229 = vsel %vm3972, %v7224, %v7228
        %v7230 = vrot.slane %v7199, 1
        %v7231 = vsel %vm3972, %v7226, %v7230
        %v7232 = vrot.slane %v7200, 1
        %v7233 = vsel %vm3972, %v7228, %v7232
        %v7234 = vrot.slane %v7201, 1
        %v7235 = vsel %vm3972, %v7230, %v7234
        %v7248 = vmax.f32 %v7176, %v7216
        %v7249 = vmax.f32 %v7177, %v7219
        %v7250 = vmax.f32 %v7178, %v7221
        %v7251 = vmax.f32 %v7179, %v7223
        %v7252 = vmax.f32 %v7180, %v7225
        %v7253 = vmax.f32 %v7181, %v7227
        %v7254 = vmax.f32 %v7182, %v7229
        %v7255 = vmax.f32 %v7183, %v7231
        %v7256 = vmax.f32 %v7184, %v7233
        %v7257 = vmax.f32 %v7185, %v7235
        %v7258 = vmax.f32 %v7186, %v7232
        %v7259 = vmax.f32 %v7187, %v7234
        %v7260 = vld [vmem:[%s7] sm:$0x3]
        %v7262 = vlaneseq
        %v7263 = vshrl.u32 %v7262, 7
        %v7264 = vsub.s32 0, %v7263
        %v7265 = vrot.slane %v7260, %v7264
        %v7266 = vlaneseq
        %v7267 = vshrl.u32 %v7266, 7
        %v7268 = vsub.s32 1, %v7267
        %v7269 = vrot.slane %v7260, %v7268
        %v7272 = vadd.f32 %v7248, %v7265
        %v7273 = vadd.f32 %v7249, %v7269
        %v7274 = vadd.f32 %v7250, %v7265
        %v7275 = vadd.f32 %v7251, %v7269
        %v7276 = vadd.f32 %v7252, %v7265
        %v7277 = vadd.f32 %v7253, %v7269
        %v7278 = vadd.f32 %v7254, %v7265
        %v7279 = vadd.f32 %v7255, %v7269
        %v7280 = vadd.f32 %v7256, %v7265
        %v7281 = vadd.f32 %v7257, %v7269
        %v7282 = vadd.f32 %v7258, %v7265
        %v7283 = vadd.f32 %v7259, %v7269
        %vm7284 = vcmp.ge.f32.partialorder %v7272, 0.0
        %vm7285 = vcmp.ge.f32.partialorder %v7273, 0.0
        %vm7286 = vcmp.ge.f32.partialorder %v7274, 0.0
        %vm7287 = vcmp.ge.f32.partialorder %v7275, 0.0
        %vm7288 = vcmp.ge.f32.partialorder %v7276, 0.0
        %vm7289 = vcmp.ge.f32.partialorder %v7277, 0.0
        %vm7290 = vcmp.ge.f32.partialorder %v7278, 0.0
        %vm7291 = vcmp.ge.f32.partialorder %v7279, 0.0
        %vm7292 = vcmp.ge.f32.partialorder %v7280, 0.0
        %vm7293 = vcmp.ge.f32.partialorder %v7281, 0.0
        %vm7294 = vcmp.ge.f32.partialorder %v7282, 0.0
        %vm7295 = vcmp.ge.f32.partialorder %v7283, 0.0
        %v7296 = vmul.f32 %v7272, 0.2
        %v7297 = vmul.f32 %v7273, 0.2
        %v7298 = vmul.f32 %v7274, 0.2
        %v7299 = vmul.f32 %v7275, 0.2
        %v7300 = vmul.f32 %v7276, 0.2
        %v7301 = vmul.f32 %v7277, 0.2
        %v7302 = vmul.f32 %v7278, 0.2
        %v7303 = vmul.f32 %v7279, 0.2
        %v7304 = vmul.f32 %v7280, 0.2
        %v7305 = vmul.f32 %v7281, 0.2
        %v7306 = vmul.f32 %v7282, 0.2
        %v7307 = vmul.f32 %v7283, 0.2
        %v7308 = vsel %vm7284, %v7272, %v7296
        %v7309 = vsel %vm7285, %v7273, %v7297
        %v7310 = vsel %vm7286, %v7274, %v7298
        %v7311 = vsel %vm7287, %v7275, %v7299
        %v7312 = vsel %vm7288, %v7276, %v7300
        %v7313 = vsel %vm7289, %v7277, %v7301
        %v7314 = vsel %vm7290, %v7278, %v7302
        %v7315 = vsel %vm7291, %v7279, %v7303
        %v7316 = vsel %vm7292, %v7280, %v7304
        %v7317 = vsel %vm7293, %v7281, %v7305
        %v7318 = vsel %vm7294, %v7282, %v7306
        %v7319 = vsel %vm7295, %v7283, %v7307
        %v7322 = vrot.slane %v7308, 2
        %v7323 = vrot.slane %v7309, 2
        %v7326 = vmax.f32 %v7308, %v7322
        %v7327 = vmax.f32 %v7309, %v7323
        %v7330 = vrot.slane %v7312, 2
        %v7331 = vrot.slane %v7313, 2
        %v7334 = vmax.f32 %v7312, %v7330
        %v7335 = vmax.f32 %v7313, %v7331
        %v7338 = vrot.slane %v7334, 2
        %v7339 = vrot.slane %v7335, 2
        %v7342 = vmax.f32 %v7326, %v7338
        %v7343 = vmax.f32 %v7327, %v7339
        %v7344 = vld [vmem:[%s8] sm:$0xf]
        %v7345 = vld [vmem:[%s8 + $0x4] sm:$0xf]
        %v7346 = vld [vmem:[%s8 + $0x8] sm:$0xf]
        %v7347 = vld [vmem:[%s8 + $0xc] sm:$0xf]
        %v7348 = vpack.c.bf16 %v7310, %v7308
        %v7349 = vpack.c.bf16 %v7311, %v7309
        %v7350 = vpack.c.bf16 %v7314, %v7312
        %v7351 = vpack.c.bf16 %v7315, %v7313
        %v7352 = vpack.c.bf16 %v7318, %v7316
        %v7353 = vpack.c.bf16 %v7319, %v7317
        %v7358 = vunpack.c.l.b16 %v7344
        %v7359 = vunpack.c.l.b16 %v7345
        %v7360 = vunpack.c.l.b16 %v7346
        %v7361 = vunpack.c.l.b16 %v7347
        %v7362 = vpack.c.b16 %v7359, %v7358
        %v7363 = vpack.c.b16 %v7361, %v7360
        %vm7364 = vcmask 334848
        %v7366 = vsel %vm7364, %v7362, 0
        %v7369 = vsel %vm7364, %v7363, 0
        %vm7371 = vcmask 1043456
        %vm7372 = vcmask 1044480
        %v7373 = vsel %vm7371, 4294967295, 65535
        %v7374 = vsel %vm7372, %v7373, 0
        %v7376 = vand.u32 %v7352, %v7374
        %v7379 = vand.u32 %v7353, %v7374
        %7381 = vmatprep.subr.bf16.mxu0 0
        %7382 = vmatpush1.bf16.msra.mxu0 0
        %7383 = vmatprep.subr.bf16.mxu0 0
        %7384 = vmatpush1.bf16.msra.mxu0 0
        %7385 = vmatprep.subr.bf16.mxu0 0
        %7386 = vmatpush1.bf16.msra.mxu0 0
        %7387 = vmatprep.subr.bf16.mxu0 0
        %7388 = vmatpush1.bf16.msra.mxu0 0
        %7389 = vmatprep.subr.bf16.mxu0 0
        %7390 = vmatpush1.bf16.msra.mxu0 0
        %7391 = vmatprep.subr.bf16.mxu0 %v7379
        %7392 = vmatpush1.bf16.msra.mxu0 %v7376
        %7393 = vmatprep.subr.bf16.mxu0 %v7351
        %7394 = vmatpush1.bf16.msra.mxu0 %v7350
        %7395 = vmatprep.subr.bf16.mxu0 %v7349
        %7396 = vmatpush1.bf16.msra.mxu0 %v7348
        %7397 = vmatprep.subr.bf16.mxu0 0
        %7398 = vmatpush2.bf16.msra.mxu0 0
        %7399 = vmatprep.subr.bf16.mxu0 0
        %7400 = vmatpush2.bf16.msra.mxu0 0
        %7401 = vmatprep.subr.bf16.mxu0 0
        %7402 = vmatpush2.bf16.msra.mxu0 0
        %7403 = vmatprep.subr.bf16.mxu0 0
        %7404 = vmatpush2.bf16.msra.mxu0 0
        %7405 = vmatprep.subr.bf16.mxu0 0
        %7406 = vmatpush2.bf16.msra.mxu0 0
        %7407 = vmatprep.subr.bf16.mxu0 0
        %7408 = vmatpush2.bf16.msra.mxu0 0
        %7409 = vmatprep.subr.bf16.mxu0 0
        %7410 = vmatpush2.bf16.msra.mxu0 0
        %7411 = vmatprep.subr.bf16.mxu0 0
        %7412 = vmatpush2.bf16.msra.mxu0 0
        %7413 = vmatprep.mubr.bf16.mxu0 0
        %7414 = vmatmul.mubr.bf16.gmra.mxu0 %v7366
        %v7415 = vpop.f32.mrf.mxu0
        %v7416 = vadd.f32 0.0, %v7415
        %v7417 = vpop.f32.mrf.mxu0
        %v7418 = vadd.f32 0.0, %v7417
        %v7419 = vpop.f32.mrf.mxu0
        %v7420 = vadd.f32 0.0, %v7419
        %v7421 = vpop.f32.mrf.mxu0
        %v7422 = vadd.f32 0.0, %v7421
        %7423 = vmatprep.mubr.bf16.mxu0 0
        %7424 = vmatmul.mubr.bf16.gmra.mxu0 %v7369
        %v7425 = vpop.f32.mrf.mxu0
        %v7426 = vadd.f32 0.0, %v7425
        %v7427 = vpop.f32.mrf.mxu0
        %v7428 = vadd.f32 0.0, %v7427
        %v7429 = vpop.f32.mrf.mxu0
        %v7430 = vadd.f32 0.0, %v7429
        %v7431 = vpop.f32.mrf.mxu0
        %v7432 = vadd.f32 0.0, %v7431
        %7433 = vdwg.mxu0
        %v7434 = vpack.c.bf16 %v7420, %v7416
        %v7435 = vpack.c.bf16 %v7422, %v7418
        %v7436 = vpack.c.bf16 %v7426, %v7426
        %v7437 = vpack.c.bf16 %v7428, %v7428
        %v7438 = vpack.c.bf16 %v7426, %v7420
        %v7439 = vpack.c.bf16 %v7428, %v7422
        %v7440 = vpack.c.bf16 %v7430, %v7430
        %v7441 = vpack.c.bf16 %v7432, %v7432
        %v7443 = vshrl.u32 %v7434, 16
        %v7445 = vshll.u32 %v7434, 16
        %v7447 = vrot.slane %v7445, 1
        %v7448 = vor.u32 %v7443, %v7447
        %v7450 = vshrl.u32 %v7435, 16
        %v7452 = vshll.u32 %v7435, 16
        %v7454 = vrot.slane %v7452, 1
        %v7455 = vor.u32 %v7450, %v7454
        %v7460 = vrot.slane %v7434, 1
        %v7461 = vrot.slane %v7435, 1
        %vm7464 = vsmask.f32 5376
        %v7465 = vrot.slane %v7443, 2
        %v7466 = vrot.slane %v7445, 3
        %v7467 = vor.u32 %v7465, %v7466
        %v7469 = vshrl.u32 %v7436, 16
        %v7471 = vrot.slane %v7469, 2
        %v7472 = vshll.u32 %v7436, 16
        %v7474 = vrot.slane %v7472, 3
        %v7475 = vor.u32 %v7471, %v7474
        %v7476 = vsel %vm7464, %v7467, %v7475
        %v7477 = vrot.slane %v7450, 2
        %v7478 = vrot.slane %v7452, 3
        %v7479 = vor.u32 %v7477, %v7478
        %v7481 = vshrl.u32 %v7437, 16
        %v7483 = vrot.slane %v7481, 2
        %v7484 = vshll.u32 %v7437, 16
        %v7486 = vrot.slane %v7484, 3
        %v7487 = vor.u32 %v7483, %v7486
        %v7488 = vsel %vm7464, %v7479, %v7487
        %vm7493 = vcmask 1044480
        %v7494 = vrot.slane %v7434, 3
        %v7495 = vrot.slane %v7436, 3
        %v7496 = vsel %vm7493, %v7494, %v7495
        %v7497 = vrot.slane %v7435, 3
        %v7498 = vrot.slane %v7437, 3
        %v7499 = vsel %vm7493, %v7497, %v7498
        %vm7502 = vsmask.f32 4352
        %v7503 = vrot.slane %v7443, 3
        %v7504 = vrot.slane %v7445, 4
        %v7505 = vor.u32 %v7503, %v7504
        %v7506 = vrot.slane %v7469, 3
        %v7507 = vrot.slane %v7472, 4
        %v7508 = vor.u32 %v7506, %v7507
        %v7509 = vsel %vm7502, %v7505, %v7508
        %v7510 = vrot.slane %v7450, 3
        %v7511 = vrot.slane %v7452, 4
        %v7512 = vor.u32 %v7510, %v7511
        %v7513 = vrot.slane %v7481, 3
        %v7514 = vrot.slane %v7484, 4
        %v7515 = vor.u32 %v7513, %v7514
        %v7516 = vsel %vm7502, %v7512, %v7515
        %v7521 = vrot.slane %v7438, 1
        %v7522 = vrot.slane %v7439, 1
        %v7526 = vshrl.u32 %v7438, 16
        %v7528 = vrot.slane %v7526, 1
        %v7529 = vshll.u32 %v7438, 16
        %v7531 = vrot.slane %v7529, 2
        %v7532 = vor.u32 %v7528, %v7531
        %v7534 = vshrl.u32 %v7439, 16
        %v7536 = vrot.slane %v7534, 1
        %v7537 = vshll.u32 %v7439, 16
        %v7539 = vrot.slane %v7537, 2
        %v7540 = vor.u32 %v7536, %v7539
        %v7545 = vrot.slane %v7438, 2
        %v7546 = vrot.slane %v7440, 2
        %v7547 = vsel %vm6890, %v7545, %v7546
        %v7548 = vrot.slane %v7439, 2
        %v7549 = vrot.slane %v7441, 2
        %v7550 = vsel %vm6890, %v7548, %v7549
        %v7553 = vld [vmem:[%s9] sm:$0xff]
        %v7554 = vld [vmem:[%s9 + $0x8] sm:$0xff]
        %v7555 = vld [vmem:[%s9 + $0x10] sm:$0xff]
        %v7556 = vld [vmem:[%s9 + $0x18] sm:$0xff]
        %v7557 = vld [vmem:[%s9 + $0x20] sm:$0xff]
        %v7558 = vld [vmem:[%s9 + $0x28] sm:$0xff]
        %v7559 = vld [vmem:[%s9 + $0x30] sm:$0xff]
        %v7560 = vld [vmem:[%s9 + $0x38] sm:$0xff]
        %v7561 = vld [vmem:[%s9 + $0x40] sm:$0xff]
        %v7562 = vld [vmem:[%s9 + $0x48] sm:$0xff]
        %v7563 = vld [vmem:[%s9 + $0x50] sm:$0xff]
        %v7564 = vld [vmem:[%s9 + $0x58] sm:$0xff]
        %v7565 = vld [vmem:[%s9 + $0x60] sm:$0xff]
        %v7566 = vld [vmem:[%s9 + $0x68] sm:$0xff]
        %v7567 = vld [vmem:[%s9 + $0x70] sm:$0xff]
        %v7568 = vld [vmem:[%s9 + $0x78] sm:$0xff]
        %v7569 = vld [vmem:[%s9 + $0x80] sm:$0xff]
        %v7570 = vld [vmem:[%s9 + $0x88] sm:$0xff]
        %v7571 = vld [vmem:[%s9 + $0x90] sm:$0xff]
        %v7572 = vld [vmem:[%s9 + $0x98] sm:$0xff]
        %v7573 = vld [vmem:[%s9 + $0xa0] sm:$0xff]
        %v7574 = vld [vmem:[%s9 + $0xa8] sm:$0xff]
        %v7575 = vld [vmem:[%s9 + $0xb0] sm:$0xff]
        %v7576 = vld [vmem:[%s9 + $0xb8] sm:$0xff]
        %v7577 = vld [vmem:[%s9 + $0xc0] sm:$0xff]
        %v7578 = vld [vmem:[%s9 + $0xc8] sm:$0xff]
        %v7579 = vld [vmem:[%s9 + $0xd0] sm:$0xff]
        %v7580 = vld [vmem:[%s9 + $0xd8] sm:$0xff]
        %v7581 = vld [vmem:[%s9 + $0xe0] sm:$0xff]
        %v7582 = vld [vmem:[%s9 + $0xe8] sm:$0xff]
        %v7583 = vld [vmem:[%s9 + $0xf0] sm:$0xff]
        %v7584 = vld [vmem:[%s9 + $0xf8] sm:$0xff]
        %v7585 = vld [vmem:[%s9 + $0x100] sm:$0xff]
        %v7586 = vld [vmem:[%s9 + $0x108] sm:$0xff]
        %v7587 = vld [vmem:[%s9 + $0x110] sm:$0xff]
        %v7588 = vld [vmem:[%s9 + $0x118] sm:$0xff]
        %v7589 = vld [vmem:[%s9 + $0x120] sm:$0xff]
        %v7590 = vld [vmem:[%s9 + $0x128] sm:$0xff]
        %v7591 = vld [vmem:[%s9 + $0x130] sm:$0xff]
        %v7592 = vld [vmem:[%s9 + $0x138] sm:$0xff]
        %v7593 = vld [vmem:[%s9 + $0x140] sm:$0xff]
        %v7594 = vld [vmem:[%s9 + $0x148] sm:$0xff]
        %v7595 = vld [vmem:[%s9 + $0x150] sm:$0xff]
        %v7596 = vld [vmem:[%s9 + $0x158] sm:$0xff]
        %v7597 = vld [vmem:[%s9 + $0x160] sm:$0xff]
        %v7598 = vld [vmem:[%s9 + $0x168] sm:$0xff]
        %v7599 = vld [vmem:[%s9 + $0x170] sm:$0xff]
        %v7600 = vld [vmem:[%s9 + $0x178] sm:$0xff]
        %v7601 = vld [vmem:[%s9 + $0x180] sm:$0xff]
        %v7602 = vld [vmem:[%s9 + $0x188] sm:$0xff]
        %v7603 = vld [vmem:[%s9 + $0x190] sm:$0xff]
        %v7604 = vld [vmem:[%s9 + $0x198] sm:$0xff]
        %v7605 = vld [vmem:[%s9 + $0x1a0] sm:$0xff]
        %v7606 = vld [vmem:[%s9 + $0x1a8] sm:$0xff]
        %v7607 = vld [vmem:[%s9 + $0x1b0] sm:$0xff]
        %v7608 = vld [vmem:[%s9 + $0x1b8] sm:$0xff]
        %v7609 = vld [vmem:[%s9 + $0x1c0] sm:$0xff]
        %v7610 = vld [vmem:[%s9 + $0x1c8] sm:$0xff]
        %v7611 = vld [vmem:[%s9 + $0x1d0] sm:$0xff]
        %v7612 = vld [vmem:[%s9 + $0x1d8] sm:$0xff]
        %v7613 = vld [vmem:[%s9 + $0x1e0] sm:$0xff]
        %v7614 = vld [vmem:[%s9 + $0x1e8] sm:$0xff]
        %v7615 = vld [vmem:[%s9 + $0x1f0] sm:$0xff]
        %v7616 = vld [vmem:[%s9 + $0x1f8] sm:$0xff]
        %v7617 = vld [vmem:[%s9 + $0x200] sm:$0xff]
        %v7618 = vld [vmem:[%s9 + $0x208] sm:$0xff]
        %v7619 = vld [vmem:[%s9 + $0x210] sm:$0xff]
        %v7620 = vld [vmem:[%s9 + $0x218] sm:$0xff]
        %v7621 = vld [vmem:[%s9 + $0x220] sm:$0xff]
        %v7622 = vld [vmem:[%s9 + $0x228] sm:$0xff]
        %v7623 = vld [vmem:[%s9 + $0x230] sm:$0xff]
        %v7624 = vld [vmem:[%s9 + $0x238] sm:$0xff]
        %v7625 = vld [vmem:[%s9 + $0x240] sm:$0xff]
        %v7626 = vld [vmem:[%s9 + $0x248] sm:$0xff]
        %v7627 = vld [vmem:[%s9 + $0x250] sm:$0xff]
        %v7628 = vld [vmem:[%s9 + $0x258] sm:$0xff]
        %v7629 = vld [vmem:[%s9 + $0x260] sm:$0xff]
        %v7630 = vld [vmem:[%s9 + $0x268] sm:$0xff]
        %v7631 = vld [vmem:[%s9 + $0x270] sm:$0xff]
        %v7632 = vld [vmem:[%s9 + $0x278] sm:$0xff]
        %v7633 = vld [vmem:[%s9 + $0x280] sm:$0xff]
        %v7634 = vld [vmem:[%s9 + $0x288] sm:$0xff]
        %v7635 = vld [vmem:[%s9 + $0x290] sm:$0xff]
        %v7636 = vld [vmem:[%s9 + $0x298] sm:$0xff]
        %v7637 = vld [vmem:[%s9 + $0x2a0] sm:$0xff]
        %v7638 = vld [vmem:[%s9 + $0x2a8] sm:$0xff]
        %v7639 = vld [vmem:[%s9 + $0x2b0] sm:$0xff]
        %v7640 = vld [vmem:[%s9 + $0x2b8] sm:$0xff]
        %v7641 = vld [vmem:[%s9 + $0x2c0] sm:$0xff]
        %v7642 = vld [vmem:[%s9 + $0x2c8] sm:$0xff]
        %v7643 = vld [vmem:[%s9 + $0x2d0] sm:$0xff]
        %v7644 = vld [vmem:[%s9 + $0x2d8] sm:$0xff]
        %v7645 = vld [vmem:[%s9 + $0x2e0] sm:$0xff]
        %v7646 = vld [vmem:[%s9 + $0x2e8] sm:$0xff]
        %v7647 = vld [vmem:[%s9 + $0x2f0] sm:$0xff]
        %v7648 = vld [vmem:[%s9 + $0x2f8] sm:$0xff]
        %v7649 = vld [vmem:[%s9 + $0x300] sm:$0xff]
        %v7650 = vld [vmem:[%s9 + $0x308] sm:$0xff]
        %v7651 = vld [vmem:[%s9 + $0x310] sm:$0xff]
        %v7652 = vld [vmem:[%s9 + $0x318] sm:$0xff]
        %v7653 = vld [vmem:[%s9 + $0x320] sm:$0xff]
        %v7654 = vld [vmem:[%s9 + $0x328] sm:$0xff]
        %v7655 = vld [vmem:[%s9 + $0x330] sm:$0xff]
        %v7656 = vld [vmem:[%s9 + $0x338] sm:$0xff]
        %v7657 = vld [vmem:[%s9 + $0x340] sm:$0xff]
        %v7658 = vld [vmem:[%s9 + $0x348] sm:$0xff]
        %v7659 = vld [vmem:[%s9 + $0x350] sm:$0xff]
        %v7660 = vld [vmem:[%s9 + $0x358] sm:$0xff]
        %v7661 = vld [vmem:[%s9 + $0x360] sm:$0xff]
        %v7662 = vld [vmem:[%s9 + $0x368] sm:$0xff]
        %v7663 = vld [vmem:[%s9 + $0x370] sm:$0xff]
        %v7664 = vld [vmem:[%s9 + $0x378] sm:$0xff]
        %v7665 = vld [vmem:[%s9 + $0x380] sm:$0xff]
        %v7666 = vld [vmem:[%s9 + $0x388] sm:$0xff]
        %v7667 = vld [vmem:[%s9 + $0x390] sm:$0xff]
        %v7668 = vld [vmem:[%s9 + $0x398] sm:$0xff]
        %v7669 = vld [vmem:[%s9 + $0x3a0] sm:$0xff]
        %v7670 = vld [vmem:[%s9 + $0x3a8] sm:$0xff]
        %v7671 = vld [vmem:[%s9 + $0x3b0] sm:$0xff]
        %v7672 = vld [vmem:[%s9 + $0x3b8] sm:$0xff]
        %v7673 = vld [vmem:[%s9 + $0x3c0] sm:$0xff]
        %v7674 = vld [vmem:[%s9 + $0x3c8] sm:$0xff]
        %v7675 = vld [vmem:[%s9 + $0x3d0] sm:$0xff]
        %v7676 = vld [vmem:[%s9 + $0x3d8] sm:$0xff]
        %v7677 = vld [vmem:[%s9 + $0x3e0] sm:$0xff]
        %v7678 = vld [vmem:[%s9 + $0x3e8] sm:$0xff]
        %v7679 = vld [vmem:[%s9 + $0x3f0] sm:$0xff]
        %v7680 = vld [vmem:[%s9 + $0x3f8] sm:$0xff]
        %v7681 = vld [vmem:[%s9 + $0x400] sm:$0xff]
        %v7682 = vld [vmem:[%s9 + $0x408] sm:$0xff]
        %v7683 = vld [vmem:[%s9 + $0x410] sm:$0xff]
        %v7684 = vld [vmem:[%s9 + $0x418] sm:$0xff]
        %v7685 = vld [vmem:[%s9 + $0x420] sm:$0xff]
        %v7686 = vld [vmem:[%s9 + $0x428] sm:$0xff]
        %v7687 = vld [vmem:[%s9 + $0x430] sm:$0xff]
        %v7688 = vld [vmem:[%s9 + $0x438] sm:$0xff]
        %v7689 = vld [vmem:[%s9 + $0x440] sm:$0xff]
        %v7690 = vld [vmem:[%s9 + $0x448] sm:$0xff]
        %v7691 = vld [vmem:[%s9 + $0x450] sm:$0xff]
        %v7692 = vld [vmem:[%s9 + $0x458] sm:$0xff]
        %v7693 = vld [vmem:[%s9 + $0x460] sm:$0xff]
        %v7694 = vld [vmem:[%s9 + $0x468] sm:$0xff]
        %v7695 = vld [vmem:[%s9 + $0x470] sm:$0xff]
        %v7696 = vld [vmem:[%s9 + $0x478] sm:$0xff]
        %v7697 = vld [vmem:[%s9 + $0x480] sm:$0xff]
        %v7698 = vld [vmem:[%s9 + $0x488] sm:$0xff]
        %v7699 = vld [vmem:[%s9 + $0x490] sm:$0xff]
        %v7700 = vld [vmem:[%s9 + $0x498] sm:$0xff]
        %v7701 = vld [vmem:[%s9 + $0x4a0] sm:$0xff]
        %v7702 = vld [vmem:[%s9 + $0x4a8] sm:$0xff]
        %v7703 = vld [vmem:[%s9 + $0x4b0] sm:$0xff]
        %v7704 = vld [vmem:[%s9 + $0x4b8] sm:$0xff]
        %v7705 = vld [vmem:[%s9 + $0x4c0] sm:$0xff]
        %v7706 = vld [vmem:[%s9 + $0x4c8] sm:$0xff]
        %v7707 = vld [vmem:[%s9 + $0x4d0] sm:$0xff]
        %v7708 = vld [vmem:[%s9 + $0x4d8] sm:$0xff]
        %v7709 = vld [vmem:[%s9 + $0x4e0] sm:$0xff]
        %v7710 = vld [vmem:[%s9 + $0x4e8] sm:$0xff]
        %v7711 = vld [vmem:[%s9 + $0x4f0] sm:$0xff]
        %v7712 = vld [vmem:[%s9 + $0x4f8] sm:$0xff]
        %v7713 = vld [vmem:[%s9 + $0x500] sm:$0xff]
        %v7714 = vld [vmem:[%s9 + $0x508] sm:$0xff]
        %v7715 = vld [vmem:[%s9 + $0x510] sm:$0xff]
        %v7716 = vld [vmem:[%s9 + $0x518] sm:$0xff]
        %v7717 = vld [vmem:[%s9 + $0x520] sm:$0xff]
        %v7718 = vld [vmem:[%s9 + $0x528] sm:$0xff]
        %v7719 = vld [vmem:[%s9 + $0x530] sm:$0xff]
        %v7720 = vld [vmem:[%s9 + $0x538] sm:$0xff]
        %v7721 = vld [vmem:[%s9 + $0x540] sm:$0xff]
        %v7722 = vld [vmem:[%s9 + $0x548] sm:$0xff]
        %v7723 = vld [vmem:[%s9 + $0x550] sm:$0xff]
        %v7724 = vld [vmem:[%s9 + $0x558] sm:$0xff]
        %v7725 = vld [vmem:[%s9 + $0x560] sm:$0xff]
        %v7726 = vld [vmem:[%s9 + $0x568] sm:$0xff]
        %v7727 = vld [vmem:[%s9 + $0x570] sm:$0xff]
        %v7728 = vld [vmem:[%s9 + $0x578] sm:$0xff]
        %v7729 = vld [vmem:[%s9 + $0x580] sm:$0xff]
        %v7730 = vld [vmem:[%s9 + $0x588] sm:$0xff]
        %v7731 = vld [vmem:[%s9 + $0x590] sm:$0xff]
        %v7732 = vld [vmem:[%s9 + $0x598] sm:$0xff]
        %v7733 = vld [vmem:[%s9 + $0x5a0] sm:$0xff]
        %v7734 = vld [vmem:[%s9 + $0x5a8] sm:$0xff]
        %v7735 = vld [vmem:[%s9 + $0x5b0] sm:$0xff]
        %v7736 = vld [vmem:[%s9 + $0x5b8] sm:$0xff]
        %v7737 = vld [vmem:[%s9 + $0x5c0] sm:$0xff]
        %v7738 = vld [vmem:[%s9 + $0x5c8] sm:$0xff]
        %v7739 = vld [vmem:[%s9 + $0x5d0] sm:$0xff]
        %v7740 = vld [vmem:[%s9 + $0x5d8] sm:$0xff]
        %v7741 = vld [vmem:[%s9 + $0x5e0] sm:$0xff]
        %v7742 = vld [vmem:[%s9 + $0x5e8] sm:$0xff]
        %v7743 = vld [vmem:[%s9 + $0x5f0] sm:$0xff]
        %v7744 = vld [vmem:[%s9 + $0x5f8] sm:$0xff]
        %v7745 = vld [vmem:[%s9 + $0x600] sm:$0xff]
        %v7746 = vld [vmem:[%s9 + $0x608] sm:$0xff]
        %v7747 = vld [vmem:[%s9 + $0x610] sm:$0xff]
        %v7748 = vld [vmem:[%s9 + $0x618] sm:$0xff]
        %v7749 = vld [vmem:[%s9 + $0x620] sm:$0xff]
        %v7750 = vld [vmem:[%s9 + $0x628] sm:$0xff]
        %v7751 = vld [vmem:[%s9 + $0x630] sm:$0xff]
        %v7752 = vld [vmem:[%s9 + $0x638] sm:$0xff]
        %v7753 = vld [vmem:[%s9 + $0x640] sm:$0xff]
        %v7754 = vld [vmem:[%s9 + $0x648] sm:$0xff]
        %v7755 = vld [vmem:[%s9 + $0x650] sm:$0xff]
        %v7756 = vld [vmem:[%s9 + $0x658] sm:$0xff]
        %v7757 = vld [vmem:[%s9 + $0x660] sm:$0xff]
        %v7758 = vld [vmem:[%s9 + $0x668] sm:$0xff]
        %v7759 = vld [vmem:[%s9 + $0x670] sm:$0xff]
        %v7760 = vld [vmem:[%s9 + $0x678] sm:$0xff]
        %v7761 = vld [vmem:[%s9 + $0x680] sm:$0xff]
        %v7762 = vld [vmem:[%s9 + $0x688] sm:$0xff]
        %v7763 = vld [vmem:[%s9 + $0x690] sm:$0xff]
        %v7764 = vld [vmem:[%s9 + $0x698] sm:$0xff]
        %v7765 = vld [vmem:[%s9 + $0x6a0] sm:$0xff]
        %v7766 = vld [vmem:[%s9 + $0x6a8] sm:$0xff]
        %v7767 = vld [vmem:[%s9 + $0x6b0] sm:$0xff]
        %v7768 = vld [vmem:[%s9 + $0x6b8] sm:$0xff]
        %v7769 = vld [vmem:[%s9 + $0x6c0] sm:$0xff]
        %v7770 = vld [vmem:[%s9 + $0x6c8] sm:$0xff]
        %v7771 = vld [vmem:[%s9 + $0x6d0] sm:$0xff]
        %v7772 = vld [vmem:[%s9 + $0x6d8] sm:$0xff]
        %v7773 = vld [vmem:[%s9 + $0x6e0] sm:$0xff]
        %v7774 = vld [vmem:[%s9 + $0x6e8] sm:$0xff]
        %v7775 = vld [vmem:[%s9 + $0x6f0] sm:$0xff]
        %v7776 = vld [vmem:[%s9 + $0x6f8] sm:$0xff]
        %v7777 = vld [vmem:[%s9 + $0x700] sm:$0xff]
        %v7778 = vld [vmem:[%s9 + $0x708] sm:$0xff]
        %v7779 = vld [vmem:[%s9 + $0x710] sm:$0xff]
        %v7780 = vld [vmem:[%s9 + $0x718] sm:$0xff]
        %v7781 = vld [vmem:[%s9 + $0x720] sm:$0xff]
        %v7782 = vld [vmem:[%s9 + $0x728] sm:$0xff]
        %v7783 = vld [vmem:[%s9 + $0x730] sm:$0xff]
        %v7784 = vld [vmem:[%s9 + $0x738] sm:$0xff]
        %v7785 = vld [vmem:[%s9 + $0x740] sm:$0xff]
        %v7786 = vld [vmem:[%s9 + $0x748] sm:$0xff]
        %v7787 = vld [vmem:[%s9 + $0x750] sm:$0xff]
        %v7788 = vld [vmem:[%s9 + $0x758] sm:$0xff]
        %v7789 = vld [vmem:[%s9 + $0x760] sm:$0xff]
        %v7790 = vld [vmem:[%s9 + $0x768] sm:$0xff]
        %v7791 = vld [vmem:[%s9 + $0x770] sm:$0xff]
        %v7792 = vld [vmem:[%s9 + $0x778] sm:$0xff]
        %v7793 = vld [vmem:[%s9 + $0x780] sm:$0xff]
        %v7794 = vld [vmem:[%s9 + $0x788] sm:$0xff]
        %v7795 = vld [vmem:[%s9 + $0x790] sm:$0xff]
        %v7796 = vld [vmem:[%s9 + $0x798] sm:$0xff]
        %v7797 = vld [vmem:[%s9 + $0x7a0] sm:$0xff]
        %v7798 = vld [vmem:[%s9 + $0x7a8] sm:$0xff]
        %v7799 = vld [vmem:[%s9 + $0x7b0] sm:$0xff]
        %v7800 = vld [vmem:[%s9 + $0x7b8] sm:$0xff]
        %v7801 = vld [vmem:[%s9 + $0x7c0] sm:$0xff]
        %v7802 = vld [vmem:[%s9 + $0x7c8] sm:$0xff]
        %v7803 = vld [vmem:[%s9 + $0x7d0] sm:$0xff]
        %v7804 = vld [vmem:[%s9 + $0x7d8] sm:$0xff]
        %v7805 = vld [vmem:[%s9 + $0x7e0] sm:$0xff]
        %v7806 = vld [vmem:[%s9 + $0x7e8] sm:$0xff]
        %v7807 = vld [vmem:[%s9 + $0x7f0] sm:$0xff]
        %v7808 = vld [vmem:[%s9 + $0x7f8] sm:$0xff]
        %v7809 = vld [vmem:[%s9 + $0x800] sm:$0xff]
        %v7810 = vld [vmem:[%s9 + $0x808] sm:$0xff]
        %v7811 = vld [vmem:[%s9 + $0x810] sm:$0xff]
        %v7812 = vld [vmem:[%s9 + $0x818] sm:$0xff]
        %v7813 = vld [vmem:[%s9 + $0x820] sm:$0xff]
        %v7814 = vld [vmem:[%s9 + $0x828] sm:$0xff]
        %v7815 = vld [vmem:[%s9 + $0x830] sm:$0xff]
        %v7816 = vld [vmem:[%s9 + $0x838] sm:$0xff]
        %v7817 = vld [vmem:[%s9 + $0x840] sm:$0xff]
        %v7818 = vld [vmem:[%s9 + $0x848] sm:$0xff]
        %v7819 = vld [vmem:[%s9 + $0x850] sm:$0xff]
        %v7820 = vld [vmem:[%s9 + $0x858] sm:$0xff]
        %v7821 = vld [vmem:[%s9 + $0x860] sm:$0xff]
        %v7822 = vld [vmem:[%s9 + $0x868] sm:$0xff]
        %v7823 = vld [vmem:[%s9 + $0x870] sm:$0xff]
        %v7824 = vld [vmem:[%s9 + $0x878] sm:$0xff]
        %v7825 = vld [vmem:[%s9 + $0x880] sm:$0xff]
        %v7826 = vld [vmem:[%s9 + $0x888] sm:$0xff]
        %v7827 = vld [vmem:[%s9 + $0x890] sm:$0xff]
        %v7828 = vld [vmem:[%s9 + $0x898] sm:$0xff]
        %v7829 = vld [vmem:[%s9 + $0x8a0] sm:$0xff]
        %v7830 = vld [vmem:[%s9 + $0x8a8] sm:$0xff]
        %v7831 = vld [vmem:[%s9 + $0x8b0] sm:$0xff]
        %v7832 = vld [vmem:[%s9 + $0x8b8] sm:$0xff]
        %v7833 = vld [vmem:[%s9 + $0x8c0] sm:$0xff]
        %v7834 = vld [vmem:[%s9 + $0x8c8] sm:$0xff]
        %v7835 = vld [vmem:[%s9 + $0x8d0] sm:$0xff]
        %v7836 = vld [vmem:[%s9 + $0x8d8] sm:$0xff]
        %v7837 = vld [vmem:[%s9 + $0x8e0] sm:$0xff]
        %v7838 = vld [vmem:[%s9 + $0x8e8] sm:$0xff]
        %v7839 = vld [vmem:[%s9 + $0x8f0] sm:$0xff]
        %v7840 = vld [vmem:[%s9 + $0x8f8] sm:$0xff]
        %v7841 = vld [vmem:[%s9 + $0x900] sm:$0xff]
        %v7842 = vld [vmem:[%s9 + $0x908] sm:$0xff]
        %v7843 = vld [vmem:[%s9 + $0x910] sm:$0xff]
        %v7844 = vld [vmem:[%s9 + $0x918] sm:$0xff]
        %v7845 = vld [vmem:[%s9 + $0x920] sm:$0xff]
        %v7846 = vld [vmem:[%s9 + $0x928] sm:$0xff]
        %v7847 = vld [vmem:[%s9 + $0x930] sm:$0xff]
        %v7848 = vld [vmem:[%s9 + $0x938] sm:$0xff]
        %v7849 = vld [vmem:[%s9 + $0x940] sm:$0xff]
        %v7850 = vld [vmem:[%s9 + $0x948] sm:$0xff]
        %v7851 = vld [vmem:[%s9 + $0x950] sm:$0xff]
        %v7852 = vld [vmem:[%s9 + $0x958] sm:$0xff]
        %v7853 = vld [vmem:[%s9 + $0x960] sm:$0xff]
        %v7854 = vld [vmem:[%s9 + $0x968] sm:$0xff]
        %v7855 = vld [vmem:[%s9 + $0x970] sm:$0xff]
        %v7856 = vld [vmem:[%s9 + $0x978] sm:$0xff]
        %v7857 = vld [vmem:[%s9 + $0x980] sm:$0xff]
        %v7858 = vld [vmem:[%s9 + $0x988] sm:$0xff]
        %v7859 = vld [vmem:[%s9 + $0x990] sm:$0xff]
        %v7860 = vld [vmem:[%s9 + $0x998] sm:$0xff]
        %v7861 = vld [vmem:[%s9 + $0x9a0] sm:$0xff]
        %v7862 = vld [vmem:[%s9 + $0x9a8] sm:$0xff]
        %v7863 = vld [vmem:[%s9 + $0x9b0] sm:$0xff]
        %v7864 = vld [vmem:[%s9 + $0x9b8] sm:$0xff]
        %v7865 = vld [vmem:[%s9 + $0x9c0] sm:$0xff]
        %v7866 = vld [vmem:[%s9 + $0x9c8] sm:$0xff]
        %v7867 = vld [vmem:[%s9 + $0x9d0] sm:$0xff]
        %v7868 = vld [vmem:[%s9 + $0x9d8] sm:$0xff]
        %v7869 = vld [vmem:[%s9 + $0x9e0] sm:$0xff]
        %v7870 = vld [vmem:[%s9 + $0x9e8] sm:$0xff]
        %v7871 = vld [vmem:[%s9 + $0x9f0] sm:$0xff]
        %v7872 = vld [vmem:[%s9 + $0x9f8] sm:$0xff]
        %v7873 = vld [vmem:[%s9 + $0xa00] sm:$0xff]
        %v7874 = vld [vmem:[%s9 + $0xa08] sm:$0xff]
        %v7875 = vld [vmem:[%s9 + $0xa10] sm:$0xff]
        %v7876 = vld [vmem:[%s9 + $0xa18] sm:$0xff]
        %v7877 = vld [vmem:[%s9 + $0xa20] sm:$0xff]
        %v7878 = vld [vmem:[%s9 + $0xa28] sm:$0xff]
        %v7879 = vld [vmem:[%s9 + $0xa30] sm:$0xff]
        %v7880 = vld [vmem:[%s9 + $0xa38] sm:$0xff]
        %v7881 = vld [vmem:[%s9 + $0xa40] sm:$0xff]
        %v7882 = vld [vmem:[%s9 + $0xa48] sm:$0xff]
        %v7883 = vld [vmem:[%s9 + $0xa50] sm:$0xff]
        %v7884 = vld [vmem:[%s9 + $0xa58] sm:$0xff]
        %v7885 = vld [vmem:[%s9 + $0xa60] sm:$0xff]
        %v7886 = vld [vmem:[%s9 + $0xa68] sm:$0xff]
        %v7887 = vld [vmem:[%s9 + $0xa70] sm:$0xff]
        %v7888 = vld [vmem:[%s9 + $0xa78] sm:$0xff]
        %v7889 = vld [vmem:[%s9 + $0xa80] sm:$0xff]
        %v7890 = vld [vmem:[%s9 + $0xa88] sm:$0xff]
        %v7891 = vld [vmem:[%s9 + $0xa90] sm:$0xff]
        %v7892 = vld [vmem:[%s9 + $0xa98] sm:$0xff]
        %v7893 = vld [vmem:[%s9 + $0xaa0] sm:$0xff]
        %v7894 = vld [vmem:[%s9 + $0xaa8] sm:$0xff]
        %v7895 = vld [vmem:[%s9 + $0xab0] sm:$0xff]
        %v7896 = vld [vmem:[%s9 + $0xab8] sm:$0xff]
        %v7897 = vld [vmem:[%s9 + $0xac0] sm:$0xff]
        %v7898 = vld [vmem:[%s9 + $0xac8] sm:$0xff]
        %v7899 = vld [vmem:[%s9 + $0xad0] sm:$0xff]
        %v7900 = vld [vmem:[%s9 + $0xad8] sm:$0xff]
        %v7901 = vld [vmem:[%s9 + $0xae0] sm:$0xff]
        %v7902 = vld [vmem:[%s9 + $0xae8] sm:$0xff]
        %v7903 = vld [vmem:[%s9 + $0xaf0] sm:$0xff]
        %v7904 = vld [vmem:[%s9 + $0xaf8] sm:$0xff]
        %v7905 = vld [vmem:[%s9 + $0xb00] sm:$0xff]
        %v7906 = vld [vmem:[%s9 + $0xb08] sm:$0xff]
        %v7907 = vld [vmem:[%s9 + $0xb10] sm:$0xff]
        %v7908 = vld [vmem:[%s9 + $0xb18] sm:$0xff]
        %v7909 = vld [vmem:[%s9 + $0xb20] sm:$0xff]
        %v7910 = vld [vmem:[%s9 + $0xb28] sm:$0xff]
        %v7911 = vld [vmem:[%s9 + $0xb30] sm:$0xff]
        %v7912 = vld [vmem:[%s9 + $0xb38] sm:$0xff]
        %v7913 = vld [vmem:[%s9 + $0xb40] sm:$0xff]
        %v7914 = vld [vmem:[%s9 + $0xb48] sm:$0xff]
        %v7915 = vld [vmem:[%s9 + $0xb50] sm:$0xff]
        %v7916 = vld [vmem:[%s9 + $0xb58] sm:$0xff]
        %v7917 = vld [vmem:[%s9 + $0xb60] sm:$0xff]
        %v7918 = vld [vmem:[%s9 + $0xb68] sm:$0xff]
        %v7919 = vld [vmem:[%s9 + $0xb70] sm:$0xff]
        %v7920 = vld [vmem:[%s9 + $0xb78] sm:$0xff]
        %v7921 = vld [vmem:[%s9 + $0xb80] sm:$0xff]
        %v7922 = vld [vmem:[%s9 + $0xb88] sm:$0xff]
        %v7923 = vld [vmem:[%s9 + $0xb90] sm:$0xff]
        %v7924 = vld [vmem:[%s9 + $0xb98] sm:$0xff]
        %v7925 = vld [vmem:[%s9 + $0xba0] sm:$0xff]
        %v7926 = vld [vmem:[%s9 + $0xba8] sm:$0xff]
        %v7927 = vld [vmem:[%s9 + $0xbb0] sm:$0xff]
        %v7928 = vld [vmem:[%s9 + $0xbb8] sm:$0xff]
        %v7929 = vld [vmem:[%s9 + $0xbc0] sm:$0xff]
        %v7930 = vld [vmem:[%s9 + $0xbc8] sm:$0xff]
        %v7931 = vld [vmem:[%s9 + $0xbd0] sm:$0xff]
        %v7932 = vld [vmem:[%s9 + $0xbd8] sm:$0xff]
        %v7933 = vld [vmem:[%s9 + $0xbe0] sm:$0xff]
        %v7934 = vld [vmem:[%s9 + $0xbe8] sm:$0xff]
        %v7935 = vld [vmem:[%s9 + $0xbf0] sm:$0xff]
        %v7936 = vld [vmem:[%s9 + $0xbf8] sm:$0xff]
        %v7937 = vld [vmem:[%s9 + $0xc00] sm:$0xff]
        %v7938 = vld [vmem:[%s9 + $0xc08] sm:$0xff]
        %v7939 = vld [vmem:[%s9 + $0xc10] sm:$0xff]
        %v7940 = vld [vmem:[%s9 + $0xc18] sm:$0xff]
        %v7941 = vld [vmem:[%s9 + $0xc20] sm:$0xff]
        %v7942 = vld [vmem:[%s9 + $0xc28] sm:$0xff]
        %v7943 = vld [vmem:[%s9 + $0xc30] sm:$0xff]
        %v7944 = vld [vmem:[%s9 + $0xc38] sm:$0xff]
        %v7945 = vld [vmem:[%s9 + $0xc40] sm:$0xff]
        %v7946 = vld [vmem:[%s9 + $0xc48] sm:$0xff]
        %v7947 = vld [vmem:[%s9 + $0xc50] sm:$0xff]
        %v7948 = vld [vmem:[%s9 + $0xc58] sm:$0xff]
        %v7949 = vld [vmem:[%s9 + $0xc60] sm:$0xff]
        %v7950 = vld [vmem:[%s9 + $0xc68] sm:$0xff]
        %v7951 = vld [vmem:[%s9 + $0xc70] sm:$0xff]
        %v7952 = vld [vmem:[%s9 + $0xc78] sm:$0xff]
        %v7953 = vld [vmem:[%s9 + $0xc80] sm:$0xff]
        %v7954 = vld [vmem:[%s9 + $0xc88] sm:$0xff]
        %v7955 = vld [vmem:[%s9 + $0xc90] sm:$0xff]
        %v7956 = vld [vmem:[%s9 + $0xc98] sm:$0xff]
        %v7957 = vld [vmem:[%s9 + $0xca0] sm:$0xff]
        %v7958 = vld [vmem:[%s9 + $0xca8] sm:$0xff]
        %v7959 = vld [vmem:[%s9 + $0xcb0] sm:$0xff]
        %v7960 = vld [vmem:[%s9 + $0xcb8] sm:$0xff]
        %v7961 = vld [vmem:[%s9 + $0xcc0] sm:$0xff]
        %v7962 = vld [vmem:[%s9 + $0xcc8] sm:$0xff]
        %v7963 = vld [vmem:[%s9 + $0xcd0] sm:$0xff]
        %v7964 = vld [vmem:[%s9 + $0xcd8] sm:$0xff]
        %v7965 = vld [vmem:[%s9 + $0xce0] sm:$0xff]
        %v7966 = vld [vmem:[%s9 + $0xce8] sm:$0xff]
        %v7967 = vld [vmem:[%s9 + $0xcf0] sm:$0xff]
        %v7968 = vld [vmem:[%s9 + $0xcf8] sm:$0xff]
        %v7969 = vld [vmem:[%s9 + $0xd00] sm:$0xff]
        %v7970 = vld [vmem:[%s9 + $0xd08] sm:$0xff]
        %v7971 = vld [vmem:[%s9 + $0xd10] sm:$0xff]
        %v7972 = vld [vmem:[%s9 + $0xd18] sm:$0xff]
        %v7973 = vld [vmem:[%s9 + $0xd20] sm:$0xff]
        %v7974 = vld [vmem:[%s9 + $0xd28] sm:$0xff]
        %v7975 = vld [vmem:[%s9 + $0xd30] sm:$0xff]
        %v7976 = vld [vmem:[%s9 + $0xd38] sm:$0xff]
        %v7977 = vld [vmem:[%s9 + $0xd40] sm:$0xff]
        %v7978 = vld [vmem:[%s9 + $0xd48] sm:$0xff]
        %v7979 = vld [vmem:[%s9 + $0xd50] sm:$0xff]
        %v7980 = vld [vmem:[%s9 + $0xd58] sm:$0xff]
        %v7981 = vld [vmem:[%s9 + $0xd60] sm:$0xff]
        %v7982 = vld [vmem:[%s9 + $0xd68] sm:$0xff]
        %v7983 = vld [vmem:[%s9 + $0xd70] sm:$0xff]
        %v7984 = vld [vmem:[%s9 + $0xd78] sm:$0xff]
        %v7985 = vld [vmem:[%s9 + $0xd80] sm:$0xff]
        %v7986 = vld [vmem:[%s9 + $0xd88] sm:$0xff]
        %v7987 = vld [vmem:[%s9 + $0xd90] sm:$0xff]
        %v7988 = vld [vmem:[%s9 + $0xd98] sm:$0xff]
        %v7989 = vld [vmem:[%s9 + $0xda0] sm:$0xff]
        %v7990 = vld [vmem:[%s9 + $0xda8] sm:$0xff]
        %v7991 = vld [vmem:[%s9 + $0xdb0] sm:$0xff]
        %v7992 = vld [vmem:[%s9 + $0xdb8] sm:$0xff]
        %v7993 = vld [vmem:[%s9 + $0xdc0] sm:$0xff]
        %v7994 = vld [vmem:[%s9 + $0xdc8] sm:$0xff]
        %v7995 = vld [vmem:[%s9 + $0xdd0] sm:$0xff]
        %v7996 = vld [vmem:[%s9 + $0xdd8] sm:$0xff]
        %v7997 = vld [vmem:[%s9 + $0xde0] sm:$0xff]
        %v7998 = vld [vmem:[%s9 + $0xde8] sm:$0xff]
        %v7999 = vld [vmem:[%s9 + $0xdf0] sm:$0xff]
        %v8000 = vld [vmem:[%s9 + $0xdf8] sm:$0xff]
        %v8001 = vld [vmem:[%s9 + $0xe00] sm:$0xff]
        %v8002 = vld [vmem:[%s9 + $0xe08] sm:$0xff]
        %v8003 = vld [vmem:[%s9 + $0xe10] sm:$0xff]
        %v8004 = vld [vmem:[%s9 + $0xe18] sm:$0xff]
        %v8005 = vld [vmem:[%s9 + $0xe20] sm:$0xff]
        %v8006 = vld [vmem:[%s9 + $0xe28] sm:$0xff]
        %v8007 = vld [vmem:[%s9 + $0xe30] sm:$0xff]
        %v8008 = vld [vmem:[%s9 + $0xe38] sm:$0xff]
        %v8009 = vld [vmem:[%s9 + $0xe40] sm:$0xff]
        %v8010 = vld [vmem:[%s9 + $0xe48] sm:$0xff]
        %v8011 = vld [vmem:[%s9 + $0xe50] sm:$0xff]
        %v8012 = vld [vmem:[%s9 + $0xe58] sm:$0xff]
        %v8013 = vld [vmem:[%s9 + $0xe60] sm:$0xff]
        %v8014 = vld [vmem:[%s9 + $0xe68] sm:$0xff]
        %v8015 = vld [vmem:[%s9 + $0xe70] sm:$0xff]
        %v8016 = vld [vmem:[%s9 + $0xe78] sm:$0xff]
        %v8017 = vld [vmem:[%s9 + $0xe80] sm:$0xff]
        %v8018 = vld [vmem:[%s9 + $0xe88] sm:$0xff]
        %v8019 = vld [vmem:[%s9 + $0xe90] sm:$0xff]
        %v8020 = vld [vmem:[%s9 + $0xe98] sm:$0xff]
        %v8021 = vld [vmem:[%s9 + $0xea0] sm:$0xff]
        %v8022 = vld [vmem:[%s9 + $0xea8] sm:$0xff]
        %v8023 = vld [vmem:[%s9 + $0xeb0] sm:$0xff]
        %v8024 = vld [vmem:[%s9 + $0xeb8] sm:$0xff]
        %v8025 = vld [vmem:[%s9 + $0xec0] sm:$0xff]
        %v8026 = vld [vmem:[%s9 + $0xec8] sm:$0xff]
        %v8027 = vld [vmem:[%s9 + $0xed0] sm:$0xff]
        %v8028 = vld [vmem:[%s9 + $0xed8] sm:$0xff]
        %v8029 = vld [vmem:[%s9 + $0xee0] sm:$0xff]
        %v8030 = vld [vmem:[%s9 + $0xee8] sm:$0xff]
        %v8031 = vld [vmem:[%s9 + $0xef0] sm:$0xff]
        %v8032 = vld [vmem:[%s9 + $0xef8] sm:$0xff]
        %v8033 = vld [vmem:[%s9 + $0xf00] sm:$0xff]
        %v8034 = vld [vmem:[%s9 + $0xf08] sm:$0xff]
        %v8035 = vld [vmem:[%s9 + $0xf10] sm:$0xff]
        %v8036 = vld [vmem:[%s9 + $0xf18] sm:$0xff]
        %v8037 = vld [vmem:[%s9 + $0xf20] sm:$0xff]
        %v8038 = vld [vmem:[%s9 + $0xf28] sm:$0xff]
        %v8039 = vld [vmem:[%s9 + $0xf30] sm:$0xff]
        %v8040 = vld [vmem:[%s9 + $0xf38] sm:$0xff]
        %v8041 = vld [vmem:[%s9 + $0xf40] sm:$0xff]
        %v8042 = vld [vmem:[%s9 + $0xf48] sm:$0xff]
        %v8043 = vld [vmem:[%s9 + $0xf50] sm:$0xff]
        %v8044 = vld [vmem:[%s9 + $0xf58] sm:$0xff]
        %v8045 = vld [vmem:[%s9 + $0xf60] sm:$0xff]
        %v8046 = vld [vmem:[%s9 + $0xf68] sm:$0xff]
        %v8047 = vld [vmem:[%s9 + $0xf70] sm:$0xff]
        %v8048 = vld [vmem:[%s9 + $0xf78] sm:$0xff]
        %v8049 = vld [vmem:[%s9 + $0xf80] sm:$0xff]
        %v8050 = vld [vmem:[%s9 + $0xf88] sm:$0xff]
        %v8051 = vld [vmem:[%s9 + $0xf90] sm:$0xff]
        %v8052 = vld [vmem:[%s9 + $0xf98] sm:$0xff]
        %v8053 = vld [vmem:[%s9 + $0xfa0] sm:$0xff]
        %v8054 = vld [vmem:[%s9 + $0xfa8] sm:$0xff]
        %v8055 = vld [vmem:[%s9 + $0xfb0] sm:$0xff]
        %v8056 = vld [vmem:[%s9 + $0xfb8] sm:$0xff]
        %v8057 = vld [vmem:[%s9 + $0xfc0] sm:$0xff]
        %v8058 = vld [vmem:[%s9 + $0xfc8] sm:$0xff]
        %v8059 = vld [vmem:[%s9 + $0xfd0] sm:$0xff]
        %v8060 = vld [vmem:[%s9 + $0xfd8] sm:$0xff]
        %v8061 = vld [vmem:[%s9 + $0xfe0] sm:$0xff]
        %v8062 = vld [vmem:[%s9 + $0xfe8] sm:$0xff]
        %v8063 = vld [vmem:[%s9 + $0xff0] sm:$0xff]
        %v8064 = vld [vmem:[%s9 + $0xff8] sm:$0xff]
        %v8065 = vld [vmem:[%s9 + $0x1000] sm:$0xff]
        %v8066 = vld [vmem:[%s9 + $0x1008] sm:$0xff]
        %v8067 = vld [vmem:[%s9 + $0x1010] sm:$0xff]
        %v8068 = vld [vmem:[%s9 + $0x1018] sm:$0xff]
        %v8069 = vld [vmem:[%s9 + $0x1020] sm:$0xff]
        %v8070 = vld [vmem:[%s9 + $0x1028] sm:$0xff]
        %v8071 = vld [vmem:[%s9 + $0x1030] sm:$0xff]
        %v8072 = vld [vmem:[%s9 + $0x1038] sm:$0xff]
        %v8073 = vld [vmem:[%s9 + $0x1040] sm:$0xff]
        %v8074 = vld [vmem:[%s9 + $0x1048] sm:$0xff]
        %v8075 = vld [vmem:[%s9 + $0x1050] sm:$0xff]
        %v8076 = vld [vmem:[%s9 + $0x1058] sm:$0xff]
        %v8077 = vld [vmem:[%s9 + $0x1060] sm:$0xff]
        %v8078 = vld [vmem:[%s9 + $0x1068] sm:$0xff]
        %v8079 = vld [vmem:[%s9 + $0x1070] sm:$0xff]
        %v8080 = vld [vmem:[%s9 + $0x1078] sm:$0xff]
        %v8081 = vld [vmem:[%s9 + $0x1080] sm:$0xff]
        %v8082 = vld [vmem:[%s9 + $0x1088] sm:$0xff]
        %v8083 = vld [vmem:[%s9 + $0x1090] sm:$0xff]
        %v8084 = vld [vmem:[%s9 + $0x1098] sm:$0xff]
        %v8085 = vld [vmem:[%s9 + $0x10a0] sm:$0xff]
        %v8086 = vld [vmem:[%s9 + $0x10a8] sm:$0xff]
        %v8087 = vld [vmem:[%s9 + $0x10b0] sm:$0xff]
        %v8088 = vld [vmem:[%s9 + $0x10b8] sm:$0xff]
        %v8089 = vld [vmem:[%s9 + $0x10c0] sm:$0xff]
        %v8090 = vld [vmem:[%s9 + $0x10c8] sm:$0xff]
        %v8091 = vld [vmem:[%s9 + $0x10d0] sm:$0xff]
        %v8092 = vld [vmem:[%s9 + $0x10d8] sm:$0xff]
        %v8093 = vld [vmem:[%s9 + $0x10e0] sm:$0xff]
        %v8094 = vld [vmem:[%s9 + $0x10e8] sm:$0xff]
        %v8095 = vld [vmem:[%s9 + $0x10f0] sm:$0xff]
        %v8096 = vld [vmem:[%s9 + $0x10f8] sm:$0xff]
        %v8097 = vld [vmem:[%s9 + $0x1100] sm:$0xff]
        %v8098 = vld [vmem:[%s9 + $0x1108] sm:$0xff]
        %v8099 = vld [vmem:[%s9 + $0x1110] sm:$0xff]
        %v8100 = vld [vmem:[%s9 + $0x1118] sm:$0xff]
        %v8101 = vld [vmem:[%s9 + $0x1120] sm:$0xff]
        %v8102 = vld [vmem:[%s9 + $0x1128] sm:$0xff]
        %v8103 = vld [vmem:[%s9 + $0x1130] sm:$0xff]
        %v8104 = vld [vmem:[%s9 + $0x1138] sm:$0xff]
        %v8105 = vld [vmem:[%s9 + $0x1140] sm:$0xff]
        %v8106 = vld [vmem:[%s9 + $0x1148] sm:$0xff]
        %v8107 = vld [vmem:[%s9 + $0x1150] sm:$0xff]
        %v8108 = vld [vmem:[%s9 + $0x1158] sm:$0xff]
        %v8109 = vld [vmem:[%s9 + $0x1160] sm:$0xff]
        %v8110 = vld [vmem:[%s9 + $0x1168] sm:$0xff]
        %v8111 = vld [vmem:[%s9 + $0x1170] sm:$0xff]
        %v8112 = vld [vmem:[%s9 + $0x1178] sm:$0xff]
        %v8113 = vld [vmem:[%s9 + $0x1180] sm:$0xff]
        %v8114 = vld [vmem:[%s9 + $0x1188] sm:$0xff]
        %v8115 = vld [vmem:[%s9 + $0x1190] sm:$0xff]
        %v8116 = vld [vmem:[%s9 + $0x1198] sm:$0xff]
        %v8117 = vld [vmem:[%s9 + $0x11a0] sm:$0xff]
        %v8118 = vld [vmem:[%s9 + $0x11a8] sm:$0xff]
        %v8119 = vld [vmem:[%s9 + $0x11b0] sm:$0xff]
        %v8120 = vld [vmem:[%s9 + $0x11b8] sm:$0xff]
        %v8121 = vld [vmem:[%s9 + $0x11c0] sm:$0xff]
        %v8122 = vld [vmem:[%s9 + $0x11c8] sm:$0xff]
        %v8123 = vld [vmem:[%s9 + $0x11d0] sm:$0xff]
        %v8124 = vld [vmem:[%s9 + $0x11d8] sm:$0xff]
        %v8125 = vld [vmem:[%s9 + $0x11e0] sm:$0xff]
        %v8126 = vld [vmem:[%s9 + $0x11e8] sm:$0xff]
        %v8127 = vld [vmem:[%s9 + $0x11f0] sm:$0xff]
        %v8128 = vld [vmem:[%s9 + $0x11f8] sm:$0xff]
        %v8705 = vunpack.c.l.b16 %v7553
        %v8706 = vunpack.c.h.b16 %v7553
        %v8707 = vunpack.c.l.b16 %v7554
        %v8708 = vunpack.c.h.b16 %v7554
        %v8709 = vunpack.c.l.b16 %v7555
        %v8710 = vunpack.c.h.b16 %v7555
        %v8711 = vunpack.c.l.b16 %v7556
        %v8712 = vunpack.c.h.b16 %v7556
        %v8713 = vunpack.c.l.b16 %v7557
        %v8714 = vunpack.c.h.b16 %v7557
        %v8715 = vunpack.c.l.b16 %v7558
        %v8716 = vunpack.c.h.b16 %v7558
        %v8717 = vunpack.c.l.b16 %v7559
        %v8718 = vunpack.c.h.b16 %v7559
        %v8719 = vunpack.c.l.b16 %v7560
        %v8720 = vunpack.c.h.b16 %v7560
        %v8721 = vunpack.c.l.b16 %v7561
        %v8722 = vunpack.c.h.b16 %v7561
        %v8723 = vunpack.c.l.b16 %v7562
        %v8724 = vunpack.c.h.b16 %v7562
        %v8725 = vunpack.c.l.b16 %v7563
        %v8726 = vunpack.c.h.b16 %v7563
        %v8727 = vunpack.c.l.b16 %v7564
        %v8728 = vunpack.c.h.b16 %v7564
        %v8729 = vunpack.c.l.b16 %v7565
        %v8730 = vunpack.c.h.b16 %v7565
        %v8731 = vunpack.c.l.b16 %v7566
        %v8732 = vunpack.c.h.b16 %v7566
        %v8733 = vunpack.c.l.b16 %v7567
        %v8734 = vunpack.c.h.b16 %v7567
        %v8735 = vunpack.c.l.b16 %v7568
        %v8736 = vunpack.c.h.b16 %v7568
        %v8737 = vunpack.c.l.b16 %v7569
        %v8738 = vunpack.c.h.b16 %v7569
        %v8739 = vunpack.c.l.b16 %v7570
        %v8740 = vunpack.c.h.b16 %v7570
        %v8741 = vunpack.c.l.b16 %v7571
        %v8742 = vunpack.c.h.b16 %v7571
        %v8743 = vunpack.c.l.b16 %v7572
        %v8744 = vunpack.c.h.b16 %v7572
        %v8745 = vunpack.c.l.b16 %v7573
        %v8746 = vunpack.c.h.b16 %v7573
        %v8747 = vunpack.c.l.b16 %v7574
        %v8748 = vunpack.c.h.b16 %v7574
        %v8749 = vunpack.c.l.b16 %v7575
        %v8750 = vunpack.c.h.b16 %v7575
        %v8751 = vunpack.c.l.b16 %v7576
        %v8752 = vunpack.c.h.b16 %v7576
        %v8753 = vunpack.c.l.b16 %v7577
        %v8754 = vunpack.c.h.b16 %v7577
        %v8755 = vunpack.c.l.b16 %v7578
        %v8756 = vunpack.c.h.b16 %v7578
        %v8757 = vunpack.c.l.b16 %v7579
        %v8758 = vunpack.c.h.b16 %v7579
        %v8759 = vunpack.c.l.b16 %v7580
        %v8760 = vunpack.c.h.b16 %v7580
        %v8761 = vunpack.c.l.b16 %v7581
        %v8762 = vunpack.c.h.b16 %v7581
        %v8763 = vunpack.c.l.b16 %v7582
        %v8764 = vunpack.c.h.b16 %v7582
        %v8765 = vunpack.c.l.b16 %v7583
        %v8766 = vunpack.c.h.b16 %v7583
        %v8767 = vunpack.c.l.b16 %v7584
        %v8768 = vunpack.c.h.b16 %v7584
        %v8769 = vunpack.c.l.b16 %v7585
        %v8770 = vunpack.c.h.b16 %v7585
        %v8771 = vunpack.c.l.b16 %v7586
        %v8772 = vunpack.c.h.b16 %v7586
        %v8773 = vunpack.c.l.b16 %v7587
        %v8774 = vunpack.c.h.b16 %v7587
        %v8775 = vunpack.c.l.b16 %v7588
        %v8776 = vunpack.c.h.b16 %v7588
        %v8777 = vunpack.c.l.b16 %v7589
        %v8778 = vunpack.c.h.b16 %v7589
        %v8779 = vunpack.c.l.b16 %v7590
        %v8780 = vunpack.c.h.b16 %v7590
        %v8781 = vunpack.c.l.b16 %v7591
        %v8782 = vunpack.c.h.b16 %v7591
        %v8783 = vunpack.c.l.b16 %v7592
        %v8784 = vunpack.c.h.b16 %v7592
        %v8785 = vunpack.c.l.b16 %v7593
        %v8786 = vunpack.c.h.b16 %v7593
        %v8787 = vunpack.c.l.b16 %v7594
        %v8788 = vunpack.c.h.b16 %v7594
        %v8789 = vunpack.c.l.b16 %v7595
        %v8790 = vunpack.c.h.b16 %v7595
        %v8791 = vunpack.c.l.b16 %v7596
        %v8792 = vunpack.c.h.b16 %v7596
        %v8793 = vunpack.c.l.b16 %v7597
        %v8794 = vunpack.c.h.b16 %v7597
        %v8795 = vunpack.c.l.b16 %v7598
        %v8796 = vunpack.c.h.b16 %v7598
        %v8797 = vunpack.c.l.b16 %v7599
        %v8798 = vunpack.c.h.b16 %v7599
        %v8799 = vunpack.c.l.b16 %v7600
        %v8800 = vunpack.c.h.b16 %v7600
        %v8801 = vunpack.c.l.b16 %v7601
        %v8802 = vunpack.c.h.b16 %v7601
        %v8803 = vunpack.c.l.b16 %v7602
        %v8804 = vunpack.c.h.b16 %v7602
        %v8805 = vunpack.c.l.b16 %v7603
        %v8806 = vunpack.c.h.b16 %v7603
        %v8807 = vunpack.c.l.b16 %v7604
        %v8808 = vunpack.c.h.b16 %v7604
        %v8809 = vunpack.c.l.b16 %v7605
        %v8810 = vunpack.c.h.b16 %v7605
        %v8811 = vunpack.c.l.b16 %v7606
        %v8812 = vunpack.c.h.b16 %v7606
        %v8813 = vunpack.c.l.b16 %v7607
        %v8814 = vunpack.c.h.b16 %v7607
        %v8815 = vunpack.c.l.b16 %v7608
        %v8816 = vunpack.c.h.b16 %v7608
        %v8817 = vunpack.c.l.b16 %v7609
        %v8818 = vunpack.c.h.b16 %v7609
        %v8819 = vunpack.c.l.b16 %v7610
        %v8820 = vunpack.c.h.b16 %v7610
        %v8821 = vunpack.c.l.b16 %v7611
        %v8822 = vunpack.c.h.b16 %v7611
        %v8823 = vunpack.c.l.b16 %v7612
        %v8824 = vunpack.c.h.b16 %v7612
        %v8825 = vunpack.c.l.b16 %v7613
        %v8826 = vunpack.c.h.b16 %v7613
        %v8827 = vunpack.c.l.b16 %v7614
        %v8828 = vunpack.c.h.b16 %v7614
        %v8829 = vunpack.c.l.b16 %v7615
        %v8830 = vunpack.c.h.b16 %v7615
        %v8831 = vunpack.c.l.b16 %v7616
        %v8832 = vunpack.c.h.b16 %v7616
        %v8833 = vunpack.c.l.b16 %v7617
        %v8834 = vunpack.c.h.b16 %v7617
        %v8835 = vunpack.c.l.b16 %v7618
        %v8836 = vunpack.c.h.b16 %v7618
        %v8837 = vunpack.c.l.b16 %v7619
        %v8838 = vunpack.c.h.b16 %v7619
        %v8839 = vunpack.c.l.b16 %v7620
        %v8840 = vunpack.c.h.b16 %v7620
        %v8841 = vunpack.c.l.b16 %v7621
        %v8842 = vunpack.c.h.b16 %v7621
        %v8843 = vunpack.c.l.b16 %v7622
        %v8844 = vunpack.c.h.b16 %v7622
        %v8845 = vunpack.c.l.b16 %v7623
        %v8846 = vunpack.c.h.b16 %v7623
        %v8847 = vunpack.c.l.b16 %v7624
        %v8848 = vunpack.c.h.b16 %v7624
        %v8849 = vunpack.c.l.b16 %v7625
        %v8850 = vunpack.c.h.b16 %v7625
        %v8851 = vunpack.c.l.b16 %v7626
        %v8852 = vunpack.c.h.b16 %v7626
        %v8853 = vunpack.c.l.b16 %v7627
        %v8854 = vunpack.c.h.b16 %v7627
        %v8855 = vunpack.c.l.b16 %v7628
        %v8856 = vunpack.c.h.b16 %v7628
        %v8857 = vunpack.c.l.b16 %v7629
        %v8858 = vunpack.c.h.b16 %v7629
        %v8859 = vunpack.c.l.b16 %v7630
        %v8860 = vunpack.c.h.b16 %v7630
        %v8861 = vunpack.c.l.b16 %v7631
        %v8862 = vunpack.c.h.b16 %v7631
        %v8863 = vunpack.c.l.b16 %v7632
        %v8864 = vunpack.c.h.b16 %v7632
        %v8865 = vunpack.c.l.b16 %v7633
        %v8866 = vunpack.c.h.b16 %v7633
        %v8867 = vunpack.c.l.b16 %v7634
        %v8868 = vunpack.c.h.b16 %v7634
        %v8869 = vunpack.c.l.b16 %v7635
        %v8870 = vunpack.c.h.b16 %v7635
        %v8871 = vunpack.c.l.b16 %v7636
        %v8872 = vunpack.c.h.b16 %v7636
        %v8873 = vunpack.c.l.b16 %v7637
        %v8874 = vunpack.c.h.b16 %v7637
        %v8875 = vunpack.c.l.b16 %v7638
        %v8876 = vunpack.c.h.b16 %v7638
        %v8877 = vunpack.c.l.b16 %v7639
        %v8878 = vunpack.c.h.b16 %v7639
        %v8879 = vunpack.c.l.b16 %v7640
        %v8880 = vunpack.c.h.b16 %v7640
        %v8881 = vunpack.c.l.b16 %v7641
        %v8882 = vunpack.c.h.b16 %v7641
        %v8883 = vunpack.c.l.b16 %v7642
        %v8884 = vunpack.c.h.b16 %v7642
        %v8885 = vunpack.c.l.b16 %v7643
        %v8886 = vunpack.c.h.b16 %v7643
        %v8887 = vunpack.c.l.b16 %v7644
        %v8888 = vunpack.c.h.b16 %v7644
        %v8889 = vunpack.c.l.b16 %v7645
        %v8890 = vunpack.c.h.b16 %v7645
        %v8891 = vunpack.c.l.b16 %v7646
        %v8892 = vunpack.c.h.b16 %v7646
        %v8893 = vunpack.c.l.b16 %v7647
        %v8894 = vunpack.c.h.b16 %v7647
        %v8895 = vunpack.c.l.b16 %v7648
        %v8896 = vunpack.c.h.b16 %v7648
        %v8897 = vunpack.c.l.b16 %v7649
        %v8898 = vunpack.c.h.b16 %v7649
        %v8899 = vunpack.c.l.b16 %v7650
        %v8900 = vunpack.c.h.b16 %v7650
        %v8901 = vunpack.c.l.b16 %v7651
        %v8902 = vunpack.c.h.b16 %v7651
        %v8903 = vunpack.c.l.b16 %v7652
        %v8904 = vunpack.c.h.b16 %v7652
        %v8905 = vunpack.c.l.b16 %v7653
        %v8906 = vunpack.c.h.b16 %v7653
        %v8907 = vunpack.c.l.b16 %v7654
        %v8908 = vunpack.c.h.b16 %v7654
        %v8909 = vunpack.c.l.b16 %v7655
        %v8910 = vunpack.c.h.b16 %v7655
        %v8911 = vunpack.c.l.b16 %v7656
        %v8912 = vunpack.c.h.b16 %v7656
        %v8913 = vunpack.c.l.b16 %v7657
        %v8914 = vunpack.c.h.b16 %v7657
        %v8915 = vunpack.c.l.b16 %v7658
        %v8916 = vunpack.c.h.b16 %v7658
        %v8917 = vunpack.c.l.b16 %v7659
        %v8918 = vunpack.c.h.b16 %v7659
        %v8919 = vunpack.c.l.b16 %v7660
        %v8920 = vunpack.c.h.b16 %v7660
        %v8921 = vunpack.c.l.b16 %v7661
        %v8922 = vunpack.c.h.b16 %v7661
        %v8923 = vunpack.c.l.b16 %v7662
        %v8924 = vunpack.c.h.b16 %v7662
        %v8925 = vunpack.c.l.b16 %v7663
        %v8926 = vunpack.c.h.b16 %v7663
        %v8927 = vunpack.c.l.b16 %v7664
        %v8928 = vunpack.c.h.b16 %v7664
        %v8929 = vunpack.c.l.b16 %v7665
        %v8930 = vunpack.c.h.b16 %v7665
        %v8931 = vunpack.c.l.b16 %v7666
        %v8932 = vunpack.c.h.b16 %v7666
        %v8933 = vunpack.c.l.b16 %v7667
        %v8934 = vunpack.c.h.b16 %v7667
        %v8935 = vunpack.c.l.b16 %v7668
        %v8936 = vunpack.c.h.b16 %v7668
        %v8937 = vunpack.c.l.b16 %v7669
        %v8938 = vunpack.c.h.b16 %v7669
        %v8939 = vunpack.c.l.b16 %v7670
        %v8940 = vunpack.c.h.b16 %v7670
        %v8941 = vunpack.c.l.b16 %v7671
        %v8942 = vunpack.c.h.b16 %v7671
        %v8943 = vunpack.c.l.b16 %v7672
        %v8944 = vunpack.c.h.b16 %v7672
        %v8945 = vunpack.c.l.b16 %v7673
        %v8946 = vunpack.c.h.b16 %v7673
        %v8947 = vunpack.c.l.b16 %v7674
        %v8948 = vunpack.c.h.b16 %v7674
        %v8949 = vunpack.c.l.b16 %v7675
        %v8950 = vunpack.c.h.b16 %v7675
        %v8951 = vunpack.c.l.b16 %v7676
        %v8952 = vunpack.c.h.b16 %v7676
        %v8953 = vunpack.c.l.b16 %v7677
        %v8954 = vunpack.c.h.b16 %v7677
        %v8955 = vunpack.c.l.b16 %v7678
        %v8956 = vunpack.c.h.b16 %v7678
        %v8957 = vunpack.c.l.b16 %v7679
        %v8958 = vunpack.c.h.b16 %v7679
        %v8959 = vunpack.c.l.b16 %v7680
        %v8960 = vunpack.c.h.b16 %v7680
        %v8961 = vunpack.c.l.b16 %v7681
        %v8962 = vunpack.c.h.b16 %v7681
        %v8963 = vunpack.c.l.b16 %v7682
        %v8964 = vunpack.c.h.b16 %v7682
        %v8965 = vunpack.c.l.b16 %v7683
        %v8966 = vunpack.c.h.b16 %v7683
        %v8967 = vunpack.c.l.b16 %v7684
        %v8968 = vunpack.c.h.b16 %v7684
        %v8969 = vunpack.c.l.b16 %v7685
        %v8970 = vunpack.c.h.b16 %v7685
        %v8971 = vunpack.c.l.b16 %v7686
        %v8972 = vunpack.c.h.b16 %v7686
        %v8973 = vunpack.c.l.b16 %v7687
        %v8974 = vunpack.c.h.b16 %v7687
        %v8975 = vunpack.c.l.b16 %v7688
        %v8976 = vunpack.c.h.b16 %v7688
        %v8977 = vunpack.c.l.b16 %v7689
        %v8978 = vunpack.c.h.b16 %v7689
        %v8979 = vunpack.c.l.b16 %v7690
        %v8980 = vunpack.c.h.b16 %v7690
        %v8981 = vunpack.c.l.b16 %v7691
        %v8982 = vunpack.c.h.b16 %v7691
        %v8983 = vunpack.c.l.b16 %v7692
        %v8984 = vunpack.c.h.b16 %v7692
        %v8985 = vunpack.c.l.b16 %v7693
        %v8986 = vunpack.c.h.b16 %v7693
        %v8987 = vunpack.c.l.b16 %v7694
        %v8988 = vunpack.c.h.b16 %v7694
        %v8989 = vunpack.c.l.b16 %v7695
        %v8990 = vunpack.c.h.b16 %v7695
        %v8991 = vunpack.c.l.b16 %v7696
        %v8992 = vunpack.c.h.b16 %v7696
        %v8993 = vunpack.c.l.b16 %v7697
        %v8994 = vunpack.c.h.b16 %v7697
        %v8995 = vunpack.c.l.b16 %v7698
        %v8996 = vunpack.c.h.b16 %v7698
        %v8997 = vunpack.c.l.b16 %v7699
        %v8998 = vunpack.c.h.b16 %v7699
        %v8999 = vunpack.c.l.b16 %v7700
        %v9000 = vunpack.c.h.b16 %v7700
        %v9001 = vunpack.c.l.b16 %v7701
        %v9002 = vunpack.c.h.b16 %v7701
        %v9003 = vunpack.c.l.b16 %v7702
        %v9004 = vunpack.c.h.b16 %v7702
        %v9005 = vunpack.c.l.b16 %v7703
        %v9006 = vunpack.c.h.b16 %v7703
        %v9007 = vunpack.c.l.b16 %v7704
        %v9008 = vunpack.c.h.b16 %v7704
        %v9009 = vunpack.c.l.b16 %v7705
        %v9010 = vunpack.c.h.b16 %v7705
        %v9011 = vunpack.c.l.b16 %v7706
        %v9012 = vunpack.c.h.b16 %v7706
        %v9013 = vunpack.c.l.b16 %v7707
        %v9014 = vunpack.c.h.b16 %v7707
        %v9015 = vunpack.c.l.b16 %v7708
        %v9016 = vunpack.c.h.b16 %v7708
        %v9017 = vunpack.c.l.b16 %v7709
        %v9018 = vunpack.c.h.b16 %v7709
        %v9019 = vunpack.c.l.b16 %v7710
        %v9020 = vunpack.c.h.b16 %v7710
        %v9021 = vunpack.c.l.b16 %v7711
        %v9022 = vunpack.c.h.b16 %v7711
        %v9023 = vunpack.c.l.b16 %v7712
        %v9024 = vunpack.c.h.b16 %v7712
        %v9025 = vunpack.c.l.b16 %v7713
        %v9026 = vunpack.c.h.b16 %v7713
        %v9027 = vunpack.c.l.b16 %v7714
        %v9028 = vunpack.c.h.b16 %v7714
        %v9029 = vunpack.c.l.b16 %v7715
        %v9030 = vunpack.c.h.b16 %v7715
        %v9031 = vunpack.c.l.b16 %v7716
        %v9032 = vunpack.c.h.b16 %v7716
        %v9033 = vunpack.c.l.b16 %v7717
        %v9034 = vunpack.c.h.b16 %v7717
        %v9035 = vunpack.c.l.b16 %v7718
        %v9036 = vunpack.c.h.b16 %v7718
        %v9037 = vunpack.c.l.b16 %v7719
        %v9038 = vunpack.c.h.b16 %v7719
        %v9039 = vunpack.c.l.b16 %v7720
        %v9040 = vunpack.c.h.b16 %v7720
        %v9041 = vunpack.c.l.b16 %v7721
        %v9042 = vunpack.c.h.b16 %v7721
        %v9043 = vunpack.c.l.b16 %v7722
        %v9044 = vunpack.c.h.b16 %v7722
        %v9045 = vunpack.c.l.b16 %v7723
        %v9046 = vunpack.c.h.b16 %v7723
        %v9047 = vunpack.c.l.b16 %v7724
        %v9048 = vunpack.c.h.b16 %v7724
        %v9049 = vunpack.c.l.b16 %v7725
        %v9050 = vunpack.c.h.b16 %v7725
        %v9051 = vunpack.c.l.b16 %v7726
        %v9052 = vunpack.c.h.b16 %v7726
        %v9053 = vunpack.c.l.b16 %v7727
        %v9054 = vunpack.c.h.b16 %v7727
        %v9055 = vunpack.c.l.b16 %v7728
        %v9056 = vunpack.c.h.b16 %v7728
        %v9057 = vunpack.c.l.b16 %v7729
        %v9058 = vunpack.c.h.b16 %v7729
        %v9059 = vunpack.c.l.b16 %v7730
        %v9060 = vunpack.c.h.b16 %v7730
        %v9061 = vunpack.c.l.b16 %v7731
        %v9062 = vunpack.c.h.b16 %v7731
        %v9063 = vunpack.c.l.b16 %v7732
        %v9064 = vunpack.c.h.b16 %v7732
        %v9065 = vunpack.c.l.b16 %v7733
        %v9066 = vunpack.c.h.b16 %v7733
        %v9067 = vunpack.c.l.b16 %v7734
        %v9068 = vunpack.c.h.b16 %v7734
        %v9069 = vunpack.c.l.b16 %v7735
        %v9070 = vunpack.c.h.b16 %v7735
        %v9071 = vunpack.c.l.b16 %v7736
        %v9072 = vunpack.c.h.b16 %v7736
        %v9073 = vunpack.c.l.b16 %v7737
        %v9074 = vunpack.c.h.b16 %v7737
        %v9075 = vunpack.c.l.b16 %v7738
        %v9076 = vunpack.c.h.b16 %v7738
        %v9077 = vunpack.c.l.b16 %v7739
        %v9078 = vunpack.c.h.b16 %v7739
        %v9079 = vunpack.c.l.b16 %v7740
        %v9080 = vunpack.c.h.b16 %v7740
        %v9081 = vunpack.c.l.b16 %v7741
        %v9082 = vunpack.c.h.b16 %v7741
        %v9083 = vunpack.c.l.b16 %v7742
        %v9084 = vunpack.c.h.b16 %v7742
        %v9085 = vunpack.c.l.b16 %v7743
        %v9086 = vunpack.c.h.b16 %v7743
        %v9087 = vunpack.c.l.b16 %v7744
        %v9088 = vunpack.c.h.b16 %v7744
        %v9089 = vunpack.c.l.b16 %v7745
        %v9090 = vunpack.c.h.b16 %v7745
        %v9091 = vunpack.c.l.b16 %v7746
        %v9092 = vunpack.c.h.b16 %v7746
        %v9093 = vunpack.c.l.b16 %v7747
        %v9094 = vunpack.c.h.b16 %v7747
        %v9095 = vunpack.c.l.b16 %v7748
        %v9096 = vunpack.c.h.b16 %v7748
        %v9097 = vunpack.c.l.b16 %v7749
        %v9098 = vunpack.c.h.b16 %v7749
        %v9099 = vunpack.c.l.b16 %v7750
        %v9100 = vunpack.c.h.b16 %v7750
        %v9101 = vunpack.c.l.b16 %v7751
        %v9102 = vunpack.c.h.b16 %v7751
        %v9103 = vunpack.c.l.b16 %v7752
        %v9104 = vunpack.c.h.b16 %v7752
        %v9105 = vunpack.c.l.b16 %v7753
        %v9106 = vunpack.c.h.b16 %v7753
        %v9107 = vunpack.c.l.b16 %v7754
        %v9108 = vunpack.c.h.b16 %v7754
        %v9109 = vunpack.c.l.b16 %v7755
        %v9110 = vunpack.c.h.b16 %v7755
        %v9111 = vunpack.c.l.b16 %v7756
        %v9112 = vunpack.c.h.b16 %v7756
        %v9113 = vunpack.c.l.b16 %v7757
        %v9114 = vunpack.c.h.b16 %v7757
        %v9115 = vunpack.c.l.b16 %v7758
        %v9116 = vunpack.c.h.b16 %v7758
        %v9117 = vunpack.c.l.b16 %v7759
        %v9118 = vunpack.c.h.b16 %v7759
        %v9119 = vunpack.c.l.b16 %v7760
        %v9120 = vunpack.c.h.b16 %v7760
        %v9121 = vunpack.c.l.b16 %v7761
        %v9122 = vunpack.c.h.b16 %v7761
        %v9123 = vunpack.c.l.b16 %v7762
        %v9124 = vunpack.c.h.b16 %v7762
        %v9125 = vunpack.c.l.b16 %v7763
        %v9126 = vunpack.c.h.b16 %v7763
        %v9127 = vunpack.c.l.b16 %v7764
        %v9128 = vunpack.c.h.b16 %v7764
        %v9129 = vunpack.c.l.b16 %v7765
        %v9130 = vunpack.c.h.b16 %v7765
        %v9131 = vunpack.c.l.b16 %v7766
        %v9132 = vunpack.c.h.b16 %v7766
        %v9133 = vunpack.c.l.b16 %v7767
        %v9134 = vunpack.c.h.b16 %v7767
        %v9135 = vunpack.c.l.b16 %v7768
        %v9136 = vunpack.c.h.b16 %v7768
        %v9137 = vunpack.c.l.b16 %v7769
        %v9138 = vunpack.c.h.b16 %v7769
        %v9139 = vunpack.c.l.b16 %v7770
        %v9140 = vunpack.c.h.b16 %v7770
        %v9141 = vunpack.c.l.b16 %v7771
        %v9142 = vunpack.c.h.b16 %v7771
        %v9143 = vunpack.c.l.b16 %v7772
        %v9144 = vunpack.c.h.b16 %v7772
        %v9145 = vunpack.c.l.b16 %v7773
        %v9146 = vunpack.c.h.b16 %v7773
        %v9147 = vunpack.c.l.b16 %v7774
        %v9148 = vunpack.c.h.b16 %v7774
        %v9149 = vunpack.c.l.b16 %v7775
        %v9150 = vunpack.c.h.b16 %v7775
        %v9151 = vunpack.c.l.b16 %v7776
        %v9152 = vunpack.c.h.b16 %v7776
        %v9153 = vunpack.c.l.b16 %v7777
        %v9154 = vunpack.c.h.b16 %v7777
        %v9155 = vunpack.c.l.b16 %v7778
        %v9156 = vunpack.c.h.b16 %v7778
        %v9157 = vunpack.c.l.b16 %v7779
        %v9158 = vunpack.c.h.b16 %v7779
        %v9159 = vunpack.c.l.b16 %v7780
        %v9160 = vunpack.c.h.b16 %v7780
        %v9161 = vunpack.c.l.b16 %v7781
        %v9162 = vunpack.c.h.b16 %v7781
        %v9163 = vunpack.c.l.b16 %v7782
        %v9164 = vunpack.c.h.b16 %v7782
        %v9165 = vunpack.c.l.b16 %v7783
        %v9166 = vunpack.c.h.b16 %v7783
        %v9167 = vunpack.c.l.b16 %v7784
        %v9168 = vunpack.c.h.b16 %v7784
        %v9169 = vunpack.c.l.b16 %v7785
        %v9170 = vunpack.c.h.b16 %v7785
        %v9171 = vunpack.c.l.b16 %v7786
        %v9172 = vunpack.c.h.b16 %v7786
        %v9173 = vunpack.c.l.b16 %v7787
        %v9174 = vunpack.c.h.b16 %v7787
        %v9175 = vunpack.c.l.b16 %v7788
        %v9176 = vunpack.c.h.b16 %v7788
        %v9177 = vunpack.c.l.b16 %v7789
        %v9178 = vunpack.c.h.b16 %v7789
        %v9179 = vunpack.c.l.b16 %v7790
        %v9180 = vunpack.c.h.b16 %v7790
        %v9181 = vunpack.c.l.b16 %v7791
        %v9182 = vunpack.c.h.b16 %v7791
        %v9183 = vunpack.c.l.b16 %v7792
        %v9184 = vunpack.c.h.b16 %v7792
        %v9185 = vunpack.c.l.b16 %v7793
        %v9186 = vunpack.c.h.b16 %v7793
        %v9187 = vunpack.c.l.b16 %v7794
        %v9188 = vunpack.c.h.b16 %v7794
        %v9189 = vunpack.c.l.b16 %v7795
        %v9190 = vunpack.c.h.b16 %v7795
        %v9191 = vunpack.c.l.b16 %v7796
        %v9192 = vunpack.c.h.b16 %v7796
        %v9193 = vunpack.c.l.b16 %v7797
        %v9194 = vunpack.c.h.b16 %v7797
        %v9195 = vunpack.c.l.b16 %v7798
        %v9196 = vunpack.c.h.b16 %v7798
        %v9197 = vunpack.c.l.b16 %v7799
        %v9198 = vunpack.c.h.b16 %v7799
        %v9199 = vunpack.c.l.b16 %v7800
        %v9200 = vunpack.c.h.b16 %v7800
        %v9201 = vunpack.c.l.b16 %v7801
        %v9202 = vunpack.c.h.b16 %v7801
        %v9203 = vunpack.c.l.b16 %v7802
        %v9204 = vunpack.c.h.b16 %v7802
        %v9205 = vunpack.c.l.b16 %v7803
        %v9206 = vunpack.c.h.b16 %v7803
        %v9207 = vunpack.c.l.b16 %v7804
        %v9208 = vunpack.c.h.b16 %v7804
        %v9209 = vunpack.c.l.b16 %v7805
        %v9210 = vunpack.c.h.b16 %v7805
        %v9211 = vunpack.c.l.b16 %v7806
        %v9212 = vunpack.c.h.b16 %v7806
        %v9213 = vunpack.c.l.b16 %v7807
        %v9214 = vunpack.c.h.b16 %v7807
        %v9215 = vunpack.c.l.b16 %v7808
        %v9216 = vunpack.c.h.b16 %v7808
        %v9217 = vunpack.c.l.b16 %v7809
        %v9218 = vunpack.c.h.b16 %v7809
        %v9219 = vunpack.c.l.b16 %v7810
        %v9220 = vunpack.c.h.b16 %v7810
        %v9221 = vunpack.c.l.b16 %v7811
        %v9222 = vunpack.c.h.b16 %v7811
        %v9223 = vunpack.c.l.b16 %v7812
        %v9224 = vunpack.c.h.b16 %v7812
        %v9225 = vunpack.c.l.b16 %v7813
        %v9226 = vunpack.c.h.b16 %v7813
        %v9227 = vunpack.c.l.b16 %v7814
        %v9228 = vunpack.c.h.b16 %v7814
        %v9229 = vunpack.c.l.b16 %v7815
        %v9230 = vunpack.c.h.b16 %v7815
        %v9231 = vunpack.c.l.b16 %v7816
        %v9232 = vunpack.c.h.b16 %v7816
        %v9233 = vunpack.c.l.b16 %v7817
        %v9234 = vunpack.c.h.b16 %v7817
        %v9235 = vunpack.c.l.b16 %v7818
        %v9236 = vunpack.c.h.b16 %v7818
        %v9237 = vunpack.c.l.b16 %v7819
        %v9238 = vunpack.c.h.b16 %v7819
        %v9239 = vunpack.c.l.b16 %v7820
        %v9240 = vunpack.c.h.b16 %v7820
        %v9241 = vunpack.c.l.b16 %v7821
        %v9242 = vunpack.c.h.b16 %v7821
        %v9243 = vunpack.c.l.b16 %v7822
        %v9244 = vunpack.c.h.b16 %v7822
        %v9245 = vunpack.c.l.b16 %v7823
        %v9246 = vunpack.c.h.b16 %v7823
        %v9247 = vunpack.c.l.b16 %v7824
        %v9248 = vunpack.c.h.b16 %v7824
        %v9249 = vunpack.c.l.b16 %v7825
        %v9250 = vunpack.c.h.b16 %v7825
        %v9251 = vunpack.c.l.b16 %v7826
        %v9252 = vunpack.c.h.b16 %v7826
        %v9253 = vunpack.c.l.b16 %v7827
        %v9254 = vunpack.c.h.b16 %v7827
        %v9255 = vunpack.c.l.b16 %v7828
        %v9256 = vunpack.c.h.b16 %v7828
        %v9257 = vunpack.c.l.b16 %v7829
        %v9258 = vunpack.c.h.b16 %v7829
        %v9259 = vunpack.c.l.b16 %v7830
        %v9260 = vunpack.c.h.b16 %v7830
        %v9261 = vunpack.c.l.b16 %v7831
        %v9262 = vunpack.c.h.b16 %v7831
        %v9263 = vunpack.c.l.b16 %v7832
        %v9264 = vunpack.c.h.b16 %v7832
        %v9265 = vunpack.c.l.b16 %v7833
        %v9266 = vunpack.c.h.b16 %v7833
        %v9267 = vunpack.c.l.b16 %v7834
        %v9268 = vunpack.c.h.b16 %v7834
        %v9269 = vunpack.c.l.b16 %v7835
        %v9270 = vunpack.c.h.b16 %v7835
        %v9271 = vunpack.c.l.b16 %v7836
        %v9272 = vunpack.c.h.b16 %v7836
        %v9273 = vunpack.c.l.b16 %v7837
        %v9274 = vunpack.c.h.b16 %v7837
        %v9275 = vunpack.c.l.b16 %v7838
        %v9276 = vunpack.c.h.b16 %v7838
        %v9277 = vunpack.c.l.b16 %v7839
        %v9278 = vunpack.c.h.b16 %v7839
        %v9279 = vunpack.c.l.b16 %v7840
        %v9280 = vunpack.c.h.b16 %v7840
        %v9281 = vunpack.c.l.b16 %v7841
        %v9282 = vunpack.c.h.b16 %v7841
        %v9283 = vunpack.c.l.b16 %v7842
        %v9284 = vunpack.c.h.b16 %v7842
        %v9285 = vunpack.c.l.b16 %v7843
        %v9286 = vunpack.c.h.b16 %v7843
        %v9287 = vunpack.c.l.b16 %v7844
        %v9288 = vunpack.c.h.b16 %v7844
        %v9289 = vunpack.c.l.b16 %v7845
        %v9290 = vunpack.c.h.b16 %v7845
        %v9291 = vunpack.c.l.b16 %v7846
        %v9292 = vunpack.c.h.b16 %v7846
        %v9293 = vunpack.c.l.b16 %v7847
        %v9294 = vunpack.c.h.b16 %v7847
        %v9295 = vunpack.c.l.b16 %v7848
        %v9296 = vunpack.c.h.b16 %v7848
        %v9297 = vunpack.c.l.b16 %v7849
        %v9298 = vunpack.c.h.b16 %v7849
        %v9299 = vunpack.c.l.b16 %v7850
        %v9300 = vunpack.c.h.b16 %v7850
        %v9301 = vunpack.c.l.b16 %v7851
        %v9302 = vunpack.c.h.b16 %v7851
        %v9303 = vunpack.c.l.b16 %v7852
        %v9304 = vunpack.c.h.b16 %v7852
        %v9305 = vunpack.c.l.b16 %v7853
        %v9306 = vunpack.c.h.b16 %v7853
        %v9307 = vunpack.c.l.b16 %v7854
        %v9308 = vunpack.c.h.b16 %v7854
        %v9309 = vunpack.c.l.b16 %v7855
        %v9310 = vunpack.c.h.b16 %v7855
        %v9311 = vunpack.c.l.b16 %v7856
        %v9312 = vunpack.c.h.b16 %v7856
        %v9313 = vunpack.c.l.b16 %v7857
        %v9314 = vunpack.c.h.b16 %v7857
        %v9315 = vunpack.c.l.b16 %v7858
        %v9316 = vunpack.c.h.b16 %v7858
        %v9317 = vunpack.c.l.b16 %v7859
        %v9318 = vunpack.c.h.b16 %v7859
        %v9319 = vunpack.c.l.b16 %v7860
        %v9320 = vunpack.c.h.b16 %v7860
        %v9321 = vunpack.c.l.b16 %v7861
        %v9322 = vunpack.c.h.b16 %v7861
        %v9323 = vunpack.c.l.b16 %v7862
        %v9324 = vunpack.c.h.b16 %v7862
        %v9325 = vunpack.c.l.b16 %v7863
        %v9326 = vunpack.c.h.b16 %v7863
        %v9327 = vunpack.c.l.b16 %v7864
        %v9328 = vunpack.c.h.b16 %v7864
        %v9329 = vunpack.c.l.b16 %v7865
        %v9330 = vunpack.c.h.b16 %v7865
        %v9331 = vunpack.c.l.b16 %v7866
        %v9332 = vunpack.c.h.b16 %v7866
        %v9333 = vunpack.c.l.b16 %v7867
        %v9334 = vunpack.c.h.b16 %v7867
        %v9335 = vunpack.c.l.b16 %v7868
        %v9336 = vunpack.c.h.b16 %v7868
        %v9337 = vunpack.c.l.b16 %v7869
        %v9338 = vunpack.c.h.b16 %v7869
        %v9339 = vunpack.c.l.b16 %v7870
        %v9340 = vunpack.c.h.b16 %v7870
        %v9341 = vunpack.c.l.b16 %v7871
        %v9342 = vunpack.c.h.b16 %v7871
        %v9343 = vunpack.c.l.b16 %v7872
        %v9344 = vunpack.c.h.b16 %v7872
        %v9345 = vunpack.c.l.b16 %v7873
        %v9346 = vunpack.c.h.b16 %v7873
        %v9347 = vunpack.c.l.b16 %v7874
        %v9348 = vunpack.c.h.b16 %v7874
        %v9349 = vunpack.c.l.b16 %v7875
        %v9350 = vunpack.c.h.b16 %v7875
        %v9351 = vunpack.c.l.b16 %v7876
        %v9352 = vunpack.c.h.b16 %v7876
        %v9353 = vunpack.c.l.b16 %v7877
        %v9354 = vunpack.c.h.b16 %v7877
        %v9355 = vunpack.c.l.b16 %v7878
        %v9356 = vunpack.c.h.b16 %v7878
        %v9357 = vunpack.c.l.b16 %v7879
        %v9358 = vunpack.c.h.b16 %v7879
        %v9359 = vunpack.c.l.b16 %v7880
        %v9360 = vunpack.c.h.b16 %v7880
        %v9361 = vunpack.c.l.b16 %v7881
        %v9362 = vunpack.c.h.b16 %v7881
        %v9363 = vunpack.c.l.b16 %v7882
        %v9364 = vunpack.c.h.b16 %v7882
        %v9365 = vunpack.c.l.b16 %v7883
        %v9366 = vunpack.c.h.b16 %v7883
        %v9367 = vunpack.c.l.b16 %v7884
        %v9368 = vunpack.c.h.b16 %v7884
        %v9369 = vunpack.c.l.b16 %v7885
        %v9370 = vunpack.c.h.b16 %v7885
        %v9371 = vunpack.c.l.b16 %v7886
        %v9372 = vunpack.c.h.b16 %v7886
        %v9373 = vunpack.c.l.b16 %v7887
        %v9374 = vunpack.c.h.b16 %v7887
        %v9375 = vunpack.c.l.b16 %v7888
        %v9376 = vunpack.c.h.b16 %v7888
        %v9377 = vunpack.c.l.b16 %v7889
        %v9378 = vunpack.c.h.b16 %v7889
        %v9379 = vunpack.c.l.b16 %v7890
        %v9380 = vunpack.c.h.b16 %v7890
        %v9381 = vunpack.c.l.b16 %v7891
        %v9382 = vunpack.c.h.b16 %v7891
        %v9383 = vunpack.c.l.b16 %v7892
        %v9384 = vunpack.c.h.b16 %v7892
        %v9385 = vunpack.c.l.b16 %v7893
        %v9386 = vunpack.c.h.b16 %v7893
        %v9387 = vunpack.c.l.b16 %v7894
        %v9388 = vunpack.c.h.b16 %v7894
        %v9389 = vunpack.c.l.b16 %v7895
        %v9390 = vunpack.c.h.b16 %v7895
        %v9391 = vunpack.c.l.b16 %v7896
        %v9392 = vunpack.c.h.b16 %v7896
        %v9393 = vunpack.c.l.b16 %v7897
        %v9394 = vunpack.c.h.b16 %v7897
        %v9395 = vunpack.c.l.b16 %v7898
        %v9396 = vunpack.c.h.b16 %v7898
        %v9397 = vunpack.c.l.b16 %v7899
        %v9398 = vunpack.c.h.b16 %v7899
        %v9399 = vunpack.c.l.b16 %v7900
        %v9400 = vunpack.c.h.b16 %v7900
        %v9401 = vunpack.c.l.b16 %v7901
        %v9402 = vunpack.c.h.b16 %v7901
        %v9403 = vunpack.c.l.b16 %v7902
        %v9404 = vunpack.c.h.b16 %v7902
        %v9405 = vunpack.c.l.b16 %v7903
        %v9406 = vunpack.c.h.b16 %v7903
        %v9407 = vunpack.c.l.b16 %v7904
        %v9408 = vunpack.c.h.b16 %v7904
        %v9409 = vunpack.c.l.b16 %v7905
        %v9410 = vunpack.c.h.b16 %v7905
        %v9411 = vunpack.c.l.b16 %v7906
        %v9412 = vunpack.c.h.b16 %v7906
        %v9413 = vunpack.c.l.b16 %v7907
        %v9414 = vunpack.c.h.b16 %v7907
        %v9415 = vunpack.c.l.b16 %v7908
        %v9416 = vunpack.c.h.b16 %v7908
        %v9417 = vunpack.c.l.b16 %v7909
        %v9418 = vunpack.c.h.b16 %v7909
        %v9419 = vunpack.c.l.b16 %v7910
        %v9420 = vunpack.c.h.b16 %v7910
        %v9421 = vunpack.c.l.b16 %v7911
        %v9422 = vunpack.c.h.b16 %v7911
        %v9423 = vunpack.c.l.b16 %v7912
        %v9424 = vunpack.c.h.b16 %v7912
        %v9425 = vunpack.c.l.b16 %v7913
        %v9426 = vunpack.c.h.b16 %v7913
        %v9427 = vunpack.c.l.b16 %v7914
        %v9428 = vunpack.c.h.b16 %v7914
        %v9429 = vunpack.c.l.b16 %v7915
        %v9430 = vunpack.c.h.b16 %v7915
        %v9431 = vunpack.c.l.b16 %v7916
        %v9432 = vunpack.c.h.b16 %v7916
        %v9433 = vunpack.c.l.b16 %v7917
        %v9434 = vunpack.c.h.b16 %v7917
        %v9435 = vunpack.c.l.b16 %v7918
        %v9436 = vunpack.c.h.b16 %v7918
        %v9437 = vunpack.c.l.b16 %v7919
        %v9438 = vunpack.c.h.b16 %v7919
        %v9439 = vunpack.c.l.b16 %v7920
        %v9440 = vunpack.c.h.b16 %v7920
        %v9441 = vunpack.c.l.b16 %v7921
        %v9442 = vunpack.c.h.b16 %v7921
        %v9443 = vunpack.c.l.b16 %v7922
        %v9444 = vunpack.c.h.b16 %v7922
        %v9445 = vunpack.c.l.b16 %v7923
        %v9446 = vunpack.c.h.b16 %v7923
        %v9447 = vunpack.c.l.b16 %v7924
        %v9448 = vunpack.c.h.b16 %v7924
        %v9449 = vunpack.c.l.b16 %v7925
        %v9450 = vunpack.c.h.b16 %v7925
        %v9451 = vunpack.c.l.b16 %v7926
        %v9452 = vunpack.c.h.b16 %v7926
        %v9453 = vunpack.c.l.b16 %v7927
        %v9454 = vunpack.c.h.b16 %v7927
        %v9455 = vunpack.c.l.b16 %v7928
        %v9456 = vunpack.c.h.b16 %v7928
        %v9457 = vunpack.c.l.b16 %v7929
        %v9458 = vunpack.c.h.b16 %v7929
        %v9459 = vunpack.c.l.b16 %v7930
        %v9460 = vunpack.c.h.b16 %v7930
        %v9461 = vunpack.c.l.b16 %v7931
        %v9462 = vunpack.c.h.b16 %v7931
        %v9463 = vunpack.c.l.b16 %v7932
        %v9464 = vunpack.c.h.b16 %v7932
        %v9465 = vunpack.c.l.b16 %v7933
        %v9466 = vunpack.c.h.b16 %v7933
        %v9467 = vunpack.c.l.b16 %v7934
        %v9468 = vunpack.c.h.b16 %v7934
        %v9469 = vunpack.c.l.b16 %v7935
        %v9470 = vunpack.c.h.b16 %v7935
        %v9471 = vunpack.c.l.b16 %v7936
        %v9472 = vunpack.c.h.b16 %v7936
        %v9473 = vunpack.c.l.b16 %v7937
        %v9474 = vunpack.c.h.b16 %v7937
        %v9475 = vunpack.c.l.b16 %v7938
        %v9476 = vunpack.c.h.b16 %v7938
        %v9477 = vunpack.c.l.b16 %v7939
        %v9478 = vunpack.c.h.b16 %v7939
        %v9479 = vunpack.c.l.b16 %v7940
        %v9480 = vunpack.c.h.b16 %v7940
        %v9481 = vunpack.c.l.b16 %v7941
        %v9482 = vunpack.c.h.b16 %v7941
        %v9483 = vunpack.c.l.b16 %v7942
        %v9484 = vunpack.c.h.b16 %v7942
        %v9485 = vunpack.c.l.b16 %v7943
        %v9486 = vunpack.c.h.b16 %v7943
        %v9487 = vunpack.c.l.b16 %v7944
        %v9488 = vunpack.c.h.b16 %v7944
        %v9489 = vunpack.c.l.b16 %v7945
        %v9490 = vunpack.c.h.b16 %v7945
        %v9491 = vunpack.c.l.b16 %v7946
        %v9492 = vunpack.c.h.b16 %v7946
        %v9493 = vunpack.c.l.b16 %v7947
        %v9494 = vunpack.c.h.b16 %v7947
        %v9495 = vunpack.c.l.b16 %v7948
        %v9496 = vunpack.c.h.b16 %v7948
        %v9497 = vunpack.c.l.b16 %v7949
        %v9498 = vunpack.c.h.b16 %v7949
        %v9499 = vunpack.c.l.b16 %v7950
        %v9500 = vunpack.c.h.b16 %v7950
        %v9501 = vunpack.c.l.b16 %v7951
        %v9502 = vunpack.c.h.b16 %v7951
        %v9503 = vunpack.c.l.b16 %v7952
        %v9504 = vunpack.c.h.b16 %v7952
        %v9505 = vunpack.c.l.b16 %v7953
        %v9506 = vunpack.c.h.b16 %v7953
        %v9507 = vunpack.c.l.b16 %v7954
        %v9508 = vunpack.c.h.b16 %v7954
        %v9509 = vunpack.c.l.b16 %v7955
        %v9510 = vunpack.c.h.b16 %v7955
        %v9511 = vunpack.c.l.b16 %v7956
        %v9512 = vunpack.c.h.b16 %v7956
        %v9513 = vunpack.c.l.b16 %v7957
        %v9514 = vunpack.c.h.b16 %v7957
        %v9515 = vunpack.c.l.b16 %v7958
        %v9516 = vunpack.c.h.b16 %v7958
        %v9517 = vunpack.c.l.b16 %v7959
        %v9518 = vunpack.c.h.b16 %v7959
        %v9519 = vunpack.c.l.b16 %v7960
        %v9520 = vunpack.c.h.b16 %v7960
        %v9521 = vunpack.c.l.b16 %v7961
        %v9522 = vunpack.c.h.b16 %v7961
        %v9523 = vunpack.c.l.b16 %v7962
        %v9524 = vunpack.c.h.b16 %v7962
        %v9525 = vunpack.c.l.b16 %v7963
        %v9526 = vunpack.c.h.b16 %v7963
        %v9527 = vunpack.c.l.b16 %v7964
        %v9528 = vunpack.c.h.b16 %v7964
        %v9529 = vunpack.c.l.b16 %v7965
        %v9530 = vunpack.c.h.b16 %v7965
        %v9531 = vunpack.c.l.b16 %v7966
        %v9532 = vunpack.c.h.b16 %v7966
        %v9533 = vunpack.c.l.b16 %v7967
        %v9534 = vunpack.c.h.b16 %v7967
        %v9535 = vunpack.c.l.b16 %v7968
        %v9536 = vunpack.c.h.b16 %v7968
        %v9537 = vunpack.c.l.b16 %v7969
        %v9538 = vunpack.c.h.b16 %v7969
        %v9539 = vunpack.c.l.b16 %v7970
        %v9540 = vunpack.c.h.b16 %v7970
        %v9541 = vunpack.c.l.b16 %v7971
        %v9542 = vunpack.c.h.b16 %v7971
        %v9543 = vunpack.c.l.b16 %v7972
        %v9544 = vunpack.c.h.b16 %v7972
        %v9545 = vunpack.c.l.b16 %v7973
        %v9546 = vunpack.c.h.b16 %v7973
        %v9547 = vunpack.c.l.b16 %v7974
        %v9548 = vunpack.c.h.b16 %v7974
        %v9549 = vunpack.c.l.b16 %v7975
        %v9550 = vunpack.c.h.b16 %v7975
        %v9551 = vunpack.c.l.b16 %v7976
        %v9552 = vunpack.c.h.b16 %v7976
        %v9553 = vunpack.c.l.b16 %v7977
        %v9554 = vunpack.c.h.b16 %v7977
        %v9555 = vunpack.c.l.b16 %v7978
        %v9556 = vunpack.c.h.b16 %v7978
        %v9557 = vunpack.c.l.b16 %v7979
        %v9558 = vunpack.c.h.b16 %v7979
        %v9559 = vunpack.c.l.b16 %v7980
        %v9560 = vunpack.c.h.b16 %v7980
        %v9561 = vunpack.c.l.b16 %v7981
        %v9562 = vunpack.c.h.b16 %v7981
        %v9563 = vunpack.c.l.b16 %v7982
        %v9564 = vunpack.c.h.b16 %v7982
        %v9565 = vunpack.c.l.b16 %v7983
        %v9566 = vunpack.c.h.b16 %v7983
        %v9567 = vunpack.c.l.b16 %v7984
        %v9568 = vunpack.c.h.b16 %v7984
        %v9569 = vunpack.c.l.b16 %v7985
        %v9570 = vunpack.c.h.b16 %v7985
        %v9571 = vunpack.c.l.b16 %v7986
        %v9572 = vunpack.c.h.b16 %v7986
        %v9573 = vunpack.c.l.b16 %v7987
        %v9574 = vunpack.c.h.b16 %v7987
        %v9575 = vunpack.c.l.b16 %v7988
        %v9576 = vunpack.c.h.b16 %v7988
        %v9577 = vunpack.c.l.b16 %v7989
        %v9578 = vunpack.c.h.b16 %v7989
        %v9579 = vunpack.c.l.b16 %v7990
        %v9580 = vunpack.c.h.b16 %v7990
        %v9581 = vunpack.c.l.b16 %v7991
        %v9582 = vunpack.c.h.b16 %v7991
        %v9583 = vunpack.c.l.b16 %v7992
        %v9584 = vunpack.c.h.b16 %v7992
        %v9585 = vunpack.c.l.b16 %v7993
        %v9586 = vunpack.c.h.b16 %v7993
        %v9587 = vunpack.c.l.b16 %v7994
        %v9588 = vunpack.c.h.b16 %v7994
        %v9589 = vunpack.c.l.b16 %v7995
        %v9590 = vunpack.c.h.b16 %v7995
        %v9591 = vunpack.c.l.b16 %v7996
        %v9592 = vunpack.c.h.b16 %v7996
        %v9593 = vunpack.c.l.b16 %v7997
        %v9594 = vunpack.c.h.b16 %v7997
        %v9595 = vunpack.c.l.b16 %v7998
        %v9596 = vunpack.c.h.b16 %v7998
        %v9597 = vunpack.c.l.b16 %v7999
        %v9598 = vunpack.c.h.b16 %v7999
        %v9599 = vunpack.c.l.b16 %v8000
        %v9600 = vunpack.c.h.b16 %v8000
        %v9601 = vunpack.c.l.b16 %v8001
        %v9602 = vunpack.c.h.b16 %v8001
        %v9603 = vunpack.c.l.b16 %v8002
        %v9604 = vunpack.c.h.b16 %v8002
        %v9605 = vunpack.c.l.b16 %v8003
        %v9606 = vunpack.c.h.b16 %v8003
        %v9607 = vunpack.c.l.b16 %v8004
        %v9608 = vunpack.c.h.b16 %v8004
        %v9609 = vunpack.c.l.b16 %v8005
        %v9610 = vunpack.c.h.b16 %v8005
        %v9611 = vunpack.c.l.b16 %v8006
        %v9612 = vunpack.c.h.b16 %v8006
        %v9613 = vunpack.c.l.b16 %v8007
        %v9614 = vunpack.c.h.b16 %v8007
        %v9615 = vunpack.c.l.b16 %v8008
        %v9616 = vunpack.c.h.b16 %v8008
        %v9617 = vunpack.c.l.b16 %v8009
        %v9618 = vunpack.c.h.b16 %v8009
        %v9619 = vunpack.c.l.b16 %v8010
        %v9620 = vunpack.c.h.b16 %v8010
        %v9621 = vunpack.c.l.b16 %v8011
        %v9622 = vunpack.c.h.b16 %v8011
        %v9623 = vunpack.c.l.b16 %v8012
        %v9624 = vunpack.c.h.b16 %v8012
        %v9625 = vunpack.c.l.b16 %v8013
        %v9626 = vunpack.c.h.b16 %v8013
        %v9627 = vunpack.c.l.b16 %v8014
        %v9628 = vunpack.c.h.b16 %v8014
        %v9629 = vunpack.c.l.b16 %v8015
        %v9630 = vunpack.c.h.b16 %v8015
        %v9631 = vunpack.c.l.b16 %v8016
        %v9632 = vunpack.c.h.b16 %v8016
        %v9633 = vunpack.c.l.b16 %v8017
        %v9634 = vunpack.c.h.b16 %v8017
        %v9635 = vunpack.c.l.b16 %v8018
        %v9636 = vunpack.c.h.b16 %v8018
        %v9637 = vunpack.c.l.b16 %v8019
        %v9638 = vunpack.c.h.b16 %v8019
        %v9639 = vunpack.c.l.b16 %v8020
        %v9640 = vunpack.c.h.b16 %v8020
        %v9641 = vunpack.c.l.b16 %v8021
        %v9642 = vunpack.c.h.b16 %v8021
        %v9643 = vunpack.c.l.b16 %v8022
        %v9644 = vunpack.c.h.b16 %v8022
        %v9645 = vunpack.c.l.b16 %v8023
        %v9646 = vunpack.c.h.b16 %v8023
        %v9647 = vunpack.c.l.b16 %v8024
        %v9648 = vunpack.c.h.b16 %v8024
        %v9649 = vunpack.c.l.b16 %v8025
        %v9650 = vunpack.c.h.b16 %v8025
        %v9651 = vunpack.c.l.b16 %v8026
        %v9652 = vunpack.c.h.b16 %v8026
        %v9653 = vunpack.c.l.b16 %v8027
        %v9654 = vunpack.c.h.b16 %v8027
        %v9655 = vunpack.c.l.b16 %v8028
        %v9656 = vunpack.c.h.b16 %v8028
        %v9657 = vunpack.c.l.b16 %v8029
        %v9658 = vunpack.c.h.b16 %v8029
        %v9659 = vunpack.c.l.b16 %v8030
        %v9660 = vunpack.c.h.b16 %v8030
        %v9661 = vunpack.c.l.b16 %v8031
        %v9662 = vunpack.c.h.b16 %v8031
        %v9663 = vunpack.c.l.b16 %v8032
        %v9664 = vunpack.c.h.b16 %v8032
        %v9665 = vunpack.c.l.b16 %v8033
        %v9666 = vunpack.c.h.b16 %v8033
        %v9667 = vunpack.c.l.b16 %v8034
        %v9668 = vunpack.c.h.b16 %v8034
        %v9669 = vunpack.c.l.b16 %v8035
        %v9670 = vunpack.c.h.b16 %v8035
        %v9671 = vunpack.c.l.b16 %v8036
        %v9672 = vunpack.c.h.b16 %v8036
        %v9673 = vunpack.c.l.b16 %v8037
        %v9674 = vunpack.c.h.b16 %v8037
        %v9675 = vunpack.c.l.b16 %v8038
        %v9676 = vunpack.c.h.b16 %v8038
        %v9677 = vunpack.c.l.b16 %v8039
        %v9678 = vunpack.c.h.b16 %v8039
        %v9679 = vunpack.c.l.b16 %v8040
        %v9680 = vunpack.c.h.b16 %v8040
        %v9681 = vunpack.c.l.b16 %v8041
        %v9682 = vunpack.c.h.b16 %v8041
        %v9683 = vunpack.c.l.b16 %v8042
        %v9684 = vunpack.c.h.b16 %v8042
        %v9685 = vunpack.c.l.b16 %v8043
        %v9686 = vunpack.c.h.b16 %v8043
        %v9687 = vunpack.c.l.b16 %v8044
        %v9688 = vunpack.c.h.b16 %v8044
        %v9689 = vunpack.c.l.b16 %v8045
        %v9690 = vunpack.c.h.b16 %v8045
        %v9691 = vunpack.c.l.b16 %v8046
        %v9692 = vunpack.c.h.b16 %v8046
        %v9693 = vunpack.c.l.b16 %v8047
        %v9694 = vunpack.c.h.b16 %v8047
        %v9695 = vunpack.c.l.b16 %v8048
        %v9696 = vunpack.c.h.b16 %v8048
        %v9697 = vunpack.c.l.b16 %v8049
        %v9698 = vunpack.c.h.b16 %v8049
        %v9699 = vunpack.c.l.b16 %v8050
        %v9700 = vunpack.c.h.b16 %v8050
        %v9701 = vunpack.c.l.b16 %v8051
        %v9702 = vunpack.c.h.b16 %v8051
        %v9703 = vunpack.c.l.b16 %v8052
        %v9704 = vunpack.c.h.b16 %v8052
        %v9705 = vunpack.c.l.b16 %v8053
        %v9706 = vunpack.c.h.b16 %v8053
        %v9707 = vunpack.c.l.b16 %v8054
        %v9708 = vunpack.c.h.b16 %v8054
        %v9709 = vunpack.c.l.b16 %v8055
        %v9710 = vunpack.c.h.b16 %v8055
        %v9711 = vunpack.c.l.b16 %v8056
        %v9712 = vunpack.c.h.b16 %v8056
        %v9713 = vunpack.c.l.b16 %v8057
        %v9714 = vunpack.c.h.b16 %v8057
        %v9715 = vunpack.c.l.b16 %v8058
        %v9716 = vunpack.c.h.b16 %v8058
        %v9717 = vunpack.c.l.b16 %v8059
        %v9718 = vunpack.c.h.b16 %v8059
        %v9719 = vunpack.c.l.b16 %v8060
        %v9720 = vunpack.c.h.b16 %v8060
        %v9721 = vunpack.c.l.b16 %v8061
        %v9722 = vunpack.c.h.b16 %v8061
        %v9723 = vunpack.c.l.b16 %v8062
        %v9724 = vunpack.c.h.b16 %v8062
        %v9725 = vunpack.c.l.b16 %v8063
        %v9726 = vunpack.c.h.b16 %v8063
        %v9727 = vunpack.c.l.b16 %v8064
        %v9728 = vunpack.c.h.b16 %v8064
        %v9729 = vunpack.c.l.b16 %v8065
        %v9730 = vunpack.c.h.b16 %v8065
        %v9731 = vunpack.c.l.b16 %v8066
        %v9732 = vunpack.c.h.b16 %v8066
        %v9733 = vunpack.c.l.b16 %v8067
        %v9734 = vunpack.c.h.b16 %v8067
        %v9735 = vunpack.c.l.b16 %v8068
        %v9736 = vunpack.c.h.b16 %v8068
        %v9737 = vunpack.c.l.b16 %v8069
        %v9738 = vunpack.c.h.b16 %v8069
        %v9739 = vunpack.c.l.b16 %v8070
        %v9740 = vunpack.c.h.b16 %v8070
        %v9741 = vunpack.c.l.b16 %v8071
        %v9742 = vunpack.c.h.b16 %v8071
        %v9743 = vunpack.c.l.b16 %v8072
        %v9744 = vunpack.c.h.b16 %v8072
        %v9745 = vunpack.c.l.b16 %v8073
        %v9746 = vunpack.c.h.b16 %v8073
        %v9747 = vunpack.c.l.b16 %v8074
        %v9748 = vunpack.c.h.b16 %v8074
        %v9749 = vunpack.c.l.b16 %v8075
        %v9750 = vunpack.c.h.b16 %v8075
        %v9751 = vunpack.c.l.b16 %v8076
        %v9752 = vunpack.c.h.b16 %v8076
        %v9753 = vunpack.c.l.b16 %v8077
        %v9754 = vunpack.c.h.b16 %v8077
        %v9755 = vunpack.c.l.b16 %v8078
        %v9756 = vunpack.c.h.b16 %v8078
        %v9757 = vunpack.c.l.b16 %v8079
        %v9758 = vunpack.c.h.b16 %v8079
        %v9759 = vunpack.c.l.b16 %v8080
        %v9760 = vunpack.c.h.b16 %v8080
        %v9761 = vunpack.c.l.b16 %v8081
        %v9762 = vunpack.c.h.b16 %v8081
        %v9763 = vunpack.c.l.b16 %v8082
        %v9764 = vunpack.c.h.b16 %v8082
        %v9765 = vunpack.c.l.b16 %v8083
        %v9766 = vunpack.c.h.b16 %v8083
        %v9767 = vunpack.c.l.b16 %v8084
        %v9768 = vunpack.c.h.b16 %v8084
        %v9769 = vunpack.c.l.b16 %v8085
        %v9770 = vunpack.c.h.b16 %v8085
        %v9771 = vunpack.c.l.b16 %v8086
        %v9772 = vunpack.c.h.b16 %v8086
        %v9773 = vunpack.c.l.b16 %v8087
        %v9774 = vunpack.c.h.b16 %v8087
        %v9775 = vunpack.c.l.b16 %v8088
        %v9776 = vunpack.c.h.b16 %v8088
        %v9777 = vunpack.c.l.b16 %v8089
        %v9778 = vunpack.c.h.b16 %v8089
        %v9779 = vunpack.c.l.b16 %v8090
        %v9780 = vunpack.c.h.b16 %v8090
        %v9781 = vunpack.c.l.b16 %v8091
        %v9782 = vunpack.c.h.b16 %v8091
        %v9783 = vunpack.c.l.b16 %v8092
        %v9784 = vunpack.c.h.b16 %v8092
        %v9785 = vunpack.c.l.b16 %v8093
        %v9786 = vunpack.c.h.b16 %v8093
        %v9787 = vunpack.c.l.b16 %v8094
        %v9788 = vunpack.c.h.b16 %v8094
        %v9789 = vunpack.c.l.b16 %v8095
        %v9790 = vunpack.c.h.b16 %v8095
        %v9791 = vunpack.c.l.b16 %v8096
        %v9792 = vunpack.c.h.b16 %v8096
        %v9793 = vunpack.c.l.b16 %v8097
        %v9794 = vunpack.c.h.b16 %v8097
        %v9795 = vunpack.c.l.b16 %v8098
        %v9796 = vunpack.c.h.b16 %v8098
        %v9797 = vunpack.c.l.b16 %v8099
        %v9798 = vunpack.c.h.b16 %v8099
        %v9799 = vunpack.c.l.b16 %v8100
        %v9800 = vunpack.c.h.b16 %v8100
        %v9801 = vunpack.c.l.b16 %v8101
        %v9802 = vunpack.c.h.b16 %v8101
        %v9803 = vunpack.c.l.b16 %v8102
        %v9804 = vunpack.c.h.b16 %v8102
        %v9805 = vunpack.c.l.b16 %v8103
        %v9806 = vunpack.c.h.b16 %v8103
        %v9807 = vunpack.c.l.b16 %v8104
        %v9808 = vunpack.c.h.b16 %v8104
        %v9809 = vunpack.c.l.b16 %v8105
        %v9810 = vunpack.c.h.b16 %v8105
        %v9811 = vunpack.c.l.b16 %v8106
        %v9812 = vunpack.c.h.b16 %v8106
        %v9813 = vunpack.c.l.b16 %v8107
        %v9814 = vunpack.c.h.b16 %v8107
        %v9815 = vunpack.c.l.b16 %v8108
        %v9816 = vunpack.c.h.b16 %v8108
        %v9817 = vunpack.c.l.b16 %v8109
        %v9818 = vunpack.c.h.b16 %v8109
        %v9819 = vunpack.c.l.b16 %v8110
        %v9820 = vunpack.c.h.b16 %v8110
        %v9821 = vunpack.c.l.b16 %v8111
        %v9822 = vunpack.c.h.b16 %v8111
        %v9823 = vunpack.c.l.b16 %v8112
        %v9824 = vunpack.c.h.b16 %v8112
        %v9825 = vunpack.c.l.b16 %v8113
        %v9826 = vunpack.c.h.b16 %v8113
        %v9827 = vunpack.c.l.b16 %v8114
        %v9828 = vunpack.c.h.b16 %v8114
        %v9829 = vunpack.c.l.b16 %v8115
        %v9830 = vunpack.c.h.b16 %v8115
        %v9831 = vunpack.c.l.b16 %v8116
        %v9832 = vunpack.c.h.b16 %v8116
        %v9833 = vunpack.c.l.b16 %v8117
        %v9834 = vunpack.c.h.b16 %v8117
        %v9835 = vunpack.c.l.b16 %v8118
        %v9836 = vunpack.c.h.b16 %v8118
        %v9837 = vunpack.c.l.b16 %v8119
        %v9838 = vunpack.c.h.b16 %v8119
        %v9839 = vunpack.c.l.b16 %v8120
        %v9840 = vunpack.c.h.b16 %v8120
        %v9841 = vunpack.c.l.b16 %v8121
        %v9842 = vunpack.c.h.b16 %v8121
        %v9843 = vunpack.c.l.b16 %v8122
        %v9844 = vunpack.c.h.b16 %v8122
        %v9845 = vunpack.c.l.b16 %v8123
        %v9846 = vunpack.c.h.b16 %v8123
        %v9847 = vunpack.c.l.b16 %v8124
        %v9848 = vunpack.c.h.b16 %v8124
        %v9849 = vunpack.c.l.b16 %v8125
        %v9850 = vunpack.c.h.b16 %v8125
        %v9851 = vunpack.c.l.b16 %v8126
        %v9852 = vunpack.c.h.b16 %v8126
        %v9853 = vunpack.c.l.b16 %v8127
        %v9854 = vunpack.c.h.b16 %v8127
        %v9855 = vunpack.c.l.b16 %v8128
        %v9856 = vunpack.c.h.b16 %v8128
        %v9857 = vpack.c.b16 %v8709, %v8705
        %v9858 = vpack.c.b16 %v8710, %v8706
        %v9859 = vpack.c.b16 %v8711, %v8707
        %v9860 = vpack.c.b16 %v8712, %v8708
        %v9861 = vpack.c.b16 %v8717, %v8713
        %v9862 = vpack.c.b16 %v8718, %v8714
        %v9863 = vpack.c.b16 %v8719, %v8715
        %v9864 = vpack.c.b16 %v8720, %v8716
        %v9865 = vpack.c.b16 %v8725, %v8721
        %v9866 = vpack.c.b16 %v8726, %v8722
        %v9867 = vpack.c.b16 %v8727, %v8723
        %v9868 = vpack.c.b16 %v8728, %v8724
        %v9869 = vpack.c.b16 %v8733, %v8729
        %v9870 = vpack.c.b16 %v8734, %v8730
        %v9871 = vpack.c.b16 %v8735, %v8731
        %v9872 = vpack.c.b16 %v8736, %v8732
        %v9873 = vpack.c.b16 %v8741, %v8737
        %v9874 = vpack.c.b16 %v8742, %v8738
        %v9875 = vpack.c.b16 %v8743, %v8739
        %v9876 = vpack.c.b16 %v8744, %v8740
        %v9877 = vpack.c.b16 %v8749, %v8745
        %v9878 = vpack.c.b16 %v8750, %v8746
        %v9879 = vpack.c.b16 %v8751, %v8747
        %v9880 = vpack.c.b16 %v8752, %v8748
        %v9881 = vpack.c.b16 %v8757, %v8753
        %v9882 = vpack.c.b16 %v8758, %v8754
        %v9883 = vpack.c.b16 %v8759, %v8755
        %v9884 = vpack.c.b16 %v8760, %v8756
        %v9885 = vpack.c.b16 %v8765, %v8761
        %v9886 = vpack.c.b16 %v8766, %v8762
        %v9887 = vpack.c.b16 %v8767, %v8763
        %v9888 = vpack.c.b16 %v8768, %v8764
        %v9889 = vpack.c.b16 %v8773, %v8769
        %v9890 = vpack.c.b16 %v8774, %v8770
        %v9891 = vpack.c.b16 %v8775, %v8771
        %v9892 = vpack.c.b16 %v8776, %v8772
        %v9893 = vpack.c.b16 %v8781, %v8777
        %v9894 = vpack.c.b16 %v8782, %v8778
        %v9895 = vpack.c.b16 %v8783, %v8779
        %v9896 = vpack.c.b16 %v8784, %v8780
        %v9897 = vpack.c.b16 %v8789, %v8785
        %v9898 = vpack.c.b16 %v8790, %v8786
        %v9899 = vpack.c.b16 %v8791, %v8787
        %v9900 = vpack.c.b16 %v8792, %v8788
        %v9901 = vpack.c.b16 %v8797, %v8793
        %v9902 = vpack.c.b16 %v8798, %v8794
        %v9903 = vpack.c.b16 %v8799, %v8795
        %v9904 = vpack.c.b16 %v8800, %v8796
        %v9905 = vpack.c.b16 %v8805, %v8801
        %v9906 = vpack.c.b16 %v8806, %v8802
        %v9907 = vpack.c.b16 %v8807, %v8803
        %v9908 = vpack.c.b16 %v8808, %v8804
        %v9909 = vpack.c.b16 %v8813, %v8809
        %v9910 = vpack.c.b16 %v8814, %v8810
        %v9911 = vpack.c.b16 %v8815, %v8811
        %v9912 = vpack.c.b16 %v8816, %v8812
        %v9913 = vpack.c.b16 %v8821, %v8817
        %v9914 = vpack.c.b16 %v8822, %v8818
        %v9915 = vpack.c.b16 %v8823, %v8819
        %v9916 = vpack.c.b16 %v8824, %v8820
        %v9917 = vpack.c.b16 %v8829, %v8825
        %v9918 = vpack.c.b16 %v8830, %v8826
        %v9919 = vpack.c.b16 %v8831, %v8827
        %v9920 = vpack.c.b16 %v8832, %v8828
        %v9921 = vpack.c.b16 %v8837, %v8833
        %v9922 = vpack.c.b16 %v8838, %v8834
        %v9923 = vpack.c.b16 %v8839, %v8835
        %v9924 = vpack.c.b16 %v8840, %v8836
        %v9925 = vpack.c.b16 %v8845, %v8841
        %v9926 = vpack.c.b16 %v8846, %v8842
        %v9927 = vpack.c.b16 %v8847, %v8843
        %v9928 = vpack.c.b16 %v8848, %v8844
        %v9929 = vpack.c.b16 %v8853, %v8849
        %v9930 = vpack.c.b16 %v8854, %v8850
        %v9931 = vpack.c.b16 %v8855, %v8851
        %v9932 = vpack.c.b16 %v8856, %v8852
        %v9933 = vpack.c.b16 %v8861, %v8857
        %v9934 = vpack.c.b16 %v8862, %v8858
        %v9935 = vpack.c.b16 %v8863, %v8859
        %v9936 = vpack.c.b16 %v8864, %v8860
        %v9937 = vpack.c.b16 %v8869, %v8865
        %v9938 = vpack.c.b16 %v8870, %v8866
        %v9939 = vpack.c.b16 %v8871, %v8867
        %v9940 = vpack.c.b16 %v8872, %v8868
        %v9941 = vpack.c.b16 %v8877, %v8873
        %v9942 = vpack.c.b16 %v8878, %v8874
        %v9943 = vpack.c.b16 %v8879, %v8875
        %v9944 = vpack.c.b16 %v8880, %v8876
        %v9945 = vpack.c.b16 %v8885, %v8881
        %v9946 = vpack.c.b16 %v8886, %v8882
        %v9947 = vpack.c.b16 %v8887, %v8883
        %v9948 = vpack.c.b16 %v8888, %v8884
        %v9949 = vpack.c.b16 %v8893, %v8889
        %v9950 = vpack.c.b16 %v8894, %v8890
        %v9951 = vpack.c.b16 %v8895, %v8891
        %v9952 = vpack.c.b16 %v8896, %v8892
        %v9953 = vpack.c.b16 %v8901, %v8897
        %v9954 = vpack.c.b16 %v8902, %v8898
        %v9955 = vpack.c.b16 %v8903, %v8899
        %v9956 = vpack.c.b16 %v8904, %v8900
        %v9957 = vpack.c.b16 %v8909, %v8905
        %v9958 = vpack.c.b16 %v8910, %v8906
        %v9959 = vpack.c.b16 %v8911, %v8907
        %v9960 = vpack.c.b16 %v8912, %v8908
        %v9961 = vpack.c.b16 %v8917, %v8913
        %v9962 = vpack.c.b16 %v8918, %v8914
        %v9963 = vpack.c.b16 %v8919, %v8915
        %v9964 = vpack.c.b16 %v8920, %v8916
        %v9965 = vpack.c.b16 %v8925, %v8921
        %v9966 = vpack.c.b16 %v8926, %v8922
        %v9967 = vpack.c.b16 %v8927, %v8923
        %v9968 = vpack.c.b16 %v8928, %v8924
        %v9969 = vpack.c.b16 %v8933, %v8929
        %v9970 = vpack.c.b16 %v8934, %v8930
        %v9971 = vpack.c.b16 %v8935, %v8931
        %v9972 = vpack.c.b16 %v8936, %v8932
        %v9973 = vpack.c.b16 %v8941, %v8937
        %v9974 = vpack.c.b16 %v8942, %v8938
        %v9975 = vpack.c.b16 %v8943, %v8939
        %v9976 = vpack.c.b16 %v8944, %v8940
        %v9977 = vpack.c.b16 %v8949, %v8945
        %v9978 = vpack.c.b16 %v8950, %v8946
        %v9979 = vpack.c.b16 %v8951, %v8947
        %v9980 = vpack.c.b16 %v8952, %v8948
        %v9981 = vpack.c.b16 %v8957, %v8953
        %v9982 = vpack.c.b16 %v8958, %v8954
        %v9983 = vpack.c.b16 %v8959, %v8955
        %v9984 = vpack.c.b16 %v8960, %v8956
        %v9985 = vpack.c.b16 %v8965, %v8961
        %v9986 = vpack.c.b16 %v8966, %v8962
        %v9987 = vpack.c.b16 %v8967, %v8963
        %v9988 = vpack.c.b16 %v8968, %v8964
        %v9989 = vpack.c.b16 %v8973, %v8969
        %v9990 = vpack.c.b16 %v8974, %v8970
        %v9991 = vpack.c.b16 %v8975, %v8971
        %v9992 = vpack.c.b16 %v8976, %v8972
        %v9993 = vpack.c.b16 %v8981, %v8977
        %v9994 = vpack.c.b16 %v8982, %v8978
        %v9995 = vpack.c.b16 %v8983, %v8979
        %v9996 = vpack.c.b16 %v8984, %v8980
        %v9997 = vpack.c.b16 %v8989, %v8985
        %v9998 = vpack.c.b16 %v8990, %v8986
        %v9999 = vpack.c.b16 %v8991, %v8987
        %v10000 = vpack.c.b16 %v8992, %v8988
        %v10001 = vpack.c.b16 %v8997, %v8993
        %v10002 = vpack.c.b16 %v8998, %v8994
        %v10003 = vpack.c.b16 %v8999, %v8995
        %v10004 = vpack.c.b16 %v9000, %v8996
        %v10005 = vpack.c.b16 %v9005, %v9001
        %v10006 = vpack.c.b16 %v9006, %v9002
        %v10007 = vpack.c.b16 %v9007, %v9003
        %v10008 = vpack.c.b16 %v9008, %v9004
        %v10009 = vpack.c.b16 %v9013, %v9009
        %v10010 = vpack.c.b16 %v9014, %v9010
        %v10011 = vpack.c.b16 %v9015, %v9011
        %v10012 = vpack.c.b16 %v9016, %v9012
        %v10013 = vpack.c.b16 %v9021, %v9017
        %v10014 = vpack.c.b16 %v9022, %v9018
        %v10015 = vpack.c.b16 %v9023, %v9019
        %v10016 = vpack.c.b16 %v9024, %v9020
        %v10017 = vpack.c.b16 %v9029, %v9025
        %v10018 = vpack.c.b16 %v9030, %v9026
        %v10019 = vpack.c.b16 %v9031, %v9027
        %v10020 = vpack.c.b16 %v9032, %v9028
        %v10021 = vpack.c.b16 %v9037, %v9033
        %v10022 = vpack.c.b16 %v9038, %v9034
        %v10023 = vpack.c.b16 %v9039, %v9035
        %v10024 = vpack.c.b16 %v9040, %v9036
        %v10025 = vpack.c.b16 %v9045, %v9041
        %v10026 = vpack.c.b16 %v9046, %v9042
        %v10027 = vpack.c.b16 %v9047, %v9043
        %v10028 = vpack.c.b16 %v9048, %v9044
        %v10029 = vpack.c.b16 %v9053, %v9049
        %v10030 = vpack.c.b16 %v9054, %v9050
        %v10031 = vpack.c.b16 %v9055, %v9051
        %v10032 = vpack.c.b16 %v9056, %v9052
        %v10033 = vpack.c.b16 %v9061, %v9057
        %v10034 = vpack.c.b16 %v9062, %v9058
        %v10035 = vpack.c.b16 %v9063, %v9059
        %v10036 = vpack.c.b16 %v9064, %v9060
        %v10037 = vpack.c.b16 %v9069, %v9065
        %v10038 = vpack.c.b16 %v9070, %v9066
        %v10039 = vpack.c.b16 %v9071, %v9067
        %v10040 = vpack.c.b16 %v9072, %v9068
        %v10041 = vpack.c.b16 %v9077, %v9073
        %v10042 = vpack.c.b16 %v9078, %v9074
        %v10043 = vpack.c.b16 %v9079, %v9075
        %v10044 = vpack.c.b16 %v9080, %v9076
        %v10045 = vpack.c.b16 %v9085, %v9081
        %v10046 = vpack.c.b16 %v9086, %v9082
        %v10047 = vpack.c.b16 %v9087, %v9083
        %v10048 = vpack.c.b16 %v9088, %v9084
        %v10049 = vpack.c.b16 %v9093, %v9089
        %v10050 = vpack.c.b16 %v9094, %v9090
        %v10051 = vpack.c.b16 %v9095, %v9091
        %v10052 = vpack.c.b16 %v9096, %v9092
        %v10053 = vpack.c.b16 %v9101, %v9097
        %v10054 = vpack.c.b16 %v9102, %v9098
        %v10055 = vpack.c.b16 %v9103, %v9099
        %v10056 = vpack.c.b16 %v9104, %v9100
        %v10057 = vpack.c.b16 %v9109, %v9105
        %v10058 = vpack.c.b16 %v9110, %v9106
        %v10059 = vpack.c.b16 %v9111, %v9107
        %v10060 = vpack.c.b16 %v9112, %v9108
        %v10061 = vpack.c.b16 %v9117, %v9113
        %v10062 = vpack.c.b16 %v9118, %v9114
        %v10063 = vpack.c.b16 %v9119, %v9115
        %v10064 = vpack.c.b16 %v9120, %v9116
        %v10065 = vpack.c.b16 %v9125, %v9121
        %v10066 = vpack.c.b16 %v9126, %v9122
        %v10067 = vpack.c.b16 %v9127, %v9123
        %v10068 = vpack.c.b16 %v9128, %v9124
        %v10069 = vpack.c.b16 %v9133, %v9129
        %v10070 = vpack.c.b16 %v9134, %v9130
        %v10071 = vpack.c.b16 %v9135, %v9131
        %v10072 = vpack.c.b16 %v9136, %v9132
        %v10073 = vpack.c.b16 %v9141, %v9137
        %v10074 = vpack.c.b16 %v9142, %v9138
        %v10075 = vpack.c.b16 %v9143, %v9139
        %v10076 = vpack.c.b16 %v9144, %v9140
        %v10077 = vpack.c.b16 %v9149, %v9145
        %v10078 = vpack.c.b16 %v9150, %v9146
        %v10079 = vpack.c.b16 %v9151, %v9147
        %v10080 = vpack.c.b16 %v9152, %v9148
        %v10081 = vpack.c.b16 %v9157, %v9153
        %v10082 = vpack.c.b16 %v9158, %v9154
        %v10083 = vpack.c.b16 %v9159, %v9155
        %v10084 = vpack.c.b16 %v9160, %v9156
        %v10085 = vpack.c.b16 %v9165, %v9161
        %v10086 = vpack.c.b16 %v9166, %v9162
        %v10087 = vpack.c.b16 %v9167, %v9163
        %v10088 = vpack.c.b16 %v9168, %v9164
        %v10089 = vpack.c.b16 %v9173, %v9169
        %v10090 = vpack.c.b16 %v9174, %v9170
        %v10091 = vpack.c.b16 %v9175, %v9171
        %v10092 = vpack.c.b16 %v9176, %v9172
        %v10093 = vpack.c.b16 %v9181, %v9177
        %v10094 = vpack.c.b16 %v9182, %v9178
        %v10095 = vpack.c.b16 %v9183, %v9179
        %v10096 = vpack.c.b16 %v9184, %v9180
        %v10097 = vpack.c.b16 %v9189, %v9185
        %v10098 = vpack.c.b16 %v9190, %v9186
        %v10099 = vpack.c.b16 %v9191, %v9187
        %v10100 = vpack.c.b16 %v9192, %v9188
        %v10101 = vpack.c.b16 %v9197, %v9193
        %v10102 = vpack.c.b16 %v9198, %v9194
        %v10103 = vpack.c.b16 %v9199, %v9195
        %v10104 = vpack.c.b16 %v9200, %v9196
        %v10105 = vpack.c.b16 %v9205, %v9201
        %v10106 = vpack.c.b16 %v9206, %v9202
        %v10107 = vpack.c.b16 %v9207, %v9203
        %v10108 = vpack.c.b16 %v9208, %v9204
        %v10109 = vpack.c.b16 %v9213, %v9209
        %v10110 = vpack.c.b16 %v9214, %v9210
        %v10111 = vpack.c.b16 %v9215, %v9211
        %v10112 = vpack.c.b16 %v9216, %v9212
        %v10113 = vpack.c.b16 %v9221, %v9217
        %v10114 = vpack.c.b16 %v9222, %v9218
        %v10115 = vpack.c.b16 %v9223, %v9219
        %v10116 = vpack.c.b16 %v9224, %v9220
        %v10117 = vpack.c.b16 %v9229, %v9225
        %v10118 = vpack.c.b16 %v9230, %v9226
        %v10119 = vpack.c.b16 %v9231, %v9227
        %v10120 = vpack.c.b16 %v9232, %v9228
        %v10121 = vpack.c.b16 %v9237, %v9233
        %v10122 = vpack.c.b16 %v9238, %v9234
        %v10123 = vpack.c.b16 %v9239, %v9235
        %v10124 = vpack.c.b16 %v9240, %v9236
        %v10125 = vpack.c.b16 %v9245, %v9241
        %v10126 = vpack.c.b16 %v9246, %v9242
        %v10127 = vpack.c.b16 %v9247, %v9243
        %v10128 = vpack.c.b16 %v9248, %v9244
        %v10129 = vpack.c.b16 %v9253, %v9249
        %v10130 = vpack.c.b16 %v9254, %v9250
        %v10131 = vpack.c.b16 %v9255, %v9251
        %v10132 = vpack.c.b16 %v9256, %v9252
        %v10133 = vpack.c.b16 %v9261, %v9257
        %v10134 = vpack.c.b16 %v9262, %v9258
        %v10135 = vpack.c.b16 %v9263, %v9259
        %v10136 = vpack.c.b16 %v9264, %v9260
        %v10137 = vpack.c.b16 %v9269, %v9265
        %v10138 = vpack.c.b16 %v9270, %v9266
        %v10139 = vpack.c.b16 %v9271, %v9267
        %v10140 = vpack.c.b16 %v9272, %v9268
        %v10141 = vpack.c.b16 %v9277, %v9273
        %v10142 = vpack.c.b16 %v9278, %v9274
        %v10143 = vpack.c.b16 %v9279, %v9275
        %v10144 = vpack.c.b16 %v9280, %v9276
        %v10145 = vpack.c.b16 %v9285, %v9281
        %v10146 = vpack.c.b16 %v9286, %v9282
        %v10147 = vpack.c.b16 %v9287, %v9283
        %v10148 = vpack.c.b16 %v9288, %v9284
        %v10149 = vpack.c.b16 %v9293, %v9289
        %v10150 = vpack.c.b16 %v9294, %v9290
        %v10151 = vpack.c.b16 %v9295, %v9291
        %v10152 = vpack.c.b16 %v9296, %v9292
        %v10153 = vpack.c.b16 %v9301, %v9297
        %v10154 = vpack.c.b16 %v9302, %v9298
        %v10155 = vpack.c.b16 %v9303, %v9299
        %v10156 = vpack.c.b16 %v9304, %v9300
        %v10157 = vpack.c.b16 %v9309, %v9305
        %v10158 = vpack.c.b16 %v9310, %v9306
        %v10159 = vpack.c.b16 %v9311, %v9307
        %v10160 = vpack.c.b16 %v9312, %v9308
        %v10161 = vpack.c.b16 %v9317, %v9313
        %v10162 = vpack.c.b16 %v9318, %v9314
        %v10163 = vpack.c.b16 %v9319, %v9315
        %v10164 = vpack.c.b16 %v9320, %v9316
        %v10165 = vpack.c.b16 %v9325, %v9321
        %v10166 = vpack.c.b16 %v9326, %v9322
        %v10167 = vpack.c.b16 %v9327, %v9323
        %v10168 = vpack.c.b16 %v9328, %v9324
        %v10169 = vpack.c.b16 %v9333, %v9329
        %v10170 = vpack.c.b16 %v9334, %v9330
        %v10171 = vpack.c.b16 %v9335, %v9331
        %v10172 = vpack.c.b16 %v9336, %v9332
        %v10173 = vpack.c.b16 %v9341, %v9337
        %v10174 = vpack.c.b16 %v9342, %v9338
        %v10175 = vpack.c.b16 %v9343, %v9339
        %v10176 = vpack.c.b16 %v9344, %v9340
        %v10177 = vpack.c.b16 %v9349, %v9345
        %v10178 = vpack.c.b16 %v9350, %v9346
        %v10179 = vpack.c.b16 %v9351, %v9347
        %v10180 = vpack.c.b16 %v9352, %v9348
        %v10181 = vpack.c.b16 %v9357, %v9353
        %v10182 = vpack.c.b16 %v9358, %v9354
        %v10183 = vpack.c.b16 %v9359, %v9355
        %v10184 = vpack.c.b16 %v9360, %v9356
        %v10185 = vpack.c.b16 %v9365, %v9361
        %v10186 = vpack.c.b16 %v9366, %v9362
        %v10187 = vpack.c.b16 %v9367, %v9363
        %v10188 = vpack.c.b16 %v9368, %v9364
        %v10189 = vpack.c.b16 %v9373, %v9369
        %v10190 = vpack.c.b16 %v9374, %v9370
        %v10191 = vpack.c.b16 %v9375, %v9371
        %v10192 = vpack.c.b16 %v9376, %v9372
        %v10193 = vpack.c.b16 %v9381, %v9377
        %v10194 = vpack.c.b16 %v9382, %v9378
        %v10195 = vpack.c.b16 %v9383, %v9379
        %v10196 = vpack.c.b16 %v9384, %v9380
        %v10197 = vpack.c.b16 %v9389, %v9385
        %v10198 = vpack.c.b16 %v9390, %v9386
        %v10199 = vpack.c.b16 %v9391, %v9387
        %v10200 = vpack.c.b16 %v9392, %v9388
        %v10201 = vpack.c.b16 %v9397, %v9393
        %v10202 = vpack.c.b16 %v9398, %v9394
        %v10203 = vpack.c.b16 %v9399, %v9395
        %v10204 = vpack.c.b16 %v9400, %v9396
        %v10205 = vpack.c.b16 %v9405, %v9401
        %v10206 = vpack.c.b16 %v9406, %v9402
        %v10207 = vpack.c.b16 %v9407, %v9403
        %v10208 = vpack.c.b16 %v9408, %v9404
        %v10209 = vpack.c.b16 %v9413, %v9409
        %v10210 = vpack.c.b16 %v9414, %v9410
        %v10211 = vpack.c.b16 %v9415, %v9411
        %v10212 = vpack.c.b16 %v9416, %v9412
        %v10213 = vpack.c.b16 %v9421, %v9417
        %v10214 = vpack.c.b16 %v9422, %v9418
        %v10215 = vpack.c.b16 %v9423, %v9419
        %v10216 = vpack.c.b16 %v9424, %v9420
        %v10217 = vpack.c.b16 %v9429, %v9425
        %v10218 = vpack.c.b16 %v9430, %v9426
        %v10219 = vpack.c.b16 %v9431, %v9427
        %v10220 = vpack.c.b16 %v9432, %v9428
        %v10221 = vpack.c.b16 %v9437, %v9433
        %v10222 = vpack.c.b16 %v9438, %v9434
        %v10223 = vpack.c.b16 %v9439, %v9435
        %v10224 = vpack.c.b16 %v9440, %v9436
        %v10225 = vpack.c.b16 %v9445, %v9441
        %v10226 = vpack.c.b16 %v9446, %v9442
        %v10227 = vpack.c.b16 %v9447, %v9443
        %v10228 = vpack.c.b16 %v9448, %v9444
        %v10229 = vpack.c.b16 %v9453, %v9449
        %v10230 = vpack.c.b16 %v9454, %v9450
        %v10231 = vpack.c.b16 %v9455, %v9451
        %v10232 = vpack.c.b16 %v9456, %v9452
        %v10233 = vpack.c.b16 %v9461, %v9457
        %v10234 = vpack.c.b16 %v9462, %v9458
        %v10235 = vpack.c.b16 %v9463, %v9459
        %v10236 = vpack.c.b16 %v9464, %v9460
        %v10237 = vpack.c.b16 %v9469, %v9465
        %v10238 = vpack.c.b16 %v9470, %v9466
        %v10239 = vpack.c.b16 %v9471, %v9467
        %v10240 = vpack.c.b16 %v9472, %v9468
        %v10241 = vpack.c.b16 %v9477, %v9473
        %v10242 = vpack.c.b16 %v9478, %v9474
        %v10243 = vpack.c.b16 %v9479, %v9475
        %v10244 = vpack.c.b16 %v9480, %v9476
        %v10245 = vpack.c.b16 %v9485, %v9481
        %v10246 = vpack.c.b16 %v9486, %v9482
        %v10247 = vpack.c.b16 %v9487, %v9483
        %v10248 = vpack.c.b16 %v9488, %v9484
        %v10249 = vpack.c.b16 %v9493, %v9489
        %v10250 = vpack.c.b16 %v9494, %v9490
        %v10251 = vpack.c.b16 %v9495, %v9491
        %v10252 = vpack.c.b16 %v9496, %v9492
        %v10253 = vpack.c.b16 %v9501, %v9497
        %v10254 = vpack.c.b16 %v9502, %v9498
        %v10255 = vpack.c.b16 %v9503, %v9499
        %v10256 = vpack.c.b16 %v9504, %v9500
        %v10257 = vpack.c.b16 %v9509, %v9505
        %v10258 = vpack.c.b16 %v9510, %v9506
        %v10259 = vpack.c.b16 %v9511, %v9507
        %v10260 = vpack.c.b16 %v9512, %v9508
        %v10261 = vpack.c.b16 %v9517, %v9513
        %v10262 = vpack.c.b16 %v9518, %v9514
        %v10263 = vpack.c.b16 %v9519, %v9515
        %v10264 = vpack.c.b16 %v9520, %v9516
        %v10265 = vpack.c.b16 %v9525, %v9521
        %v10266 = vpack.c.b16 %v9526, %v9522
        %v10267 = vpack.c.b16 %v9527, %v9523
        %v10268 = vpack.c.b16 %v9528, %v9524
        %v10269 = vpack.c.b16 %v9533, %v9529
        %v10270 = vpack.c.b16 %v9534, %v9530
        %v10271 = vpack.c.b16 %v9535, %v9531
        %v10272 = vpack.c.b16 %v9536, %v9532
        %v10273 = vpack.c.b16 %v9541, %v9537
        %v10274 = vpack.c.b16 %v9542, %v9538
        %v10275 = vpack.c.b16 %v9543, %v9539
        %v10276 = vpack.c.b16 %v9544, %v9540
        %v10277 = vpack.c.b16 %v9549, %v9545
        %v10278 = vpack.c.b16 %v9550, %v9546
        %v10279 = vpack.c.b16 %v9551, %v9547
        %v10280 = vpack.c.b16 %v9552, %v9548
        %v10281 = vpack.c.b16 %v9557, %v9553
        %v10282 = vpack.c.b16 %v9558, %v9554
        %v10283 = vpack.c.b16 %v9559, %v9555
        %v10284 = vpack.c.b16 %v9560, %v9556
        %v10285 = vpack.c.b16 %v9565, %v9561
        %v10286 = vpack.c.b16 %v9566, %v9562
        %v10287 = vpack.c.b16 %v9567, %v9563
        %v10288 = vpack.c.b16 %v9568, %v9564
        %v10289 = vpack.c.b16 %v9573, %v9569
        %v10290 = vpack.c.b16 %v9574, %v9570
        %v10291 = vpack.c.b16 %v9575, %v9571
        %v10292 = vpack.c.b16 %v9576, %v9572
        %v10293 = vpack.c.b16 %v9581, %v9577
        %v10294 = vpack.c.b16 %v9582, %v9578
        %v10295 = vpack.c.b16 %v9583, %v9579
        %v10296 = vpack.c.b16 %v9584, %v9580
        %v10297 = vpack.c.b16 %v9589, %v9585
        %v10298 = vpack.c.b16 %v9590, %v9586
        %v10299 = vpack.c.b16 %v9591, %v9587
        %v10300 = vpack.c.b16 %v9592, %v9588
        %v10301 = vpack.c.b16 %v9597, %v9593
        %v10302 = vpack.c.b16 %v9598, %v9594
        %v10303 = vpack.c.b16 %v9599, %v9595
        %v10304 = vpack.c.b16 %v9600, %v9596
        %v10305 = vpack.c.b16 %v9605, %v9601
        %v10306 = vpack.c.b16 %v9606, %v9602
        %v10307 = vpack.c.b16 %v9607, %v9603
        %v10308 = vpack.c.b16 %v9608, %v9604
        %v10309 = vpack.c.b16 %v9613, %v9609
        %v10310 = vpack.c.b16 %v9614, %v9610
        %v10311 = vpack.c.b16 %v9615, %v9611
        %v10312 = vpack.c.b16 %v9616, %v9612
        %v10313 = vpack.c.b16 %v9621, %v9617
        %v10314 = vpack.c.b16 %v9622, %v9618
        %v10315 = vpack.c.b16 %v9623, %v9619
        %v10316 = vpack.c.b16 %v9624, %v9620
        %v10317 = vpack.c.b16 %v9629, %v9625
        %v10318 = vpack.c.b16 %v9630, %v9626
        %v10319 = vpack.c.b16 %v9631, %v9627
        %v10320 = vpack.c.b16 %v9632, %v9628
        %v10321 = vpack.c.b16 %v9637, %v9633
        %v10322 = vpack.c.b16 %v9638, %v9634
        %v10323 = vpack.c.b16 %v9639, %v9635
        %v10324 = vpack.c.b16 %v9640, %v9636
        %v10325 = vpack.c.b16 %v9645, %v9641
        %v10326 = vpack.c.b16 %v9646, %v9642
        %v10327 = vpack.c.b16 %v9647, %v9643
        %v10328 = vpack.c.b16 %v9648, %v9644
        %v10329 = vpack.c.b16 %v9653, %v9649
        %v10330 = vpack.c.b16 %v9654, %v9650
        %v10331 = vpack.c.b16 %v9655, %v9651
        %v10332 = vpack.c.b16 %v9656, %v9652
        %v10333 = vpack.c.b16 %v9661, %v9657
        %v10334 = vpack.c.b16 %v9662, %v9658
        %v10335 = vpack.c.b16 %v9663, %v9659
        %v10336 = vpack.c.b16 %v9664, %v9660
        %v10337 = vpack.c.b16 %v9669, %v9665
        %v10338 = vpack.c.b16 %v9670, %v9666
        %v10339 = vpack.c.b16 %v9671, %v9667
        %v10340 = vpack.c.b16 %v9672, %v9668
        %v10341 = vpack.c.b16 %v9677, %v9673
        %v10342 = vpack.c.b16 %v9678, %v9674
        %v10343 = vpack.c.b16 %v9679, %v9675
        %v10344 = vpack.c.b16 %v9680, %v9676
        %v10345 = vpack.c.b16 %v9685, %v9681
        %v10346 = vpack.c.b16 %v9686, %v9682
        %v10347 = vpack.c.b16 %v9687, %v9683
        %v10348 = vpack.c.b16 %v9688, %v9684
        %v10349 = vpack.c.b16 %v9693, %v9689
        %v10350 = vpack.c.b16 %v9694, %v9690
        %v10351 = vpack.c.b16 %v9695, %v9691
        %v10352 = vpack.c.b16 %v9696, %v9692
        %v10353 = vpack.c.b16 %v9701, %v9697
        %v10354 = vpack.c.b16 %v9702, %v9698
        %v10355 = vpack.c.b16 %v9703, %v9699
        %v10356 = vpack.c.b16 %v9704, %v9700
        %v10357 = vpack.c.b16 %v9709, %v9705
        %v10358 = vpack.c.b16 %v9710, %v9706
        %v10359 = vpack.c.b16 %v9711, %v9707
        %v10360 = vpack.c.b16 %v9712, %v9708
        %v10361 = vpack.c.b16 %v9717, %v9713
        %v10362 = vpack.c.b16 %v9718, %v9714
        %v10363 = vpack.c.b16 %v9719, %v9715
        %v10364 = vpack.c.b16 %v9720, %v9716
        %v10365 = vpack.c.b16 %v9725, %v9721
        %v10366 = vpack.c.b16 %v9726, %v9722
        %v10367 = vpack.c.b16 %v9727, %v9723
        %v10368 = vpack.c.b16 %v9728, %v9724
        %v10369 = vpack.c.b16 %v9733, %v9729
        %v10370 = vpack.c.b16 %v9734, %v9730
        %v10371 = vpack.c.b16 %v9735, %v9731
        %v10372 = vpack.c.b16 %v9736, %v9732
        %v10373 = vpack.c.b16 %v9741, %v9737
        %v10374 = vpack.c.b16 %v9742, %v9738
        %v10375 = vpack.c.b16 %v9743, %v9739
        %v10376 = vpack.c.b16 %v9744, %v9740
        %v10377 = vpack.c.b16 %v9749, %v9745
        %v10378 = vpack.c.b16 %v9750, %v9746
        %v10379 = vpack.c.b16 %v9751, %v9747
        %v10380 = vpack.c.b16 %v9752, %v9748
        %v10381 = vpack.c.b16 %v9757, %v9753
        %v10382 = vpack.c.b16 %v9758, %v9754
        %v10383 = vpack.c.b16 %v9759, %v9755
        %v10384 = vpack.c.b16 %v9760, %v9756
        %v10385 = vpack.c.b16 %v9765, %v9761
        %v10386 = vpack.c.b16 %v9766, %v9762
        %v10387 = vpack.c.b16 %v9767, %v9763
        %v10388 = vpack.c.b16 %v9768, %v9764
        %v10389 = vpack.c.b16 %v9773, %v9769
        %v10390 = vpack.c.b16 %v9774, %v9770
        %v10391 = vpack.c.b16 %v9775, %v9771
        %v10392 = vpack.c.b16 %v9776, %v9772
        %v10393 = vpack.c.b16 %v9781, %v9777
        %v10394 = vpack.c.b16 %v9782, %v9778
        %v10395 = vpack.c.b16 %v9783, %v9779
        %v10396 = vpack.c.b16 %v9784, %v9780
        %v10397 = vpack.c.b16 %v9789, %v9785
        %v10398 = vpack.c.b16 %v9790, %v9786
        %v10399 = vpack.c.b16 %v9791, %v9787
        %v10400 = vpack.c.b16 %v9792, %v9788
        %v10401 = vpack.c.b16 %v9797, %v9793
        %v10402 = vpack.c.b16 %v9798, %v9794
        %v10403 = vpack.c.b16 %v9799, %v9795
        %v10404 = vpack.c.b16 %v9800, %v9796
        %v10405 = vpack.c.b16 %v9805, %v9801
        %v10406 = vpack.c.b16 %v9806, %v9802
        %v10407 = vpack.c.b16 %v9807, %v9803
        %v10408 = vpack.c.b16 %v9808, %v9804
        %v10409 = vpack.c.b16 %v9813, %v9809
        %v10410 = vpack.c.b16 %v9814, %v9810
        %v10411 = vpack.c.b16 %v9815, %v9811
        %v10412 = vpack.c.b16 %v9816, %v9812
        %v10413 = vpack.c.b16 %v9821, %v9817
        %v10414 = vpack.c.b16 %v9822, %v9818
        %v10415 = vpack.c.b16 %v9823, %v9819
        %v10416 = vpack.c.b16 %v9824, %v9820
        %v10417 = vpack.c.b16 %v9829, %v9825
        %v10418 = vpack.c.b16 %v9830, %v9826
        %v10419 = vpack.c.b16 %v9831, %v9827
        %v10420 = vpack.c.b16 %v9832, %v9828
        %v10421 = vpack.c.b16 %v9837, %v9833
        %v10422 = vpack.c.b16 %v9838, %v9834
        %v10423 = vpack.c.b16 %v9839, %v9835
        %v10424 = vpack.c.b16 %v9840, %v9836
        %v10425 = vpack.c.b16 %v9845, %v9841
        %v10426 = vpack.c.b16 %v9846, %v9842
        %v10427 = vpack.c.b16 %v9847, %v9843
        %v10428 = vpack.c.b16 %v9848, %v9844
        %v10429 = vpack.c.b16 %v9853, %v9849
        %v10430 = vpack.c.b16 %v9854, %v9850
        %v10431 = vpack.c.b16 %v9855, %v9851
        %v10432 = vpack.c.b16 %v9856, %v9852
        %11009 = vmatprep.subr.bf16.mxu0 %v9886
        %11010 = vmatpush1.bf16.msra.mxu0 %v9885
        %11011 = vmatprep.subr.bf16.mxu0 %v9882
        %11012 = vmatpush1.bf16.msra.mxu0 %v9881
        %11013 = vmatprep.subr.bf16.mxu0 %v9878
        %11014 = vmatpush1.bf16.msra.mxu0 %v9877
        %11015 = vmatprep.subr.bf16.mxu0 %v9874
        %11016 = vmatpush1.bf16.msra.mxu0 %v9873
        %11017 = vmatprep.subr.bf16.mxu0 %v9870
        %11018 = vmatpush1.bf16.msra.mxu0 %v9869
        %11019 = vmatprep.subr.bf16.mxu0 %v9866
        %11020 = vmatpush1.bf16.msra.mxu0 %v9865
        %11021 = vmatprep.subr.bf16.mxu0 %v9862
        %11022 = vmatpush1.bf16.msra.mxu0 %v9861
        %11023 = vmatprep.subr.bf16.mxu0 %v9858
        %11024 = vmatpush1.bf16.msra.mxu0 %v9857
        %11025 = vmatprep.subr.bf16.mxu0 %v9918
        %11026 = vmatpush2.bf16.msra.mxu0 %v9917
        %11027 = vmatprep.subr.bf16.mxu0 %v9914
        %11028 = vmatpush2.bf16.msra.mxu0 %v9913
        %11029 = vmatprep.subr.bf16.mxu0 %v9910
        %11030 = vmatpush2.bf16.msra.mxu0 %v9909
        %11031 = vmatprep.subr.bf16.mxu0 %v9906
        %11032 = vmatpush2.bf16.msra.mxu0 %v9905
        %11033 = vmatprep.subr.bf16.mxu0 %v9902
        %11034 = vmatpush2.bf16.msra.mxu0 %v9901
        %11035 = vmatprep.subr.bf16.mxu0 %v9898
        %11036 = vmatpush2.bf16.msra.mxu0 %v9897
        %11037 = vmatprep.subr.bf16.mxu0 %v9894
        %11038 = vmatpush2.bf16.msra.mxu0 %v9893
        %11039 = vmatprep.subr.bf16.mxu0 %v9890
        %11040 = vmatpush2.bf16.msra.mxu0 %v9889
        %11041 = vmatprep.mubr.bf16.mxu0 %v7435
        %11042 = vmatmul.mubr.bf16.gmra.mxu0 %v7434
        %v11043 = vpop.f32.mrf.mxu0
        %v11044 = vadd.f32 0.0, %v11043
        %v11045 = vpop.f32.mrf.mxu0
        %v11046 = vadd.f32 0.0, %v11045
        %v11047 = vpop.f32.mrf.mxu0
        %v11048 = vpop.f32.mrf.mxu0
        %11049 = vdwg.mxu0
        %11050 = vmatprep.subr.bf16.mxu0 %v9950
        %11051 = vmatpush1.bf16.msra.mxu0 %v9949
        %11052 = vmatprep.subr.bf16.mxu0 %v9946
        %11053 = vmatpush1.bf16.msra.mxu0 %v9945
        %11054 = vmatprep.subr.bf16.mxu0 %v9942
        %11055 = vmatpush1.bf16.msra.mxu0 %v9941
        %11056 = vmatprep.subr.bf16.mxu0 %v9938
        %11057 = vmatpush1.bf16.msra.mxu0 %v9937
        %11058 = vmatprep.subr.bf16.mxu0 %v9934
        %11059 = vmatpush1.bf16.msra.mxu0 %v9933
        %11060 = vmatprep.subr.bf16.mxu0 %v9930
        %11061 = vmatpush1.bf16.msra.mxu0 %v9929
        %11062 = vmatprep.subr.bf16.mxu0 %v9926
        %11063 = vmatpush1.bf16.msra.mxu0 %v9925
        %11064 = vmatprep.subr.bf16.mxu0 %v9922
        %11065 = vmatpush1.bf16.msra.mxu0 %v9921
        %11066 = vmatprep.subr.bf16.mxu0 %v9982
        %11067 = vmatpush2.bf16.msra.mxu0 %v9981
        %11068 = vmatprep.subr.bf16.mxu0 %v9978
        %11069 = vmatpush2.bf16.msra.mxu0 %v9977
        %11070 = vmatprep.subr.bf16.mxu0 %v9974
        %11071 = vmatpush2.bf16.msra.mxu0 %v9973
        %11072 = vmatprep.subr.bf16.mxu0 %v9970
        %11073 = vmatpush2.bf16.msra.mxu0 %v9969
        %11074 = vmatprep.subr.bf16.mxu0 %v9966
        %11075 = vmatpush2.bf16.msra.mxu0 %v9965
        %11076 = vmatprep.subr.bf16.mxu0 %v9962
        %11077 = vmatpush2.bf16.msra.mxu0 %v9961
        %11078 = vmatprep.subr.bf16.mxu0 %v9958
        %11079 = vmatpush2.bf16.msra.mxu0 %v9957
        %11080 = vmatprep.subr.bf16.mxu0 %v9954
        %11081 = vmatpush2.bf16.msra.mxu0 %v9953
        %11082 = vmatprep.mubr.bf16.mxu0 %v7455
        %11083 = vmatmul.mubr.bf16.gmra.mxu0 %v7448
        %v11084 = vpop.f32.mrf.mxu0
        %v11085 = vadd.f32 %v11044, %v11084
        %v11086 = vpop.f32.mrf.mxu0
        %v11087 = vadd.f32 %v11046, %v11086
        %v11088 = vpop.f32.mrf.mxu0
        %v11089 = vpop.f32.mrf.mxu0
        %11090 = vdwg.mxu0
        %11091 = vmatprep.subr.bf16.mxu0 %v10014
        %11092 = vmatpush1.bf16.msra.mxu0 %v10013
        %11093 = vmatprep.subr.bf16.mxu0 %v10010
        %11094 = vmatpush1.bf16.msra.mxu0 %v10009
        %11095 = vmatprep.subr.bf16.mxu0 %v10006
        %11096 = vmatpush1.bf16.msra.mxu0 %v10005
        %11097 = vmatprep.subr.bf16.mxu0 %v10002
        %11098 = vmatpush1.bf16.msra.mxu0 %v10001
        %11099 = vmatprep.subr.bf16.mxu0 %v9998
        %11100 = vmatpush1.bf16.msra.mxu0 %v9997
        %11101 = vmatprep.subr.bf16.mxu0 %v9994
        %11102 = vmatpush1.bf16.msra.mxu0 %v9993
        %11103 = vmatprep.subr.bf16.mxu0 %v9990
        %11104 = vmatpush1.bf16.msra.mxu0 %v9989
        %11105 = vmatprep.subr.bf16.mxu0 %v9986
        %11106 = vmatpush1.bf16.msra.mxu0 %v9985
        %11107 = vmatprep.subr.bf16.mxu0 %v10046
        %11108 = vmatpush2.bf16.msra.mxu0 %v10045
        %11109 = vmatprep.subr.bf16.mxu0 %v10042
        %11110 = vmatpush2.bf16.msra.mxu0 %v10041
        %11111 = vmatprep.subr.bf16.mxu0 %v10038
        %11112 = vmatpush2.bf16.msra.mxu0 %v10037
        %11113 = vmatprep.subr.bf16.mxu0 %v10034
        %11114 = vmatpush2.bf16.msra.mxu0 %v10033
        %11115 = vmatprep.subr.bf16.mxu0 %v10030
        %11116 = vmatpush2.bf16.msra.mxu0 %v10029
        %11117 = vmatprep.subr.bf16.mxu0 %v10026
        %11118 = vmatpush2.bf16.msra.mxu0 %v10025
        %11119 = vmatprep.subr.bf16.mxu0 %v10022
        %11120 = vmatpush2.bf16.msra.mxu0 %v10021
        %11121 = vmatprep.subr.bf16.mxu0 %v10018
        %11122 = vmatpush2.bf16.msra.mxu0 %v10017
        %11123 = vmatprep.mubr.bf16.mxu0 %v7461
        %11124 = vmatmul.mubr.bf16.gmra.mxu0 %v7460
        %v11125 = vpop.f32.mrf.mxu0
        %v11126 = vadd.f32 %v11085, %v11125
        %v11127 = vpop.f32.mrf.mxu0
        %v11128 = vadd.f32 %v11087, %v11127
        %v11129 = vpop.f32.mrf.mxu0
        %v11130 = vpop.f32.mrf.mxu0
        %11131 = vdwg.mxu0
        %11132 = vmatprep.subr.bf16.mxu0 %v10078
        %11133 = vmatpush1.bf16.msra.mxu0 %v10077
        %11134 = vmatprep.subr.bf16.mxu0 %v10074
        %11135 = vmatpush1.bf16.msra.mxu0 %v10073
        %11136 = vmatprep.subr.bf16.mxu0 %v10070
        %11137 = vmatpush1.bf16.msra.mxu0 %v10069
        %11138 = vmatprep.subr.bf16.mxu0 %v10066
        %11139 = vmatpush1.bf16.msra.mxu0 %v10065
        %11140 = vmatprep.subr.bf16.mxu0 %v10062
        %11141 = vmatpush1.bf16.msra.mxu0 %v10061
        %11142 = vmatprep.subr.bf16.mxu0 %v10058
        %11143 = vmatpush1.bf16.msra.mxu0 %v10057
        %11144 = vmatprep.subr.bf16.mxu0 %v10054
        %11145 = vmatpush1.bf16.msra.mxu0 %v10053
        %11146 = vmatprep.subr.bf16.mxu0 %v10050
        %11147 = vmatpush1.bf16.msra.mxu0 %v10049
        %11148 = vmatprep.subr.bf16.mxu0 %v10110
        %11149 = vmatpush2.bf16.msra.mxu0 %v10109
        %11150 = vmatprep.subr.bf16.mxu0 %v10106
        %11151 = vmatpush2.bf16.msra.mxu0 %v10105
        %11152 = vmatprep.subr.bf16.mxu0 %v10102
        %11153 = vmatpush2.bf16.msra.mxu0 %v10101
        %11154 = vmatprep.subr.bf16.mxu0 %v10098
        %11155 = vmatpush2.bf16.msra.mxu0 %v10097
        %11156 = vmatprep.subr.bf16.mxu0 %v10094
        %11157 = vmatpush2.bf16.msra.mxu0 %v10093
        %11158 = vmatprep.subr.bf16.mxu0 %v10090
        %11159 = vmatpush2.bf16.msra.mxu0 %v10089
        %11160 = vmatprep.subr.bf16.mxu0 %v10086
        %11161 = vmatpush2.bf16.msra.mxu0 %v10085
        %11162 = vmatprep.subr.bf16.mxu0 %v10082
        %11163 = vmatpush2.bf16.msra.mxu0 %v10081
        %11164 = vmatprep.mubr.bf16.mxu0 %v7488
        %11165 = vmatmul.mubr.bf16.gmra.mxu0 %v7476
        %v11166 = vpop.f32.mrf.mxu0
        %v11167 = vadd.f32 %v11126, %v11166
        %v11168 = vpop.f32.mrf.mxu0
        %v11169 = vadd.f32 %v11128, %v11168
        %v11170 = vpop.f32.mrf.mxu0
        %v11171 = vpop.f32.mrf.mxu0
        %11172 = vdwg.mxu0
        %11173 = vmatprep.subr.bf16.mxu0 %v10142
        %11174 = vmatpush1.bf16.msra.mxu0 %v10141
        %11175 = vmatprep.subr.bf16.mxu0 %v10138
        %11176 = vmatpush1.bf16.msra.mxu0 %v10137
        %11177 = vmatprep.subr.bf16.mxu0 %v10134
        %11178 = vmatpush1.bf16.msra.mxu0 %v10133
        %11179 = vmatprep.subr.bf16.mxu0 %v10130
        %11180 = vmatpush1.bf16.msra.mxu0 %v10129
        %11181 = vmatprep.subr.bf16.mxu0 %v10126
        %11182 = vmatpush1.bf16.msra.mxu0 %v10125
        %11183 = vmatprep.subr.bf16.mxu0 %v10122
        %11184 = vmatpush1.bf16.msra.mxu0 %v10121
        %11185 = vmatprep.subr.bf16.mxu0 %v10118
        %11186 = vmatpush1.bf16.msra.mxu0 %v10117
        %11187 = vmatprep.subr.bf16.mxu0 %v10114
        %11188 = vmatpush1.bf16.msra.mxu0 %v10113
        %11189 = vmatprep.subr.bf16.mxu0 %v10174
        %11190 = vmatpush2.bf16.msra.mxu0 %v10173
        %11191 = vmatprep.subr.bf16.mxu0 %v10170
        %11192 = vmatpush2.bf16.msra.mxu0 %v10169
        %11193 = vmatprep.subr.bf16.mxu0 %v10166
        %11194 = vmatpush2.bf16.msra.mxu0 %v10165
        %11195 = vmatprep.subr.bf16.mxu0 %v10162
        %11196 = vmatpush2.bf16.msra.mxu0 %v10161
        %11197 = vmatprep.subr.bf16.mxu0 %v10158
        %11198 = vmatpush2.bf16.msra.mxu0 %v10157
        %11199 = vmatprep.subr.bf16.mxu0 %v10154
        %11200 = vmatpush2.bf16.msra.mxu0 %v10153
        %11201 = vmatprep.subr.bf16.mxu0 %v10150
        %11202 = vmatpush2.bf16.msra.mxu0 %v10149
        %11203 = vmatprep.subr.bf16.mxu0 %v10146
        %11204 = vmatpush2.bf16.msra.mxu0 %v10145
        %11205 = vmatprep.mubr.bf16.mxu0 %v7499
        %11206 = vmatmul.mubr.bf16.gmra.mxu0 %v7496
        %v11207 = vpop.f32.mrf.mxu0
        %v11208 = vadd.f32 %v11167, %v11207
        %v11209 = vpop.f32.mrf.mxu0
        %v11210 = vadd.f32 %v11169, %v11209
        %v11211 = vpop.f32.mrf.mxu0
        %v11212 = vpop.f32.mrf.mxu0
        %11213 = vdwg.mxu0
        %11214 = vmatprep.subr.bf16.mxu0 %v10206
        %11215 = vmatpush1.bf16.msra.mxu0 %v10205
        %11216 = vmatprep.subr.bf16.mxu0 %v10202
        %11217 = vmatpush1.bf16.msra.mxu0 %v10201
        %11218 = vmatprep.subr.bf16.mxu0 %v10198
        %11219 = vmatpush1.bf16.msra.mxu0 %v10197
        %11220 = vmatprep.subr.bf16.mxu0 %v10194
        %11221 = vmatpush1.bf16.msra.mxu0 %v10193
        %11222 = vmatprep.subr.bf16.mxu0 %v10190
        %11223 = vmatpush1.bf16.msra.mxu0 %v10189
        %11224 = vmatprep.subr.bf16.mxu0 %v10186
        %11225 = vmatpush1.bf16.msra.mxu0 %v10185
        %11226 = vmatprep.subr.bf16.mxu0 %v10182
        %11227 = vmatpush1.bf16.msra.mxu0 %v10181
        %11228 = vmatprep.subr.bf16.mxu0 %v10178
        %11229 = vmatpush1.bf16.msra.mxu0 %v10177
        %11230 = vmatprep.subr.bf16.mxu0 %v10238
        %11231 = vmatpush2.bf16.msra.mxu0 %v10237
        %11232 = vmatprep.subr.bf16.mxu0 %v10234
        %11233 = vmatpush2.bf16.msra.mxu0 %v10233
        %11234 = vmatprep.subr.bf16.mxu0 %v10230
        %11235 = vmatpush2.bf16.msra.mxu0 %v10229
        %11236 = vmatprep.subr.bf16.mxu0 %v10226
        %11237 = vmatpush2.bf16.msra.mxu0 %v10225
        %11238 = vmatprep.subr.bf16.mxu0 %v10222
        %11239 = vmatpush2.bf16.msra.mxu0 %v10221
        %11240 = vmatprep.subr.bf16.mxu0 %v10218
        %11241 = vmatpush2.bf16.msra.mxu0 %v10217
        %11242 = vmatprep.subr.bf16.mxu0 %v10214
        %11243 = vmatpush2.bf16.msra.mxu0 %v10213
        %11244 = vmatprep.subr.bf16.mxu0 %v10210
        %11245 = vmatpush2.bf16.msra.mxu0 %v10209
        %11246 = vmatprep.mubr.bf16.mxu0 %v7516
        %11247 = vmatmul.mubr.bf16.gmra.mxu0 %v7509
        %v11248 = vpop.f32.mrf.mxu0
        %v11249 = vadd.f32 %v11208, %v11248
        %v11250 = vpop.f32.mrf.mxu0
        %v11251 = vadd.f32 %v11210, %v11250
        %v11252 = vpop.f32.mrf.mxu0
        %v11253 = vpop.f32.mrf.mxu0
        %11254 = vdwg.mxu0
        %11255 = vmatprep.subr.bf16.mxu0 %v10270
        %11256 = vmatpush1.bf16.msra.mxu0 %v10269
        %11257 = vmatprep.subr.bf16.mxu0 %v10266
        %11258 = vmatpush1.bf16.msra.mxu0 %v10265
        %11259 = vmatprep.subr.bf16.mxu0 %v10262
        %11260 = vmatpush1.bf16.msra.mxu0 %v10261
        %11261 = vmatprep.subr.bf16.mxu0 %v10258
        %11262 = vmatpush1.bf16.msra.mxu0 %v10257
        %11263 = vmatprep.subr.bf16.mxu0 %v10254
        %11264 = vmatpush1.bf16.msra.mxu0 %v10253
        %11265 = vmatprep.subr.bf16.mxu0 %v10250
        %11266 = vmatpush1.bf16.msra.mxu0 %v10249
        %11267 = vmatprep.subr.bf16.mxu0 %v10246
        %11268 = vmatpush1.bf16.msra.mxu0 %v10245
        %11269 = vmatprep.subr.bf16.mxu0 %v10242
        %11270 = vmatpush1.bf16.msra.mxu0 %v10241
        %11271 = vmatprep.subr.bf16.mxu0 %v10302
        %11272 = vmatpush2.bf16.msra.mxu0 %v10301
        %11273 = vmatprep.subr.bf16.mxu0 %v10298
        %11274 = vmatpush2.bf16.msra.mxu0 %v10297
        %11275 = vmatprep.subr.bf16.mxu0 %v10294
        %11276 = vmatpush2.bf16.msra.mxu0 %v10293
        %11277 = vmatprep.subr.bf16.mxu0 %v10290
        %11278 = vmatpush2.bf16.msra.mxu0 %v10289
        %11279 = vmatprep.subr.bf16.mxu0 %v10286
        %11280 = vmatpush2.bf16.msra.mxu0 %v10285
        %11281 = vmatprep.subr.bf16.mxu0 %v10282
        %11282 = vmatpush2.bf16.msra.mxu0 %v10281
        %11283 = vmatprep.subr.bf16.mxu0 %v10278
        %11284 = vmatpush2.bf16.msra.mxu0 %v10277
        %11285 = vmatprep.subr.bf16.mxu0 %v10274
        %11286 = vmatpush2.bf16.msra.mxu0 %v10273
        %11287 = vmatprep.mubr.bf16.mxu0 %v7522
        %11288 = vmatmul.mubr.bf16.gmra.mxu0 %v7521
        %v11289 = vpop.f32.mrf.mxu0
        %v11290 = vadd.f32 %v11249, %v11289
        %v11291 = vpop.f32.mrf.mxu0
        %v11292 = vadd.f32 %v11251, %v11291
        %v11293 = vpop.f32.mrf.mxu0
        %v11294 = vpop.f32.mrf.mxu0
        %11295 = vdwg.mxu0
        %11296 = vmatprep.subr.bf16.mxu0 %v10334
        %11297 = vmatpush1.bf16.msra.mxu0 %v10333
        %11298 = vmatprep.subr.bf16.mxu0 %v10330
        %11299 = vmatpush1.bf16.msra.mxu0 %v10329
        %11300 = vmatprep.subr.bf16.mxu0 %v10326
        %11301 = vmatpush1.bf16.msra.mxu0 %v10325
        %11302 = vmatprep.subr.bf16.mxu0 %v10322
        %11303 = vmatpush1.bf16.msra.mxu0 %v10321
        %11304 = vmatprep.subr.bf16.mxu0 %v10318
        %11305 = vmatpush1.bf16.msra.mxu0 %v10317
        %11306 = vmatprep.subr.bf16.mxu0 %v10314
        %11307 = vmatpush1.bf16.msra.mxu0 %v10313
        %11308 = vmatprep.subr.bf16.mxu0 %v10310
        %11309 = vmatpush1.bf16.msra.mxu0 %v10309
        %11310 = vmatprep.subr.bf16.mxu0 %v10306
        %11311 = vmatpush1.bf16.msra.mxu0 %v10305
        %11312 = vmatprep.subr.bf16.mxu0 %v10366
        %11313 = vmatpush2.bf16.msra.mxu0 %v10365
        %11314 = vmatprep.subr.bf16.mxu0 %v10362
        %11315 = vmatpush2.bf16.msra.mxu0 %v10361
        %11316 = vmatprep.subr.bf16.mxu0 %v10358
        %11317 = vmatpush2.bf16.msra.mxu0 %v10357
        %11318 = vmatprep.subr.bf16.mxu0 %v10354
        %11319 = vmatpush2.bf16.msra.mxu0 %v10353
        %11320 = vmatprep.subr.bf16.mxu0 %v10350
        %11321 = vmatpush2.bf16.msra.mxu0 %v10349
        %11322 = vmatprep.subr.bf16.mxu0 %v10346
        %11323 = vmatpush2.bf16.msra.mxu0 %v10345
        %11324 = vmatprep.subr.bf16.mxu0 %v10342
        %11325 = vmatpush2.bf16.msra.mxu0 %v10341
        %11326 = vmatprep.subr.bf16.mxu0 %v10338
        %11327 = vmatpush2.bf16.msra.mxu0 %v10337
        %11328 = vmatprep.mubr.bf16.mxu0 %v7540
        %11329 = vmatmul.mubr.bf16.gmra.mxu0 %v7532
        %v11330 = vpop.f32.mrf.mxu0
        %v11331 = vadd.f32 %v11290, %v11330
        %v11332 = vpop.f32.mrf.mxu0
        %v11333 = vadd.f32 %v11292, %v11332
        %v11334 = vpop.f32.mrf.mxu0
        %v11335 = vpop.f32.mrf.mxu0
        %11336 = vdwg.mxu0
        %11337 = vmatprep.subr.bf16.mxu0 %v10398
        %11338 = vmatpush1.bf16.msra.mxu0 %v10397
        %11339 = vmatprep.subr.bf16.mxu0 %v10394
        %11340 = vmatpush1.bf16.msra.mxu0 %v10393
        %11341 = vmatprep.subr.bf16.mxu0 %v10390
        %11342 = vmatpush1.bf16.msra.mxu0 %v10389
        %11343 = vmatprep.subr.bf16.mxu0 %v10386
        %11344 = vmatpush1.bf16.msra.mxu0 %v10385
        %11345 = vmatprep.subr.bf16.mxu0 %v10382
        %11346 = vmatpush1.bf16.msra.mxu0 %v10381
        %11347 = vmatprep.subr.bf16.mxu0 %v10378
        %11348 = vmatpush1.bf16.msra.mxu0 %v10377
        %11349 = vmatprep.subr.bf16.mxu0 %v10374
        %11350 = vmatpush1.bf16.msra.mxu0 %v10373
        %11351 = vmatprep.subr.bf16.mxu0 %v10370
        %11352 = vmatpush1.bf16.msra.mxu0 %v10369
        %11353 = vmatprep.subr.bf16.mxu0 %v10430
        %11354 = vmatpush2.bf16.msra.mxu0 %v10429
        %11355 = vmatprep.subr.bf16.mxu0 %v10426
        %11356 = vmatpush2.bf16.msra.mxu0 %v10425
        %11357 = vmatprep.subr.bf16.mxu0 %v10422
        %11358 = vmatpush2.bf16.msra.mxu0 %v10421
        %11359 = vmatprep.subr.bf16.mxu0 %v10418
        %11360 = vmatpush2.bf16.msra.mxu0 %v10417
        %11361 = vmatprep.subr.bf16.mxu0 %v10414
        %11362 = vmatpush2.bf16.msra.mxu0 %v10413
        %11363 = vmatprep.subr.bf16.mxu0 %v10410
        %11364 = vmatpush2.bf16.msra.mxu0 %v10409
        %11365 = vmatprep.subr.bf16.mxu0 %v10406
        %11366 = vmatpush2.bf16.msra.mxu0 %v10405
        %11367 = vmatprep.subr.bf16.mxu0 %v10402
        %11368 = vmatpush2.bf16.msra.mxu0 %v10401
        %11369 = vmatprep.mubr.bf16.mxu0 %v7550
        %11370 = vmatmul.mubr.bf16.gmra.mxu0 %v7547
        %v11371 = vpop.f32.mrf.mxu0
        %v11372 = vadd.f32 %v11331, %v11371
        %v11373 = vpop.f32.mrf.mxu0
        %v11374 = vadd.f32 %v11333, %v11373
        %v11375 = vpop.f32.mrf.mxu0
        %v11376 = vpop.f32.mrf.mxu0
        %11377 = vdwg.mxu0
        %11378 = vmatprep.subr.bf16.mxu0 %v9888
        %11379 = vmatpush1.bf16.msra.mxu0 %v9887
        %11380 = vmatprep.subr.bf16.mxu0 %v9884
        %11381 = vmatpush1.bf16.msra.mxu0 %v9883
        %11382 = vmatprep.subr.bf16.mxu0 %v9880
        %11383 = vmatpush1.bf16.msra.mxu0 %v9879
        %11384 = vmatprep.subr.bf16.mxu0 %v9876
        %11385 = vmatpush1.bf16.msra.mxu0 %v9875
        %11386 = vmatprep.subr.bf16.mxu0 %v9872
        %11387 = vmatpush1.bf16.msra.mxu0 %v9871
        %11388 = vmatprep.subr.bf16.mxu0 %v9868
        %11389 = vmatpush1.bf16.msra.mxu0 %v9867
        %11390 = vmatprep.subr.bf16.mxu0 %v9864
        %11391 = vmatpush1.bf16.msra.mxu0 %v9863
        %11392 = vmatprep.subr.bf16.mxu0 %v9860
        %11393 = vmatpush1.bf16.msra.mxu0 %v9859
        %11394 = vmatprep.subr.bf16.mxu0 %v9920
        %11395 = vmatpush2.bf16.msra.mxu0 %v9919
        %11396 = vmatprep.subr.bf16.mxu0 %v9916
        %11397 = vmatpush2.bf16.msra.mxu0 %v9915
        %11398 = vmatprep.subr.bf16.mxu0 %v9912
        %11399 = vmatpush2.bf16.msra.mxu0 %v9911
        %11400 = vmatprep.subr.bf16.mxu0 %v9908
        %11401 = vmatpush2.bf16.msra.mxu0 %v9907
        %11402 = vmatprep.subr.bf16.mxu0 %v9904
        %11403 = vmatpush2.bf16.msra.mxu0 %v9903
        %11404 = vmatprep.subr.bf16.mxu0 %v9900
        %11405 = vmatpush2.bf16.msra.mxu0 %v9899
        %11406 = vmatprep.subr.bf16.mxu0 %v9896
        %11407 = vmatpush2.bf16.msra.mxu0 %v9895
        %11408 = vmatprep.subr.bf16.mxu0 %v9892
        %11409 = vmatpush2.bf16.msra.mxu0 %v9891
        %11410 = vmatprep.mubr.bf16.mxu0 %v7435
        %11411 = vmatmul.mubr.bf16.gmra.mxu0 %v7434
        %v11412 = vpop.f32.mrf.mxu0
        %v11413 = vadd.f32 0.0, %v11412
        %v11414 = vpop.f32.mrf.mxu0
        %v11415 = vadd.f32 0.0, %v11414
        %v11416 = vpop.f32.mrf.mxu0
        %v11417 = vpop.f32.mrf.mxu0
        %11418 = vdwg.mxu0
        %11419 = vmatprep.subr.bf16.mxu0 %v9952
        %11420 = vmatpush1.bf16.msra.mxu0 %v9951
        %11421 = vmatprep.subr.bf16.mxu0 %v9948
        %11422 = vmatpush1.bf16.msra.mxu0 %v9947
        %11423 = vmatprep.subr.bf16.mxu0 %v9944
        %11424 = vmatpush1.bf16.msra.mxu0 %v9943
        %11425 = vmatprep.subr.bf16.mxu0 %v9940
        %11426 = vmatpush1.bf16.msra.mxu0 %v9939
        %11427 = vmatprep.subr.bf16.mxu0 %v9936
        %11428 = vmatpush1.bf16.msra.mxu0 %v9935
        %11429 = vmatprep.subr.bf16.mxu0 %v9932
        %11430 = vmatpush1.bf16.msra.mxu0 %v9931
        %11431 = vmatprep.subr.bf16.mxu0 %v9928
        %11432 = vmatpush1.bf16.msra.mxu0 %v9927
        %11433 = vmatprep.subr.bf16.mxu0 %v9924
        %11434 = vmatpush1.bf16.msra.mxu0 %v9923
        %11435 = vmatprep.subr.bf16.mxu0 %v9984
        %11436 = vmatpush2.bf16.msra.mxu0 %v9983
        %11437 = vmatprep.subr.bf16.mxu0 %v9980
        %11438 = vmatpush2.bf16.msra.mxu0 %v9979
        %11439 = vmatprep.subr.bf16.mxu0 %v9976
        %11440 = vmatpush2.bf16.msra.mxu0 %v9975
        %11441 = vmatprep.subr.bf16.mxu0 %v9972
        %11442 = vmatpush2.bf16.msra.mxu0 %v9971
        %11443 = vmatprep.subr.bf16.mxu0 %v9968
        %11444 = vmatpush2.bf16.msra.mxu0 %v9967
        %11445 = vmatprep.subr.bf16.mxu0 %v9964
        %11446 = vmatpush2.bf16.msra.mxu0 %v9963
        %11447 = vmatprep.subr.bf16.mxu0 %v9960
        %11448 = vmatpush2.bf16.msra.mxu0 %v9959
        %11449 = vmatprep.subr.bf16.mxu0 %v9956
        %11450 = vmatpush2.bf16.msra.mxu0 %v9955
        %11451 = vmatprep.mubr.bf16.mxu0 %v7455
        %11452 = vmatmul.mubr.bf16.gmra.mxu0 %v7448
        %v11453 = vpop.f32.mrf.mxu0
        %v11454 = vadd.f32 %v11413, %v11453
        %v11455 = vpop.f32.mrf.mxu0
        %v11456 = vadd.f32 %v11415, %v11455
        %v11457 = vpop.f32.mrf.mxu0
        %v11458 = vpop.f32.mrf.mxu0
        %11459 = vdwg.mxu0
        %11460 = vmatprep.subr.bf16.mxu0 %v10016
        %11461 = vmatpush1.bf16.msra.mxu0 %v10015
        %11462 = vmatprep.subr.bf16.mxu0 %v10012
        %11463 = vmatpush1.bf16.msra.mxu0 %v10011
        %11464 = vmatprep.subr.bf16.mxu0 %v10008
        %11465 = vmatpush1.bf16.msra.mxu0 %v10007
        %11466 = vmatprep.subr.bf16.mxu0 %v10004
        %11467 = vmatpush1.bf16.msra.mxu0 %v10003
        %11468 = vmatprep.subr.bf16.mxu0 %v10000
        %11469 = vmatpush1.bf16.msra.mxu0 %v9999
        %11470 = vmatprep.subr.bf16.mxu0 %v9996
        %11471 = vmatpush1.bf16.msra.mxu0 %v9995
        %11472 = vmatprep.subr.bf16.mxu0 %v9992
        %11473 = vmatpush1.bf16.msra.mxu0 %v9991
        %11474 = vmatprep.subr.bf16.mxu0 %v9988
        %11475 = vmatpush1.bf16.msra.mxu0 %v9987
        %11476 = vmatprep.subr.bf16.mxu0 %v10048
        %11477 = vmatpush2.bf16.msra.mxu0 %v10047
        %11478 = vmatprep.subr.bf16.mxu0 %v10044
        %11479 = vmatpush2.bf16.msra.mxu0 %v10043
        %11480 = vmatprep.subr.bf16.mxu0 %v10040
        %11481 = vmatpush2.bf16.msra.mxu0 %v10039
        %11482 = vmatprep.subr.bf16.mxu0 %v10036
        %11483 = vmatpush2.bf16.msra.mxu0 %v10035
        %11484 = vmatprep.subr.bf16.mxu0 %v10032
        %11485 = vmatpush2.bf16.msra.mxu0 %v10031
        %11486 = vmatprep.subr.bf16.mxu0 %v10028
        %11487 = vmatpush2.bf16.msra.mxu0 %v10027
        %11488 = vmatprep.subr.bf16.mxu0 %v10024
        %11489 = vmatpush2.bf16.msra.mxu0 %v10023
        %11490 = vmatprep.subr.bf16.mxu0 %v10020
        %11491 = vmatpush2.bf16.msra.mxu0 %v10019
        %11492 = vmatprep.mubr.bf16.mxu0 %v7461
        %11493 = vmatmul.mubr.bf16.gmra.mxu0 %v7460
        %v11494 = vpop.f32.mrf.mxu0
        %v11495 = vadd.f32 %v11454, %v11494
        %v11496 = vpop.f32.mrf.mxu0
        %v11497 = vadd.f32 %v11456, %v11496
        %v11498 = vpop.f32.mrf.mxu0
        %v11499 = vpop.f32.mrf.mxu0
        %11500 = vdwg.mxu0
        %11501 = vmatprep.subr.bf16.mxu0 %v10080
        %11502 = vmatpush1.bf16.msra.mxu0 %v10079
        %11503 = vmatprep.subr.bf16.mxu0 %v10076
        %11504 = vmatpush1.bf16.msra.mxu0 %v10075
        %11505 = vmatprep.subr.bf16.mxu0 %v10072
        %11506 = vmatpush1.bf16.msra.mxu0 %v10071
        %11507 = vmatprep.subr.bf16.mxu0 %v10068
        %11508 = vmatpush1.bf16.msra.mxu0 %v10067
        %11509 = vmatprep.subr.bf16.mxu0 %v10064
        %11510 = vmatpush1.bf16.msra.mxu0 %v10063
        %11511 = vmatprep.subr.bf16.mxu0 %v10060
        %11512 = vmatpush1.bf16.msra.mxu0 %v10059
        %11513 = vmatprep.subr.bf16.mxu0 %v10056
        %11514 = vmatpush1.bf16.msra.mxu0 %v10055
        %11515 = vmatprep.subr.bf16.mxu0 %v10052
        %11516 = vmatpush1.bf16.msra.mxu0 %v10051
        %11517 = vmatprep.subr.bf16.mxu0 %v10112
        %11518 = vmatpush2.bf16.msra.mxu0 %v10111
        %11519 = vmatprep.subr.bf16.mxu0 %v10108
        %11520 = vmatpush2.bf16.msra.mxu0 %v10107
        %11521 = vmatprep.subr.bf16.mxu0 %v10104
        %11522 = vmatpush2.bf16.msra.mxu0 %v10103
        %11523 = vmatprep.subr.bf16.mxu0 %v10100
        %11524 = vmatpush2.bf16.msra.mxu0 %v10099
        %11525 = vmatprep.subr.bf16.mxu0 %v10096
        %11526 = vmatpush2.bf16.msra.mxu0 %v10095
        %11527 = vmatprep.subr.bf16.mxu0 %v10092
        %11528 = vmatpush2.bf16.msra.mxu0 %v10091
        %11529 = vmatprep.subr.bf16.mxu0 %v10088
        %11530 = vmatpush2.bf16.msra.mxu0 %v10087
        %11531 = vmatprep.subr.bf16.mxu0 %v10084
        %11532 = vmatpush2.bf16.msra.mxu0 %v10083
        %11533 = vmatprep.mubr.bf16.mxu0 %v7488
        %11534 = vmatmul.mubr.bf16.gmra.mxu0 %v7476
        %v11535 = vpop.f32.mrf.mxu0
        %v11536 = vadd.f32 %v11495, %v11535
        %v11537 = vpop.f32.mrf.mxu0
        %v11538 = vadd.f32 %v11497, %v11537
        %v11539 = vpop.f32.mrf.mxu0
        %v11540 = vpop.f32.mrf.mxu0
        %11541 = vdwg.mxu0
        %11542 = vmatprep.subr.bf16.mxu0 %v10144
        %11543 = vmatpush1.bf16.msra.mxu0 %v10143
        %11544 = vmatprep.subr.bf16.mxu0 %v10140
        %11545 = vmatpush1.bf16.msra.mxu0 %v10139
        %11546 = vmatprep.subr.bf16.mxu0 %v10136
        %11547 = vmatpush1.bf16.msra.mxu0 %v10135
        %11548 = vmatprep.subr.bf16.mxu0 %v10132
        %11549 = vmatpush1.bf16.msra.mxu0 %v10131
        %11550 = vmatprep.subr.bf16.mxu0 %v10128
        %11551 = vmatpush1.bf16.msra.mxu0 %v10127
        %11552 = vmatprep.subr.bf16.mxu0 %v10124
        %11553 = vmatpush1.bf16.msra.mxu0 %v10123
        %11554 = vmatprep.subr.bf16.mxu0 %v10120
        %11555 = vmatpush1.bf16.msra.mxu0 %v10119
        %11556 = vmatprep.subr.bf16.mxu0 %v10116
        %11557 = vmatpush1.bf16.msra.mxu0 %v10115
        %11558 = vmatprep.subr.bf16.mxu0 %v10176
        %11559 = vmatpush2.bf16.msra.mxu0 %v10175
        %11560 = vmatprep.subr.bf16.mxu0 %v10172
        %11561 = vmatpush2.bf16.msra.mxu0 %v10171
        %11562 = vmatprep.subr.bf16.mxu0 %v10168
        %11563 = vmatpush2.bf16.msra.mxu0 %v10167
        %11564 = vmatprep.subr.bf16.mxu0 %v10164
        %11565 = vmatpush2.bf16.msra.mxu0 %v10163
        %11566 = vmatprep.subr.bf16.mxu0 %v10160
        %11567 = vmatpush2.bf16.msra.mxu0 %v10159
        %11568 = vmatprep.subr.bf16.mxu0 %v10156
        %11569 = vmatpush2.bf16.msra.mxu0 %v10155
        %11570 = vmatprep.subr.bf16.mxu0 %v10152
        %11571 = vmatpush2.bf16.msra.mxu0 %v10151
        %11572 = vmatprep.subr.bf16.mxu0 %v10148
        %11573 = vmatpush2.bf16.msra.mxu0 %v10147
        %11574 = vmatprep.mubr.bf16.mxu0 %v7499
        %11575 = vmatmul.mubr.bf16.gmra.mxu0 %v7496
        %v11576 = vpop.f32.mrf.mxu0
        %v11577 = vadd.f32 %v11536, %v11576
        %v11578 = vpop.f32.mrf.mxu0
        %v11579 = vadd.f32 %v11538, %v11578
        %v11580 = vpop.f32.mrf.mxu0
        %v11581 = vpop.f32.mrf.mxu0
        %11582 = vdwg.mxu0
        %11583 = vmatprep.subr.bf16.mxu0 %v10208
        %11584 = vmatpush1.bf16.msra.mxu0 %v10207
        %11585 = vmatprep.subr.bf16.mxu0 %v10204
        %11586 = vmatpush1.bf16.msra.mxu0 %v10203
        %11587 = vmatprep.subr.bf16.mxu0 %v10200
        %11588 = vmatpush1.bf16.msra.mxu0 %v10199
        %11589 = vmatprep.subr.bf16.mxu0 %v10196
        %11590 = vmatpush1.bf16.msra.mxu0 %v10195
        %11591 = vmatprep.subr.bf16.mxu0 %v10192
        %11592 = vmatpush1.bf16.msra.mxu0 %v10191
        %11593 = vmatprep.subr.bf16.mxu0 %v10188
        %11594 = vmatpush1.bf16.msra.mxu0 %v10187
        %11595 = vmatprep.subr.bf16.mxu0 %v10184
        %11596 = vmatpush1.bf16.msra.mxu0 %v10183
        %11597 = vmatprep.subr.bf16.mxu0 %v10180
        %11598 = vmatpush1.bf16.msra.mxu0 %v10179
        %11599 = vmatprep.subr.bf16.mxu0 %v10240
        %11600 = vmatpush2.bf16.msra.mxu0 %v10239
        %11601 = vmatprep.subr.bf16.mxu0 %v10236
        %11602 = vmatpush2.bf16.msra.mxu0 %v10235
        %11603 = vmatprep.subr.bf16.mxu0 %v10232
        %11604 = vmatpush2.bf16.msra.mxu0 %v10231
        %11605 = vmatprep.subr.bf16.mxu0 %v10228
        %11606 = vmatpush2.bf16.msra.mxu0 %v10227
        %11607 = vmatprep.subr.bf16.mxu0 %v10224
        %11608 = vmatpush2.bf16.msra.mxu0 %v10223
        %11609 = vmatprep.subr.bf16.mxu0 %v10220
        %11610 = vmatpush2.bf16.msra.mxu0 %v10219
        %11611 = vmatprep.subr.bf16.mxu0 %v10216
        %11612 = vmatpush2.bf16.msra.mxu0 %v10215
        %11613 = vmatprep.subr.bf16.mxu0 %v10212
        %11614 = vmatpush2.bf16.msra.mxu0 %v10211
        %11615 = vmatprep.mubr.bf16.mxu0 %v7516
        %11616 = vmatmul.mubr.bf16.gmra.mxu0 %v7509
        %v11617 = vpop.f32.mrf.mxu0
        %v11618 = vadd.f32 %v11577, %v11617
        %v11619 = vpop.f32.mrf.mxu0
        %v11620 = vadd.f32 %v11579, %v11619
        %v11621 = vpop.f32.mrf.mxu0
        %v11622 = vpop.f32.mrf.mxu0
        %11623 = vdwg.mxu0
        %11624 = vmatprep.subr.bf16.mxu0 %v10272
        %11625 = vmatpush1.bf16.msra.mxu0 %v10271
        %11626 = vmatprep.subr.bf16.mxu0 %v10268
        %11627 = vmatpush1.bf16.msra.mxu0 %v10267
        %11628 = vmatprep.subr.bf16.mxu0 %v10264
        %11629 = vmatpush1.bf16.msra.mxu0 %v10263
        %11630 = vmatprep.subr.bf16.mxu0 %v10260
        %11631 = vmatpush1.bf16.msra.mxu0 %v10259
        %11632 = vmatprep.subr.bf16.mxu0 %v10256
        %11633 = vmatpush1.bf16.msra.mxu0 %v10255
        %11634 = vmatprep.subr.bf16.mxu0 %v10252
        %11635 = vmatpush1.bf16.msra.mxu0 %v10251
        %11636 = vmatprep.subr.bf16.mxu0 %v10248
        %11637 = vmatpush1.bf16.msra.mxu0 %v10247
        %11638 = vmatprep.subr.bf16.mxu0 %v10244
        %11639 = vmatpush1.bf16.msra.mxu0 %v10243
        %11640 = vmatprep.subr.bf16.mxu0 %v10304
        %11641 = vmatpush2.bf16.msra.mxu0 %v10303
        %11642 = vmatprep.subr.bf16.mxu0 %v10300
        %11643 = vmatpush2.bf16.msra.mxu0 %v10299
        %11644 = vmatprep.subr.bf16.mxu0 %v10296
        %11645 = vmatpush2.bf16.msra.mxu0 %v10295
        %11646 = vmatprep.subr.bf16.mxu0 %v10292
        %11647 = vmatpush2.bf16.msra.mxu0 %v10291
        %11648 = vmatprep.subr.bf16.mxu0 %v10288
        %11649 = vmatpush2.bf16.msra.mxu0 %v10287
        %11650 = vmatprep.subr.bf16.mxu0 %v10284
        %11651 = vmatpush2.bf16.msra.mxu0 %v10283
        %11652 = vmatprep.subr.bf16.mxu0 %v10280
        %11653 = vmatpush2.bf16.msra.mxu0 %v10279
        %11654 = vmatprep.subr.bf16.mxu0 %v10276
        %11655 = vmatpush2.bf16.msra.mxu0 %v10275
        %11656 = vmatprep.mubr.bf16.mxu0 %v7522
        %11657 = vmatmul.mubr.bf16.gmra.mxu0 %v7521
        %v11658 = vpop.f32.mrf.mxu0
        %v11659 = vadd.f32 %v11618, %v11658
        %v11660 = vpop.f32.mrf.mxu0
        %v11661 = vadd.f32 %v11620, %v11660
        %v11662 = vpop.f32.mrf.mxu0
        %v11663 = vpop.f32.mrf.mxu0
        %11664 = vdwg.mxu0
        %11665 = vmatprep.subr.bf16.mxu0 %v10336
        %11666 = vmatpush1.bf16.msra.mxu0 %v10335
        %11667 = vmatprep.subr.bf16.mxu0 %v10332
        %11668 = vmatpush1.bf16.msra.mxu0 %v10331
        %11669 = vmatprep.subr.bf16.mxu0 %v10328
        %11670 = vmatpush1.bf16.msra.mxu0 %v10327
        %11671 = vmatprep.subr.bf16.mxu0 %v10324
        %11672 = vmatpush1.bf16.msra.mxu0 %v10323
        %11673 = vmatprep.subr.bf16.mxu0 %v10320
        %11674 = vmatpush1.bf16.msra.mxu0 %v10319
        %11675 = vmatprep.subr.bf16.mxu0 %v10316
        %11676 = vmatpush1.bf16.msra.mxu0 %v10315
        %11677 = vmatprep.subr.bf16.mxu0 %v10312
        %11678 = vmatpush1.bf16.msra.mxu0 %v10311
        %11679 = vmatprep.subr.bf16.mxu0 %v10308
        %11680 = vmatpush1.bf16.msra.mxu0 %v10307
        %11681 = vmatprep.subr.bf16.mxu0 %v10368
        %11682 = vmatpush2.bf16.msra.mxu0 %v10367
        %11683 = vmatprep.subr.bf16.mxu0 %v10364
        %11684 = vmatpush2.bf16.msra.mxu0 %v10363
        %11685 = vmatprep.subr.bf16.mxu0 %v10360
        %11686 = vmatpush2.bf16.msra.mxu0 %v10359
        %11687 = vmatprep.subr.bf16.mxu0 %v10356
        %11688 = vmatpush2.bf16.msra.mxu0 %v10355
        %11689 = vmatprep.subr.bf16.mxu0 %v10352
        %11690 = vmatpush2.bf16.msra.mxu0 %v10351
        %11691 = vmatprep.subr.bf16.mxu0 %v10348
        %11692 = vmatpush2.bf16.msra.mxu0 %v10347
        %11693 = vmatprep.subr.bf16.mxu0 %v10344
        %11694 = vmatpush2.bf16.msra.mxu0 %v10343
        %11695 = vmatprep.subr.bf16.mxu0 %v10340
        %11696 = vmatpush2.bf16.msra.mxu0 %v10339
        %11697 = vmatprep.mubr.bf16.mxu0 %v7540
        %11698 = vmatmul.mubr.bf16.gmra.mxu0 %v7532
        %v11699 = vpop.f32.mrf.mxu0
        %v11700 = vadd.f32 %v11659, %v11699
        %v11701 = vpop.f32.mrf.mxu0
        %v11702 = vadd.f32 %v11661, %v11701
        %v11703 = vpop.f32.mrf.mxu0
        %v11704 = vpop.f32.mrf.mxu0
        %11705 = vdwg.mxu0
        %11706 = vmatprep.subr.bf16.mxu0 %v10400
        %11707 = vmatpush1.bf16.msra.mxu0 %v10399
        %11708 = vmatprep.subr.bf16.mxu0 %v10396
        %11709 = vmatpush1.bf16.msra.mxu0 %v10395
        %11710 = vmatprep.subr.bf16.mxu0 %v10392
        %11711 = vmatpush1.bf16.msra.mxu0 %v10391
        %11712 = vmatprep.subr.bf16.mxu0 %v10388
        %11713 = vmatpush1.bf16.msra.mxu0 %v10387
        %11714 = vmatprep.subr.bf16.mxu0 %v10384
        %11715 = vmatpush1.bf16.msra.mxu0 %v10383
        %11716 = vmatprep.subr.bf16.mxu0 %v10380
        %11717 = vmatpush1.bf16.msra.mxu0 %v10379
        %11718 = vmatprep.subr.bf16.mxu0 %v10376
        %11719 = vmatpush1.bf16.msra.mxu0 %v10375
        %11720 = vmatprep.subr.bf16.mxu0 %v10372
        %11721 = vmatpush1.bf16.msra.mxu0 %v10371
        %11722 = vmatprep.subr.bf16.mxu0 %v10432
        %11723 = vmatpush2.bf16.msra.mxu0 %v10431
        %11724 = vmatprep.subr.bf16.mxu0 %v10428
        %11725 = vmatpush2.bf16.msra.mxu0 %v10427
        %11726 = vmatprep.subr.bf16.mxu0 %v10424
        %11727 = vmatpush2.bf16.msra.mxu0 %v10423
        %11728 = vmatprep.subr.bf16.mxu0 %v10420
        %11729 = vmatpush2.bf16.msra.mxu0 %v10419
        %11730 = vmatprep.subr.bf16.mxu0 %v10416
        %11731 = vmatpush2.bf16.msra.mxu0 %v10415
        %11732 = vmatprep.subr.bf16.mxu0 %v10412
        %11733 = vmatpush2.bf16.msra.mxu0 %v10411
        %11734 = vmatprep.subr.bf16.mxu0 %v10408
        %11735 = vmatpush2.bf16.msra.mxu0 %v10407
        %11736 = vmatprep.subr.bf16.mxu0 %v10404
        %11737 = vmatpush2.bf16.msra.mxu0 %v10403
        %11738 = vmatprep.mubr.bf16.mxu0 %v7550
        %11739 = vmatmul.mubr.bf16.gmra.mxu0 %v7547
        %v11740 = vpop.f32.mrf.mxu0
        %v11741 = vadd.f32 %v11700, %v11740
        %v11742 = vpop.f32.mrf.mxu0
        %v11743 = vadd.f32 %v11702, %v11742
        %v11744 = vpop.f32.mrf.mxu0
        %v11745 = vpop.f32.mrf.mxu0
        %11746 = vdwg.mxu0
        %v11751 = vrot.slane %v11372, 1
        %v11752 = vrot.slane %v11374, 1
        %v11753 = vrot.slane %v11741, 1
        %v11754 = vrot.slane %v11743, 1
        %v11759 = vmax.f32 %v11372, %v11751
        %v11760 = vmax.f32 %v11374, %v11752
        %v11761 = vmax.f32 %v11741, %v11753
        %v11762 = vmax.f32 %v11743, %v11754
        %v11767 = vrot.slane %v11759, 5
        %v11768 = vrot.slane %v11760, 5
        %v11769 = vrot.slane %v11761, 5
        %v11770 = vrot.slane %v11762, 5
        %v11775 = vmax.f32 %v11759, %v11767
        %v11776 = vmax.f32 %v11760, %v11768
        %v11777 = vmax.f32 %v11761, %v11769
        %v11778 = vmax.f32 %v11762, %v11770
        %v11779 = vld [vmem:[%s10] sm:$0xf]
        %v11781 = vlaneseq
        %v11782 = vshrl.u32 %v11781, 7
        %v11783 = vsub.s32 0, %v11782
        %v11784 = vrot.slane %v11779, %v11783
        %v11785 = vlaneseq
        %v11786 = vshrl.u32 %v11785, 7
        %v11787 = vsub.s32 1, %v11786
        %v11788 = vrot.slane %v11779, %v11787
        %v11789 = vlaneseq
        %v11790 = vshrl.u32 %v11789, 7
        %v11791 = vsub.s32 2, %v11790
        %v11792 = vrot.slane %v11779, %v11791
        %v11793 = vlaneseq
        %v11794 = vshrl.u32 %v11793, 7
        %v11795 = vsub.s32 3, %v11794
        %v11796 = vrot.slane %v11779, %v11795
        %v11801 = vadd.f32 %v11775, %v11784
        %v11802 = vadd.f32 %v11776, %v11788
        %v11803 = vadd.f32 %v11777, %v11792
        %v11804 = vadd.f32 %v11778, %v11796
        %vm11805 = vcmp.ge.f32.partialorder %v11801, 0.0
        %vm11806 = vcmp.ge.f32.partialorder %v11802, 0.0
        %vm11807 = vcmp.ge.f32.partialorder %v11803, 0.0
        %vm11808 = vcmp.ge.f32.partialorder %v11804, 0.0
        %v11809 = vmul.f32 %v11801, 0.2
        %v11810 = vmul.f32 %v11802, 0.2
        %v11811 = vmul.f32 %v11803, 0.2
        %v11812 = vmul.f32 %v11804, 0.2
        %v11813 = vsel %vm11805, %v11801, %v11809
        %v11814 = vsel %vm11806, %v11802, %v11810
        %v11815 = vsel %vm11807, %v11803, %v11811
        %v11816 = vsel %vm11808, %v11804, %v11812
        %v11817 = vpack.c.bf16 %v11813, %v11813
        %v11818 = vpack.c.bf16 %v11814, %v11814
        %v11819 = vpack.c.bf16 %v11815, %v11815
        %v11820 = vpack.c.bf16 %v11816, %v11816
        %v11821 = vld [vmem:[%s11] sm:$0xf]
        %v11822 = vld [vmem:[%s11 + $0x4] sm:$0xf]
        %v11823 = vld [vmem:[%s11 + $0x8] sm:$0xf]
        %v11824 = vld [vmem:[%s11 + $0xc] sm:$0xf]
        %v11825 = vld [vmem:[%s11 + $0x10] sm:$0xf]
        %v11826 = vld [vmem:[%s11 + $0x14] sm:$0xf]
        %v11827 = vld [vmem:[%s11 + $0x18] sm:$0xf]
        %v11828 = vld [vmem:[%s11 + $0x1c] sm:$0xf]
        %v11829 = vld [vmem:[%s11 + $0x20] sm:$0xf]
        %v11830 = vld [vmem:[%s11 + $0x24] sm:$0xf]
        %v11831 = vld [vmem:[%s11 + $0x28] sm:$0xf]
        %v11832 = vld [vmem:[%s11 + $0x2c] sm:$0xf]
        %v11833 = vld [vmem:[%s11 + $0x30] sm:$0xf]
        %v11834 = vld [vmem:[%s11 + $0x34] sm:$0xf]
        %v11835 = vld [vmem:[%s11 + $0x38] sm:$0xf]
        %v11836 = vld [vmem:[%s11 + $0x3c] sm:$0xf]
        %v11837 = vld [vmem:[%s11 + $0x40] sm:$0xf]
        %v11838 = vld [vmem:[%s11 + $0x44] sm:$0xf]
        %v11839 = vld [vmem:[%s11 + $0x48] sm:$0xf]
        %v11840 = vld [vmem:[%s11 + $0x4c] sm:$0xf]
        %v11841 = vld [vmem:[%s11 + $0x50] sm:$0xf]
        %v11842 = vld [vmem:[%s11 + $0x54] sm:$0xf]
        %v11843 = vld [vmem:[%s11 + $0x58] sm:$0xf]
        %v11844 = vld [vmem:[%s11 + $0x5c] sm:$0xf]
        %v11845 = vld [vmem:[%s11 + $0x60] sm:$0xf]
        %v11846 = vld [vmem:[%s11 + $0x64] sm:$0xf]
        %v11847 = vld [vmem:[%s11 + $0x68] sm:$0xf]
        %v11848 = vld [vmem:[%s11 + $0x6c] sm:$0xf]
        %v11849 = vld [vmem:[%s11 + $0x70] sm:$0xf]
        %v11850 = vld [vmem:[%s11 + $0x74] sm:$0xf]
        %v11851 = vld [vmem:[%s11 + $0x78] sm:$0xf]
        %v11852 = vld [vmem:[%s11 + $0x7c] sm:$0xf]
        %v11853 = vld [vmem:[%s11 + $0x80] sm:$0xf]
        %v11854 = vld [vmem:[%s11 + $0x84] sm:$0xf]
        %v11855 = vld [vmem:[%s11 + $0x88] sm:$0xf]
        %v11856 = vld [vmem:[%s11 + $0x8c] sm:$0xf]
        %v11857 = vld [vmem:[%s11 + $0x90] sm:$0xf]
        %v11858 = vld [vmem:[%s11 + $0x94] sm:$0xf]
        %v11859 = vld [vmem:[%s11 + $0x98] sm:$0xf]
        %v11860 = vld [vmem:[%s11 + $0x9c] sm:$0xf]
        %v11861 = vld [vmem:[%s11 + $0xa0] sm:$0xf]
        %v11862 = vld [vmem:[%s11 + $0xa4] sm:$0xf]
        %v11863 = vld [vmem:[%s11 + $0xa8] sm:$0xf]
        %v11864 = vld [vmem:[%s11 + $0xac] sm:$0xf]
        %v11865 = vld [vmem:[%s11 + $0xb0] sm:$0xf]
        %v11866 = vld [vmem:[%s11 + $0xb4] sm:$0xf]
        %v11867 = vld [vmem:[%s11 + $0xb8] sm:$0xf]
        %v11868 = vld [vmem:[%s11 + $0xbc] sm:$0xf]
        %v11869 = vld [vmem:[%s11 + $0xc0] sm:$0xf]
        %v11870 = vld [vmem:[%s11 + $0xc4] sm:$0xf]
        %v11871 = vld [vmem:[%s11 + $0xc8] sm:$0xf]
        %v11872 = vld [vmem:[%s11 + $0xcc] sm:$0xf]
        %v11873 = vld [vmem:[%s11 + $0xd0] sm:$0xf]
        %v11874 = vld [vmem:[%s11 + $0xd4] sm:$0xf]
        %v11875 = vld [vmem:[%s11 + $0xd8] sm:$0xf]
        %v11876 = vld [vmem:[%s11 + $0xdc] sm:$0xf]
        %v11877 = vld [vmem:[%s11 + $0xe0] sm:$0xf]
        %v11878 = vld [vmem:[%s11 + $0xe4] sm:$0xf]
        %v11879 = vld [vmem:[%s11 + $0xe8] sm:$0xf]
        %v11880 = vld [vmem:[%s11 + $0xec] sm:$0xf]
        %v11881 = vld [vmem:[%s11 + $0xf0] sm:$0xf]
        %v11882 = vld [vmem:[%s11 + $0xf4] sm:$0xf]
        %v11883 = vld [vmem:[%s11 + $0xf8] sm:$0xf]
        %v11884 = vld [vmem:[%s11 + $0xfc] sm:$0xf]
        %v11885 = vld [vmem:[%s12] sm:$0x1]
        %v11950 = vunpack.c.l.b16 %v11821
        %v11951 = vunpack.c.l.b16 %v11822
        %v11952 = vunpack.c.l.b16 %v11823
        %v11953 = vunpack.c.l.b16 %v11824
        %v11954 = vunpack.c.l.b16 %v11825
        %v11955 = vunpack.c.l.b16 %v11826
        %v11956 = vunpack.c.l.b16 %v11827
        %v11957 = vunpack.c.l.b16 %v11828
        %v11958 = vunpack.c.l.b16 %v11829
        %v11959 = vunpack.c.l.b16 %v11830
        %v11960 = vunpack.c.l.b16 %v11831
        %v11961 = vunpack.c.l.b16 %v11832
        %v11962 = vunpack.c.l.b16 %v11833
        %v11963 = vunpack.c.l.b16 %v11834
        %v11964 = vunpack.c.l.b16 %v11835
        %v11965 = vunpack.c.l.b16 %v11836
        %v11966 = vunpack.c.l.b16 %v11837
        %v11967 = vunpack.c.l.b16 %v11838
        %v11968 = vunpack.c.l.b16 %v11839
        %v11969 = vunpack.c.l.b16 %v11840
        %v11970 = vunpack.c.l.b16 %v11841
        %v11971 = vunpack.c.l.b16 %v11842
        %v11972 = vunpack.c.l.b16 %v11843
        %v11973 = vunpack.c.l.b16 %v11844
        %v11974 = vunpack.c.l.b16 %v11845
        %v11975 = vunpack.c.l.b16 %v11846
        %v11976 = vunpack.c.l.b16 %v11847
        %v11977 = vunpack.c.l.b16 %v11848
        %v11978 = vunpack.c.l.b16 %v11849
        %v11979 = vunpack.c.l.b16 %v11850
        %v11980 = vunpack.c.l.b16 %v11851
        %v11981 = vunpack.c.l.b16 %v11852
        %v11982 = vunpack.c.l.b16 %v11853
        %v11983 = vunpack.c.l.b16 %v11854
        %v11984 = vunpack.c.l.b16 %v11855
        %v11985 = vunpack.c.l.b16 %v11856
        %v11986 = vunpack.c.l.b16 %v11857
        %v11987 = vunpack.c.l.b16 %v11858
        %v11988 = vunpack.c.l.b16 %v11859
        %v11989 = vunpack.c.l.b16 %v11860
        %v11990 = vunpack.c.l.b16 %v11861
        %v11991 = vunpack.c.l.b16 %v11862
        %v11992 = vunpack.c.l.b16 %v11863
        %v11993 = vunpack.c.l.b16 %v11864
        %v11994 = vunpack.c.l.b16 %v11865
        %v11995 = vunpack.c.l.b16 %v11866
        %v11996 = vunpack.c.l.b16 %v11867
        %v11997 = vunpack.c.l.b16 %v11868
        %v11998 = vunpack.c.l.b16 %v11869
        %v11999 = vunpack.c.l.b16 %v11870
        %v12000 = vunpack.c.l.b16 %v11871
        %v12001 = vunpack.c.l.b16 %v11872
        %v12002 = vunpack.c.l.b16 %v11873
        %v12003 = vunpack.c.l.b16 %v11874
        %v12004 = vunpack.c.l.b16 %v11875
        %v12005 = vunpack.c.l.b16 %v11876
        %v12006 = vunpack.c.l.b16 %v11877
        %v12007 = vunpack.c.l.b16 %v11878
        %v12008 = vunpack.c.l.b16 %v11879
        %v12009 = vunpack.c.l.b16 %v11880
        %v12010 = vunpack.c.l.b16 %v11881
        %v12011 = vunpack.c.l.b16 %v11882
        %v12012 = vunpack.c.l.b16 %v11883
        %v12013 = vunpack.c.l.b16 %v11884
        %v12014 = vpack.c.b16 %v11951, %v11950
        %v12015 = vpack.c.b16 %v11953, %v11952
        %v12016 = vpack.c.b16 %v11955, %v11954
        %v12017 = vpack.c.b16 %v11957, %v11956
        %v12018 = vpack.c.b16 %v11959, %v11958
        %v12019 = vpack.c.b16 %v11961, %v11960
        %v12020 = vpack.c.b16 %v11963, %v11962
        %v12021 = vpack.c.b16 %v11965, %v11964
        %v12022 = vpack.c.b16 %v11967, %v11966
        %v12023 = vpack.c.b16 %v11969, %v11968
        %v12024 = vpack.c.b16 %v11971, %v11970
        %v12025 = vpack.c.b16 %v11973, %v11972
        %v12026 = vpack.c.b16 %v11975, %v11974
        %v12027 = vpack.c.b16 %v11977, %v11976
        %v12028 = vpack.c.b16 %v11979, %v11978
        %v12029 = vpack.c.b16 %v11981, %v11980
        %v12030 = vpack.c.b16 %v11983, %v11982
        %v12031 = vpack.c.b16 %v11985, %v11984
        %v12032 = vpack.c.b16 %v11987, %v11986
        %v12033 = vpack.c.b16 %v11989, %v11988
        %v12034 = vpack.c.b16 %v11991, %v11990
        %v12035 = vpack.c.b16 %v11993, %v11992
        %v12036 = vpack.c.b16 %v11995, %v11994
        %v12037 = vpack.c.b16 %v11997, %v11996
        %v12038 = vpack.c.b16 %v11999, %v11998
        %v12039 = vpack.c.b16 %v12001, %v12000
        %v12040 = vpack.c.b16 %v12003, %v12002
        %v12041 = vpack.c.b16 %v12005, %v12004
        %v12042 = vpack.c.b16 %v12007, %v12006
        %v12043 = vpack.c.b16 %v12009, %v12008
        %v12044 = vpack.c.b16 %v12011, %v12010
        %v12045 = vpack.c.b16 %v12013, %v12012
        %12078 = vmatprep.subr.bf16.mxu0 0
        %12079 = vmatpush1.bf16.msra.mxu0 %v12021
        %12080 = vmatprep.subr.bf16.mxu0 0
        %12081 = vmatpush1.bf16.msra.mxu0 %v12020
        %12082 = vmatprep.subr.bf16.mxu0 0
        %12083 = vmatpush1.bf16.msra.mxu0 %v12019
        %12084 = vmatprep.subr.bf16.mxu0 0
        %12085 = vmatpush1.bf16.msra.mxu0 %v12018
        %12086 = vmatprep.subr.bf16.mxu0 0
        %12087 = vmatpush1.bf16.msra.mxu0 %v12017
        %12088 = vmatprep.subr.bf16.mxu0 0
        %12089 = vmatpush1.bf16.msra.mxu0 %v12016
        %12090 = vmatprep.subr.bf16.mxu0 0
        %12091 = vmatpush1.bf16.msra.mxu0 %v12015
        %12092 = vmatprep.subr.bf16.mxu0 0
        %12093 = vmatpush1.bf16.msra.mxu0 %v12014
        %12094 = vmatprep.subr.bf16.mxu0 0
        %12095 = vmatpush2.bf16.msra.mxu0 %v12029
        %12096 = vmatprep.subr.bf16.mxu0 0
        %12097 = vmatpush2.bf16.msra.mxu0 %v12028
        %12098 = vmatprep.subr.bf16.mxu0 0
        %12099 = vmatpush2.bf16.msra.mxu0 %v12027
        %12100 = vmatprep.subr.bf16.mxu0 0
        %12101 = vmatpush2.bf16.msra.mxu0 %v12026
        %12102 = vmatprep.subr.bf16.mxu0 0
        %12103 = vmatpush2.bf16.msra.mxu0 %v12025
        %12104 = vmatprep.subr.bf16.mxu0 0
        %12105 = vmatpush2.bf16.msra.mxu0 %v12024
        %12106 = vmatprep.subr.bf16.mxu0 0
        %12107 = vmatpush2.bf16.msra.mxu0 %v12023
        %12108 = vmatprep.subr.bf16.mxu0 0
        %12109 = vmatpush2.bf16.msra.mxu0 %v12022
        %12110 = vmatprep.mubr.bf16.mxu0 %v11818
        %12111 = vmatmul.mubr.bf16.gmra.mxu0 %v11817
        %v12112 = vpop.f32.mrf.mxu0
        %v12113 = vadd.f32 %v11885, %v12112
        %v12114 = vpop.f32.mrf.mxu0
        %v12115 = vpop.f32.mrf.mxu0
        %v12116 = vpop.f32.mrf.mxu0
        %12117 = vdwg.mxu0
        %12118 = vmatprep.subr.bf16.mxu0 0
        %12119 = vmatpush1.bf16.msra.mxu0 %v12037
        %12120 = vmatprep.subr.bf16.mxu0 0
        %12121 = vmatpush1.bf16.msra.mxu0 %v12036
        %12122 = vmatprep.subr.bf16.mxu0 0
        %12123 = vmatpush1.bf16.msra.mxu0 %v12035
        %12124 = vmatprep.subr.bf16.mxu0 0
        %12125 = vmatpush1.bf16.msra.mxu0 %v12034
        %12126 = vmatprep.subr.bf16.mxu0 0
        %12127 = vmatpush1.bf16.msra.mxu0 %v12033
        %12128 = vmatprep.subr.bf16.mxu0 0
        %12129 = vmatpush1.bf16.msra.mxu0 %v12032
        %12130 = vmatprep.subr.bf16.mxu0 0
        %12131 = vmatpush1.bf16.msra.mxu0 %v12031
        %12132 = vmatprep.subr.bf16.mxu0 0
        %12133 = vmatpush1.bf16.msra.mxu0 %v12030
        %12134 = vmatprep.subr.bf16.mxu0 0
        %12135 = vmatpush2.bf16.msra.mxu0 %v12045
        %12136 = vmatprep.subr.bf16.mxu0 0
        %12137 = vmatpush2.bf16.msra.mxu0 %v12044
        %12138 = vmatprep.subr.bf16.mxu0 0
        %12139 = vmatpush2.bf16.msra.mxu0 %v12043
        %12140 = vmatprep.subr.bf16.mxu0 0
        %12141 = vmatpush2.bf16.msra.mxu0 %v12042
        %12142 = vmatprep.subr.bf16.mxu0 0
        %12143 = vmatpush2.bf16.msra.mxu0 %v12041
        %12144 = vmatprep.subr.bf16.mxu0 0
        %12145 = vmatpush2.bf16.msra.mxu0 %v12040
        %12146 = vmatprep.subr.bf16.mxu0 0
        %12147 = vmatpush2.bf16.msra.mxu0 %v12039
        %12148 = vmatprep.subr.bf16.mxu0 0
        %12149 = vmatpush2.bf16.msra.mxu0 %v12038
        %12150 = vmatprep.mubr.bf16.mxu0 %v11820
        %12151 = vmatmul.mubr.bf16.gmra.mxu0 %v11819
        %v12152 = vpop.f32.mrf.mxu0
        %v12153 = vadd.f32 %v12113, %v12152
        %v12154 = vpop.f32.mrf.mxu0
        %v12155 = vpop.f32.mrf.mxu0
        %v12156 = vpop.f32.mrf.mxu0
        %12157 = vdwg.mxu0
        %12158 = vst [vmem:[%s517] sm:$0x1] %v12153
        %v12159 = vpack.c.bf16 %v7342, %v7342
        %v12160 = vpack.c.bf16 %v7343, %v7343
        %v12161 = vld [vmem:[%s13] sm:$0xf]
        %v12162 = vld [vmem:[%s13 + $0x4] sm:$0xf]
        %v12163 = vld [vmem:[%s13 + $0x8] sm:$0xf]
        %v12164 = vld [vmem:[%s13 + $0xc] sm:$0xf]
        %v12165 = vld [vmem:[%s13 + $0x10] sm:$0xf]
        %v12166 = vld [vmem:[%s13 + $0x14] sm:$0xf]
        %v12167 = vld [vmem:[%s13 + $0x18] sm:$0xf]
        %v12168 = vld [vmem:[%s13 + $0x1c] sm:$0xf]
        %v12169 = vld [vmem:[%s13 + $0x20] sm:$0xf]
        %v12170 = vld [vmem:[%s13 + $0x24] sm:$0xf]
        %v12171 = vld [vmem:[%s13 + $0x28] sm:$0xf]
        %v12172 = vld [vmem:[%s13 + $0x2c] sm:$0xf]
        %v12173 = vld [vmem:[%s13 + $0x30] sm:$0xf]
        %v12174 = vld [vmem:[%s13 + $0x34] sm:$0xf]
        %v12175 = vld [vmem:[%s13 + $0x38] sm:$0xf]
        %v12176 = vld [vmem:[%s13 + $0x3c] sm:$0xf]
        %v12177 = vld [vmem:[%s13 + $0x40] sm:$0xf]
        %v12178 = vld [vmem:[%s13 + $0x44] sm:$0xf]
        %v12179 = vld [vmem:[%s13 + $0x48] sm:$0xf]
        %v12180 = vld [vmem:[%s13 + $0x4c] sm:$0xf]
        %v12181 = vld [vmem:[%s13 + $0x50] sm:$0xf]
        %v12182 = vld [vmem:[%s13 + $0x54] sm:$0xf]
        %v12183 = vld [vmem:[%s13 + $0x58] sm:$0xf]
        %v12184 = vld [vmem:[%s13 + $0x5c] sm:$0xf]
        %v12185 = vld [vmem:[%s13 + $0x60] sm:$0xf]
        %v12186 = vld [vmem:[%s13 + $0x64] sm:$0xf]
        %v12187 = vld [vmem:[%s13 + $0x68] sm:$0xf]
        %v12188 = vld [vmem:[%s13 + $0x6c] sm:$0xf]
        %v12189 = vld [vmem:[%s13 + $0x70] sm:$0xf]
        %v12190 = vld [vmem:[%s13 + $0x74] sm:$0xf]
        %v12191 = vld [vmem:[%s13 + $0x78] sm:$0xf]
        %v12192 = vld [vmem:[%s13 + $0x7c] sm:$0xf]
        %v12193 = vld [vmem:[%s14] sm:$0x1]
        %v12226 = vunpack.c.l.b16 %v12161
        %v12227 = vunpack.c.l.b16 %v12162
        %v12228 = vunpack.c.l.b16 %v12163
        %v12229 = vunpack.c.l.b16 %v12164
        %v12230 = vunpack.c.l.b16 %v12165
        %v12231 = vunpack.c.l.b16 %v12166
        %v12232 = vunpack.c.l.b16 %v12167
        %v12233 = vunpack.c.l.b16 %v12168
        %v12234 = vunpack.c.l.b16 %v12169
        %v12235 = vunpack.c.l.b16 %v12170
        %v12236 = vunpack.c.l.b16 %v12171
        %v12237 = vunpack.c.l.b16 %v12172
        %v12238 = vunpack.c.l.b16 %v12173
        %v12239 = vunpack.c.l.b16 %v12174
        %v12240 = vunpack.c.l.b16 %v12175
        %v12241 = vunpack.c.l.b16 %v12176
        %v12242 = vunpack.c.l.b16 %v12177
        %v12243 = vunpack.c.l.b16 %v12178
        %v12244 = vunpack.c.l.b16 %v12179
        %v12245 = vunpack.c.l.b16 %v12180
        %v12246 = vunpack.c.l.b16 %v12181
        %v12247 = vunpack.c.l.b16 %v12182
        %v12248 = vunpack.c.l.b16 %v12183
        %v12249 = vunpack.c.l.b16 %v12184
        %v12250 = vunpack.c.l.b16 %v12185
        %v12251 = vunpack.c.l.b16 %v12186
        %v12252 = vunpack.c.l.b16 %v12187
        %v12253 = vunpack.c.l.b16 %v12188
        %v12254 = vunpack.c.l.b16 %v12189
        %v12255 = vunpack.c.l.b16 %v12190
        %v12256 = vunpack.c.l.b16 %v12191
        %v12257 = vunpack.c.l.b16 %v12192
        %v12258 = vpack.c.b16 %v12227, %v12226
        %v12259 = vpack.c.b16 %v12229, %v12228
        %v12260 = vpack.c.b16 %v12231, %v12230
        %v12261 = vpack.c.b16 %v12233, %v12232
        %v12262 = vpack.c.b16 %v12235, %v12234
        %v12263 = vpack.c.b16 %v12237, %v12236
        %v12264 = vpack.c.b16 %v12239, %v12238
        %v12265 = vpack.c.b16 %v12241, %v12240
        %v12266 = vpack.c.b16 %v12243, %v12242
        %v12267 = vpack.c.b16 %v12245, %v12244
        %v12268 = vpack.c.b16 %v12247, %v12246
        %v12269 = vpack.c.b16 %v12249, %v12248
        %v12270 = vpack.c.b16 %v12251, %v12250
        %v12271 = vpack.c.b16 %v12253, %v12252
        %v12272 = vpack.c.b16 %v12255, %v12254
        %v12273 = vpack.c.b16 %v12257, %v12256
        %12290 = vmatprep.subr.bf16.mxu0 0
        %12291 = vmatpush1.bf16.msra.mxu0 %v12265
        %12292 = vmatprep.subr.bf16.mxu0 0
        %12293 = vmatpush1.bf16.msra.mxu0 %v12264
        %12294 = vmatprep.subr.bf16.mxu0 0
        %12295 = vmatpush1.bf16.msra.mxu0 %v12263
        %12296 = vmatprep.subr.bf16.mxu0 0
        %12297 = vmatpush1.bf16.msra.mxu0 %v12262
        %12298 = vmatprep.subr.bf16.mxu0 0
        %12299 = vmatpush1.bf16.msra.mxu0 %v12261
        %12300 = vmatprep.subr.bf16.mxu0 0
        %12301 = vmatpush1.bf16.msra.mxu0 %v12260
        %12302 = vmatprep.subr.bf16.mxu0 0
        %12303 = vmatpush1.bf16.msra.mxu0 %v12259
        %12304 = vmatprep.subr.bf16.mxu0 0
        %12305 = vmatpush1.bf16.msra.mxu0 %v12258
        %12306 = vmatprep.subr.bf16.mxu0 0
        %12307 = vmatpush2.bf16.msra.mxu0 %v12273
        %12308 = vmatprep.subr.bf16.mxu0 0
        %12309 = vmatpush2.bf16.msra.mxu0 %v12272
        %12310 = vmatprep.subr.bf16.mxu0 0
        %12311 = vmatpush2.bf16.msra.mxu0 %v12271
        %12312 = vmatprep.subr.bf16.mxu0 0
        %12313 = vmatpush2.bf16.msra.mxu0 %v12270
        %12314 = vmatprep.subr.bf16.mxu0 0
        %12315 = vmatpush2.bf16.msra.mxu0 %v12269
        %12316 = vmatprep.subr.bf16.mxu0 0
        %12317 = vmatpush2.bf16.msra.mxu0 %v12268
        %12318 = vmatprep.subr.bf16.mxu0 0
        %12319 = vmatpush2.bf16.msra.mxu0 %v12267
        %12320 = vmatprep.subr.bf16.mxu0 0
        %12321 = vmatpush2.bf16.msra.mxu0 %v12266
        %12322 = vmatprep.mubr.bf16.mxu0 %v12160
        %12323 = vmatmul.mubr.bf16.gmra.mxu0 %v12159
        %v12324 = vpop.f32.mrf.mxu0
        %v12325 = vadd.f32 %v12193, %v12324
        %v12326 = vpop.f32.mrf.mxu0
        %v12327 = vpop.f32.mrf.mxu0
        %v12328 = vpop.f32.mrf.mxu0
        %12329 = vdwg.mxu0
        %12330 = vst [vmem:[%s523] sm:$0x1] %v12325
        %s12331 = sand.u32 %s362, 1
        %s12332 = scalar_lea.sflag [#allocation3], %s12331
        %s12333 = sand.u32 %s362, 1
        %s12334 = scalar_lea.vmem [#allocation2], %s12333
        %s12335 = sand.u32 %s388, 1
        %s12336 = scalar_lea.sflag [#allocation5], %s12335
        %s12337 = sand.u32 %s388, 1
        %s12338 = scalar_lea.vmem [#allocation4], %s12337
        // Predicated region
        $region81: #{_lambda_.1} parent=79 // pred_check
          %p12339 = pneg %p372
        $region82: #{_lambda_.1} parent=79 // pred_check_branch
          %12341 = sbr.rel (%p12339) target = $region84
        $region83: #{_lambda_.1} parent=79 // pred_region
          %s12343 = ssub.s32 16, 16
          %12344 = vsyncadd %s12332, %s12343
          %s12345 = smul.addr %s34, 16
          %s12346 = scalar_lea.hbm %s15, %s12345
          %s12348 = sshll.u32 %s12334, 4
          %s12349 = int_to_ptr.vmem [resolvable:$true] %s12348
          %12351 = dma.vmem_to_hbm [thread:$0]  %s12349, 16, %s12346, %s12332
        $region84: #{_lambda_.1} parent=79 // pred_fallthru
          _
        // Predicated region
        $region85: #{_lambda_.1} parent=79 // pred_check
          %p12352 = pneg %p398
        $region86: #{_lambda_.1} parent=79 // pred_check_branch
          %12354 = sbr.rel (%p12352) target = $region88
        $region87: #{_lambda_.1} parent=79 // pred_region
          %s12356 = ssub.s32 16, 16
          %12357 = vsyncadd %s12336, %s12356
          %s12358 = smul.addr %s34, 16
          %s12359 = scalar_lea.hbm %s16, %s12358
          %s12361 = sshll.u32 %s12338, 4
          %s12362 = int_to_ptr.vmem [resolvable:$true] %s12361
          %12364 = dma.vmem_to_hbm [thread:$0]  %s12362, 16, %s12359, %s12336
        $region88: #{_lambda_.1} parent=79 // pred_fallthru
          _
      $region80: #{_lambda_.1} parent=5 // pred_fallthru
        _
      %p12365 = scmp.le.s32.totalorder 2, %s29
      // Predicated region
      $region89: #{_lambda_.1} parent=5 // pred_check
        %p12366 = pneg %p12365
      $region90: #{_lambda_.1} parent=5 // pred_check_branch
        %12368 = sbr.rel (%p12366) target = $region92
      $region91: #{_lambda_.1} parent=5 // pred_region
        %s12369 = ssub.s32 %s29, 2
        // Predicated region
        $region93: #{_lambda_.1} parent=91 // pred_check
          %p12370 = pneg %p378
        $region94: #{_lambda_.1} parent=91 // pred_check_branch
          %12372 = sbr.rel (%p12370) target = $region96
        $region95: #{_lambda_.1} parent=91 // pred_region
          %s12373 = sand.u32 %s363, 1
          %s12374 = scalar_lea.sflag [#allocation3], %s12373
          %s12375 = sand.u32 %s363, 1
          %s12376 = scalar_lea.vmem [#allocation2], %s12375
          %12377 = dma.done %s12374, 16
        $region96: #{_lambda_.1} parent=91 // pred_fallthru
          _
        // Predicated region
        $region97: #{_lambda_.1} parent=91 // pred_check
          %p12378 = pneg %p404
        $region98: #{_lambda_.1} parent=91 // pred_check_branch
          %12380 = sbr.rel (%p12378) target = $region100
        $region99: #{_lambda_.1} parent=91 // pred_region
          %s12381 = sand.u32 %s389, 1
          %s12382 = scalar_lea.sflag [#allocation5], %s12381
          %s12383 = sand.u32 %s389, 1
          %s12384 = scalar_lea.vmem [#allocation4], %s12383
          %12385 = dma.done %s12382, 16
        $region100: #{_lambda_.1} parent=91 // pred_fallthru
          _
      $region92: #{_lambda_.1} parent=5 // pred_fallthru
        _
    $region6: #{_lambda_.1} parent=1 // loop_footer
      %s33 = sadd.s32 1, %s29
    $region7: #{_lambda_.1} parent=1 // loop_footer_branch
      %28 = sbr.rel target = $region3
    $region8: #{_lambda_.1} parent=1 // loop_exit
      _
    %12386 = vsyncpa [#allocation3], 1
    %s12387 = scalar_lea.sflag [#allocation3], 1
    %12388 = vsyncpa %s12387, 1
    %12389 = vsyncpa [#allocation5], 1
    %s12390 = scalar_lea.sflag [#allocation5], 1
    %12391 = vsyncpa %s12390, 1

</llo_original>
